<compile_context>
chip_gen: v5e
topology: v5e:2x2
jax: 0.10.0
libtpu: 0.0.40
codegen_flags: <defaults>
</compile_context>

<pallas_src>
import functools

import jax
import jax.numpy as jnp
from jax.experimental import pallas as pl
from jax.experimental.pallas import tpu as pltpu


TM = 512     # row tile of the kernel matrix
TN = 1024    # col tile of the kernel matrix (lane-dense multiple of 128; TM | TN)
SUB = 8      # sublane multiple for the (tiny) feature dim


def _rbf_noise_kernel(params_ref, xi_ref, xj_ref, ssqi_ref, ssqj_ref, out_ref):
    """One (TM, TN) tile of exp(-0.5*||xi-xj||^2/l^2) + noise_var on the diag.

    x has been pre-scaled by 1/lengthscale and ssq_* hold -0.5*||xs||^2, so the
    exponent is simply ssq_i + ssq_j + xs_i.xs_j (clamped at 0 for fp jitter).
    """
    noise_var = params_ref[0]                     # lik_std_noise ** 2 (SMEM)

    row0 = pl.program_id(0) * TM
    col0 = pl.program_id(1) * TN

    # MXU matmul contracting the feature axis of both operands (no .T).
    cross = jax.lax.dot_general(
        xi_ref[...], xj_ref[...], (((1,), (1,)), ((), ())),
        preferred_element_type=jnp.float32)       # (TM, TN)

    e = ssqi_ref[...] + ssqj_ref[...] + cross     # two broadcast adds
    k = jnp.exp(jnp.minimum(e, 0.0))              # f32 tile value

    # Does this tile's [row0,row0+TM) x [col0,col0+TN) window hit the diagonal?
    intersects = jnp.logical_and(row0 < col0 + TN, col0 < row0 + TM)

    @pl.when(intersects)
    def _():
        # One full iota (cols) vs. a (TM,1) row-iota shifted by row0 - col0.
        col_ids = jax.lax.broadcasted_iota(jnp.int32, (TM, TN), 1)
        row_ids = jax.lax.broadcasted_iota(jnp.int32, (TM, 1), 0) + (row0 - col0)
        bump = jnp.where(col_ids == row_ids, noise_var, jnp.float32(0.0))
        out_ref[...] = (k + bump).astype(out_ref.dtype)      # single f32->out store

    @pl.when(jnp.logical_not(intersects))
    def _():
        out_ref[...] = k.astype(out_ref.dtype)


@functools.partial(jax.jit, static_argnames=("out_dtype",))
def gp_train_forward(x, lengthscale, lik_std_noise, out_dtype=jnp.float32):
    """Knn_noise = RBF(x, x) + lik_std_noise^2 * I  via Pallas. Returns (n, n)."""
    n, d = x.shape
    n_pad = pl.cdiv(n, TN) * TN                   # TM | TN => covers both tilings
    dp = ((d + SUB - 1) // SUB) * SUB             # pad features to 8 sublanes only

    # Pre-scale x by 1/lengthscale in the O(N*d) wrapper (drops an O(N^2) mul).
    xs = x.astype(jnp.float32) * (1.0 / lengthscale)
    xp = jnp.zeros((n_pad, dp), jnp.float32).at[:n, :d].set(xs)

    ssq = -0.5 * jnp.sum(xp * xp, axis=-1)        # (n_pad,) pre-scaled row norms
    ssq_col = ssq.reshape(n_pad, 1)
    ssq_row = ssq.reshape(1, n_pad)

    noise_var = jnp.asarray(lik_std_noise, jnp.float32) ** 2
    params = noise_var.reshape(1)                 # -> SMEM via scalar prefetch

    grid = (pl.cdiv(n, TM), pl.cdiv(n, TN))
    out = pl.pallas_call(
        _rbf_noise_kernel,
        out_shape=jax.ShapeDtypeStruct((n, n), out_dtype),
        grid_spec=pltpu.PrefetchScalarGridSpec(
            num_scalar_prefetch=1,                # params -> SMEM
            grid=grid,
            in_specs=[
                # row tile of scaled x (block index only changes with i)
                pl.BlockSpec((TM, dp), lambda i, j, p: (i, 0)),
                # column tile of scaled x (pipelined, O(tile) VMEM)
                pl.BlockSpec((TN, dp), lambda i, j, p: (j, 0)),
                # pre-scaled squared norms as column / row vectors
                pl.BlockSpec((TM, 1), lambda i, j, p: (i, 0)),
                pl.BlockSpec((1, TN), lambda i, j, p: (0, j)),
            ],
            out_specs=pl.BlockSpec((TM, TN), lambda i, j, p: (i, j)),
        ),
        compiler_params=pltpu.CompilerParams(
            dimension_semantics=("parallel", "parallel"),
        ),
    )(params, xp, xp, ssq_col, ssq_row)
    return out


def gp_train_forward_ref(x, lengthscale, lik_std_noise):
    """Pure-JAX reference for correctness checking."""
    xs = x.astype(jnp.float32) / lengthscale
    d2 = jnp.sum((xs[:, None, :] - xs[None, :, :]) ** 2, axis=-1)
    k = jnp.exp(-0.5 * d2)
    return k + (lik_std_noise ** 2) * jnp.eye(x.shape[0], dtype=jnp.float32)


if __name__ == "__main__":
    # Deterministic parameter init mirroring the module's __init__:
    #   lik_std_noise = nn.Parameter(tensor([0.3]))
    #   RBFKernel() -> raw_lengthscale = 0 -> lengthscale = softplus(0) = ln(2)
    lik_std_noise = 0.3
    lengthscale = float(jnp.log(2.0))

    # Data like the script's x = cat(rand*0.3, rand*0.5+0.5), Ndata = 500.
    key = jax.random.PRNGKey(0)
    k1, k2 = jax.random.split(key)
    ndata = 500
    x_lo = jax.random.uniform(k1, (ndata, 1), jnp.float32) * 0.3
    x_hi = jax.random.uniform(k2, (ndata, 1), jnp.float32) * 0.5 + 0.5
    x = jnp.concatenate([x_lo, x_hi], axis=0)            # (1000, 1)

    ref = gp_train_forward_ref(x, lengthscale, lik_std_noise)

    # f32 path (default; safe for downstream Cholesky/CG).
    knn_noise = jax.block_until_ready(gp_train_forward(x, lengthscale, lik_std_noise))
    assert knn_noise.shape == (2 * ndata, 2 * ndata)
    assert jnp.allclose(knn_noise, ref, atol=2e-5, rtol=2e-5)

    # bf16 writeback path (halves N^2 HBM traffic on mem-bound v5e/v6e).
    knn_bf16 = jax.block_until_ready(
        gp_train_forward(x, lengthscale, lik_std_noise, out_dtype=jnp.bfloat16))
    assert jnp.allclose(knn_bf16.astype(jnp.float32), ref, atol=1e-2, rtol=1e-2)

    print("KERNEL_OK")
</pallas_src>

<mosaic_0001>
module attributes {stable_mosaic.version = 11 : i64} {
  func.func @_rbf_noise_kernel(%arg0: i32, %arg1: i32, %arg2: memref<1xf32, #tpu.memory_space<smem>>, %arg3: memref<512x8xf32, #tpu.memory_space<vmem>>, %arg4: memref<1024x8xf32, #tpu.memory_space<vmem>>, %arg5: memref<512x1xf32, #tpu.memory_space<vmem>>, %arg6: memref<1x1024xf32, #tpu.memory_space<vmem>>, %arg7: memref<512x1024xf32, #tpu.memory_space<vmem>>) attributes {dimension_semantics = [#tpu.dimension_semantics<parallel>, #tpu.dimension_semantics<parallel>], iteration_bounds = array<i64: 2, 1>, scalar_prefetch = 1 : i64, scratch_operands = 0 : i64, tpu.core_type = #tpu.core_type<tc>, window_params = [{transform_indices = @transform_0, window_bounds = array<i64: 512, 8>}, {transform_indices = @transform_1, window_bounds = array<i64: 1024, 8>}, {transform_indices = @transform_2, window_bounds = array<i64: 512, 1>}, {transform_indices = @transform_3, window_bounds = array<i64: 1, 1024>}, {transform_indices = @transform_4, window_bounds = array<i64: 512, 1024>}]} {
    %c0 = arith.constant 0 : index
    %0 = memref.load %arg2[%c0] : memref<1xf32, #tpu.memory_space<smem>>
    %c512_i32 = arith.constant 512 : i32
    %1 = arith.muli %arg0, %c512_i32 : i32
    %c1024_i32 = arith.constant 1024 : i32
    %2 = arith.muli %arg1, %c1024_i32 : i32
    %c0_0 = arith.constant 0 : index
    %c0_1 = arith.constant 0 : index
    %3 = vector.load %arg3[%c0_0, %c0_1] : memref<512x8xf32, #tpu.memory_space<vmem>>, vector<512x8xf32>
    %c0_2 = arith.constant 0 : index
    %c0_3 = arith.constant 0 : index
    %4 = vector.load %arg4[%c0_2, %c0_3] : memref<1024x8xf32, #tpu.memory_space<vmem>>, vector<1024x8xf32>
    %cst = arith.constant dense<0.000000e+00> : vector<512x1024xf32>
    %5 = tpu.matmul %3, %4, %cst {dimension_numbers = #tpu.dot_dimension_numbers<[1], [1], [0], [0], [0, 0, 1, 0], [], []>} : vector<512x8xf32>, vector<1024x8xf32>, vector<512x1024xf32> -> vector<512x1024xf32>
    %c0_4 = arith.constant 0 : index
    %c0_5 = arith.constant 0 : index
    %6 = vector.load %arg5[%c0_4, %c0_5] : memref<512x1xf32, #tpu.memory_space<vmem>>, vector<512x1xf32>
    %c0_6 = arith.constant 0 : index
    %c0_7 = arith.constant 0 : index
    %7 = vector.load %arg6[%c0_6, %c0_7] : memref<1x1024xf32, #tpu.memory_space<vmem>>, vector<1x1024xf32>
    %8 = vector.broadcast %6 : vector<512x1xf32> to vector<512x1024xf32>
    %9 = vector.broadcast %7 : vector<1x1024xf32> to vector<512x1024xf32>
    %10 = arith.addf %8, %9 : vector<512x1024xf32>
    %11 = arith.addf %10, %5 : vector<512x1024xf32>
    %cst_8 = arith.constant 0.000000e+00 : f32
    %12 = vector.broadcast %cst_8 : f32 to vector<512x1024xf32>
    %13 = arith.minimumf %11, %12 : vector<512x1024xf32>
    %14 = math.exp %13 : vector<512x1024xf32>
    %c1024_i32_9 = arith.constant 1024 : i32
    %15 = arith.addi %2, %c1024_i32_9 : i32
    %16 = arith.cmpi slt, %1, %15 : i32
    %c512_i32_10 = arith.constant 512 : i32
    %17 = arith.addi %1, %c512_i32_10 : i32
    %18 = arith.cmpi slt, %2, %17 : i32
    %19 = arith.andi %16, %18 : i1
    %20 = arith.extui %19 : i1 to i32
    %c0_i32 = arith.constant 0 : i32
    %21 = arith.cmpi ne, %20, %c0_i32 : i32
    scf.if %21 {
      %25 = tpu.iota {dimensions = array<i32: 1>} : vector<512x1024xi32>
      %26 = tpu.iota {dimensions = array<i32: 0>} : vector<512x1xi32>
      %27 = arith.subi %1, %2 : i32
      %28 = vector.broadcast %27 : i32 to vector<512x1xi32>
      %29 = arith.addi %26, %28 : vector<512x1xi32>
      %30 = vector.broadcast %29 : vector<512x1xi32> to vector<512x1024xi32>
      %31 = arith.cmpi eq, %25, %30 : vector<512x1024xi32>
      %cst_12 = arith.constant 0.000000e+00 : f32
      %32 = vector.broadcast %0 : f32 to vector<512x1024xf32>
      %33 = vector.broadcast %cst_12 : f32 to vector<512x1024xf32>
      %34 = arith.select %31, %32, %33 : vector<512x1024xi1>, vector<512x1024xf32>
      %35 = arith.addf %14, %34 : vector<512x1024xf32>
      %c0_13 = arith.constant 0 : index
      %c0_14 = arith.constant 0 : index
      %36 = vector.load %arg7[%c0_13, %c0_14] : memref<512x1024xf32, #tpu.memory_space<vmem>>, vector<512x1024xf32>
      tpu.vector_store %arg7[%c0_13, %c0_14], %35 {strides = array<i32>} : memref<512x1024xf32, #tpu.memory_space<vmem>>, vector<512x1024xf32>,
    } else {
    }
    %true = arith.constant true
    %22 = arith.xori %19, %true : i1
    %23 = arith.extui %22 : i1 to i32
    %c0_i32_11 = arith.constant 0 : i32
    %24 = arith.cmpi ne, %23, %c0_i32_11 : i32
    scf.if %24 {
      %c0_12 = arith.constant 0 : index
      %c0_13 = arith.constant 0 : index
      %25 = vector.load %arg7[%c0_12, %c0_13] : memref<512x1024xf32, #tpu.memory_space<vmem>>, vector<512x1024xf32>
      tpu.vector_store %arg7[%c0_12, %c0_13], %14 {strides = array<i32>} : memref<512x1024xf32, #tpu.memory_space<vmem>>, vector<512x1024xf32>,
    } else {
    }
    return
  }
  func.func @transform_0(%arg0: i32, %arg1: i32, %arg2: memref<1xf32, #tpu.memory_space<smem>>) -> (i32, i32) {
    %c0_i32 = arith.constant 0 : i32
    %c0_i32_0 = arith.constant 0 : i32
    return %arg0, %c0_i32 : i32, i32
  }
  func.func @transform_1(%arg0: i32, %arg1: i32, %arg2: memref<1xf32, #tpu.memory_space<smem>>) -> (i32, i32) {
    %c0_i32 = arith.constant 0 : i32
    %c0_i32_0 = arith.constant 0 : i32
    return %arg1, %c0_i32 : i32, i32
  }
  func.func @transform_2(%arg0: i32, %arg1: i32, %arg2: memref<1xf32, #tpu.memory_space<smem>>) -> (i32, i32) {
    %c0_i32 = arith.constant 0 : i32
    %c0_i32_0 = arith.constant 0 : i32
    return %arg0, %c0_i32 : i32, i32
  }
  func.func @transform_3(%arg0: i32, %arg1: i32, %arg2: memref<1xf32, #tpu.memory_space<smem>>) -> (i32, i32) {
    %c0_i32 = arith.constant 0 : i32
    %c0_i32_0 = arith.constant 0 : i32
    return %c0_i32, %arg1 : i32, i32
  }
  func.func @transform_4(%arg0: i32, %arg1: i32, %arg2: memref<1xf32, #tpu.memory_space<smem>>) -> (i32, i32) {
    %c0_i32 = arith.constant 0 : i32
    return %arg0, %arg1 : i32, i32
  }
}

</mosaic_0001>

<llo_original>
// kernel: gp_train_forward.1
$region0: #{gp_train_forward.1}
  #allocation0 [shape = 'u32[]', space=smem, size = 0x4, offset = 0x4, fixed_abs, tag = 'smem constant byte address 0x4 - core index']
  #allocation1 [shape = 'u32[72,128]{1,0:T(1,128)}', space=vmem, size = 0x9000, scoped, tag = 'internal scratch']
  #allocation2 [shape = 's32[1]{0}', space=sflag, size = 0x4, scoped, tag = 'scoped memory for gp_train_forward.1']
  #allocation3 [shape = 'f32[1]{0:T(128)S(6)}', space=smem, size = 0x200, scoped, tag = 'prefetched SMEM operand 0']
  %s0 = inlined_call_operand.<no memory space> [shape: f32[1], index: 0, kind: input, shape index: {}]
  %s1 = inlined_call_operand.vmem [shape: f32[1024,8], index: 1, kind: input, shape index: {}, may-alias: {1,2}]
  %s2 = inlined_call_operand.vmem [shape: f32[1024,8], index: 2, kind: input, shape index: {}, may-alias: {1,2}]
  %s3 = inlined_call_operand.vmem [shape: f32[1024,1], index: 3, kind: input, shape index: {}]
  %s4 = inlined_call_operand.vmem [shape: f32[1,1024], index: 4, kind: input, shape index: {}]
  %s5 = inlined_call_operand.hbm [shape: f32[1000,1000], index: 5, kind: output, shape index: {}]
  %s6 = sld [smem:[#allocation0]]
  $region57: #{gp_train_forward.1} parent=0
    _
  %s8 = ssub.s32 1, %s6
  %s9 = scalar_select 0, %s8, %s6
  %10 = sst [smem:[#allocation3]] %s0
  $region1: #{gp_train_forward.1} parent=0
    #allocation4 [shape = 'u8[4194304]{0}', space=vmem, size = 0x400000, scoped, tag = 'output window, operand 0']
    #allocation5 [shape = 's32[2]{0}', space=sflag, size = 0x8, scoped, tag = 'scoped memory for gp_train_forward.1']
    %11 = vsyncpa [#allocation5], 0
    %s12 = scalar_lea.sflag [#allocation5], 1
    %13 = vsyncpa %s12, 0
    loop: start=0, step=1, limit=4
    $region2: #{gp_train_forward.1} parent=1 // loop_pre_header
      _
    $region3: #{gp_train_forward.1} parent=1 // loop_header
      %s15 = sphi 0, %s19
      %p16 = scmp.ge.s32.totalorder %s15, 4
      %s22 = sphi 0, %s34
      %s23 = sphi 0, %s30
      %s24 = sphi 0, %s22
      %s25 = sphi 0, %s23
      %s26 = sphi 0, %s24
      %s27 = sphi 0, %s25
      %s37 = sphi 0, %s39
      %s40 = sphi 0, %s37
      %s41 = sphi 0, %s40
      %s57 = sphi 0, %s41
      %s63 = sphi 0, %s65
      %s66 = sphi 0, %s63
      %s67 = sphi 0, %s66
      %s83 = sphi 0, %s67
      %s89 = sphi 0, %s91
      %s92 = sphi 0, %s89
      %s93 = sphi 0, %s92
      %s109 = sphi 0, %s93
      %s115 = sphi 0, %s117
      %s118 = sphi 0, %s115
      %s119 = sphi 0, %s118
      %s135 = sphi 0, %s119
      %s143 = sphi 0, %s145
      %s146 = sphi 0, %s143
      %s147 = sphi 0, %s146
      %s163 = sphi 0, %s147
    $region4: #{gp_train_forward.1} parent=1 // loop_header_branch
      %18 = sbr.rel (%p16) target = $region8
    $region5: #{gp_train_forward.1} parent=1 // loop_body
      %s20 = ssub.s32 %s15, 1
      %s21 = ssub.s32 %s15, 2
      %s28 = sadd.s32 1, %s23
      %p29 = scmp.ge.s32.totalorder %s28, 1
      %s30 = scalar_select %p29, 0, %s28
      %s31 = sadd.s32 1, %s22
      %s32 = scalar_select %p29, %s31, %s22
      %p33 = scmp.ge.s32.totalorder %s32, 2
      %s34 = scalar_select %p33, 0, %s32
      %s35 = ssub.s32 %s22, %s34
      %p36 = scmp.eq.s32.totalorder %s35, 0
      %s38 = sadd.s32 %s37, 1
      %s39 = scalar_select %p36, %s37, %s38
      %p42 = pneg %p36
      %p43 = scmp.eq.s32.totalorder %s15, 1
      %p44 = por %p42, %p43
      %p45 = scmp.ne.s32.totalorder %s37, %s40
      %p46 = scmp.eq.s32.totalorder %s15, 0
      %p47 = por %p45, %p46
      %p48 = scmp.ne.s32.totalorder %s37, %s40
      %p49 = scmp.eq.s32.totalorder %s20, 1
      %p50 = por %p48, %p49
      %p51 = scmp.ne.s32.totalorder %s40, %s41
      %p52 = scmp.eq.s32.totalorder %s20, 0
      %p53 = por %p51, %p52
      %p54 = scmp.ne.s32.totalorder %s40, %s41
      %p55 = scmp.eq.s32.totalorder %s21, 1
      %p56 = por %p54, %p55
      %p58 = scmp.ne.s32.totalorder %s41, %s57
      %p59 = scmp.eq.s32.totalorder %s21, 0
      %p60 = por %p58, %p59
      %s61 = ssub.s32 %s23, %s30
      %p62 = scmp.eq.s32.totalorder %s61, 0
      %s64 = sadd.s32 %s63, 1
      %s65 = scalar_select %p62, %s63, %s64
      %p68 = pneg %p62
      %p69 = scmp.eq.s32.totalorder %s15, 1
      %p70 = por %p68, %p69
      %p71 = scmp.ne.s32.totalorder %s63, %s66
      %p72 = scmp.eq.s32.totalorder %s15, 0
      %p73 = por %p71, %p72
      %p74 = scmp.ne.s32.totalorder %s63, %s66
      %p75 = scmp.eq.s32.totalorder %s20, 1
      %p76 = por %p74, %p75
      %p77 = scmp.ne.s32.totalorder %s66, %s67
      %p78 = scmp.eq.s32.totalorder %s20, 0
      %p79 = por %p77, %p78
      %p80 = scmp.ne.s32.totalorder %s66, %s67
      %p81 = scmp.eq.s32.totalorder %s21, 1
      %p82 = por %p80, %p81
      %p84 = scmp.ne.s32.totalorder %s67, %s83
      %p85 = scmp.eq.s32.totalorder %s21, 0
      %p86 = por %p84, %p85
      %s87 = ssub.s32 %s22, %s34
      %p88 = scmp.eq.s32.totalorder %s87, 0
      %s90 = sadd.s32 %s89, 1
      %s91 = scalar_select %p88, %s89, %s90
      %p94 = pneg %p88
      %p95 = scmp.eq.s32.totalorder %s15, 1
      %p96 = por %p94, %p95
      %p97 = scmp.ne.s32.totalorder %s89, %s92
      %p98 = scmp.eq.s32.totalorder %s15, 0
      %p99 = por %p97, %p98
      %p100 = scmp.ne.s32.totalorder %s89, %s92
      %p101 = scmp.eq.s32.totalorder %s20, 1
      %p102 = por %p100, %p101
      %p103 = scmp.ne.s32.totalorder %s92, %s93
      %p104 = scmp.eq.s32.totalorder %s20, 0
      %p105 = por %p103, %p104
      %p106 = scmp.ne.s32.totalorder %s92, %s93
      %p107 = scmp.eq.s32.totalorder %s21, 1
      %p108 = por %p106, %p107
      %p110 = scmp.ne.s32.totalorder %s93, %s109
      %p111 = scmp.eq.s32.totalorder %s21, 0
      %p112 = por %p110, %p111
      %s113 = ssub.s32 %s23, %s30
      %p114 = scmp.eq.s32.totalorder %s113, 0
      %s116 = sadd.s32 %s115, 1
      %s117 = scalar_select %p114, %s115, %s116
      %p120 = pneg %p114
      %p121 = scmp.eq.s32.totalorder %s15, 1
      %p122 = por %p120, %p121
      %p123 = scmp.ne.s32.totalorder %s115, %s118
      %p124 = scmp.eq.s32.totalorder %s15, 0
      %p125 = por %p123, %p124
      %p126 = scmp.ne.s32.totalorder %s115, %s118
      %p127 = scmp.eq.s32.totalorder %s20, 1
      %p128 = por %p126, %p127
      %p129 = scmp.ne.s32.totalorder %s118, %s119
      %p130 = scmp.eq.s32.totalorder %s20, 0
      %p131 = por %p129, %p130
      %p132 = scmp.ne.s32.totalorder %s118, %s119
      %p133 = scmp.eq.s32.totalorder %s21, 1
      %p134 = por %p132, %p133
      %p136 = scmp.ne.s32.totalorder %s119, %s135
      %p137 = scmp.eq.s32.totalorder %s21, 0
      %p138 = por %p136, %p137
      %s139 = ssub.s32 %s22, %s34
      %s140 = ssub.s32 %s23, %s30
      %s141 = sor.u32 %s139, %s140
      %p142 = scmp.eq.s32.totalorder %s141, 0
      %s144 = sadd.s32 %s143, 1
      %s145 = scalar_select %p142, %s143, %s144
      %p148 = pneg %p142
      %p149 = scmp.eq.s32.totalorder %s15, 1
      %p150 = por %p148, %p149
      %p151 = scmp.ne.s32.totalorder %s143, %s146
      %p152 = scmp.eq.s32.totalorder %s15, 0
      %p153 = por %p151, %p152
      %p154 = scmp.ne.s32.totalorder %s143, %s146
      %p155 = scmp.eq.s32.totalorder %s20, 1
      %p156 = por %p154, %p155
      %p157 = scmp.ne.s32.totalorder %s146, %s147
      %p158 = scmp.eq.s32.totalorder %s20, 0
      %p159 = por %p157, %p158
      %p160 = scmp.ne.s32.totalorder %s146, %s147
      %p161 = scmp.eq.s32.totalorder %s21, 1
      %p162 = por %p160, %p161
      %p164 = scmp.ne.s32.totalorder %s147, %s163
      %p165 = scmp.eq.s32.totalorder %s21, 0
      %p166 = por %p164, %p165
      %p167 = scmp.le.s32.totalorder 1, %s15
      %p168 = scmp.lt.s32.totalorder %s15, 3
      %p169 = pnand %p167, %p168
      %p170 = pneg %p169
      // Predicated region
      $region9: #{gp_train_forward.1} parent=5 // pred_check
        _
      $region10: #{gp_train_forward.1} parent=5 // pred_check_branch
        %172 = sbr.rel (%p169) target = $region12
      $region11: #{gp_train_forward.1} parent=5 // pred_region
        %s173 = ssub.s32 %s15, 1
        // Predicated region
        $region13: #{gp_train_forward.1} parent=11 // pred_check
          %p174 = pneg %p79
        $region14: #{gp_train_forward.1} parent=11 // pred_check_branch
          %176 = sbr.rel (%p174) target = $region16
        $region15: #{gp_train_forward.1} parent=11 // pred_region
          %s177 = smul.u32 128, %s25
          %p178 = scmp.lt.s32.totalorder %s177, 127
          %s179 = scalar_select %p178, %s177, 127
          %s180 = smul.addr %s179, 8
          %s181 = scalar_lea.vmem %s2, %s180
          %s182 = smul.u32 128, %s25
        $region16: #{gp_train_forward.1} parent=11 // pred_fallthru
          _
        // Predicated region
        $region17: #{gp_train_forward.1} parent=11 // pred_check
          %p183 = pneg %p131
        $region18: #{gp_train_forward.1} parent=11 // pred_check_branch
          %185 = sbr.rel (%p183) target = $region20
        $region19: #{gp_train_forward.1} parent=11 // pred_region
          %s186 = smul.u32 8, %s25
          %p187 = scmp.lt.s32.totalorder %s186, 7
          %s188 = scalar_select %p187, %s186, 7
          %s189 = scalar_lea.vmem %s4, %s188
          %s190 = smul.u32 8, %s25
        $region20: #{gp_train_forward.1} parent=11 // pred_fallthru
          _
      $region12: #{gp_train_forward.1} parent=5 // pred_fallthru
        _
      %p191 = scmp.lt.s32.totalorder %s15, 2
      // Predicated region
      $region21: #{gp_train_forward.1} parent=5 // pred_check
        %p192 = pneg %p191
      $region22: #{gp_train_forward.1} parent=5 // pred_check_branch
        %194 = sbr.rel (%p192) target = $region24
      $region23: #{gp_train_forward.1} parent=5 // pred_region
        // Predicated region
        $region25: #{gp_train_forward.1} parent=23 // pred_check
          %p195 = pneg %p47
        $region26: #{gp_train_forward.1} parent=23 // pred_check_branch
          %197 = sbr.rel (%p195) target = $region28
        $region27: #{gp_train_forward.1} parent=23 // pred_region
          %s198 = smul.u32 64, %s22
          %p199 = scmp.lt.s32.totalorder %s198, 127
          %s200 = scalar_select %p199, %s198, 127
          %s201 = smul.addr %s200, 8
          %s202 = scalar_lea.vmem %s1, %s201
          %s203 = smul.u32 64, %s22
        $region28: #{gp_train_forward.1} parent=23 // pred_fallthru
          _
        // Predicated region
        $region29: #{gp_train_forward.1} parent=23 // pred_check
          %p204 = pneg %p99
        $region30: #{gp_train_forward.1} parent=23 // pred_check_branch
          %206 = sbr.rel (%p204) target = $region32
        $region31: #{gp_train_forward.1} parent=23 // pred_region
          %s207 = smul.u32 64, %s22
          %p208 = scmp.lt.s32.totalorder %s207, 127
          %s209 = scalar_select %p208, %s207, 127
          %s210 = smul.addr %s209, 8
          %s211 = scalar_lea.vmem %s3, %s210
          %s212 = smul.u32 64, %s22
        $region32: #{gp_train_forward.1} parent=23 // pred_fallthru
          _
      $region24: #{gp_train_forward.1} parent=5 // pred_fallthru
        _
      %p213 = scmp.le.s32.totalorder 1, %s15
      %p214 = scmp.lt.s32.totalorder %s15, 3
      %p215 = pnand %p213, %p214
      %p216 = pneg %p215
      // Predicated region
      $region33: #{gp_train_forward.1} parent=5 // pred_check
        _
      $region34: #{gp_train_forward.1} parent=5 // pred_check_branch
        %218 = sbr.rel (%p215) target = $region36
      $region35: #{gp_train_forward.1} parent=5 // pred_region
        %s219 = ssub.s32 %s15, 1
        %s220 = smul.u32 64, %s24
        %p221 = scmp.lt.s32.totalorder %s220, 127
        %s222 = scalar_select %p221, %s220, 127
        %s223 = smul.addr %s222, 8
        %s224 = scalar_lea.vmem %s1, %s223
        %p225 = pneg %p53
        %p226 = pneg %p50
        %s227 = smul.u32 128, %s25
        %p228 = scmp.lt.s32.totalorder %s227, 127
        %s229 = scalar_select %p228, %s227, 127
        %s230 = smul.addr %s229, 8
        %s231 = scalar_lea.vmem %s2, %s230
        %p232 = pneg %p79
        %p233 = pneg %p76
        %s234 = smul.u32 64, %s24
        %p235 = scmp.lt.s32.totalorder %s234, 127
        %s236 = scalar_select %p235, %s234, 127
        %s237 = smul.addr %s236, 8
        %s238 = scalar_lea.vmem %s3, %s237
        %p239 = pneg %p105
        %p240 = pneg %p102
        %s241 = smul.u32 8, %s25
        %p242 = scmp.lt.s32.totalorder %s241, 7
        %s243 = scalar_select %p242, %s241, 7
        %s244 = scalar_lea.vmem %s4, %s243
        %p245 = pneg %p131
        %p246 = pneg %p128
        %p247 = pneg %p159
        %p248 = pneg %p156
        %s249 = sand.u32 %s146, 1
        %s250 = scalar_lea.sflag [#allocation5], %s249
        %s251 = sand.u32 %s146, 1
        %s252 = smul.addr %s251, 4096
        %s253 = scalar_lea.vmem [#allocation4], %s252
        %s254 = smul.u32 64, %s24
        %p255 = scmp.lt.s32.totalorder %s254, 127
        %s256 = scalar_select %p255, %s254, 127
        %s257 = smul.addr %s256, 8
        %s258 = scalar_lea.vmem %s1, %s257
        %s259 = smul.u32 64, %s24
        %s260 = smul.u32 128, %s25
        %p261 = scmp.lt.s32.totalorder %s260, 127
        %s262 = scalar_select %p261, %s260, 127
        %s263 = smul.addr %s262, 8
        %s264 = scalar_lea.vmem %s2, %s263
        %s265 = smul.u32 128, %s25
        %s266 = smul.u32 64, %s24
        %p267 = scmp.lt.s32.totalorder %s266, 127
        %s268 = scalar_select %p267, %s266, 127
        %s269 = smul.addr %s268, 8
        %s270 = scalar_lea.vmem %s3, %s269
        %s271 = smul.u32 64, %s24
        %s272 = smul.u32 8, %s25
        %p273 = scmp.lt.s32.totalorder %s272, 7
        %s274 = scalar_select %p273, %s272, 7
        %s275 = scalar_lea.vmem %s4, %s274
        %s276 = smul.u32 8, %s25
        %s277 = smul.u32 64, %s24
        %s278 = smul.u32 8, %s25
        %s279 = ssub.s32 125, %s277
        %p280 = scmp.lt.s32.totalorder %s279, 64
        %s281 = scalar_select %p280, %s279, 64
        %s282 = smul.u32 8, %s281
        %s283 = smul.u32 %s282, 8
        %s284 = sld [smem:[#allocation3]]
        %s285 = smul.u32 %s24, 512
        %s286 = smul.u32 %s25, 1024
        %v287 = vld [vmem:[%s258] sm:$0xff]
        %v288 = vld [vmem:[%s258 + $0x8] sm:$0xff]
        %v289 = vld [vmem:[%s258 + $0x10] sm:$0xff]
        %v290 = vld [vmem:[%s258 + $0x18] sm:$0xff]
        %v291 = vld [vmem:[%s258 + $0x20] sm:$0xff]
        %v292 = vld [vmem:[%s258 + $0x28] sm:$0xff]
        %v293 = vld [vmem:[%s258 + $0x30] sm:$0xff]
        %v294 = vld [vmem:[%s258 + $0x38] sm:$0xff]
        %v295 = vld [vmem:[%s258 + $0x40] sm:$0xff]
        %v296 = vld [vmem:[%s258 + $0x48] sm:$0xff]
        %v297 = vld [vmem:[%s258 + $0x50] sm:$0xff]
        %v298 = vld [vmem:[%s258 + $0x58] sm:$0xff]
        %v299 = vld [vmem:[%s258 + $0x60] sm:$0xff]
        %v300 = vld [vmem:[%s258 + $0x68] sm:$0xff]
        %v301 = vld [vmem:[%s258 + $0x70] sm:$0xff]
        %v302 = vld [vmem:[%s258 + $0x78] sm:$0xff]
        %v303 = vld [vmem:[%s258 + $0x80] sm:$0xff]
        %v304 = vld [vmem:[%s258 + $0x88] sm:$0xff]
        %v305 = vld [vmem:[%s258 + $0x90] sm:$0xff]
        %v306 = vld [vmem:[%s258 + $0x98] sm:$0xff]
        %v307 = vld [vmem:[%s258 + $0xa0] sm:$0xff]
        %v308 = vld [vmem:[%s258 + $0xa8] sm:$0xff]
        %v309 = vld [vmem:[%s258 + $0xb0] sm:$0xff]
        %v310 = vld [vmem:[%s258 + $0xb8] sm:$0xff]
        %v311 = vld [vmem:[%s258 + $0xc0] sm:$0xff]
        %v312 = vld [vmem:[%s258 + $0xc8] sm:$0xff]
        %v313 = vld [vmem:[%s258 + $0xd0] sm:$0xff]
        %v314 = vld [vmem:[%s258 + $0xd8] sm:$0xff]
        %v315 = vld [vmem:[%s258 + $0xe0] sm:$0xff]
        %v316 = vld [vmem:[%s258 + $0xe8] sm:$0xff]
        %v317 = vld [vmem:[%s258 + $0xf0] sm:$0xff]
        %v318 = vld [vmem:[%s258 + $0xf8] sm:$0xff]
        %v319 = vld [vmem:[%s258 + $0x100] sm:$0xff]
        %v320 = vld [vmem:[%s258 + $0x108] sm:$0xff]
        %v321 = vld [vmem:[%s258 + $0x110] sm:$0xff]
        %v322 = vld [vmem:[%s258 + $0x118] sm:$0xff]
        %v323 = vld [vmem:[%s258 + $0x120] sm:$0xff]
        %v324 = vld [vmem:[%s258 + $0x128] sm:$0xff]
        %v325 = vld [vmem:[%s258 + $0x130] sm:$0xff]
        %v326 = vld [vmem:[%s258 + $0x138] sm:$0xff]
        %v327 = vld [vmem:[%s258 + $0x140] sm:$0xff]
        %v328 = vld [vmem:[%s258 + $0x148] sm:$0xff]
        %v329 = vld [vmem:[%s258 + $0x150] sm:$0xff]
        %v330 = vld [vmem:[%s258 + $0x158] sm:$0xff]
        %v331 = vld [vmem:[%s258 + $0x160] sm:$0xff]
        %v332 = vld [vmem:[%s258 + $0x168] sm:$0xff]
        %v333 = vld [vmem:[%s258 + $0x170] sm:$0xff]
        %v334 = vld [vmem:[%s258 + $0x178] sm:$0xff]
        %v335 = vld [vmem:[%s258 + $0x180] sm:$0xff]
        %v336 = vld [vmem:[%s258 + $0x188] sm:$0xff]
        %v337 = vld [vmem:[%s258 + $0x190] sm:$0xff]
        %v338 = vld [vmem:[%s258 + $0x198] sm:$0xff]
        %v339 = vld [vmem:[%s258 + $0x1a0] sm:$0xff]
        %v340 = vld [vmem:[%s258 + $0x1a8] sm:$0xff]
        %v341 = vld [vmem:[%s258 + $0x1b0] sm:$0xff]
        %v342 = vld [vmem:[%s258 + $0x1b8] sm:$0xff]
        %v343 = vld [vmem:[%s258 + $0x1c0] sm:$0xff]
        %v344 = vld [vmem:[%s258 + $0x1c8] sm:$0xff]
        %v345 = vld [vmem:[%s258 + $0x1d0] sm:$0xff]
        %v346 = vld [vmem:[%s258 + $0x1d8] sm:$0xff]
        %v347 = vld [vmem:[%s258 + $0x1e0] sm:$0xff]
        %v348 = vld [vmem:[%s258 + $0x1e8] sm:$0xff]
        %v349 = vld [vmem:[%s258 + $0x1f0] sm:$0xff]
        %v350 = vld [vmem:[%s258 + $0x1f8] sm:$0xff]
        %v351 = vld [vmem:[%s264] sm:$0xff]
        %v352 = vld [vmem:[%s264 + $0x8] sm:$0xff]
        %v353 = vld [vmem:[%s264 + $0x10] sm:$0xff]
        %v354 = vld [vmem:[%s264 + $0x18] sm:$0xff]
        %v355 = vld [vmem:[%s264 + $0x20] sm:$0xff]
        %v356 = vld [vmem:[%s264 + $0x28] sm:$0xff]
        %v357 = vld [vmem:[%s264 + $0x30] sm:$0xff]
        %v358 = vld [vmem:[%s264 + $0x38] sm:$0xff]
        %v359 = vld [vmem:[%s264 + $0x40] sm:$0xff]
        %v360 = vld [vmem:[%s264 + $0x48] sm:$0xff]
        %v361 = vld [vmem:[%s264 + $0x50] sm:$0xff]
        %v362 = vld [vmem:[%s264 + $0x58] sm:$0xff]
        %v363 = vld [vmem:[%s264 + $0x60] sm:$0xff]
        %v364 = vld [vmem:[%s264 + $0x68] sm:$0xff]
        %v365 = vld [vmem:[%s264 + $0x70] sm:$0xff]
        %v366 = vld [vmem:[%s264 + $0x78] sm:$0xff]
        %v367 = vld [vmem:[%s264 + $0x80] sm:$0xff]
        %v368 = vld [vmem:[%s264 + $0x88] sm:$0xff]
        %v369 = vld [vmem:[%s264 + $0x90] sm:$0xff]
        %v370 = vld [vmem:[%s264 + $0x98] sm:$0xff]
        %v371 = vld [vmem:[%s264 + $0xa0] sm:$0xff]
        %v372 = vld [vmem:[%s264 + $0xa8] sm:$0xff]
        %v373 = vld [vmem:[%s264 + $0xb0] sm:$0xff]
        %v374 = vld [vmem:[%s264 + $0xb8] sm:$0xff]
        %v375 = vld [vmem:[%s264 + $0xc0] sm:$0xff]
        %v376 = vld [vmem:[%s264 + $0xc8] sm:$0xff]
        %v377 = vld [vmem:[%s264 + $0xd0] sm:$0xff]
        %v378 = vld [vmem:[%s264 + $0xd8] sm:$0xff]
        %v379 = vld [vmem:[%s264 + $0xe0] sm:$0xff]
        %v380 = vld [vmem:[%s264 + $0xe8] sm:$0xff]
        %v381 = vld [vmem:[%s264 + $0xf0] sm:$0xff]
        %v382 = vld [vmem:[%s264 + $0xf8] sm:$0xff]
        %v383 = vld [vmem:[%s264 + $0x100] sm:$0xff]
        %v384 = vld [vmem:[%s264 + $0x108] sm:$0xff]
        %v385 = vld [vmem:[%s264 + $0x110] sm:$0xff]
        %v386 = vld [vmem:[%s264 + $0x118] sm:$0xff]
        %v387 = vld [vmem:[%s264 + $0x120] sm:$0xff]
        %v388 = vld [vmem:[%s264 + $0x128] sm:$0xff]
        %v389 = vld [vmem:[%s264 + $0x130] sm:$0xff]
        %v390 = vld [vmem:[%s264 + $0x138] sm:$0xff]
        %v391 = vld [vmem:[%s264 + $0x140] sm:$0xff]
        %v392 = vld [vmem:[%s264 + $0x148] sm:$0xff]
        %v393 = vld [vmem:[%s264 + $0x150] sm:$0xff]
        %v394 = vld [vmem:[%s264 + $0x158] sm:$0xff]
        %v395 = vld [vmem:[%s264 + $0x160] sm:$0xff]
        %v396 = vld [vmem:[%s264 + $0x168] sm:$0xff]
        %v397 = vld [vmem:[%s264 + $0x170] sm:$0xff]
        %v398 = vld [vmem:[%s264 + $0x178] sm:$0xff]
        %v399 = vld [vmem:[%s264 + $0x180] sm:$0xff]
        %v400 = vld [vmem:[%s264 + $0x188] sm:$0xff]
        %v401 = vld [vmem:[%s264 + $0x190] sm:$0xff]
        %v402 = vld [vmem:[%s264 + $0x198] sm:$0xff]
        %v403 = vld [vmem:[%s264 + $0x1a0] sm:$0xff]
        %v404 = vld [vmem:[%s264 + $0x1a8] sm:$0xff]
        %v405 = vld [vmem:[%s264 + $0x1b0] sm:$0xff]
        %v406 = vld [vmem:[%s264 + $0x1b8] sm:$0xff]
        %v407 = vld [vmem:[%s264 + $0x1c0] sm:$0xff]
        %v408 = vld [vmem:[%s264 + $0x1c8] sm:$0xff]
        %v409 = vld [vmem:[%s264 + $0x1d0] sm:$0xff]
        %v410 = vld [vmem:[%s264 + $0x1d8] sm:$0xff]
        %v411 = vld [vmem:[%s264 + $0x1e0] sm:$0xff]
        %v412 = vld [vmem:[%s264 + $0x1e8] sm:$0xff]
        %v413 = vld [vmem:[%s264 + $0x1f0] sm:$0xff]
        %v414 = vld [vmem:[%s264 + $0x1f8] sm:$0xff]
        %v415 = vld [vmem:[%s264 + $0x200] sm:$0xff]
        %v416 = vld [vmem:[%s264 + $0x208] sm:$0xff]
        %v417 = vld [vmem:[%s264 + $0x210] sm:$0xff]
        %v418 = vld [vmem:[%s264 + $0x218] sm:$0xff]
        %v419 = vld [vmem:[%s264 + $0x220] sm:$0xff]
        %v420 = vld [vmem:[%s264 + $0x228] sm:$0xff]
        %v421 = vld [vmem:[%s264 + $0x230] sm:$0xff]
        %v422 = vld [vmem:[%s264 + $0x238] sm:$0xff]
        %v423 = vld [vmem:[%s264 + $0x240] sm:$0xff]
        %v424 = vld [vmem:[%s264 + $0x248] sm:$0xff]
        %v425 = vld [vmem:[%s264 + $0x250] sm:$0xff]
        %v426 = vld [vmem:[%s264 + $0x258] sm:$0xff]
        %v427 = vld [vmem:[%s264 + $0x260] sm:$0xff]
        %v428 = vld [vmem:[%s264 + $0x268] sm:$0xff]
        %v429 = vld [vmem:[%s264 + $0x270] sm:$0xff]
        %v430 = vld [vmem:[%s264 + $0x278] sm:$0xff]
        %v431 = vld [vmem:[%s264 + $0x280] sm:$0xff]
        %v432 = vld [vmem:[%s264 + $0x288] sm:$0xff]
        %v433 = vld [vmem:[%s264 + $0x290] sm:$0xff]
        %v434 = vld [vmem:[%s264 + $0x298] sm:$0xff]
        %v435 = vld [vmem:[%s264 + $0x2a0] sm:$0xff]
        %v436 = vld [vmem:[%s264 + $0x2a8] sm:$0xff]
        %v437 = vld [vmem:[%s264 + $0x2b0] sm:$0xff]
        %v438 = vld [vmem:[%s264 + $0x2b8] sm:$0xff]
        %v439 = vld [vmem:[%s264 + $0x2c0] sm:$0xff]
        %v440 = vld [vmem:[%s264 + $0x2c8] sm:$0xff]
        %v441 = vld [vmem:[%s264 + $0x2d0] sm:$0xff]
        %v442 = vld [vmem:[%s264 + $0x2d8] sm:$0xff]
        %v443 = vld [vmem:[%s264 + $0x2e0] sm:$0xff]
        %v444 = vld [vmem:[%s264 + $0x2e8] sm:$0xff]
        %v445 = vld [vmem:[%s264 + $0x2f0] sm:$0xff]
        %v446 = vld [vmem:[%s264 + $0x2f8] sm:$0xff]
        %v447 = vld [vmem:[%s264 + $0x300] sm:$0xff]
        %v448 = vld [vmem:[%s264 + $0x308] sm:$0xff]
        %v449 = vld [vmem:[%s264 + $0x310] sm:$0xff]
        %v450 = vld [vmem:[%s264 + $0x318] sm:$0xff]
        %v451 = vld [vmem:[%s264 + $0x320] sm:$0xff]
        %v452 = vld [vmem:[%s264 + $0x328] sm:$0xff]
        %v453 = vld [vmem:[%s264 + $0x330] sm:$0xff]
        %v454 = vld [vmem:[%s264 + $0x338] sm:$0xff]
        %v455 = vld [vmem:[%s264 + $0x340] sm:$0xff]
        %v456 = vld [vmem:[%s264 + $0x348] sm:$0xff]
        %v457 = vld [vmem:[%s264 + $0x350] sm:$0xff]
        %v458 = vld [vmem:[%s264 + $0x358] sm:$0xff]
        %v459 = vld [vmem:[%s264 + $0x360] sm:$0xff]
        %v460 = vld [vmem:[%s264 + $0x368] sm:$0xff]
        %v461 = vld [vmem:[%s264 + $0x370] sm:$0xff]
        %v462 = vld [vmem:[%s264 + $0x378] sm:$0xff]
        %v463 = vld [vmem:[%s264 + $0x380] sm:$0xff]
        %v464 = vld [vmem:[%s264 + $0x388] sm:$0xff]
        %v465 = vld [vmem:[%s264 + $0x390] sm:$0xff]
        %v466 = vld [vmem:[%s264 + $0x398] sm:$0xff]
        %v467 = vld [vmem:[%s264 + $0x3a0] sm:$0xff]
        %v468 = vld [vmem:[%s264 + $0x3a8] sm:$0xff]
        %v469 = vld [vmem:[%s264 + $0x3b0] sm:$0xff]
        %v470 = vld [vmem:[%s264 + $0x3b8] sm:$0xff]
        %v471 = vld [vmem:[%s264 + $0x3c0] sm:$0xff]
        %v472 = vld [vmem:[%s264 + $0x3c8] sm:$0xff]
        %v473 = vld [vmem:[%s264 + $0x3d0] sm:$0xff]
        %v474 = vld [vmem:[%s264 + $0x3d8] sm:$0xff]
        %v475 = vld [vmem:[%s264 + $0x3e0] sm:$0xff]
        %v476 = vld [vmem:[%s264 + $0x3e8] sm:$0xff]
        %v477 = vld [vmem:[%s264 + $0x3f0] sm:$0xff]
        %v478 = vld [vmem:[%s264 + $0x3f8] sm:$0xff]
        %vm479 = vcmask 64512
        %v481 = vsel %vm479, %v287, 0
        %v484 = vsel %vm479, %v288, 0
        %v487 = vsel %vm479, %v289, 0
        %v490 = vsel %vm479, %v290, 0
        %v493 = vsel %vm479, %v291, 0
        %v496 = vsel %vm479, %v292, 0
        %v499 = vsel %vm479, %v293, 0
        %v502 = vsel %vm479, %v294, 0
        %v505 = vsel %vm479, %v295, 0
        %v508 = vsel %vm479, %v296, 0
        %v511 = vsel %vm479, %v297, 0
        %v514 = vsel %vm479, %v298, 0
        %v517 = vsel %vm479, %v299, 0
        %v520 = vsel %vm479, %v300, 0
        %v523 = vsel %vm479, %v301, 0
        %v526 = vsel %vm479, %v302, 0
        %v529 = vsel %vm479, %v303, 0
        %v532 = vsel %vm479, %v304, 0
        %v535 = vsel %vm479, %v305, 0
        %v538 = vsel %vm479, %v306, 0
        %v541 = vsel %vm479, %v307, 0
        %v544 = vsel %vm479, %v308, 0
        %v547 = vsel %vm479, %v309, 0
        %v550 = vsel %vm479, %v310, 0
        %v553 = vsel %vm479, %v311, 0
        %v556 = vsel %vm479, %v312, 0
        %v559 = vsel %vm479, %v313, 0
        %v562 = vsel %vm479, %v314, 0
        %v565 = vsel %vm479, %v315, 0
        %v568 = vsel %vm479, %v316, 0
        %v571 = vsel %vm479, %v317, 0
        %v574 = vsel %vm479, %v318, 0
        %v577 = vsel %vm479, %v319, 0
        %v580 = vsel %vm479, %v320, 0
        %v583 = vsel %vm479, %v321, 0
        %v586 = vsel %vm479, %v322, 0
        %v589 = vsel %vm479, %v323, 0
        %v592 = vsel %vm479, %v324, 0
        %v595 = vsel %vm479, %v325, 0
        %v598 = vsel %vm479, %v326, 0
        %v601 = vsel %vm479, %v327, 0
        %v604 = vsel %vm479, %v328, 0
        %v607 = vsel %vm479, %v329, 0
        %v610 = vsel %vm479, %v330, 0
        %v613 = vsel %vm479, %v331, 0
        %v616 = vsel %vm479, %v332, 0
        %v619 = vsel %vm479, %v333, 0
        %v622 = vsel %vm479, %v334, 0
        %v625 = vsel %vm479, %v335, 0
        %v628 = vsel %vm479, %v336, 0
        %v631 = vsel %vm479, %v337, 0
        %v634 = vsel %vm479, %v338, 0
        %v637 = vsel %vm479, %v339, 0
        %v640 = vsel %vm479, %v340, 0
        %v643 = vsel %vm479, %v341, 0
        %v646 = vsel %vm479, %v342, 0
        %v649 = vsel %vm479, %v343, 0
        %v652 = vsel %vm479, %v344, 0
        %v655 = vsel %vm479, %v345, 0
        %v658 = vsel %vm479, %v346, 0
        %v661 = vsel %vm479, %v347, 0
        %v664 = vsel %vm479, %v348, 0
        %v667 = vsel %vm479, %v349, 0
        %v670 = vsel %vm479, %v350, 0
        %v673 = vsel %vm479, %v351, 0
        %v676 = vsel %vm479, %v352, 0
        %v679 = vsel %vm479, %v353, 0
        %v682 = vsel %vm479, %v354, 0
        %v685 = vsel %vm479, %v355, 0
        %v688 = vsel %vm479, %v356, 0
        %v691 = vsel %vm479, %v357, 0
        %v694 = vsel %vm479, %v358, 0
        %v697 = vsel %vm479, %v359, 0
        %v700 = vsel %vm479, %v360, 0
        %v703 = vsel %vm479, %v361, 0
        %v706 = vsel %vm479, %v362, 0
        %v709 = vsel %vm479, %v363, 0
        %v712 = vsel %vm479, %v364, 0
        %v715 = vsel %vm479, %v365, 0
        %v718 = vsel %vm479, %v366, 0
        %v721 = vsel %vm479, %v367, 0
        %v724 = vsel %vm479, %v368, 0
        %v727 = vsel %vm479, %v369, 0
        %v730 = vsel %vm479, %v370, 0
        %v733 = vsel %vm479, %v371, 0
        %v736 = vsel %vm479, %v372, 0
        %v739 = vsel %vm479, %v373, 0
        %v742 = vsel %vm479, %v374, 0
        %v745 = vsel %vm479, %v375, 0
        %v748 = vsel %vm479, %v376, 0
        %v751 = vsel %vm479, %v377, 0
        %v754 = vsel %vm479, %v378, 0
        %v757 = vsel %vm479, %v379, 0
        %v760 = vsel %vm479, %v380, 0
        %v763 = vsel %vm479, %v381, 0
        %v766 = vsel %vm479, %v382, 0
        %v769 = vsel %vm479, %v383, 0
        %v772 = vsel %vm479, %v384, 0
        %v775 = vsel %vm479, %v385, 0
        %v778 = vsel %vm479, %v386, 0
        %v781 = vsel %vm479, %v387, 0
        %v784 = vsel %vm479, %v388, 0
        %v787 = vsel %vm479, %v389, 0
        %v790 = vsel %vm479, %v390, 0
        %v793 = vsel %vm479, %v391, 0
        %v796 = vsel %vm479, %v392, 0
        %v799 = vsel %vm479, %v393, 0
        %v802 = vsel %vm479, %v394, 0
        %v805 = vsel %vm479, %v395, 0
        %v808 = vsel %vm479, %v396, 0
        %v811 = vsel %vm479, %v397, 0
        %v814 = vsel %vm479, %v398, 0
        %v817 = vsel %vm479, %v399, 0
        %v820 = vsel %vm479, %v400, 0
        %v823 = vsel %vm479, %v401, 0
        %v826 = vsel %vm479, %v402, 0
        %v829 = vsel %vm479, %v403, 0
        %v832 = vsel %vm479, %v404, 0
        %v835 = vsel %vm479, %v405, 0
        %v838 = vsel %vm479, %v406, 0
        %v841 = vsel %vm479, %v407, 0
        %v844 = vsel %vm479, %v408, 0
        %v847 = vsel %vm479, %v409, 0
        %v850 = vsel %vm479, %v410, 0
        %v853 = vsel %vm479, %v411, 0
        %v856 = vsel %vm479, %v412, 0
        %v859 = vsel %vm479, %v413, 0
        %v862 = vsel %vm479, %v414, 0
        %v865 = vsel %vm479, %v415, 0
        %v868 = vsel %vm479, %v416, 0
        %v871 = vsel %vm479, %v417, 0
        %v874 = vsel %vm479, %v418, 0
        %v877 = vsel %vm479, %v419, 0
        %v880 = vsel %vm479, %v420, 0
        %v883 = vsel %vm479, %v421, 0
        %v886 = vsel %vm479, %v422, 0
        %v889 = vsel %vm479, %v423, 0
        %v892 = vsel %vm479, %v424, 0
        %v895 = vsel %vm479, %v425, 0
        %v898 = vsel %vm479, %v426, 0
        %v901 = vsel %vm479, %v427, 0
        %v904 = vsel %vm479, %v428, 0
        %v907 = vsel %vm479, %v429, 0
        %v910 = vsel %vm479, %v430, 0
        %v913 = vsel %vm479, %v431, 0
        %v916 = vsel %vm479, %v432, 0
        %v919 = vsel %vm479, %v433, 0
        %v922 = vsel %vm479, %v434, 0
        %v925 = vsel %vm479, %v435, 0
        %v928 = vsel %vm479, %v436, 0
        %v931 = vsel %vm479, %v437, 0
        %v934 = vsel %vm479, %v438, 0
        %v937 = vsel %vm479, %v439, 0
        %v940 = vsel %vm479, %v440, 0
        %v943 = vsel %vm479, %v441, 0
        %v946 = vsel %vm479, %v442, 0
        %v949 = vsel %vm479, %v443, 0
        %v952 = vsel %vm479, %v444, 0
        %v955 = vsel %vm479, %v445, 0
        %v958 = vsel %vm479, %v446, 0
        %v961 = vsel %vm479, %v447, 0
        %v964 = vsel %vm479, %v448, 0
        %v967 = vsel %vm479, %v449, 0
        %v970 = vsel %vm479, %v450, 0
        %v973 = vsel %vm479, %v451, 0
        %v976 = vsel %vm479, %v452, 0
        %v979 = vsel %vm479, %v453, 0
        %v982 = vsel %vm479, %v454, 0
        %v985 = vsel %vm479, %v455, 0
        %v988 = vsel %vm479, %v456, 0
        %v991 = vsel %vm479, %v457, 0
        %v994 = vsel %vm479, %v458, 0
        %v997 = vsel %vm479, %v459, 0
        %v1000 = vsel %vm479, %v460, 0
        %v1003 = vsel %vm479, %v461, 0
        %v1006 = vsel %vm479, %v462, 0
        %v1009 = vsel %vm479, %v463, 0
        %v1012 = vsel %vm479, %v464, 0
        %v1015 = vsel %vm479, %v465, 0
        %v1018 = vsel %vm479, %v466, 0
        %v1021 = vsel %vm479, %v467, 0
        %v1024 = vsel %vm479, %v468, 0
        %v1027 = vsel %vm479, %v469, 0
        %v1030 = vsel %vm479, %v470, 0
        %v1033 = vsel %vm479, %v471, 0
        %v1036 = vsel %vm479, %v472, 0
        %v1039 = vsel %vm479, %v473, 0
        %v1042 = vsel %vm479, %v474, 0
        %v1045 = vsel %vm479, %v475, 0
        %v1048 = vsel %vm479, %v476, 0
        %v1051 = vsel %vm479, %v477, 0
        %v1054 = vsel %vm479, %v478, 0
        %1056 = vmatpush.xpose.msra.mxu0 %v718
        %1057 = vmatpush.xpose.msra.mxu0 %v715
        %1058 = vmatpush.xpose.msra.mxu0 %v712
        %1059 = vmatpush.xpose.msra.mxu0 %v709
        %1060 = vmatpush.xpose.msra.mxu0 %v706
        %1061 = vmatpush.xpose.msra.mxu0 %v703
        %1062 = vmatpush.xpose.msra.mxu0 %v700
        %1063 = vmatpush.xpose.msra.mxu0 %v697
        %1064 = vmatpush.xpose.msra.mxu0 %v694
        %1065 = vmatpush.xpose.msra.mxu0 %v691
        %1066 = vmatpush.xpose.msra.mxu0 %v688
        %1067 = vmatpush.xpose.msra.mxu0 %v685
        %1068 = vmatpush.xpose.msra.mxu0 %v682
        %1069 = vmatpush.xpose.msra.mxu0 %v679
        %1070 = vmatpush.xpose.msra.mxu0 %v676
        %1071 = vmatpush.xpose.msra.mxu0 %v673
        %1072 = vmatmul.f32.gmra.mxu0 %v481
        %v1073 = vpop.f32.mrf.mxu0
        %v1074 = vadd.f32 0.0, %v1073
        %1075 = vmatmul.f32.gmra.mxu0 %v484
        %v1076 = vpop.f32.mrf.mxu0
        %v1077 = vadd.f32 0.0, %v1076
        %1078 = vmatmul.f32.gmra.mxu0 %v487
        %v1079 = vpop.f32.mrf.mxu0
        %v1080 = vadd.f32 0.0, %v1079
        %1081 = vmatmul.f32.gmra.mxu0 %v490
        %v1082 = vpop.f32.mrf.mxu0
        %v1083 = vadd.f32 0.0, %v1082
        %1084 = vmatmul.f32.gmra.mxu0 %v493
        %v1085 = vpop.f32.mrf.mxu0
        %v1086 = vadd.f32 0.0, %v1085
        %1087 = vmatmul.f32.gmra.mxu0 %v496
        %v1088 = vpop.f32.mrf.mxu0
        %v1089 = vadd.f32 0.0, %v1088
        %1090 = vmatmul.f32.gmra.mxu0 %v499
        %v1091 = vpop.f32.mrf.mxu0
        %v1092 = vadd.f32 0.0, %v1091
        %1093 = vmatmul.f32.gmra.mxu0 %v502
        %v1094 = vpop.f32.mrf.mxu0
        %v1095 = vadd.f32 0.0, %v1094
        %1096 = vmatmul.f32.gmra.mxu0 %v505
        %v1097 = vpop.f32.mrf.mxu0
        %v1098 = vadd.f32 0.0, %v1097
        %1099 = vmatmul.f32.gmra.mxu0 %v508
        %v1100 = vpop.f32.mrf.mxu0
        %v1101 = vadd.f32 0.0, %v1100
        %1102 = vmatmul.f32.gmra.mxu0 %v511
        %v1103 = vpop.f32.mrf.mxu0
        %v1104 = vadd.f32 0.0, %v1103
        %1105 = vmatmul.f32.gmra.mxu0 %v514
        %v1106 = vpop.f32.mrf.mxu0
        %v1107 = vadd.f32 0.0, %v1106
        %1108 = vmatmul.f32.gmra.mxu0 %v517
        %v1109 = vpop.f32.mrf.mxu0
        %v1110 = vadd.f32 0.0, %v1109
        %1111 = vmatmul.f32.gmra.mxu0 %v520
        %v1112 = vpop.f32.mrf.mxu0
        %v1113 = vadd.f32 0.0, %v1112
        %1114 = vmatmul.f32.gmra.mxu0 %v523
        %v1115 = vpop.f32.mrf.mxu0
        %v1116 = vadd.f32 0.0, %v1115
        %1117 = vmatmul.f32.gmra.mxu0 %v526
        %v1118 = vpop.f32.mrf.mxu0
        %v1119 = vadd.f32 0.0, %v1118
        %1120 = vmatmul.f32.gmra.mxu0 %v529
        %v1121 = vpop.f32.mrf.mxu0
        %v1122 = vadd.f32 0.0, %v1121
        %1123 = vmatmul.f32.gmra.mxu0 %v532
        %v1124 = vpop.f32.mrf.mxu0
        %v1125 = vadd.f32 0.0, %v1124
        %1126 = vmatmul.f32.gmra.mxu0 %v535
        %v1127 = vpop.f32.mrf.mxu0
        %v1128 = vadd.f32 0.0, %v1127
        %1129 = vmatmul.f32.gmra.mxu0 %v538
        %v1130 = vpop.f32.mrf.mxu0
        %v1131 = vadd.f32 0.0, %v1130
        %1132 = vmatmul.f32.gmra.mxu0 %v541
        %v1133 = vpop.f32.mrf.mxu0
        %v1134 = vadd.f32 0.0, %v1133
        %1135 = vmatmul.f32.gmra.mxu0 %v544
        %v1136 = vpop.f32.mrf.mxu0
        %v1137 = vadd.f32 0.0, %v1136
        %1138 = vmatmul.f32.gmra.mxu0 %v547
        %v1139 = vpop.f32.mrf.mxu0
        %v1140 = vadd.f32 0.0, %v1139
        %1141 = vmatmul.f32.gmra.mxu0 %v550
        %v1142 = vpop.f32.mrf.mxu0
        %v1143 = vadd.f32 0.0, %v1142
        %1144 = vmatmul.f32.gmra.mxu0 %v553
        %v1145 = vpop.f32.mrf.mxu0
        %v1146 = vadd.f32 0.0, %v1145
        %1147 = vmatmul.f32.gmra.mxu0 %v556
        %v1148 = vpop.f32.mrf.mxu0
        %v1149 = vadd.f32 0.0, %v1148
        %1150 = vmatmul.f32.gmra.mxu0 %v559
        %v1151 = vpop.f32.mrf.mxu0
        %v1152 = vadd.f32 0.0, %v1151
        %1153 = vmatmul.f32.gmra.mxu0 %v562
        %v1154 = vpop.f32.mrf.mxu0
        %v1155 = vadd.f32 0.0, %v1154
        %1156 = vmatmul.f32.gmra.mxu0 %v565
        %v1157 = vpop.f32.mrf.mxu0
        %v1158 = vadd.f32 0.0, %v1157
        %1159 = vmatmul.f32.gmra.mxu0 %v568
        %v1160 = vpop.f32.mrf.mxu0
        %v1161 = vadd.f32 0.0, %v1160
        %1162 = vmatmul.f32.gmra.mxu0 %v571
        %v1163 = vpop.f32.mrf.mxu0
        %v1164 = vadd.f32 0.0, %v1163
        %1165 = vmatmul.f32.gmra.mxu0 %v574
        %v1166 = vpop.f32.mrf.mxu0
        %v1167 = vadd.f32 0.0, %v1166
        %1168 = vmatmul.f32.gmra.mxu0 %v577
        %v1169 = vpop.f32.mrf.mxu0
        %v1170 = vadd.f32 0.0, %v1169
        %1171 = vmatmul.f32.gmra.mxu0 %v580
        %v1172 = vpop.f32.mrf.mxu0
        %v1173 = vadd.f32 0.0, %v1172
        %1174 = vmatmul.f32.gmra.mxu0 %v583
        %v1175 = vpop.f32.mrf.mxu0
        %v1176 = vadd.f32 0.0, %v1175
        %1177 = vmatmul.f32.gmra.mxu0 %v586
        %v1178 = vpop.f32.mrf.mxu0
        %v1179 = vadd.f32 0.0, %v1178
        %1180 = vmatmul.f32.gmra.mxu0 %v589
        %v1181 = vpop.f32.mrf.mxu0
        %v1182 = vadd.f32 0.0, %v1181
        %1183 = vmatmul.f32.gmra.mxu0 %v592
        %v1184 = vpop.f32.mrf.mxu0
        %v1185 = vadd.f32 0.0, %v1184
        %1186 = vmatmul.f32.gmra.mxu0 %v595
        %v1187 = vpop.f32.mrf.mxu0
        %v1188 = vadd.f32 0.0, %v1187
        %1189 = vmatmul.f32.gmra.mxu0 %v598
        %v1190 = vpop.f32.mrf.mxu0
        %v1191 = vadd.f32 0.0, %v1190
        %1192 = vmatmul.f32.gmra.mxu0 %v601
        %v1193 = vpop.f32.mrf.mxu0
        %v1194 = vadd.f32 0.0, %v1193
        %1195 = vmatmul.f32.gmra.mxu0 %v604
        %v1196 = vpop.f32.mrf.mxu0
        %v1197 = vadd.f32 0.0, %v1196
        %1198 = vmatmul.f32.gmra.mxu0 %v607
        %v1199 = vpop.f32.mrf.mxu0
        %v1200 = vadd.f32 0.0, %v1199
        %1201 = vmatmul.f32.gmra.mxu0 %v610
        %v1202 = vpop.f32.mrf.mxu0
        %v1203 = vadd.f32 0.0, %v1202
        %1204 = vmatmul.f32.gmra.mxu0 %v613
        %v1205 = vpop.f32.mrf.mxu0
        %v1206 = vadd.f32 0.0, %v1205
        %1207 = vmatmul.f32.gmra.mxu0 %v616
        %v1208 = vpop.f32.mrf.mxu0
        %v1209 = vadd.f32 0.0, %v1208
        %1210 = vmatmul.f32.gmra.mxu0 %v619
        %v1211 = vpop.f32.mrf.mxu0
        %v1212 = vadd.f32 0.0, %v1211
        %1213 = vmatmul.f32.gmra.mxu0 %v622
        %v1214 = vpop.f32.mrf.mxu0
        %v1215 = vadd.f32 0.0, %v1214
        %1216 = vmatmul.f32.gmra.mxu0 %v625
        %v1217 = vpop.f32.mrf.mxu0
        %v1218 = vadd.f32 0.0, %v1217
        %1219 = vmatmul.f32.gmra.mxu0 %v628
        %v1220 = vpop.f32.mrf.mxu0
        %v1221 = vadd.f32 0.0, %v1220
        %1222 = vmatmul.f32.gmra.mxu0 %v631
        %v1223 = vpop.f32.mrf.mxu0
        %v1224 = vadd.f32 0.0, %v1223
        %1225 = vmatmul.f32.gmra.mxu0 %v634
        %v1226 = vpop.f32.mrf.mxu0
        %v1227 = vadd.f32 0.0, %v1226
        %1228 = vmatmul.f32.gmra.mxu0 %v637
        %v1229 = vpop.f32.mrf.mxu0
        %v1230 = vadd.f32 0.0, %v1229
        %1231 = vmatmul.f32.gmra.mxu0 %v640
        %v1232 = vpop.f32.mrf.mxu0
        %v1233 = vadd.f32 0.0, %v1232
        %1234 = vmatmul.f32.gmra.mxu0 %v643
        %v1235 = vpop.f32.mrf.mxu0
        %v1236 = vadd.f32 0.0, %v1235
        %1237 = vmatmul.f32.gmra.mxu0 %v646
        %v1238 = vpop.f32.mrf.mxu0
        %v1239 = vadd.f32 0.0, %v1238
        %1240 = vmatmul.f32.gmra.mxu0 %v649
        %v1241 = vpop.f32.mrf.mxu0
        %v1242 = vadd.f32 0.0, %v1241
        %1243 = vmatmul.f32.gmra.mxu0 %v652
        %v1244 = vpop.f32.mrf.mxu0
        %v1245 = vadd.f32 0.0, %v1244
        %1246 = vmatmul.f32.gmra.mxu0 %v655
        %v1247 = vpop.f32.mrf.mxu0
        %v1248 = vadd.f32 0.0, %v1247
        %1249 = vmatmul.f32.gmra.mxu0 %v658
        %v1250 = vpop.f32.mrf.mxu0
        %v1251 = vadd.f32 0.0, %v1250
        %1252 = vmatmul.f32.gmra.mxu0 %v661
        %v1253 = vpop.f32.mrf.mxu0
        %v1254 = vadd.f32 0.0, %v1253
        %1255 = vmatmul.f32.gmra.mxu0 %v664
        %v1256 = vpop.f32.mrf.mxu0
        %v1257 = vadd.f32 0.0, %v1256
        %1258 = vmatmul.f32.gmra.mxu0 %v667
        %v1259 = vpop.f32.mrf.mxu0
        %v1260 = vadd.f32 0.0, %v1259
        %1261 = vmatmul.f32.gmra.mxu0 %v670
        %v1262 = vpop.f32.mrf.mxu0
        %v1263 = vadd.f32 0.0, %v1262
        %1264 = vdwg.mxu0
        %1265 = vmatpush.xpose.msra.mxu0 %v766
        %1266 = vmatpush.xpose.msra.mxu0 %v763
        %1267 = vmatpush.xpose.msra.mxu0 %v760
        %1268 = vmatpush.xpose.msra.mxu0 %v757
        %1269 = vmatpush.xpose.msra.mxu0 %v754
        %1270 = vmatpush.xpose.msra.mxu0 %v751
        %1271 = vmatpush.xpose.msra.mxu0 %v748
        %1272 = vmatpush.xpose.msra.mxu0 %v745
        %1273 = vmatpush.xpose.msra.mxu0 %v742
        %1274 = vmatpush.xpose.msra.mxu0 %v739
        %1275 = vmatpush.xpose.msra.mxu0 %v736
        %1276 = vmatpush.xpose.msra.mxu0 %v733
        %1277 = vmatpush.xpose.msra.mxu0 %v730
        %1278 = vmatpush.xpose.msra.mxu0 %v727
        %1279 = vmatpush.xpose.msra.mxu0 %v724
        %1280 = vmatpush.xpose.msra.mxu0 %v721
        %1281 = vmatmul.f32.gmra.mxu0 %v481
        %v1282 = vpop.f32.mrf.mxu0
        %v1283 = vadd.f32 0.0, %v1282
        %1284 = vmatmul.f32.gmra.mxu0 %v484
        %v1285 = vpop.f32.mrf.mxu0
        %v1286 = vadd.f32 0.0, %v1285
        %1287 = vmatmul.f32.gmra.mxu0 %v487
        %v1288 = vpop.f32.mrf.mxu0
        %v1289 = vadd.f32 0.0, %v1288
        %1290 = vmatmul.f32.gmra.mxu0 %v490
        %v1291 = vpop.f32.mrf.mxu0
        %v1292 = vadd.f32 0.0, %v1291
        %1293 = vmatmul.f32.gmra.mxu0 %v493
        %v1294 = vpop.f32.mrf.mxu0
        %v1295 = vadd.f32 0.0, %v1294
        %1296 = vmatmul.f32.gmra.mxu0 %v496
        %v1297 = vpop.f32.mrf.mxu0
        %v1298 = vadd.f32 0.0, %v1297
        %1299 = vmatmul.f32.gmra.mxu0 %v499
        %v1300 = vpop.f32.mrf.mxu0
        %v1301 = vadd.f32 0.0, %v1300
        %1302 = vmatmul.f32.gmra.mxu0 %v502
        %v1303 = vpop.f32.mrf.mxu0
        %v1304 = vadd.f32 0.0, %v1303
        %1305 = vmatmul.f32.gmra.mxu0 %v505
        %v1306 = vpop.f32.mrf.mxu0
        %v1307 = vadd.f32 0.0, %v1306
        %1308 = vmatmul.f32.gmra.mxu0 %v508
        %v1309 = vpop.f32.mrf.mxu0
        %v1310 = vadd.f32 0.0, %v1309
        %1311 = vmatmul.f32.gmra.mxu0 %v511
        %v1312 = vpop.f32.mrf.mxu0
        %v1313 = vadd.f32 0.0, %v1312
        %1314 = vmatmul.f32.gmra.mxu0 %v514
        %v1315 = vpop.f32.mrf.mxu0
        %v1316 = vadd.f32 0.0, %v1315
        %1317 = vmatmul.f32.gmra.mxu0 %v517
        %v1318 = vpop.f32.mrf.mxu0
        %v1319 = vadd.f32 0.0, %v1318
        %1320 = vmatmul.f32.gmra.mxu0 %v520
        %v1321 = vpop.f32.mrf.mxu0
        %v1322 = vadd.f32 0.0, %v1321
        %1323 = vmatmul.f32.gmra.mxu0 %v523
        %v1324 = vpop.f32.mrf.mxu0
        %v1325 = vadd.f32 0.0, %v1324
        %1326 = vmatmul.f32.gmra.mxu0 %v526
        %v1327 = vpop.f32.mrf.mxu0
        %v1328 = vadd.f32 0.0, %v1327
        %1329 = vmatmul.f32.gmra.mxu0 %v529
        %v1330 = vpop.f32.mrf.mxu0
        %v1331 = vadd.f32 0.0, %v1330
        %1332 = vmatmul.f32.gmra.mxu0 %v532
        %v1333 = vpop.f32.mrf.mxu0
        %v1334 = vadd.f32 0.0, %v1333
        %1335 = vmatmul.f32.gmra.mxu0 %v535
        %v1336 = vpop.f32.mrf.mxu0
        %v1337 = vadd.f32 0.0, %v1336
        %1338 = vmatmul.f32.gmra.mxu0 %v538
        %v1339 = vpop.f32.mrf.mxu0
        %v1340 = vadd.f32 0.0, %v1339
        %1341 = vmatmul.f32.gmra.mxu0 %v541
        %v1342 = vpop.f32.mrf.mxu0
        %v1343 = vadd.f32 0.0, %v1342
        %1344 = vmatmul.f32.gmra.mxu0 %v544
        %v1345 = vpop.f32.mrf.mxu0
        %v1346 = vadd.f32 0.0, %v1345
        %1347 = vmatmul.f32.gmra.mxu0 %v547
        %v1348 = vpop.f32.mrf.mxu0
        %v1349 = vadd.f32 0.0, %v1348
        %1350 = vmatmul.f32.gmra.mxu0 %v550
        %v1351 = vpop.f32.mrf.mxu0
        %v1352 = vadd.f32 0.0, %v1351
        %1353 = vmatmul.f32.gmra.mxu0 %v553
        %v1354 = vpop.f32.mrf.mxu0
        %v1355 = vadd.f32 0.0, %v1354
        %1356 = vmatmul.f32.gmra.mxu0 %v556
        %v1357 = vpop.f32.mrf.mxu0
        %v1358 = vadd.f32 0.0, %v1357
        %1359 = vmatmul.f32.gmra.mxu0 %v559
        %v1360 = vpop.f32.mrf.mxu0
        %v1361 = vadd.f32 0.0, %v1360
        %1362 = vmatmul.f32.gmra.mxu0 %v562
        %v1363 = vpop.f32.mrf.mxu0
        %v1364 = vadd.f32 0.0, %v1363
        %1365 = vmatmul.f32.gmra.mxu0 %v565
        %v1366 = vpop.f32.mrf.mxu0
        %v1367 = vadd.f32 0.0, %v1366
        %1368 = vmatmul.f32.gmra.mxu0 %v568
        %v1369 = vpop.f32.mrf.mxu0
        %v1370 = vadd.f32 0.0, %v1369
        %1371 = vmatmul.f32.gmra.mxu0 %v571
        %v1372 = vpop.f32.mrf.mxu0
        %v1373 = vadd.f32 0.0, %v1372
        %1374 = vmatmul.f32.gmra.mxu0 %v574
        %v1375 = vpop.f32.mrf.mxu0
        %v1376 = vadd.f32 0.0, %v1375
        %1377 = vmatmul.f32.gmra.mxu0 %v577
        %v1378 = vpop.f32.mrf.mxu0
        %v1379 = vadd.f32 0.0, %v1378
        %1380 = vmatmul.f32.gmra.mxu0 %v580
        %v1381 = vpop.f32.mrf.mxu0
        %v1382 = vadd.f32 0.0, %v1381
        %1383 = vmatmul.f32.gmra.mxu0 %v583
        %v1384 = vpop.f32.mrf.mxu0
        %v1385 = vadd.f32 0.0, %v1384
        %1386 = vmatmul.f32.gmra.mxu0 %v586
        %v1387 = vpop.f32.mrf.mxu0
        %v1388 = vadd.f32 0.0, %v1387
        %1389 = vmatmul.f32.gmra.mxu0 %v589
        %v1390 = vpop.f32.mrf.mxu0
        %v1391 = vadd.f32 0.0, %v1390
        %1392 = vmatmul.f32.gmra.mxu0 %v592
        %v1393 = vpop.f32.mrf.mxu0
        %v1394 = vadd.f32 0.0, %v1393
        %1395 = vmatmul.f32.gmra.mxu0 %v595
        %v1396 = vpop.f32.mrf.mxu0
        %v1397 = vadd.f32 0.0, %v1396
        %1398 = vmatmul.f32.gmra.mxu0 %v598
        %v1399 = vpop.f32.mrf.mxu0
        %v1400 = vadd.f32 0.0, %v1399
        %1401 = vmatmul.f32.gmra.mxu0 %v601
        %v1402 = vpop.f32.mrf.mxu0
        %v1403 = vadd.f32 0.0, %v1402
        %1404 = vmatmul.f32.gmra.mxu0 %v604
        %v1405 = vpop.f32.mrf.mxu0
        %v1406 = vadd.f32 0.0, %v1405
        %1407 = vmatmul.f32.gmra.mxu0 %v607
        %v1408 = vpop.f32.mrf.mxu0
        %v1409 = vadd.f32 0.0, %v1408
        %1410 = vmatmul.f32.gmra.mxu0 %v610
        %v1411 = vpop.f32.mrf.mxu0
        %v1412 = vadd.f32 0.0, %v1411
        %1413 = vmatmul.f32.gmra.mxu0 %v613
        %v1414 = vpop.f32.mrf.mxu0
        %v1415 = vadd.f32 0.0, %v1414
        %1416 = vmatmul.f32.gmra.mxu0 %v616
        %v1417 = vpop.f32.mrf.mxu0
        %v1418 = vadd.f32 0.0, %v1417
        %1419 = vmatmul.f32.gmra.mxu0 %v619
        %v1420 = vpop.f32.mrf.mxu0
        %v1421 = vadd.f32 0.0, %v1420
        %1422 = vmatmul.f32.gmra.mxu0 %v622
        %v1423 = vpop.f32.mrf.mxu0
        %v1424 = vadd.f32 0.0, %v1423
        %1425 = vmatmul.f32.gmra.mxu0 %v625
        %v1426 = vpop.f32.mrf.mxu0
        %v1427 = vadd.f32 0.0, %v1426
        %1428 = vmatmul.f32.gmra.mxu0 %v628
        %v1429 = vpop.f32.mrf.mxu0
        %v1430 = vadd.f32 0.0, %v1429
        %1431 = vmatmul.f32.gmra.mxu0 %v631
        %v1432 = vpop.f32.mrf.mxu0
        %v1433 = vadd.f32 0.0, %v1432
        %1434 = vmatmul.f32.gmra.mxu0 %v634
        %v1435 = vpop.f32.mrf.mxu0
        %v1436 = vadd.f32 0.0, %v1435
        %1437 = vmatmul.f32.gmra.mxu0 %v637
        %v1438 = vpop.f32.mrf.mxu0
        %v1439 = vadd.f32 0.0, %v1438
        %1440 = vmatmul.f32.gmra.mxu0 %v640
        %v1441 = vpop.f32.mrf.mxu0
        %v1442 = vadd.f32 0.0, %v1441
        %1443 = vmatmul.f32.gmra.mxu0 %v643
        %v1444 = vpop.f32.mrf.mxu0
        %v1445 = vadd.f32 0.0, %v1444
        %1446 = vmatmul.f32.gmra.mxu0 %v646
        %v1447 = vpop.f32.mrf.mxu0
        %v1448 = vadd.f32 0.0, %v1447
        %1449 = vmatmul.f32.gmra.mxu0 %v649
        %v1450 = vpop.f32.mrf.mxu0
        %v1451 = vadd.f32 0.0, %v1450
        %1452 = vmatmul.f32.gmra.mxu0 %v652
        %v1453 = vpop.f32.mrf.mxu0
        %v1454 = vadd.f32 0.0, %v1453
        %1455 = vmatmul.f32.gmra.mxu0 %v655
        %v1456 = vpop.f32.mrf.mxu0
        %v1457 = vadd.f32 0.0, %v1456
        %1458 = vmatmul.f32.gmra.mxu0 %v658
        %v1459 = vpop.f32.mrf.mxu0
        %v1460 = vadd.f32 0.0, %v1459
        %1461 = vmatmul.f32.gmra.mxu0 %v661
        %v1462 = vpop.f32.mrf.mxu0
        %v1463 = vadd.f32 0.0, %v1462
        %1464 = vmatmul.f32.gmra.mxu0 %v664
        %v1465 = vpop.f32.mrf.mxu0
        %v1466 = vadd.f32 0.0, %v1465
        %1467 = vmatmul.f32.gmra.mxu0 %v667
        %v1468 = vpop.f32.mrf.mxu0
        %v1469 = vadd.f32 0.0, %v1468
        %1470 = vmatmul.f32.gmra.mxu0 %v670
        %v1471 = vpop.f32.mrf.mxu0
        %v1472 = vadd.f32 0.0, %v1471
        %1473 = vdwg.mxu0
        %1474 = vmatpush.xpose.msra.mxu0 %v814
        %1475 = vmatpush.xpose.msra.mxu0 %v811
        %1476 = vmatpush.xpose.msra.mxu0 %v808
        %1477 = vmatpush.xpose.msra.mxu0 %v805
        %1478 = vmatpush.xpose.msra.mxu0 %v802
        %1479 = vmatpush.xpose.msra.mxu0 %v799
        %1480 = vmatpush.xpose.msra.mxu0 %v796
        %1481 = vmatpush.xpose.msra.mxu0 %v793
        %1482 = vmatpush.xpose.msra.mxu0 %v790
        %1483 = vmatpush.xpose.msra.mxu0 %v787
        %1484 = vmatpush.xpose.msra.mxu0 %v784
        %1485 = vmatpush.xpose.msra.mxu0 %v781
        %1486 = vmatpush.xpose.msra.mxu0 %v778
        %1487 = vmatpush.xpose.msra.mxu0 %v775
        %1488 = vmatpush.xpose.msra.mxu0 %v772
        %1489 = vmatpush.xpose.msra.mxu0 %v769
        %1490 = vmatmul.f32.gmra.mxu0 %v481
        %v1491 = vpop.f32.mrf.mxu0
        %v1492 = vadd.f32 0.0, %v1491
        %1493 = vmatmul.f32.gmra.mxu0 %v484
        %v1494 = vpop.f32.mrf.mxu0
        %v1495 = vadd.f32 0.0, %v1494
        %1496 = vmatmul.f32.gmra.mxu0 %v487
        %v1497 = vpop.f32.mrf.mxu0
        %v1498 = vadd.f32 0.0, %v1497
        %1499 = vmatmul.f32.gmra.mxu0 %v490
        %v1500 = vpop.f32.mrf.mxu0
        %v1501 = vadd.f32 0.0, %v1500
        %1502 = vmatmul.f32.gmra.mxu0 %v493
        %v1503 = vpop.f32.mrf.mxu0
        %v1504 = vadd.f32 0.0, %v1503
        %1505 = vmatmul.f32.gmra.mxu0 %v496
        %v1506 = vpop.f32.mrf.mxu0
        %v1507 = vadd.f32 0.0, %v1506
        %1508 = vmatmul.f32.gmra.mxu0 %v499
        %v1509 = vpop.f32.mrf.mxu0
        %v1510 = vadd.f32 0.0, %v1509
        %1511 = vmatmul.f32.gmra.mxu0 %v502
        %v1512 = vpop.f32.mrf.mxu0
        %v1513 = vadd.f32 0.0, %v1512
        %1514 = vmatmul.f32.gmra.mxu0 %v505
        %v1515 = vpop.f32.mrf.mxu0
        %v1516 = vadd.f32 0.0, %v1515
        %1517 = vmatmul.f32.gmra.mxu0 %v508
        %v1518 = vpop.f32.mrf.mxu0
        %v1519 = vadd.f32 0.0, %v1518
        %1520 = vmatmul.f32.gmra.mxu0 %v511
        %v1521 = vpop.f32.mrf.mxu0
        %v1522 = vadd.f32 0.0, %v1521
        %1523 = vmatmul.f32.gmra.mxu0 %v514
        %v1524 = vpop.f32.mrf.mxu0
        %v1525 = vadd.f32 0.0, %v1524
        %1526 = vmatmul.f32.gmra.mxu0 %v517
        %v1527 = vpop.f32.mrf.mxu0
        %v1528 = vadd.f32 0.0, %v1527
        %1529 = vmatmul.f32.gmra.mxu0 %v520
        %v1530 = vpop.f32.mrf.mxu0
        %v1531 = vadd.f32 0.0, %v1530
        %1532 = vmatmul.f32.gmra.mxu0 %v523
        %v1533 = vpop.f32.mrf.mxu0
        %v1534 = vadd.f32 0.0, %v1533
        %1535 = vmatmul.f32.gmra.mxu0 %v526
        %v1536 = vpop.f32.mrf.mxu0
        %v1537 = vadd.f32 0.0, %v1536
        %1538 = vmatmul.f32.gmra.mxu0 %v529
        %v1539 = vpop.f32.mrf.mxu0
        %v1540 = vadd.f32 0.0, %v1539
        %1541 = vmatmul.f32.gmra.mxu0 %v532
        %v1542 = vpop.f32.mrf.mxu0
        %v1543 = vadd.f32 0.0, %v1542
        %1544 = vmatmul.f32.gmra.mxu0 %v535
        %v1545 = vpop.f32.mrf.mxu0
        %v1546 = vadd.f32 0.0, %v1545
        %1547 = vmatmul.f32.gmra.mxu0 %v538
        %v1548 = vpop.f32.mrf.mxu0
        %v1549 = vadd.f32 0.0, %v1548
        %1550 = vmatmul.f32.gmra.mxu0 %v541
        %v1551 = vpop.f32.mrf.mxu0
        %v1552 = vadd.f32 0.0, %v1551
        %1553 = vmatmul.f32.gmra.mxu0 %v544
        %v1554 = vpop.f32.mrf.mxu0
        %v1555 = vadd.f32 0.0, %v1554
        %1556 = vmatmul.f32.gmra.mxu0 %v547
        %v1557 = vpop.f32.mrf.mxu0
        %v1558 = vadd.f32 0.0, %v1557
        %1559 = vmatmul.f32.gmra.mxu0 %v550
        %v1560 = vpop.f32.mrf.mxu0
        %v1561 = vadd.f32 0.0, %v1560
        %1562 = vmatmul.f32.gmra.mxu0 %v553
        %v1563 = vpop.f32.mrf.mxu0
        %v1564 = vadd.f32 0.0, %v1563
        %1565 = vmatmul.f32.gmra.mxu0 %v556
        %v1566 = vpop.f32.mrf.mxu0
        %v1567 = vadd.f32 0.0, %v1566
        %1568 = vmatmul.f32.gmra.mxu0 %v559
        %v1569 = vpop.f32.mrf.mxu0
        %v1570 = vadd.f32 0.0, %v1569
        %1571 = vmatmul.f32.gmra.mxu0 %v562
        %v1572 = vpop.f32.mrf.mxu0
        %v1573 = vadd.f32 0.0, %v1572
        %1574 = vmatmul.f32.gmra.mxu0 %v565
        %v1575 = vpop.f32.mrf.mxu0
        %v1576 = vadd.f32 0.0, %v1575
        %1577 = vmatmul.f32.gmra.mxu0 %v568
        %v1578 = vpop.f32.mrf.mxu0
        %v1579 = vadd.f32 0.0, %v1578
        %1580 = vmatmul.f32.gmra.mxu0 %v571
        %v1581 = vpop.f32.mrf.mxu0
        %v1582 = vadd.f32 0.0, %v1581
        %1583 = vmatmul.f32.gmra.mxu0 %v574
        %v1584 = vpop.f32.mrf.mxu0
        %v1585 = vadd.f32 0.0, %v1584
        %1586 = vmatmul.f32.gmra.mxu0 %v577
        %v1587 = vpop.f32.mrf.mxu0
        %v1588 = vadd.f32 0.0, %v1587
        %1589 = vmatmul.f32.gmra.mxu0 %v580
        %v1590 = vpop.f32.mrf.mxu0
        %v1591 = vadd.f32 0.0, %v1590
        %1592 = vmatmul.f32.gmra.mxu0 %v583
        %v1593 = vpop.f32.mrf.mxu0
        %v1594 = vadd.f32 0.0, %v1593
        %1595 = vmatmul.f32.gmra.mxu0 %v586
        %v1596 = vpop.f32.mrf.mxu0
        %v1597 = vadd.f32 0.0, %v1596
        %1598 = vmatmul.f32.gmra.mxu0 %v589
        %v1599 = vpop.f32.mrf.mxu0
        %v1600 = vadd.f32 0.0, %v1599
        %1601 = vmatmul.f32.gmra.mxu0 %v592
        %v1602 = vpop.f32.mrf.mxu0
        %v1603 = vadd.f32 0.0, %v1602
        %1604 = vmatmul.f32.gmra.mxu0 %v595
        %v1605 = vpop.f32.mrf.mxu0
        %v1606 = vadd.f32 0.0, %v1605
        %1607 = vmatmul.f32.gmra.mxu0 %v598
        %v1608 = vpop.f32.mrf.mxu0
        %v1609 = vadd.f32 0.0, %v1608
        %1610 = vmatmul.f32.gmra.mxu0 %v601
        %v1611 = vpop.f32.mrf.mxu0
        %v1612 = vadd.f32 0.0, %v1611
        %1613 = vmatmul.f32.gmra.mxu0 %v604
        %v1614 = vpop.f32.mrf.mxu0
        %v1615 = vadd.f32 0.0, %v1614
        %1616 = vmatmul.f32.gmra.mxu0 %v607
        %v1617 = vpop.f32.mrf.mxu0
        %v1618 = vadd.f32 0.0, %v1617
        %1619 = vmatmul.f32.gmra.mxu0 %v610
        %v1620 = vpop.f32.mrf.mxu0
        %v1621 = vadd.f32 0.0, %v1620
        %1622 = vmatmul.f32.gmra.mxu0 %v613
        %v1623 = vpop.f32.mrf.mxu0
        %v1624 = vadd.f32 0.0, %v1623
        %1625 = vmatmul.f32.gmra.mxu0 %v616
        %v1626 = vpop.f32.mrf.mxu0
        %v1627 = vadd.f32 0.0, %v1626
        %1628 = vmatmul.f32.gmra.mxu0 %v619
        %v1629 = vpop.f32.mrf.mxu0
        %v1630 = vadd.f32 0.0, %v1629
        %1631 = vmatmul.f32.gmra.mxu0 %v622
        %v1632 = vpop.f32.mrf.mxu0
        %v1633 = vadd.f32 0.0, %v1632
        %1634 = vmatmul.f32.gmra.mxu0 %v625
        %v1635 = vpop.f32.mrf.mxu0
        %v1636 = vadd.f32 0.0, %v1635
        %1637 = vmatmul.f32.gmra.mxu0 %v628
        %v1638 = vpop.f32.mrf.mxu0
        %v1639 = vadd.f32 0.0, %v1638
        %1640 = vmatmul.f32.gmra.mxu0 %v631
        %v1641 = vpop.f32.mrf.mxu0
        %v1642 = vadd.f32 0.0, %v1641
        %1643 = vmatmul.f32.gmra.mxu0 %v634
        %v1644 = vpop.f32.mrf.mxu0
        %v1645 = vadd.f32 0.0, %v1644
        %1646 = vmatmul.f32.gmra.mxu0 %v637
        %v1647 = vpop.f32.mrf.mxu0
        %v1648 = vadd.f32 0.0, %v1647
        %1649 = vmatmul.f32.gmra.mxu0 %v640
        %v1650 = vpop.f32.mrf.mxu0
        %v1651 = vadd.f32 0.0, %v1650
        %1652 = vmatmul.f32.gmra.mxu0 %v643
        %v1653 = vpop.f32.mrf.mxu0
        %v1654 = vadd.f32 0.0, %v1653
        %1655 = vmatmul.f32.gmra.mxu0 %v646
        %v1656 = vpop.f32.mrf.mxu0
        %v1657 = vadd.f32 0.0, %v1656
        %1658 = vmatmul.f32.gmra.mxu0 %v649
        %v1659 = vpop.f32.mrf.mxu0
        %v1660 = vadd.f32 0.0, %v1659
        %1661 = vmatmul.f32.gmra.mxu0 %v652
        %v1662 = vpop.f32.mrf.mxu0
        %v1663 = vadd.f32 0.0, %v1662
        %1664 = vmatmul.f32.gmra.mxu0 %v655
        %v1665 = vpop.f32.mrf.mxu0
        %v1666 = vadd.f32 0.0, %v1665
        %1667 = vmatmul.f32.gmra.mxu0 %v658
        %v1668 = vpop.f32.mrf.mxu0
        %v1669 = vadd.f32 0.0, %v1668
        %1670 = vmatmul.f32.gmra.mxu0 %v661
        %v1671 = vpop.f32.mrf.mxu0
        %v1672 = vadd.f32 0.0, %v1671
        %1673 = vmatmul.f32.gmra.mxu0 %v664
        %v1674 = vpop.f32.mrf.mxu0
        %v1675 = vadd.f32 0.0, %v1674
        %1676 = vmatmul.f32.gmra.mxu0 %v667
        %v1677 = vpop.f32.mrf.mxu0
        %v1678 = vadd.f32 0.0, %v1677
        %1679 = vmatmul.f32.gmra.mxu0 %v670
        %v1680 = vpop.f32.mrf.mxu0
        %v1681 = vadd.f32 0.0, %v1680
        %1682 = vdwg.mxu0
        %1683 = vmatpush.xpose.msra.mxu0 %v862
        %1684 = vmatpush.xpose.msra.mxu0 %v859
        %1685 = vmatpush.xpose.msra.mxu0 %v856
        %1686 = vmatpush.xpose.msra.mxu0 %v853
        %1687 = vmatpush.xpose.msra.mxu0 %v850
        %1688 = vmatpush.xpose.msra.mxu0 %v847
        %1689 = vmatpush.xpose.msra.mxu0 %v844
        %1690 = vmatpush.xpose.msra.mxu0 %v841
        %1691 = vmatpush.xpose.msra.mxu0 %v838
        %1692 = vmatpush.xpose.msra.mxu0 %v835
        %1693 = vmatpush.xpose.msra.mxu0 %v832
        %1694 = vmatpush.xpose.msra.mxu0 %v829
        %1695 = vmatpush.xpose.msra.mxu0 %v826
        %1696 = vmatpush.xpose.msra.mxu0 %v823
        %1697 = vmatpush.xpose.msra.mxu0 %v820
        %1698 = vmatpush.xpose.msra.mxu0 %v817
        %1699 = vmatmul.f32.gmra.mxu0 %v481
        %v1700 = vpop.f32.mrf.mxu0
        %v1701 = vadd.f32 0.0, %v1700
        %1702 = vmatmul.f32.gmra.mxu0 %v484
        %v1703 = vpop.f32.mrf.mxu0
        %v1704 = vadd.f32 0.0, %v1703
        %1705 = vmatmul.f32.gmra.mxu0 %v487
        %v1706 = vpop.f32.mrf.mxu0
        %v1707 = vadd.f32 0.0, %v1706
        %1708 = vmatmul.f32.gmra.mxu0 %v490
        %v1709 = vpop.f32.mrf.mxu0
        %v1710 = vadd.f32 0.0, %v1709
        %1711 = vmatmul.f32.gmra.mxu0 %v493
        %v1712 = vpop.f32.mrf.mxu0
        %v1713 = vadd.f32 0.0, %v1712
        %1714 = vmatmul.f32.gmra.mxu0 %v496
        %v1715 = vpop.f32.mrf.mxu0
        %v1716 = vadd.f32 0.0, %v1715
        %1717 = vmatmul.f32.gmra.mxu0 %v499
        %v1718 = vpop.f32.mrf.mxu0
        %v1719 = vadd.f32 0.0, %v1718
        %1720 = vmatmul.f32.gmra.mxu0 %v502
        %v1721 = vpop.f32.mrf.mxu0
        %v1722 = vadd.f32 0.0, %v1721
        %1723 = vmatmul.f32.gmra.mxu0 %v505
        %v1724 = vpop.f32.mrf.mxu0
        %v1725 = vadd.f32 0.0, %v1724
        %1726 = vmatmul.f32.gmra.mxu0 %v508
        %v1727 = vpop.f32.mrf.mxu0
        %v1728 = vadd.f32 0.0, %v1727
        %1729 = vmatmul.f32.gmra.mxu0 %v511
        %v1730 = vpop.f32.mrf.mxu0
        %v1731 = vadd.f32 0.0, %v1730
        %1732 = vmatmul.f32.gmra.mxu0 %v514
        %v1733 = vpop.f32.mrf.mxu0
        %v1734 = vadd.f32 0.0, %v1733
        %1735 = vmatmul.f32.gmra.mxu0 %v517
        %v1736 = vpop.f32.mrf.mxu0
        %v1737 = vadd.f32 0.0, %v1736
        %1738 = vmatmul.f32.gmra.mxu0 %v520
        %v1739 = vpop.f32.mrf.mxu0
        %v1740 = vadd.f32 0.0, %v1739
        %1741 = vmatmul.f32.gmra.mxu0 %v523
        %v1742 = vpop.f32.mrf.mxu0
        %v1743 = vadd.f32 0.0, %v1742
        %1744 = vmatmul.f32.gmra.mxu0 %v526
        %v1745 = vpop.f32.mrf.mxu0
        %v1746 = vadd.f32 0.0, %v1745
        %1747 = vmatmul.f32.gmra.mxu0 %v529
        %v1748 = vpop.f32.mrf.mxu0
        %v1749 = vadd.f32 0.0, %v1748
        %1750 = vmatmul.f32.gmra.mxu0 %v532
        %v1751 = vpop.f32.mrf.mxu0
        %v1752 = vadd.f32 0.0, %v1751
        %1753 = vmatmul.f32.gmra.mxu0 %v535
        %v1754 = vpop.f32.mrf.mxu0
        %v1755 = vadd.f32 0.0, %v1754
        %1756 = vmatmul.f32.gmra.mxu0 %v538
        %v1757 = vpop.f32.mrf.mxu0
        %v1758 = vadd.f32 0.0, %v1757
        %1759 = vmatmul.f32.gmra.mxu0 %v541
        %v1760 = vpop.f32.mrf.mxu0
        %v1761 = vadd.f32 0.0, %v1760
        %1762 = vmatmul.f32.gmra.mxu0 %v544
        %v1763 = vpop.f32.mrf.mxu0
        %v1764 = vadd.f32 0.0, %v1763
        %1765 = vmatmul.f32.gmra.mxu0 %v547
        %v1766 = vpop.f32.mrf.mxu0
        %v1767 = vadd.f32 0.0, %v1766
        %1768 = vmatmul.f32.gmra.mxu0 %v550
        %v1769 = vpop.f32.mrf.mxu0
        %v1770 = vadd.f32 0.0, %v1769
        %1771 = vmatmul.f32.gmra.mxu0 %v553
        %v1772 = vpop.f32.mrf.mxu0
        %v1773 = vadd.f32 0.0, %v1772
        %1774 = vmatmul.f32.gmra.mxu0 %v556
        %v1775 = vpop.f32.mrf.mxu0
        %v1776 = vadd.f32 0.0, %v1775
        %1777 = vmatmul.f32.gmra.mxu0 %v559
        %v1778 = vpop.f32.mrf.mxu0
        %v1779 = vadd.f32 0.0, %v1778
        %1780 = vmatmul.f32.gmra.mxu0 %v562
        %v1781 = vpop.f32.mrf.mxu0
        %v1782 = vadd.f32 0.0, %v1781
        %1783 = vmatmul.f32.gmra.mxu0 %v565
        %v1784 = vpop.f32.mrf.mxu0
        %v1785 = vadd.f32 0.0, %v1784
        %1786 = vmatmul.f32.gmra.mxu0 %v568
        %v1787 = vpop.f32.mrf.mxu0
        %v1788 = vadd.f32 0.0, %v1787
        %1789 = vmatmul.f32.gmra.mxu0 %v571
        %v1790 = vpop.f32.mrf.mxu0
        %v1791 = vadd.f32 0.0, %v1790
        %1792 = vmatmul.f32.gmra.mxu0 %v574
        %v1793 = vpop.f32.mrf.mxu0
        %v1794 = vadd.f32 0.0, %v1793
        %1795 = vmatmul.f32.gmra.mxu0 %v577
        %v1796 = vpop.f32.mrf.mxu0
        %v1797 = vadd.f32 0.0, %v1796
        %1798 = vmatmul.f32.gmra.mxu0 %v580
        %v1799 = vpop.f32.mrf.mxu0
        %v1800 = vadd.f32 0.0, %v1799
        %1801 = vmatmul.f32.gmra.mxu0 %v583
        %v1802 = vpop.f32.mrf.mxu0
        %v1803 = vadd.f32 0.0, %v1802
        %1804 = vmatmul.f32.gmra.mxu0 %v586
        %v1805 = vpop.f32.mrf.mxu0
        %v1806 = vadd.f32 0.0, %v1805
        %1807 = vmatmul.f32.gmra.mxu0 %v589
        %v1808 = vpop.f32.mrf.mxu0
        %v1809 = vadd.f32 0.0, %v1808
        %1810 = vmatmul.f32.gmra.mxu0 %v592
        %v1811 = vpop.f32.mrf.mxu0
        %v1812 = vadd.f32 0.0, %v1811
        %1813 = vmatmul.f32.gmra.mxu0 %v595
        %v1814 = vpop.f32.mrf.mxu0
        %v1815 = vadd.f32 0.0, %v1814
        %1816 = vmatmul.f32.gmra.mxu0 %v598
        %v1817 = vpop.f32.mrf.mxu0
        %v1818 = vadd.f32 0.0, %v1817
        %1819 = vmatmul.f32.gmra.mxu0 %v601
        %v1820 = vpop.f32.mrf.mxu0
        %v1821 = vadd.f32 0.0, %v1820
        %1822 = vmatmul.f32.gmra.mxu0 %v604
        %v1823 = vpop.f32.mrf.mxu0
        %v1824 = vadd.f32 0.0, %v1823
        %1825 = vmatmul.f32.gmra.mxu0 %v607
        %v1826 = vpop.f32.mrf.mxu0
        %v1827 = vadd.f32 0.0, %v1826
        %1828 = vmatmul.f32.gmra.mxu0 %v610
        %v1829 = vpop.f32.mrf.mxu0
        %v1830 = vadd.f32 0.0, %v1829
        %1831 = vmatmul.f32.gmra.mxu0 %v613
        %v1832 = vpop.f32.mrf.mxu0
        %v1833 = vadd.f32 0.0, %v1832
        %1834 = vmatmul.f32.gmra.mxu0 %v616
        %v1835 = vpop.f32.mrf.mxu0
        %v1836 = vadd.f32 0.0, %v1835
        %1837 = vmatmul.f32.gmra.mxu0 %v619
        %v1838 = vpop.f32.mrf.mxu0
        %v1839 = vadd.f32 0.0, %v1838
        %1840 = vmatmul.f32.gmra.mxu0 %v622
        %v1841 = vpop.f32.mrf.mxu0
        %v1842 = vadd.f32 0.0, %v1841
        %1843 = vmatmul.f32.gmra.mxu0 %v625
        %v1844 = vpop.f32.mrf.mxu0
        %v1845 = vadd.f32 0.0, %v1844
        %1846 = vmatmul.f32.gmra.mxu0 %v628
        %v1847 = vpop.f32.mrf.mxu0
        %v1848 = vadd.f32 0.0, %v1847
        %1849 = vmatmul.f32.gmra.mxu0 %v631
        %v1850 = vpop.f32.mrf.mxu0
        %v1851 = vadd.f32 0.0, %v1850
        %1852 = vmatmul.f32.gmra.mxu0 %v634
        %v1853 = vpop.f32.mrf.mxu0
        %v1854 = vadd.f32 0.0, %v1853
        %1855 = vmatmul.f32.gmra.mxu0 %v637
        %v1856 = vpop.f32.mrf.mxu0
        %v1857 = vadd.f32 0.0, %v1856
        %1858 = vmatmul.f32.gmra.mxu0 %v640
        %v1859 = vpop.f32.mrf.mxu0
        %v1860 = vadd.f32 0.0, %v1859
        %1861 = vmatmul.f32.gmra.mxu0 %v643
        %v1862 = vpop.f32.mrf.mxu0
        %v1863 = vadd.f32 0.0, %v1862
        %1864 = vmatmul.f32.gmra.mxu0 %v646
        %v1865 = vpop.f32.mrf.mxu0
        %v1866 = vadd.f32 0.0, %v1865
        %1867 = vmatmul.f32.gmra.mxu0 %v649
        %v1868 = vpop.f32.mrf.mxu0
        %v1869 = vadd.f32 0.0, %v1868
        %1870 = vmatmul.f32.gmra.mxu0 %v652
        %v1871 = vpop.f32.mrf.mxu0
        %v1872 = vadd.f32 0.0, %v1871
        %1873 = vmatmul.f32.gmra.mxu0 %v655
        %v1874 = vpop.f32.mrf.mxu0
        %v1875 = vadd.f32 0.0, %v1874
        %1876 = vmatmul.f32.gmra.mxu0 %v658
        %v1877 = vpop.f32.mrf.mxu0
        %v1878 = vadd.f32 0.0, %v1877
        %1879 = vmatmul.f32.gmra.mxu0 %v661
        %v1880 = vpop.f32.mrf.mxu0
        %v1881 = vadd.f32 0.0, %v1880
        %1882 = vmatmul.f32.gmra.mxu0 %v664
        %v1883 = vpop.f32.mrf.mxu0
        %v1884 = vadd.f32 0.0, %v1883
        %1885 = vmatmul.f32.gmra.mxu0 %v667
        %v1886 = vpop.f32.mrf.mxu0
        %v1887 = vadd.f32 0.0, %v1886
        %1888 = vmatmul.f32.gmra.mxu0 %v670
        %v1889 = vpop.f32.mrf.mxu0
        %v1890 = vadd.f32 0.0, %v1889
        %1891 = vdwg.mxu0
        %1892 = vmatpush.xpose.msra.mxu0 %v910
        %1893 = vmatpush.xpose.msra.mxu0 %v907
        %1894 = vmatpush.xpose.msra.mxu0 %v904
        %1895 = vmatpush.xpose.msra.mxu0 %v901
        %1896 = vmatpush.xpose.msra.mxu0 %v898
        %1897 = vmatpush.xpose.msra.mxu0 %v895
        %1898 = vmatpush.xpose.msra.mxu0 %v892
        %1899 = vmatpush.xpose.msra.mxu0 %v889
        %1900 = vmatpush.xpose.msra.mxu0 %v886
        %1901 = vmatpush.xpose.msra.mxu0 %v883
        %1902 = vmatpush.xpose.msra.mxu0 %v880
        %1903 = vmatpush.xpose.msra.mxu0 %v877
        %1904 = vmatpush.xpose.msra.mxu0 %v874
        %1905 = vmatpush.xpose.msra.mxu0 %v871
        %1906 = vmatpush.xpose.msra.mxu0 %v868
        %1907 = vmatpush.xpose.msra.mxu0 %v865
        %1908 = vmatmul.f32.gmra.mxu0 %v481
        %v1909 = vpop.f32.mrf.mxu0
        %v1910 = vadd.f32 0.0, %v1909
        %1911 = vmatmul.f32.gmra.mxu0 %v484
        %v1912 = vpop.f32.mrf.mxu0
        %v1913 = vadd.f32 0.0, %v1912
        %1914 = vmatmul.f32.gmra.mxu0 %v487
        %v1915 = vpop.f32.mrf.mxu0
        %v1916 = vadd.f32 0.0, %v1915
        %1917 = vmatmul.f32.gmra.mxu0 %v490
        %v1918 = vpop.f32.mrf.mxu0
        %v1919 = vadd.f32 0.0, %v1918
        %1920 = vmatmul.f32.gmra.mxu0 %v493
        %v1921 = vpop.f32.mrf.mxu0
        %v1922 = vadd.f32 0.0, %v1921
        %1923 = vmatmul.f32.gmra.mxu0 %v496
        %v1924 = vpop.f32.mrf.mxu0
        %v1925 = vadd.f32 0.0, %v1924
        %1926 = vmatmul.f32.gmra.mxu0 %v499
        %v1927 = vpop.f32.mrf.mxu0
        %v1928 = vadd.f32 0.0, %v1927
        %1929 = vmatmul.f32.gmra.mxu0 %v502
        %v1930 = vpop.f32.mrf.mxu0
        %v1931 = vadd.f32 0.0, %v1930
        %1932 = vmatmul.f32.gmra.mxu0 %v505
        %v1933 = vpop.f32.mrf.mxu0
        %v1934 = vadd.f32 0.0, %v1933
        %1935 = vmatmul.f32.gmra.mxu0 %v508
        %v1936 = vpop.f32.mrf.mxu0
        %v1937 = vadd.f32 0.0, %v1936
        %1938 = vmatmul.f32.gmra.mxu0 %v511
        %v1939 = vpop.f32.mrf.mxu0
        %v1940 = vadd.f32 0.0, %v1939
        %1941 = vmatmul.f32.gmra.mxu0 %v514
        %v1942 = vpop.f32.mrf.mxu0
        %v1943 = vadd.f32 0.0, %v1942
        %1944 = vmatmul.f32.gmra.mxu0 %v517
        %v1945 = vpop.f32.mrf.mxu0
        %v1946 = vadd.f32 0.0, %v1945
        %1947 = vmatmul.f32.gmra.mxu0 %v520
        %v1948 = vpop.f32.mrf.mxu0
        %v1949 = vadd.f32 0.0, %v1948
        %1950 = vmatmul.f32.gmra.mxu0 %v523
        %v1951 = vpop.f32.mrf.mxu0
        %v1952 = vadd.f32 0.0, %v1951
        %1953 = vmatmul.f32.gmra.mxu0 %v526
        %v1954 = vpop.f32.mrf.mxu0
        %v1955 = vadd.f32 0.0, %v1954
        %1956 = vmatmul.f32.gmra.mxu0 %v529
        %v1957 = vpop.f32.mrf.mxu0
        %v1958 = vadd.f32 0.0, %v1957
        %1959 = vmatmul.f32.gmra.mxu0 %v532
        %v1960 = vpop.f32.mrf.mxu0
        %v1961 = vadd.f32 0.0, %v1960
        %1962 = vmatmul.f32.gmra.mxu0 %v535
        %v1963 = vpop.f32.mrf.mxu0
        %v1964 = vadd.f32 0.0, %v1963
        %1965 = vmatmul.f32.gmra.mxu0 %v538
        %v1966 = vpop.f32.mrf.mxu0
        %v1967 = vadd.f32 0.0, %v1966
        %1968 = vmatmul.f32.gmra.mxu0 %v541
        %v1969 = vpop.f32.mrf.mxu0
        %v1970 = vadd.f32 0.0, %v1969
        %1971 = vmatmul.f32.gmra.mxu0 %v544
        %v1972 = vpop.f32.mrf.mxu0
        %v1973 = vadd.f32 0.0, %v1972
        %1974 = vmatmul.f32.gmra.mxu0 %v547
        %v1975 = vpop.f32.mrf.mxu0
        %v1976 = vadd.f32 0.0, %v1975
        %1977 = vmatmul.f32.gmra.mxu0 %v550
        %v1978 = vpop.f32.mrf.mxu0
        %v1979 = vadd.f32 0.0, %v1978
        %1980 = vmatmul.f32.gmra.mxu0 %v553
        %v1981 = vpop.f32.mrf.mxu0
        %v1982 = vadd.f32 0.0, %v1981
        %1983 = vmatmul.f32.gmra.mxu0 %v556
        %v1984 = vpop.f32.mrf.mxu0
        %v1985 = vadd.f32 0.0, %v1984
        %1986 = vmatmul.f32.gmra.mxu0 %v559
        %v1987 = vpop.f32.mrf.mxu0
        %v1988 = vadd.f32 0.0, %v1987
        %1989 = vmatmul.f32.gmra.mxu0 %v562
        %v1990 = vpop.f32.mrf.mxu0
        %v1991 = vadd.f32 0.0, %v1990
        %1992 = vmatmul.f32.gmra.mxu0 %v565
        %v1993 = vpop.f32.mrf.mxu0
        %v1994 = vadd.f32 0.0, %v1993
        %1995 = vmatmul.f32.gmra.mxu0 %v568
        %v1996 = vpop.f32.mrf.mxu0
        %v1997 = vadd.f32 0.0, %v1996
        %1998 = vmatmul.f32.gmra.mxu0 %v571
        %v1999 = vpop.f32.mrf.mxu0
        %v2000 = vadd.f32 0.0, %v1999
        %2001 = vmatmul.f32.gmra.mxu0 %v574
        %v2002 = vpop.f32.mrf.mxu0
        %v2003 = vadd.f32 0.0, %v2002
        %2004 = vmatmul.f32.gmra.mxu0 %v577
        %v2005 = vpop.f32.mrf.mxu0
        %v2006 = vadd.f32 0.0, %v2005
        %2007 = vmatmul.f32.gmra.mxu0 %v580
        %v2008 = vpop.f32.mrf.mxu0
        %v2009 = vadd.f32 0.0, %v2008
        %2010 = vmatmul.f32.gmra.mxu0 %v583
        %v2011 = vpop.f32.mrf.mxu0
        %v2012 = vadd.f32 0.0, %v2011
        %2013 = vmatmul.f32.gmra.mxu0 %v586
        %v2014 = vpop.f32.mrf.mxu0
        %v2015 = vadd.f32 0.0, %v2014
        %2016 = vmatmul.f32.gmra.mxu0 %v589
        %v2017 = vpop.f32.mrf.mxu0
        %v2018 = vadd.f32 0.0, %v2017
        %2019 = vmatmul.f32.gmra.mxu0 %v592
        %v2020 = vpop.f32.mrf.mxu0
        %v2021 = vadd.f32 0.0, %v2020
        %2022 = vmatmul.f32.gmra.mxu0 %v595
        %v2023 = vpop.f32.mrf.mxu0
        %v2024 = vadd.f32 0.0, %v2023
        %2025 = vmatmul.f32.gmra.mxu0 %v598
        %v2026 = vpop.f32.mrf.mxu0
        %v2027 = vadd.f32 0.0, %v2026
        %2028 = vmatmul.f32.gmra.mxu0 %v601
        %v2029 = vpop.f32.mrf.mxu0
        %v2030 = vadd.f32 0.0, %v2029
        %2031 = vmatmul.f32.gmra.mxu0 %v604
        %v2032 = vpop.f32.mrf.mxu0
        %v2033 = vadd.f32 0.0, %v2032
        %2034 = vmatmul.f32.gmra.mxu0 %v607
        %v2035 = vpop.f32.mrf.mxu0
        %v2036 = vadd.f32 0.0, %v2035
        %2037 = vmatmul.f32.gmra.mxu0 %v610
        %v2038 = vpop.f32.mrf.mxu0
        %v2039 = vadd.f32 0.0, %v2038
        %2040 = vmatmul.f32.gmra.mxu0 %v613
        %v2041 = vpop.f32.mrf.mxu0
        %v2042 = vadd.f32 0.0, %v2041
        %2043 = vmatmul.f32.gmra.mxu0 %v616
        %v2044 = vpop.f32.mrf.mxu0
        %v2045 = vadd.f32 0.0, %v2044
        %2046 = vmatmul.f32.gmra.mxu0 %v619
        %v2047 = vpop.f32.mrf.mxu0
        %v2048 = vadd.f32 0.0, %v2047
        %2049 = vmatmul.f32.gmra.mxu0 %v622
        %v2050 = vpop.f32.mrf.mxu0
        %v2051 = vadd.f32 0.0, %v2050
        %2052 = vmatmul.f32.gmra.mxu0 %v625
        %v2053 = vpop.f32.mrf.mxu0
        %v2054 = vadd.f32 0.0, %v2053
        %2055 = vmatmul.f32.gmra.mxu0 %v628
        %v2056 = vpop.f32.mrf.mxu0
        %v2057 = vadd.f32 0.0, %v2056
        %2058 = vmatmul.f32.gmra.mxu0 %v631
        %v2059 = vpop.f32.mrf.mxu0
        %v2060 = vadd.f32 0.0, %v2059
        %2061 = vmatmul.f32.gmra.mxu0 %v634
        %v2062 = vpop.f32.mrf.mxu0
        %v2063 = vadd.f32 0.0, %v2062
        %2064 = vmatmul.f32.gmra.mxu0 %v637
        %v2065 = vpop.f32.mrf.mxu0
        %v2066 = vadd.f32 0.0, %v2065
        %2067 = vmatmul.f32.gmra.mxu0 %v640
        %v2068 = vpop.f32.mrf.mxu0
        %v2069 = vadd.f32 0.0, %v2068
        %2070 = vmatmul.f32.gmra.mxu0 %v643
        %v2071 = vpop.f32.mrf.mxu0
        %v2072 = vadd.f32 0.0, %v2071
        %2073 = vmatmul.f32.gmra.mxu0 %v646
        %v2074 = vpop.f32.mrf.mxu0
        %v2075 = vadd.f32 0.0, %v2074
        %2076 = vmatmul.f32.gmra.mxu0 %v649
        %v2077 = vpop.f32.mrf.mxu0
        %v2078 = vadd.f32 0.0, %v2077
        %2079 = vmatmul.f32.gmra.mxu0 %v652
        %v2080 = vpop.f32.mrf.mxu0
        %v2081 = vadd.f32 0.0, %v2080
        %2082 = vmatmul.f32.gmra.mxu0 %v655
        %v2083 = vpop.f32.mrf.mxu0
        %v2084 = vadd.f32 0.0, %v2083
        %2085 = vmatmul.f32.gmra.mxu0 %v658
        %v2086 = vpop.f32.mrf.mxu0
        %v2087 = vadd.f32 0.0, %v2086
        %2088 = vmatmul.f32.gmra.mxu0 %v661
        %v2089 = vpop.f32.mrf.mxu0
        %v2090 = vadd.f32 0.0, %v2089
        %2091 = vmatmul.f32.gmra.mxu0 %v664
        %v2092 = vpop.f32.mrf.mxu0
        %v2093 = vadd.f32 0.0, %v2092
        %2094 = vmatmul.f32.gmra.mxu0 %v667
        %v2095 = vpop.f32.mrf.mxu0
        %v2096 = vadd.f32 0.0, %v2095
        %2097 = vmatmul.f32.gmra.mxu0 %v670
        %v2098 = vpop.f32.mrf.mxu0
        %v2099 = vadd.f32 0.0, %v2098
        %2100 = vdwg.mxu0
        %2101 = vmatpush.xpose.msra.mxu0 %v958
        %2102 = vmatpush.xpose.msra.mxu0 %v955
        %2103 = vmatpush.xpose.msra.mxu0 %v952
        %2104 = vmatpush.xpose.msra.mxu0 %v949
        %2105 = vmatpush.xpose.msra.mxu0 %v946
        %2106 = vmatpush.xpose.msra.mxu0 %v943
        %2107 = vmatpush.xpose.msra.mxu0 %v940
        %2108 = vmatpush.xpose.msra.mxu0 %v937
        %2109 = vmatpush.xpose.msra.mxu0 %v934
        %2110 = vmatpush.xpose.msra.mxu0 %v931
        %2111 = vmatpush.xpose.msra.mxu0 %v928
        %2112 = vmatpush.xpose.msra.mxu0 %v925
        %2113 = vmatpush.xpose.msra.mxu0 %v922
        %2114 = vmatpush.xpose.msra.mxu0 %v919
        %2115 = vmatpush.xpose.msra.mxu0 %v916
        %2116 = vmatpush.xpose.msra.mxu0 %v913
        %2117 = vmatmul.f32.gmra.mxu0 %v481
        %v2118 = vpop.f32.mrf.mxu0
        %v2119 = vadd.f32 0.0, %v2118
        %2120 = vmatmul.f32.gmra.mxu0 %v484
        %v2121 = vpop.f32.mrf.mxu0
        %v2122 = vadd.f32 0.0, %v2121
        %2123 = vmatmul.f32.gmra.mxu0 %v487
        %v2124 = vpop.f32.mrf.mxu0
        %v2125 = vadd.f32 0.0, %v2124
        %2126 = vmatmul.f32.gmra.mxu0 %v490
        %v2127 = vpop.f32.mrf.mxu0
        %v2128 = vadd.f32 0.0, %v2127
        %2129 = vmatmul.f32.gmra.mxu0 %v493
        %v2130 = vpop.f32.mrf.mxu0
        %v2131 = vadd.f32 0.0, %v2130
        %2132 = vmatmul.f32.gmra.mxu0 %v496
        %v2133 = vpop.f32.mrf.mxu0
        %v2134 = vadd.f32 0.0, %v2133
        %2135 = vmatmul.f32.gmra.mxu0 %v499
        %v2136 = vpop.f32.mrf.mxu0
        %v2137 = vadd.f32 0.0, %v2136
        %2138 = vmatmul.f32.gmra.mxu0 %v502
        %v2139 = vpop.f32.mrf.mxu0
        %v2140 = vadd.f32 0.0, %v2139
        %2141 = vmatmul.f32.gmra.mxu0 %v505
        %v2142 = vpop.f32.mrf.mxu0
        %v2143 = vadd.f32 0.0, %v2142
        %2144 = vmatmul.f32.gmra.mxu0 %v508
        %v2145 = vpop.f32.mrf.mxu0
        %v2146 = vadd.f32 0.0, %v2145
        %2147 = vmatmul.f32.gmra.mxu0 %v511
        %v2148 = vpop.f32.mrf.mxu0
        %v2149 = vadd.f32 0.0, %v2148
        %2150 = vmatmul.f32.gmra.mxu0 %v514
        %v2151 = vpop.f32.mrf.mxu0
        %v2152 = vadd.f32 0.0, %v2151
        %2153 = vmatmul.f32.gmra.mxu0 %v517
        %v2154 = vpop.f32.mrf.mxu0
        %v2155 = vadd.f32 0.0, %v2154
        %2156 = vmatmul.f32.gmra.mxu0 %v520
        %v2157 = vpop.f32.mrf.mxu0
        %v2158 = vadd.f32 0.0, %v2157
        %2159 = vmatmul.f32.gmra.mxu0 %v523
        %v2160 = vpop.f32.mrf.mxu0
        %v2161 = vadd.f32 0.0, %v2160
        %2162 = vmatmul.f32.gmra.mxu0 %v526
        %v2163 = vpop.f32.mrf.mxu0
        %v2164 = vadd.f32 0.0, %v2163
        %2165 = vmatmul.f32.gmra.mxu0 %v529
        %v2166 = vpop.f32.mrf.mxu0
        %v2167 = vadd.f32 0.0, %v2166
        %2168 = vmatmul.f32.gmra.mxu0 %v532
        %v2169 = vpop.f32.mrf.mxu0
        %v2170 = vadd.f32 0.0, %v2169
        %2171 = vmatmul.f32.gmra.mxu0 %v535
        %v2172 = vpop.f32.mrf.mxu0
        %v2173 = vadd.f32 0.0, %v2172
        %2174 = vmatmul.f32.gmra.mxu0 %v538
        %v2175 = vpop.f32.mrf.mxu0
        %v2176 = vadd.f32 0.0, %v2175
        %2177 = vmatmul.f32.gmra.mxu0 %v541
        %v2178 = vpop.f32.mrf.mxu0
        %v2179 = vadd.f32 0.0, %v2178
        %2180 = vmatmul.f32.gmra.mxu0 %v544
        %v2181 = vpop.f32.mrf.mxu0
        %v2182 = vadd.f32 0.0, %v2181
        %2183 = vmatmul.f32.gmra.mxu0 %v547
        %v2184 = vpop.f32.mrf.mxu0
        %v2185 = vadd.f32 0.0, %v2184
        %2186 = vmatmul.f32.gmra.mxu0 %v550
        %v2187 = vpop.f32.mrf.mxu0
        %v2188 = vadd.f32 0.0, %v2187
        %2189 = vmatmul.f32.gmra.mxu0 %v553
        %v2190 = vpop.f32.mrf.mxu0
        %v2191 = vadd.f32 0.0, %v2190
        %2192 = vmatmul.f32.gmra.mxu0 %v556
        %v2193 = vpop.f32.mrf.mxu0
        %v2194 = vadd.f32 0.0, %v2193
        %2195 = vmatmul.f32.gmra.mxu0 %v559
        %v2196 = vpop.f32.mrf.mxu0
        %v2197 = vadd.f32 0.0, %v2196
        %2198 = vmatmul.f32.gmra.mxu0 %v562
        %v2199 = vpop.f32.mrf.mxu0
        %v2200 = vadd.f32 0.0, %v2199
        %2201 = vmatmul.f32.gmra.mxu0 %v565
        %v2202 = vpop.f32.mrf.mxu0
        %v2203 = vadd.f32 0.0, %v2202
        %2204 = vmatmul.f32.gmra.mxu0 %v568
        %v2205 = vpop.f32.mrf.mxu0
        %v2206 = vadd.f32 0.0, %v2205
        %2207 = vmatmul.f32.gmra.mxu0 %v571
        %v2208 = vpop.f32.mrf.mxu0
        %v2209 = vadd.f32 0.0, %v2208
        %2210 = vmatmul.f32.gmra.mxu0 %v574
        %v2211 = vpop.f32.mrf.mxu0
        %v2212 = vadd.f32 0.0, %v2211
        %2213 = vmatmul.f32.gmra.mxu0 %v577
        %v2214 = vpop.f32.mrf.mxu0
        %v2215 = vadd.f32 0.0, %v2214
        %2216 = vmatmul.f32.gmra.mxu0 %v580
        %v2217 = vpop.f32.mrf.mxu0
        %v2218 = vadd.f32 0.0, %v2217
        %2219 = vmatmul.f32.gmra.mxu0 %v583
        %v2220 = vpop.f32.mrf.mxu0
        %v2221 = vadd.f32 0.0, %v2220
        %2222 = vmatmul.f32.gmra.mxu0 %v586
        %v2223 = vpop.f32.mrf.mxu0
        %v2224 = vadd.f32 0.0, %v2223
        %2225 = vmatmul.f32.gmra.mxu0 %v589
        %v2226 = vpop.f32.mrf.mxu0
        %v2227 = vadd.f32 0.0, %v2226
        %2228 = vmatmul.f32.gmra.mxu0 %v592
        %v2229 = vpop.f32.mrf.mxu0
        %v2230 = vadd.f32 0.0, %v2229
        %2231 = vmatmul.f32.gmra.mxu0 %v595
        %v2232 = vpop.f32.mrf.mxu0
        %v2233 = vadd.f32 0.0, %v2232
        %2234 = vmatmul.f32.gmra.mxu0 %v598
        %v2235 = vpop.f32.mrf.mxu0
        %v2236 = vadd.f32 0.0, %v2235
        %2237 = vmatmul.f32.gmra.mxu0 %v601
        %v2238 = vpop.f32.mrf.mxu0
        %v2239 = vadd.f32 0.0, %v2238
        %2240 = vmatmul.f32.gmra.mxu0 %v604
        %v2241 = vpop.f32.mrf.mxu0
        %v2242 = vadd.f32 0.0, %v2241
        %2243 = vmatmul.f32.gmra.mxu0 %v607
        %v2244 = vpop.f32.mrf.mxu0
        %v2245 = vadd.f32 0.0, %v2244
        %2246 = vmatmul.f32.gmra.mxu0 %v610
        %v2247 = vpop.f32.mrf.mxu0
        %v2248 = vadd.f32 0.0, %v2247
        %2249 = vmatmul.f32.gmra.mxu0 %v613
        %v2250 = vpop.f32.mrf.mxu0
        %v2251 = vadd.f32 0.0, %v2250
        %2252 = vmatmul.f32.gmra.mxu0 %v616
        %v2253 = vpop.f32.mrf.mxu0
        %v2254 = vadd.f32 0.0, %v2253
        %2255 = vmatmul.f32.gmra.mxu0 %v619
        %v2256 = vpop.f32.mrf.mxu0
        %v2257 = vadd.f32 0.0, %v2256
        %2258 = vmatmul.f32.gmra.mxu0 %v622
        %v2259 = vpop.f32.mrf.mxu0
        %v2260 = vadd.f32 0.0, %v2259
        %2261 = vmatmul.f32.gmra.mxu0 %v625
        %v2262 = vpop.f32.mrf.mxu0
        %v2263 = vadd.f32 0.0, %v2262
        %2264 = vmatmul.f32.gmra.mxu0 %v628
        %v2265 = vpop.f32.mrf.mxu0
        %v2266 = vadd.f32 0.0, %v2265
        %2267 = vmatmul.f32.gmra.mxu0 %v631
        %v2268 = vpop.f32.mrf.mxu0
        %v2269 = vadd.f32 0.0, %v2268
        %2270 = vmatmul.f32.gmra.mxu0 %v634
        %v2271 = vpop.f32.mrf.mxu0
        %v2272 = vadd.f32 0.0, %v2271
        %2273 = vmatmul.f32.gmra.mxu0 %v637
        %v2274 = vpop.f32.mrf.mxu0
        %v2275 = vadd.f32 0.0, %v2274
        %2276 = vmatmul.f32.gmra.mxu0 %v640
        %v2277 = vpop.f32.mrf.mxu0
        %v2278 = vadd.f32 0.0, %v2277
        %2279 = vmatmul.f32.gmra.mxu0 %v643
        %v2280 = vpop.f32.mrf.mxu0
        %v2281 = vadd.f32 0.0, %v2280
        %2282 = vmatmul.f32.gmra.mxu0 %v646
        %v2283 = vpop.f32.mrf.mxu0
        %v2284 = vadd.f32 0.0, %v2283
        %2285 = vmatmul.f32.gmra.mxu0 %v649
        %v2286 = vpop.f32.mrf.mxu0
        %v2287 = vadd.f32 0.0, %v2286
        %2288 = vmatmul.f32.gmra.mxu0 %v652
        %v2289 = vpop.f32.mrf.mxu0
        %v2290 = vadd.f32 0.0, %v2289
        %2291 = vmatmul.f32.gmra.mxu0 %v655
        %v2292 = vpop.f32.mrf.mxu0
        %v2293 = vadd.f32 0.0, %v2292
        %2294 = vmatmul.f32.gmra.mxu0 %v658
        %v2295 = vpop.f32.mrf.mxu0
        %v2296 = vadd.f32 0.0, %v2295
        %2297 = vmatmul.f32.gmra.mxu0 %v661
        %v2298 = vpop.f32.mrf.mxu0
        %v2299 = vadd.f32 0.0, %v2298
        %2300 = vmatmul.f32.gmra.mxu0 %v664
        %v2301 = vpop.f32.mrf.mxu0
        %v2302 = vadd.f32 0.0, %v2301
        %2303 = vmatmul.f32.gmra.mxu0 %v667
        %v2304 = vpop.f32.mrf.mxu0
        %v2305 = vadd.f32 0.0, %v2304
        %2306 = vmatmul.f32.gmra.mxu0 %v670
        %v2307 = vpop.f32.mrf.mxu0
        %v2308 = vadd.f32 0.0, %v2307
        %2309 = vdwg.mxu0
        %2310 = vmatpush.xpose.msra.mxu0 %v1006
        %2311 = vmatpush.xpose.msra.mxu0 %v1003
        %2312 = vmatpush.xpose.msra.mxu0 %v1000
        %2313 = vmatpush.xpose.msra.mxu0 %v997
        %2314 = vmatpush.xpose.msra.mxu0 %v994
        %2315 = vmatpush.xpose.msra.mxu0 %v991
        %2316 = vmatpush.xpose.msra.mxu0 %v988
        %2317 = vmatpush.xpose.msra.mxu0 %v985
        %2318 = vmatpush.xpose.msra.mxu0 %v982
        %2319 = vmatpush.xpose.msra.mxu0 %v979
        %2320 = vmatpush.xpose.msra.mxu0 %v976
        %2321 = vmatpush.xpose.msra.mxu0 %v973
        %2322 = vmatpush.xpose.msra.mxu0 %v970
        %2323 = vmatpush.xpose.msra.mxu0 %v967
        %2324 = vmatpush.xpose.msra.mxu0 %v964
        %2325 = vmatpush.xpose.msra.mxu0 %v961
        %2326 = vmatmul.f32.gmra.mxu0 %v481
        %v2327 = vpop.f32.mrf.mxu0
        %v2328 = vadd.f32 0.0, %v2327
        %2329 = vmatmul.f32.gmra.mxu0 %v484
        %v2330 = vpop.f32.mrf.mxu0
        %v2331 = vadd.f32 0.0, %v2330
        %2332 = vmatmul.f32.gmra.mxu0 %v487
        %v2333 = vpop.f32.mrf.mxu0
        %v2334 = vadd.f32 0.0, %v2333
        %2335 = vmatmul.f32.gmra.mxu0 %v490
        %v2336 = vpop.f32.mrf.mxu0
        %v2337 = vadd.f32 0.0, %v2336
        %2338 = vmatmul.f32.gmra.mxu0 %v493
        %v2339 = vpop.f32.mrf.mxu0
        %v2340 = vadd.f32 0.0, %v2339
        %2341 = vmatmul.f32.gmra.mxu0 %v496
        %v2342 = vpop.f32.mrf.mxu0
        %v2343 = vadd.f32 0.0, %v2342
        %2344 = vmatmul.f32.gmra.mxu0 %v499
        %v2345 = vpop.f32.mrf.mxu0
        %v2346 = vadd.f32 0.0, %v2345
        %2347 = vmatmul.f32.gmra.mxu0 %v502
        %v2348 = vpop.f32.mrf.mxu0
        %v2349 = vadd.f32 0.0, %v2348
        %2350 = vmatmul.f32.gmra.mxu0 %v505
        %v2351 = vpop.f32.mrf.mxu0
        %v2352 = vadd.f32 0.0, %v2351
        %2353 = vmatmul.f32.gmra.mxu0 %v508
        %v2354 = vpop.f32.mrf.mxu0
        %v2355 = vadd.f32 0.0, %v2354
        %2356 = vmatmul.f32.gmra.mxu0 %v511
        %v2357 = vpop.f32.mrf.mxu0
        %v2358 = vadd.f32 0.0, %v2357
        %2359 = vmatmul.f32.gmra.mxu0 %v514
        %v2360 = vpop.f32.mrf.mxu0
        %v2361 = vadd.f32 0.0, %v2360
        %2362 = vmatmul.f32.gmra.mxu0 %v517
        %v2363 = vpop.f32.mrf.mxu0
        %v2364 = vadd.f32 0.0, %v2363
        %2365 = vmatmul.f32.gmra.mxu0 %v520
        %v2366 = vpop.f32.mrf.mxu0
        %v2367 = vadd.f32 0.0, %v2366
        %2368 = vmatmul.f32.gmra.mxu0 %v523
        %v2369 = vpop.f32.mrf.mxu0
        %v2370 = vadd.f32 0.0, %v2369
        %2371 = vmatmul.f32.gmra.mxu0 %v526
        %v2372 = vpop.f32.mrf.mxu0
        %v2373 = vadd.f32 0.0, %v2372
        %2374 = vmatmul.f32.gmra.mxu0 %v529
        %v2375 = vpop.f32.mrf.mxu0
        %v2376 = vadd.f32 0.0, %v2375
        %2377 = vmatmul.f32.gmra.mxu0 %v532
        %v2378 = vpop.f32.mrf.mxu0
        %v2379 = vadd.f32 0.0, %v2378
        %2380 = vmatmul.f32.gmra.mxu0 %v535
        %v2381 = vpop.f32.mrf.mxu0
        %v2382 = vadd.f32 0.0, %v2381
        %2383 = vmatmul.f32.gmra.mxu0 %v538
        %v2384 = vpop.f32.mrf.mxu0
        %v2385 = vadd.f32 0.0, %v2384
        %2386 = vmatmul.f32.gmra.mxu0 %v541
        %v2387 = vpop.f32.mrf.mxu0
        %v2388 = vadd.f32 0.0, %v2387
        %2389 = vmatmul.f32.gmra.mxu0 %v544
        %v2390 = vpop.f32.mrf.mxu0
        %v2391 = vadd.f32 0.0, %v2390
        %2392 = vmatmul.f32.gmra.mxu0 %v547
        %v2393 = vpop.f32.mrf.mxu0
        %v2394 = vadd.f32 0.0, %v2393
        %2395 = vmatmul.f32.gmra.mxu0 %v550
        %v2396 = vpop.f32.mrf.mxu0
        %v2397 = vadd.f32 0.0, %v2396
        %2398 = vmatmul.f32.gmra.mxu0 %v553
        %v2399 = vpop.f32.mrf.mxu0
        %v2400 = vadd.f32 0.0, %v2399
        %2401 = vmatmul.f32.gmra.mxu0 %v556
        %v2402 = vpop.f32.mrf.mxu0
        %v2403 = vadd.f32 0.0, %v2402
        %2404 = vmatmul.f32.gmra.mxu0 %v559
        %v2405 = vpop.f32.mrf.mxu0
        %v2406 = vadd.f32 0.0, %v2405
        %2407 = vmatmul.f32.gmra.mxu0 %v562
        %v2408 = vpop.f32.mrf.mxu0
        %v2409 = vadd.f32 0.0, %v2408
        %2410 = vmatmul.f32.gmra.mxu0 %v565
        %v2411 = vpop.f32.mrf.mxu0
        %v2412 = vadd.f32 0.0, %v2411
        %2413 = vmatmul.f32.gmra.mxu0 %v568
        %v2414 = vpop.f32.mrf.mxu0
        %v2415 = vadd.f32 0.0, %v2414
        %2416 = vmatmul.f32.gmra.mxu0 %v571
        %v2417 = vpop.f32.mrf.mxu0
        %v2418 = vadd.f32 0.0, %v2417
        %2419 = vmatmul.f32.gmra.mxu0 %v574
        %v2420 = vpop.f32.mrf.mxu0
        %v2421 = vadd.f32 0.0, %v2420
        %2422 = vmatmul.f32.gmra.mxu0 %v577
        %v2423 = vpop.f32.mrf.mxu0
        %v2424 = vadd.f32 0.0, %v2423
        %2425 = vmatmul.f32.gmra.mxu0 %v580
        %v2426 = vpop.f32.mrf.mxu0
        %v2427 = vadd.f32 0.0, %v2426
        %2428 = vmatmul.f32.gmra.mxu0 %v583
        %v2429 = vpop.f32.mrf.mxu0
        %v2430 = vadd.f32 0.0, %v2429
        %2431 = vmatmul.f32.gmra.mxu0 %v586
        %v2432 = vpop.f32.mrf.mxu0
        %v2433 = vadd.f32 0.0, %v2432
        %2434 = vmatmul.f32.gmra.mxu0 %v589
        %v2435 = vpop.f32.mrf.mxu0
        %v2436 = vadd.f32 0.0, %v2435
        %2437 = vmatmul.f32.gmra.mxu0 %v592
        %v2438 = vpop.f32.mrf.mxu0
        %v2439 = vadd.f32 0.0, %v2438
        %2440 = vmatmul.f32.gmra.mxu0 %v595
        %v2441 = vpop.f32.mrf.mxu0
        %v2442 = vadd.f32 0.0, %v2441
        %2443 = vmatmul.f32.gmra.mxu0 %v598
        %v2444 = vpop.f32.mrf.mxu0
        %v2445 = vadd.f32 0.0, %v2444
        %2446 = vmatmul.f32.gmra.mxu0 %v601
        %v2447 = vpop.f32.mrf.mxu0
        %v2448 = vadd.f32 0.0, %v2447
        %2449 = vmatmul.f32.gmra.mxu0 %v604
        %v2450 = vpop.f32.mrf.mxu0
        %v2451 = vadd.f32 0.0, %v2450
        %2452 = vmatmul.f32.gmra.mxu0 %v607
        %v2453 = vpop.f32.mrf.mxu0
        %v2454 = vadd.f32 0.0, %v2453
        %2455 = vmatmul.f32.gmra.mxu0 %v610
        %v2456 = vpop.f32.mrf.mxu0
        %v2457 = vadd.f32 0.0, %v2456
        %2458 = vmatmul.f32.gmra.mxu0 %v613
        %v2459 = vpop.f32.mrf.mxu0
        %v2460 = vadd.f32 0.0, %v2459
        %2461 = vmatmul.f32.gmra.mxu0 %v616
        %v2462 = vpop.f32.mrf.mxu0
        %v2463 = vadd.f32 0.0, %v2462
        %2464 = vmatmul.f32.gmra.mxu0 %v619
        %v2465 = vpop.f32.mrf.mxu0
        %v2466 = vadd.f32 0.0, %v2465
        %2467 = vmatmul.f32.gmra.mxu0 %v622
        %v2468 = vpop.f32.mrf.mxu0
        %v2469 = vadd.f32 0.0, %v2468
        %2470 = vmatmul.f32.gmra.mxu0 %v625
        %v2471 = vpop.f32.mrf.mxu0
        %v2472 = vadd.f32 0.0, %v2471
        %2473 = vmatmul.f32.gmra.mxu0 %v628
        %v2474 = vpop.f32.mrf.mxu0
        %v2475 = vadd.f32 0.0, %v2474
        %2476 = vmatmul.f32.gmra.mxu0 %v631
        %v2477 = vpop.f32.mrf.mxu0
        %v2478 = vadd.f32 0.0, %v2477
        %2479 = vmatmul.f32.gmra.mxu0 %v634
        %v2480 = vpop.f32.mrf.mxu0
        %v2481 = vadd.f32 0.0, %v2480
        %2482 = vmatmul.f32.gmra.mxu0 %v637
        %v2483 = vpop.f32.mrf.mxu0
        %v2484 = vadd.f32 0.0, %v2483
        %2485 = vmatmul.f32.gmra.mxu0 %v640
        %v2486 = vpop.f32.mrf.mxu0
        %v2487 = vadd.f32 0.0, %v2486
        %2488 = vmatmul.f32.gmra.mxu0 %v643
        %v2489 = vpop.f32.mrf.mxu0
        %v2490 = vadd.f32 0.0, %v2489
        %2491 = vmatmul.f32.gmra.mxu0 %v646
        %v2492 = vpop.f32.mrf.mxu0
        %v2493 = vadd.f32 0.0, %v2492
        %2494 = vmatmul.f32.gmra.mxu0 %v649
        %v2495 = vpop.f32.mrf.mxu0
        %v2496 = vadd.f32 0.0, %v2495
        %2497 = vmatmul.f32.gmra.mxu0 %v652
        %v2498 = vpop.f32.mrf.mxu0
        %v2499 = vadd.f32 0.0, %v2498
        %2500 = vmatmul.f32.gmra.mxu0 %v655
        %v2501 = vpop.f32.mrf.mxu0
        %v2502 = vadd.f32 0.0, %v2501
        %2503 = vmatmul.f32.gmra.mxu0 %v658
        %v2504 = vpop.f32.mrf.mxu0
        %v2505 = vadd.f32 0.0, %v2504
        %2506 = vmatmul.f32.gmra.mxu0 %v661
        %v2507 = vpop.f32.mrf.mxu0
        %v2508 = vadd.f32 0.0, %v2507
        %2509 = vmatmul.f32.gmra.mxu0 %v664
        %v2510 = vpop.f32.mrf.mxu0
        %v2511 = vadd.f32 0.0, %v2510
        %2512 = vmatmul.f32.gmra.mxu0 %v667
        %v2513 = vpop.f32.mrf.mxu0
        %v2514 = vadd.f32 0.0, %v2513
        %2515 = vmatmul.f32.gmra.mxu0 %v670
        %v2516 = vpop.f32.mrf.mxu0
        %v2517 = vadd.f32 0.0, %v2516
        %2518 = vdwg.mxu0
        %2519 = vmatpush.xpose.msra.mxu0 %v1054
        %2520 = vmatpush.xpose.msra.mxu0 %v1051
        %2521 = vmatpush.xpose.msra.mxu0 %v1048
        %2522 = vmatpush.xpose.msra.mxu0 %v1045
        %2523 = vmatpush.xpose.msra.mxu0 %v1042
        %2524 = vmatpush.xpose.msra.mxu0 %v1039
        %2525 = vmatpush.xpose.msra.mxu0 %v1036
        %2526 = vmatpush.xpose.msra.mxu0 %v1033
        %2527 = vmatpush.xpose.msra.mxu0 %v1030
        %2528 = vmatpush.xpose.msra.mxu0 %v1027
        %2529 = vmatpush.xpose.msra.mxu0 %v1024
        %2530 = vmatpush.xpose.msra.mxu0 %v1021
        %2531 = vmatpush.xpose.msra.mxu0 %v1018
        %2532 = vmatpush.xpose.msra.mxu0 %v1015
        %2533 = vmatpush.xpose.msra.mxu0 %v1012
        %2534 = vmatpush.xpose.msra.mxu0 %v1009
        %2535 = vmatmul.f32.gmra.mxu0 %v481
        %v2536 = vpop.f32.mrf.mxu0
        %v2537 = vadd.f32 0.0, %v2536
        %2538 = vmatmul.f32.gmra.mxu0 %v484
        %v2539 = vpop.f32.mrf.mxu0
        %v2540 = vadd.f32 0.0, %v2539
        %2541 = vmatmul.f32.gmra.mxu0 %v487
        %v2542 = vpop.f32.mrf.mxu0
        %v2543 = vadd.f32 0.0, %v2542
        %2544 = vmatmul.f32.gmra.mxu0 %v490
        %v2545 = vpop.f32.mrf.mxu0
        %v2546 = vadd.f32 0.0, %v2545
        %2547 = vmatmul.f32.gmra.mxu0 %v493
        %v2548 = vpop.f32.mrf.mxu0
        %v2549 = vadd.f32 0.0, %v2548
        %2550 = vmatmul.f32.gmra.mxu0 %v496
        %v2551 = vpop.f32.mrf.mxu0
        %v2552 = vadd.f32 0.0, %v2551
        %2553 = vmatmul.f32.gmra.mxu0 %v499
        %v2554 = vpop.f32.mrf.mxu0
        %v2555 = vadd.f32 0.0, %v2554
        %2556 = vmatmul.f32.gmra.mxu0 %v502
        %v2557 = vpop.f32.mrf.mxu0
        %v2558 = vadd.f32 0.0, %v2557
        %2559 = vmatmul.f32.gmra.mxu0 %v505
        %v2560 = vpop.f32.mrf.mxu0
        %v2561 = vadd.f32 0.0, %v2560
        %2562 = vmatmul.f32.gmra.mxu0 %v508
        %v2563 = vpop.f32.mrf.mxu0
        %v2564 = vadd.f32 0.0, %v2563
        %2565 = vmatmul.f32.gmra.mxu0 %v511
        %v2566 = vpop.f32.mrf.mxu0
        %v2567 = vadd.f32 0.0, %v2566
        %2568 = vmatmul.f32.gmra.mxu0 %v514
        %v2569 = vpop.f32.mrf.mxu0
        %v2570 = vadd.f32 0.0, %v2569
        %2571 = vmatmul.f32.gmra.mxu0 %v517
        %v2572 = vpop.f32.mrf.mxu0
        %v2573 = vadd.f32 0.0, %v2572
        %2574 = vmatmul.f32.gmra.mxu0 %v520
        %v2575 = vpop.f32.mrf.mxu0
        %v2576 = vadd.f32 0.0, %v2575
        %2577 = vmatmul.f32.gmra.mxu0 %v523
        %v2578 = vpop.f32.mrf.mxu0
        %v2579 = vadd.f32 0.0, %v2578
        %2580 = vmatmul.f32.gmra.mxu0 %v526
        %v2581 = vpop.f32.mrf.mxu0
        %v2582 = vadd.f32 0.0, %v2581
        %2583 = vmatmul.f32.gmra.mxu0 %v529
        %v2584 = vpop.f32.mrf.mxu0
        %v2585 = vadd.f32 0.0, %v2584
        %2586 = vmatmul.f32.gmra.mxu0 %v532
        %v2587 = vpop.f32.mrf.mxu0
        %v2588 = vadd.f32 0.0, %v2587
        %2589 = vmatmul.f32.gmra.mxu0 %v535
        %v2590 = vpop.f32.mrf.mxu0
        %v2591 = vadd.f32 0.0, %v2590
        %2592 = vmatmul.f32.gmra.mxu0 %v538
        %v2593 = vpop.f32.mrf.mxu0
        %v2594 = vadd.f32 0.0, %v2593
        %2595 = vmatmul.f32.gmra.mxu0 %v541
        %v2596 = vpop.f32.mrf.mxu0
        %v2597 = vadd.f32 0.0, %v2596
        %2598 = vmatmul.f32.gmra.mxu0 %v544
        %v2599 = vpop.f32.mrf.mxu0
        %v2600 = vadd.f32 0.0, %v2599
        %2601 = vmatmul.f32.gmra.mxu0 %v547
        %v2602 = vpop.f32.mrf.mxu0
        %v2603 = vadd.f32 0.0, %v2602
        %2604 = vmatmul.f32.gmra.mxu0 %v550
        %v2605 = vpop.f32.mrf.mxu0
        %v2606 = vadd.f32 0.0, %v2605
        %2607 = vmatmul.f32.gmra.mxu0 %v553
        %v2608 = vpop.f32.mrf.mxu0
        %v2609 = vadd.f32 0.0, %v2608
        %2610 = vmatmul.f32.gmra.mxu0 %v556
        %v2611 = vpop.f32.mrf.mxu0
        %v2612 = vadd.f32 0.0, %v2611
        %2613 = vmatmul.f32.gmra.mxu0 %v559
        %v2614 = vpop.f32.mrf.mxu0
        %v2615 = vadd.f32 0.0, %v2614
        %2616 = vmatmul.f32.gmra.mxu0 %v562
        %v2617 = vpop.f32.mrf.mxu0
        %v2618 = vadd.f32 0.0, %v2617
        %2619 = vmatmul.f32.gmra.mxu0 %v565
        %v2620 = vpop.f32.mrf.mxu0
        %v2621 = vadd.f32 0.0, %v2620
        %2622 = vmatmul.f32.gmra.mxu0 %v568
        %v2623 = vpop.f32.mrf.mxu0
        %v2624 = vadd.f32 0.0, %v2623
        %2625 = vmatmul.f32.gmra.mxu0 %v571
        %v2626 = vpop.f32.mrf.mxu0
        %v2627 = vadd.f32 0.0, %v2626
        %2628 = vmatmul.f32.gmra.mxu0 %v574
        %v2629 = vpop.f32.mrf.mxu0
        %v2630 = vadd.f32 0.0, %v2629
        %2631 = vmatmul.f32.gmra.mxu0 %v577
        %v2632 = vpop.f32.mrf.mxu0
        %v2633 = vadd.f32 0.0, %v2632
        %2634 = vmatmul.f32.gmra.mxu0 %v580
        %v2635 = vpop.f32.mrf.mxu0
        %v2636 = vadd.f32 0.0, %v2635
        %2637 = vmatmul.f32.gmra.mxu0 %v583
        %v2638 = vpop.f32.mrf.mxu0
        %v2639 = vadd.f32 0.0, %v2638
        %2640 = vmatmul.f32.gmra.mxu0 %v586
        %v2641 = vpop.f32.mrf.mxu0
        %v2642 = vadd.f32 0.0, %v2641
        %2643 = vmatmul.f32.gmra.mxu0 %v589
        %v2644 = vpop.f32.mrf.mxu0
        %v2645 = vadd.f32 0.0, %v2644
        %2646 = vmatmul.f32.gmra.mxu0 %v592
        %v2647 = vpop.f32.mrf.mxu0
        %v2648 = vadd.f32 0.0, %v2647
        %2649 = vmatmul.f32.gmra.mxu0 %v595
        %v2650 = vpop.f32.mrf.mxu0
        %v2651 = vadd.f32 0.0, %v2650
        %2652 = vmatmul.f32.gmra.mxu0 %v598
        %v2653 = vpop.f32.mrf.mxu0
        %v2654 = vadd.f32 0.0, %v2653
        %2655 = vmatmul.f32.gmra.mxu0 %v601
        %v2656 = vpop.f32.mrf.mxu0
        %v2657 = vadd.f32 0.0, %v2656
        %2658 = vmatmul.f32.gmra.mxu0 %v604
        %v2659 = vpop.f32.mrf.mxu0
        %v2660 = vadd.f32 0.0, %v2659
        %2661 = vmatmul.f32.gmra.mxu0 %v607
        %v2662 = vpop.f32.mrf.mxu0
        %v2663 = vadd.f32 0.0, %v2662
        %2664 = vmatmul.f32.gmra.mxu0 %v610
        %v2665 = vpop.f32.mrf.mxu0
        %v2666 = vadd.f32 0.0, %v2665
        %2667 = vmatmul.f32.gmra.mxu0 %v613
        %v2668 = vpop.f32.mrf.mxu0
        %v2669 = vadd.f32 0.0, %v2668
        %2670 = vmatmul.f32.gmra.mxu0 %v616
        %v2671 = vpop.f32.mrf.mxu0
        %v2672 = vadd.f32 0.0, %v2671
        %2673 = vmatmul.f32.gmra.mxu0 %v619
        %v2674 = vpop.f32.mrf.mxu0
        %v2675 = vadd.f32 0.0, %v2674
        %2676 = vmatmul.f32.gmra.mxu0 %v622
        %v2677 = vpop.f32.mrf.mxu0
        %v2678 = vadd.f32 0.0, %v2677
        %2679 = vmatmul.f32.gmra.mxu0 %v625
        %v2680 = vpop.f32.mrf.mxu0
        %v2681 = vadd.f32 0.0, %v2680
        %2682 = vmatmul.f32.gmra.mxu0 %v628
        %v2683 = vpop.f32.mrf.mxu0
        %v2684 = vadd.f32 0.0, %v2683
        %2685 = vmatmul.f32.gmra.mxu0 %v631
        %v2686 = vpop.f32.mrf.mxu0
        %v2687 = vadd.f32 0.0, %v2686
        %2688 = vmatmul.f32.gmra.mxu0 %v634
        %v2689 = vpop.f32.mrf.mxu0
        %v2690 = vadd.f32 0.0, %v2689
        %2691 = vmatmul.f32.gmra.mxu0 %v637
        %v2692 = vpop.f32.mrf.mxu0
        %v2693 = vadd.f32 0.0, %v2692
        %2694 = vmatmul.f32.gmra.mxu0 %v640
        %v2695 = vpop.f32.mrf.mxu0
        %v2696 = vadd.f32 0.0, %v2695
        %2697 = vmatmul.f32.gmra.mxu0 %v643
        %v2698 = vpop.f32.mrf.mxu0
        %v2699 = vadd.f32 0.0, %v2698
        %2700 = vmatmul.f32.gmra.mxu0 %v646
        %v2701 = vpop.f32.mrf.mxu0
        %v2702 = vadd.f32 0.0, %v2701
        %2703 = vmatmul.f32.gmra.mxu0 %v649
        %v2704 = vpop.f32.mrf.mxu0
        %v2705 = vadd.f32 0.0, %v2704
        %2706 = vmatmul.f32.gmra.mxu0 %v652
        %v2707 = vpop.f32.mrf.mxu0
        %v2708 = vadd.f32 0.0, %v2707
        %2709 = vmatmul.f32.gmra.mxu0 %v655
        %v2710 = vpop.f32.mrf.mxu0
        %v2711 = vadd.f32 0.0, %v2710
        %2712 = vmatmul.f32.gmra.mxu0 %v658
        %v2713 = vpop.f32.mrf.mxu0
        %v2714 = vadd.f32 0.0, %v2713
        %2715 = vmatmul.f32.gmra.mxu0 %v661
        %v2716 = vpop.f32.mrf.mxu0
        %v2717 = vadd.f32 0.0, %v2716
        %2718 = vmatmul.f32.gmra.mxu0 %v664
        %v2719 = vpop.f32.mrf.mxu0
        %v2720 = vadd.f32 0.0, %v2719
        %2721 = vmatmul.f32.gmra.mxu0 %v667
        %v2722 = vpop.f32.mrf.mxu0
        %v2723 = vadd.f32 0.0, %v2722
        %2724 = vmatmul.f32.gmra.mxu0 %v670
        %v2725 = vpop.f32.mrf.mxu0
        %v2726 = vadd.f32 0.0, %v2725
        %2727 = vdwg.mxu0
        %v2728 = vld [vmem:[%s270] sm:$0xff]
        %v2729 = vld [vmem:[%s270 + $0x8] sm:$0xff]
        %v2730 = vld [vmem:[%s270 + $0x10] sm:$0xff]
        %v2731 = vld [vmem:[%s270 + $0x18] sm:$0xff]
        %v2732 = vld [vmem:[%s270 + $0x20] sm:$0xff]
        %v2733 = vld [vmem:[%s270 + $0x28] sm:$0xff]
        %v2734 = vld [vmem:[%s270 + $0x30] sm:$0xff]
        %v2735 = vld [vmem:[%s270 + $0x38] sm:$0xff]
        %v2736 = vld [vmem:[%s270 + $0x40] sm:$0xff]
        %v2737 = vld [vmem:[%s270 + $0x48] sm:$0xff]
        %v2738 = vld [vmem:[%s270 + $0x50] sm:$0xff]
        %v2739 = vld [vmem:[%s270 + $0x58] sm:$0xff]
        %v2740 = vld [vmem:[%s270 + $0x60] sm:$0xff]
        %v2741 = vld [vmem:[%s270 + $0x68] sm:$0xff]
        %v2742 = vld [vmem:[%s270 + $0x70] sm:$0xff]
        %v2743 = vld [vmem:[%s270 + $0x78] sm:$0xff]
        %v2744 = vld [vmem:[%s270 + $0x80] sm:$0xff]
        %v2745 = vld [vmem:[%s270 + $0x88] sm:$0xff]
        %v2746 = vld [vmem:[%s270 + $0x90] sm:$0xff]
        %v2747 = vld [vmem:[%s270 + $0x98] sm:$0xff]
        %v2748 = vld [vmem:[%s270 + $0xa0] sm:$0xff]
        %v2749 = vld [vmem:[%s270 + $0xa8] sm:$0xff]
        %v2750 = vld [vmem:[%s270 + $0xb0] sm:$0xff]
        %v2751 = vld [vmem:[%s270 + $0xb8] sm:$0xff]
        %v2752 = vld [vmem:[%s270 + $0xc0] sm:$0xff]
        %v2753 = vld [vmem:[%s270 + $0xc8] sm:$0xff]
        %v2754 = vld [vmem:[%s270 + $0xd0] sm:$0xff]
        %v2755 = vld [vmem:[%s270 + $0xd8] sm:$0xff]
        %v2756 = vld [vmem:[%s270 + $0xe0] sm:$0xff]
        %v2757 = vld [vmem:[%s270 + $0xe8] sm:$0xff]
        %v2758 = vld [vmem:[%s270 + $0xf0] sm:$0xff]
        %v2759 = vld [vmem:[%s270 + $0xf8] sm:$0xff]
        %v2760 = vld [vmem:[%s270 + $0x100] sm:$0xff]
        %v2761 = vld [vmem:[%s270 + $0x108] sm:$0xff]
        %v2762 = vld [vmem:[%s270 + $0x110] sm:$0xff]
        %v2763 = vld [vmem:[%s270 + $0x118] sm:$0xff]
        %v2764 = vld [vmem:[%s270 + $0x120] sm:$0xff]
        %v2765 = vld [vmem:[%s270 + $0x128] sm:$0xff]
        %v2766 = vld [vmem:[%s270 + $0x130] sm:$0xff]
        %v2767 = vld [vmem:[%s270 + $0x138] sm:$0xff]
        %v2768 = vld [vmem:[%s270 + $0x140] sm:$0xff]
        %v2769 = vld [vmem:[%s270 + $0x148] sm:$0xff]
        %v2770 = vld [vmem:[%s270 + $0x150] sm:$0xff]
        %v2771 = vld [vmem:[%s270 + $0x158] sm:$0xff]
        %v2772 = vld [vmem:[%s270 + $0x160] sm:$0xff]
        %v2773 = vld [vmem:[%s270 + $0x168] sm:$0xff]
        %v2774 = vld [vmem:[%s270 + $0x170] sm:$0xff]
        %v2775 = vld [vmem:[%s270 + $0x178] sm:$0xff]
        %v2776 = vld [vmem:[%s270 + $0x180] sm:$0xff]
        %v2777 = vld [vmem:[%s270 + $0x188] sm:$0xff]
        %v2778 = vld [vmem:[%s270 + $0x190] sm:$0xff]
        %v2779 = vld [vmem:[%s270 + $0x198] sm:$0xff]
        %v2780 = vld [vmem:[%s270 + $0x1a0] sm:$0xff]
        %v2781 = vld [vmem:[%s270 + $0x1a8] sm:$0xff]
        %v2782 = vld [vmem:[%s270 + $0x1b0] sm:$0xff]
        %v2783 = vld [vmem:[%s270 + $0x1b8] sm:$0xff]
        %v2784 = vld [vmem:[%s270 + $0x1c0] sm:$0xff]
        %v2785 = vld [vmem:[%s270 + $0x1c8] sm:$0xff]
        %v2786 = vld [vmem:[%s270 + $0x1d0] sm:$0xff]
        %v2787 = vld [vmem:[%s270 + $0x1d8] sm:$0xff]
        %v2788 = vld [vmem:[%s270 + $0x1e0] sm:$0xff]
        %v2789 = vld [vmem:[%s270 + $0x1e8] sm:$0xff]
        %v2790 = vld [vmem:[%s270 + $0x1f0] sm:$0xff]
        %v2791 = vld [vmem:[%s270 + $0x1f8] sm:$0xff]
        %v2792 = vld [vmem:[%s275] sm:$0xff]
        %2794 = vset.pattern.permute.xlu0 0
        %2795 = vperm.xlu0 %2794, %v2728
        %v2796 = vpop.permute.xlu0 %2795
        %2799 = vset.pattern.permute.xlu0 0
        %2800 = vperm.xlu0 %2799, %v2729
        %v2801 = vpop.permute.xlu0 %2800
        %2804 = vset.pattern.permute.xlu0 0
        %2805 = vperm.xlu0 %2804, %v2730
        %v2806 = vpop.permute.xlu0 %2805
        %2809 = vset.pattern.permute.xlu0 0
        %2810 = vperm.xlu0 %2809, %v2731
        %v2811 = vpop.permute.xlu0 %2810
        %2814 = vset.pattern.permute.xlu0 0
        %2815 = vperm.xlu0 %2814, %v2732
        %v2816 = vpop.permute.xlu0 %2815
        %2819 = vset.pattern.permute.xlu0 0
        %2820 = vperm.xlu0 %2819, %v2733
        %v2821 = vpop.permute.xlu0 %2820
        %2824 = vset.pattern.permute.xlu0 0
        %2825 = vperm.xlu0 %2824, %v2734
        %v2826 = vpop.permute.xlu0 %2825
        %2829 = vset.pattern.permute.xlu0 0
        %2830 = vperm.xlu0 %2829, %v2735
        %v2831 = vpop.permute.xlu0 %2830
        %2834 = vset.pattern.permute.xlu0 0
        %2835 = vperm.xlu0 %2834, %v2736
        %v2836 = vpop.permute.xlu0 %2835
        %2839 = vset.pattern.permute.xlu0 0
        %2840 = vperm.xlu0 %2839, %v2737
        %v2841 = vpop.permute.xlu0 %2840
        %2844 = vset.pattern.permute.xlu0 0
        %2845 = vperm.xlu0 %2844, %v2738
        %v2846 = vpop.permute.xlu0 %2845
        %2849 = vset.pattern.permute.xlu0 0
        %2850 = vperm.xlu0 %2849, %v2739
        %v2851 = vpop.permute.xlu0 %2850
        %2854 = vset.pattern.permute.xlu0 0
        %2855 = vperm.xlu0 %2854, %v2740
        %v2856 = vpop.permute.xlu0 %2855
        %2859 = vset.pattern.permute.xlu0 0
        %2860 = vperm.xlu0 %2859, %v2741
        %v2861 = vpop.permute.xlu0 %2860
        %2864 = vset.pattern.permute.xlu0 0
        %2865 = vperm.xlu0 %2864, %v2742
        %v2866 = vpop.permute.xlu0 %2865
        %2869 = vset.pattern.permute.xlu0 0
        %2870 = vperm.xlu0 %2869, %v2743
        %v2871 = vpop.permute.xlu0 %2870
        %2874 = vset.pattern.permute.xlu0 0
        %2875 = vperm.xlu0 %2874, %v2744
        %v2876 = vpop.permute.xlu0 %2875
        %2879 = vset.pattern.permute.xlu0 0
        %2880 = vperm.xlu0 %2879, %v2745
        %v2881 = vpop.permute.xlu0 %2880
        %2884 = vset.pattern.permute.xlu0 0
        %2885 = vperm.xlu0 %2884, %v2746
        %v2886 = vpop.permute.xlu0 %2885
        %2889 = vset.pattern.permute.xlu0 0
        %2890 = vperm.xlu0 %2889, %v2747
        %v2891 = vpop.permute.xlu0 %2890
        %2894 = vset.pattern.permute.xlu0 0
        %2895 = vperm.xlu0 %2894, %v2748
        %v2896 = vpop.permute.xlu0 %2895
        %2899 = vset.pattern.permute.xlu0 0
        %2900 = vperm.xlu0 %2899, %v2749
        %v2901 = vpop.permute.xlu0 %2900
        %2904 = vset.pattern.permute.xlu0 0
        %2905 = vperm.xlu0 %2904, %v2750
        %v2906 = vpop.permute.xlu0 %2905
        %2909 = vset.pattern.permute.xlu0 0
        %2910 = vperm.xlu0 %2909, %v2751
        %v2911 = vpop.permute.xlu0 %2910
        %2914 = vset.pattern.permute.xlu0 0
        %2915 = vperm.xlu0 %2914, %v2752
        %v2916 = vpop.permute.xlu0 %2915
        %2919 = vset.pattern.permute.xlu0 0
        %2920 = vperm.xlu0 %2919, %v2753
        %v2921 = vpop.permute.xlu0 %2920
        %2924 = vset.pattern.permute.xlu0 0
        %2925 = vperm.xlu0 %2924, %v2754
        %v2926 = vpop.permute.xlu0 %2925
        %2929 = vset.pattern.permute.xlu0 0
        %2930 = vperm.xlu0 %2929, %v2755
        %v2931 = vpop.permute.xlu0 %2930
        %2934 = vset.pattern.permute.xlu0 0
        %2935 = vperm.xlu0 %2934, %v2756
        %v2936 = vpop.permute.xlu0 %2935
        %2939 = vset.pattern.permute.xlu0 0
        %2940 = vperm.xlu0 %2939, %v2757
        %v2941 = vpop.permute.xlu0 %2940
        %2944 = vset.pattern.permute.xlu0 0
        %2945 = vperm.xlu0 %2944, %v2758
        %v2946 = vpop.permute.xlu0 %2945
        %2949 = vset.pattern.permute.xlu0 0
        %2950 = vperm.xlu0 %2949, %v2759
        %v2951 = vpop.permute.xlu0 %2950
        %2954 = vset.pattern.permute.xlu0 0
        %2955 = vperm.xlu0 %2954, %v2760
        %v2956 = vpop.permute.xlu0 %2955
        %2959 = vset.pattern.permute.xlu0 0
        %2960 = vperm.xlu0 %2959, %v2761
        %v2961 = vpop.permute.xlu0 %2960
        %2964 = vset.pattern.permute.xlu0 0
        %2965 = vperm.xlu0 %2964, %v2762
        %v2966 = vpop.permute.xlu0 %2965
        %2969 = vset.pattern.permute.xlu0 0
        %2970 = vperm.xlu0 %2969, %v2763
        %v2971 = vpop.permute.xlu0 %2970
        %2974 = vset.pattern.permute.xlu0 0
        %2975 = vperm.xlu0 %2974, %v2764
        %v2976 = vpop.permute.xlu0 %2975
        %2979 = vset.pattern.permute.xlu0 0
        %2980 = vperm.xlu0 %2979, %v2765
        %v2981 = vpop.permute.xlu0 %2980
        %2984 = vset.pattern.permute.xlu0 0
        %2985 = vperm.xlu0 %2984, %v2766
        %v2986 = vpop.permute.xlu0 %2985
        %2989 = vset.pattern.permute.xlu0 0
        %2990 = vperm.xlu0 %2989, %v2767
        %v2991 = vpop.permute.xlu0 %2990
        %2994 = vset.pattern.permute.xlu0 0
        %2995 = vperm.xlu0 %2994, %v2768
        %v2996 = vpop.permute.xlu0 %2995
        %2999 = vset.pattern.permute.xlu0 0
        %3000 = vperm.xlu0 %2999, %v2769
        %v3001 = vpop.permute.xlu0 %3000
        %3004 = vset.pattern.permute.xlu0 0
        %3005 = vperm.xlu0 %3004, %v2770
        %v3006 = vpop.permute.xlu0 %3005
        %3009 = vset.pattern.permute.xlu0 0
        %3010 = vperm.xlu0 %3009, %v2771
        %v3011 = vpop.permute.xlu0 %3010
        %3014 = vset.pattern.permute.xlu0 0
        %3015 = vperm.xlu0 %3014, %v2772
        %v3016 = vpop.permute.xlu0 %3015
        %3019 = vset.pattern.permute.xlu0 0
        %3020 = vperm.xlu0 %3019, %v2773
        %v3021 = vpop.permute.xlu0 %3020
        %3024 = vset.pattern.permute.xlu0 0
        %3025 = vperm.xlu0 %3024, %v2774
        %v3026 = vpop.permute.xlu0 %3025
        %3029 = vset.pattern.permute.xlu0 0
        %3030 = vperm.xlu0 %3029, %v2775
        %v3031 = vpop.permute.xlu0 %3030
        %3034 = vset.pattern.permute.xlu0 0
        %3035 = vperm.xlu0 %3034, %v2776
        %v3036 = vpop.permute.xlu0 %3035
        %3039 = vset.pattern.permute.xlu0 0
        %3040 = vperm.xlu0 %3039, %v2777
        %v3041 = vpop.permute.xlu0 %3040
        %3044 = vset.pattern.permute.xlu0 0
        %3045 = vperm.xlu0 %3044, %v2778
        %v3046 = vpop.permute.xlu0 %3045
        %3049 = vset.pattern.permute.xlu0 0
        %3050 = vperm.xlu0 %3049, %v2779
        %v3051 = vpop.permute.xlu0 %3050
        %3054 = vset.pattern.permute.xlu0 0
        %3055 = vperm.xlu0 %3054, %v2780
        %v3056 = vpop.permute.xlu0 %3055
        %3059 = vset.pattern.permute.xlu0 0
        %3060 = vperm.xlu0 %3059, %v2781
        %v3061 = vpop.permute.xlu0 %3060
        %3064 = vset.pattern.permute.xlu0 0
        %3065 = vperm.xlu0 %3064, %v2782
        %v3066 = vpop.permute.xlu0 %3065
        %3069 = vset.pattern.permute.xlu0 0
        %3070 = vperm.xlu0 %3069, %v2783
        %v3071 = vpop.permute.xlu0 %3070
        %3074 = vset.pattern.permute.xlu0 0
        %3075 = vperm.xlu0 %3074, %v2784
        %v3076 = vpop.permute.xlu0 %3075
        %3079 = vset.pattern.permute.xlu0 0
        %3080 = vperm.xlu0 %3079, %v2785
        %v3081 = vpop.permute.xlu0 %3080
        %3084 = vset.pattern.permute.xlu0 0
        %3085 = vperm.xlu0 %3084, %v2786
        %v3086 = vpop.permute.xlu0 %3085
        %3089 = vset.pattern.permute.xlu0 0
        %3090 = vperm.xlu0 %3089, %v2787
        %v3091 = vpop.permute.xlu0 %3090
        %3094 = vset.pattern.permute.xlu0 0
        %3095 = vperm.xlu0 %3094, %v2788
        %v3096 = vpop.permute.xlu0 %3095
        %3099 = vset.pattern.permute.xlu0 0
        %3100 = vperm.xlu0 %3099, %v2789
        %v3101 = vpop.permute.xlu0 %3100
        %3104 = vset.pattern.permute.xlu0 0
        %3105 = vperm.xlu0 %3104, %v2790
        %v3106 = vpop.permute.xlu0 %3105
        %3109 = vset.pattern.permute.xlu0 0
        %3110 = vperm.xlu0 %3109, %v2791
        %v3111 = vpop.permute.xlu0 %3110
        %v3114 = vperm.slane %v2792, 0
        %v3115 = vperm.slane %v2792, 1
        %v3116 = vperm.slane %v2792, 2
        %v3117 = vperm.slane %v2792, 3
        %v3118 = vperm.slane %v2792, 4
        %v3119 = vperm.slane %v2792, 5
        %v3120 = vperm.slane %v2792, 6
        %v3121 = vperm.slane %v2792, 7
        %v3130 = vadd.f32 %v2796, %v3114
        %v3131 = vadd.f32 %v2796, %v3115
        %v3132 = vadd.f32 %v2796, %v3116
        %v3133 = vadd.f32 %v2796, %v3117
        %v3134 = vadd.f32 %v2796, %v3118
        %v3135 = vadd.f32 %v2796, %v3119
        %v3136 = vadd.f32 %v2796, %v3120
        %v3137 = vadd.f32 %v2796, %v3121
        %v3138 = vadd.f32 %v2801, %v3114
        %v3139 = vadd.f32 %v2801, %v3115
        %v3140 = vadd.f32 %v2801, %v3116
        %v3141 = vadd.f32 %v2801, %v3117
        %v3142 = vadd.f32 %v2801, %v3118
        %v3143 = vadd.f32 %v2801, %v3119
        %v3144 = vadd.f32 %v2801, %v3120
        %v3145 = vadd.f32 %v2801, %v3121
        %v3146 = vadd.f32 %v2806, %v3114
        %v3147 = vadd.f32 %v2806, %v3115
        %v3148 = vadd.f32 %v2806, %v3116
        %v3149 = vadd.f32 %v2806, %v3117
        %v3150 = vadd.f32 %v2806, %v3118
        %v3151 = vadd.f32 %v2806, %v3119
        %v3152 = vadd.f32 %v2806, %v3120
        %v3153 = vadd.f32 %v2806, %v3121
        %v3154 = vadd.f32 %v2811, %v3114
        %v3155 = vadd.f32 %v2811, %v3115
        %v3156 = vadd.f32 %v2811, %v3116
        %v3157 = vadd.f32 %v2811, %v3117
        %v3158 = vadd.f32 %v2811, %v3118
        %v3159 = vadd.f32 %v2811, %v3119
        %v3160 = vadd.f32 %v2811, %v3120
        %v3161 = vadd.f32 %v2811, %v3121
        %v3162 = vadd.f32 %v2816, %v3114
        %v3163 = vadd.f32 %v2816, %v3115
        %v3164 = vadd.f32 %v2816, %v3116
        %v3165 = vadd.f32 %v2816, %v3117
        %v3166 = vadd.f32 %v2816, %v3118
        %v3167 = vadd.f32 %v2816, %v3119
        %v3168 = vadd.f32 %v2816, %v3120
        %v3169 = vadd.f32 %v2816, %v3121
        %v3170 = vadd.f32 %v2821, %v3114
        %v3171 = vadd.f32 %v2821, %v3115
        %v3172 = vadd.f32 %v2821, %v3116
        %v3173 = vadd.f32 %v2821, %v3117
        %v3174 = vadd.f32 %v2821, %v3118
        %v3175 = vadd.f32 %v2821, %v3119
        %v3176 = vadd.f32 %v2821, %v3120
        %v3177 = vadd.f32 %v2821, %v3121
        %v3178 = vadd.f32 %v2826, %v3114
        %v3179 = vadd.f32 %v2826, %v3115
        %v3180 = vadd.f32 %v2826, %v3116
        %v3181 = vadd.f32 %v2826, %v3117
        %v3182 = vadd.f32 %v2826, %v3118
        %v3183 = vadd.f32 %v2826, %v3119
        %v3184 = vadd.f32 %v2826, %v3120
        %v3185 = vadd.f32 %v2826, %v3121
        %v3186 = vadd.f32 %v2831, %v3114
        %v3187 = vadd.f32 %v2831, %v3115
        %v3188 = vadd.f32 %v2831, %v3116
        %v3189 = vadd.f32 %v2831, %v3117
        %v3190 = vadd.f32 %v2831, %v3118
        %v3191 = vadd.f32 %v2831, %v3119
        %v3192 = vadd.f32 %v2831, %v3120
        %v3193 = vadd.f32 %v2831, %v3121
        %v3194 = vadd.f32 %v2836, %v3114
        %v3195 = vadd.f32 %v2836, %v3115
        %v3196 = vadd.f32 %v2836, %v3116
        %v3197 = vadd.f32 %v2836, %v3117
        %v3198 = vadd.f32 %v2836, %v3118
        %v3199 = vadd.f32 %v2836, %v3119
        %v3200 = vadd.f32 %v2836, %v3120
        %v3201 = vadd.f32 %v2836, %v3121
        %v3202 = vadd.f32 %v2841, %v3114
        %v3203 = vadd.f32 %v2841, %v3115
        %v3204 = vadd.f32 %v2841, %v3116
        %v3205 = vadd.f32 %v2841, %v3117
        %v3206 = vadd.f32 %v2841, %v3118
        %v3207 = vadd.f32 %v2841, %v3119
        %v3208 = vadd.f32 %v2841, %v3120
        %v3209 = vadd.f32 %v2841, %v3121
        %v3210 = vadd.f32 %v2846, %v3114
        %v3211 = vadd.f32 %v2846, %v3115
        %v3212 = vadd.f32 %v2846, %v3116
        %v3213 = vadd.f32 %v2846, %v3117
        %v3214 = vadd.f32 %v2846, %v3118
        %v3215 = vadd.f32 %v2846, %v3119
        %v3216 = vadd.f32 %v2846, %v3120
        %v3217 = vadd.f32 %v2846, %v3121
        %v3218 = vadd.f32 %v2851, %v3114
        %v3219 = vadd.f32 %v2851, %v3115
        %v3220 = vadd.f32 %v2851, %v3116
        %v3221 = vadd.f32 %v2851, %v3117
        %v3222 = vadd.f32 %v2851, %v3118
        %v3223 = vadd.f32 %v2851, %v3119
        %v3224 = vadd.f32 %v2851, %v3120
        %v3225 = vadd.f32 %v2851, %v3121
        %v3226 = vadd.f32 %v2856, %v3114
        %v3227 = vadd.f32 %v2856, %v3115
        %v3228 = vadd.f32 %v2856, %v3116
        %v3229 = vadd.f32 %v2856, %v3117
        %v3230 = vadd.f32 %v2856, %v3118
        %v3231 = vadd.f32 %v2856, %v3119
        %v3232 = vadd.f32 %v2856, %v3120
        %v3233 = vadd.f32 %v2856, %v3121
        %v3234 = vadd.f32 %v2861, %v3114
        %v3235 = vadd.f32 %v2861, %v3115
        %v3236 = vadd.f32 %v2861, %v3116
        %v3237 = vadd.f32 %v2861, %v3117
        %v3238 = vadd.f32 %v2861, %v3118
        %v3239 = vadd.f32 %v2861, %v3119
        %v3240 = vadd.f32 %v2861, %v3120
        %v3241 = vadd.f32 %v2861, %v3121
        %v3242 = vadd.f32 %v2866, %v3114
        %v3243 = vadd.f32 %v2866, %v3115
        %v3244 = vadd.f32 %v2866, %v3116
        %v3245 = vadd.f32 %v2866, %v3117
        %v3246 = vadd.f32 %v2866, %v3118
        %v3247 = vadd.f32 %v2866, %v3119
        %v3248 = vadd.f32 %v2866, %v3120
        %v3249 = vadd.f32 %v2866, %v3121
        %v3250 = vadd.f32 %v2871, %v3114
        %v3251 = vadd.f32 %v2871, %v3115
        %v3252 = vadd.f32 %v2871, %v3116
        %v3253 = vadd.f32 %v2871, %v3117
        %v3254 = vadd.f32 %v2871, %v3118
        %v3255 = vadd.f32 %v2871, %v3119
        %v3256 = vadd.f32 %v2871, %v3120
        %v3257 = vadd.f32 %v2871, %v3121
        %v3258 = vadd.f32 %v2876, %v3114
        %v3259 = vadd.f32 %v2876, %v3115
        %v3260 = vadd.f32 %v2876, %v3116
        %v3261 = vadd.f32 %v2876, %v3117
        %v3262 = vadd.f32 %v2876, %v3118
        %v3263 = vadd.f32 %v2876, %v3119
        %v3264 = vadd.f32 %v2876, %v3120
        %v3265 = vadd.f32 %v2876, %v3121
        %v3266 = vadd.f32 %v2881, %v3114
        %v3267 = vadd.f32 %v2881, %v3115
        %v3268 = vadd.f32 %v2881, %v3116
        %v3269 = vadd.f32 %v2881, %v3117
        %v3270 = vadd.f32 %v2881, %v3118
        %v3271 = vadd.f32 %v2881, %v3119
        %v3272 = vadd.f32 %v2881, %v3120
        %v3273 = vadd.f32 %v2881, %v3121
        %v3274 = vadd.f32 %v2886, %v3114
        %v3275 = vadd.f32 %v2886, %v3115
        %v3276 = vadd.f32 %v2886, %v3116
        %v3277 = vadd.f32 %v2886, %v3117
        %v3278 = vadd.f32 %v2886, %v3118
        %v3279 = vadd.f32 %v2886, %v3119
        %v3280 = vadd.f32 %v2886, %v3120
        %v3281 = vadd.f32 %v2886, %v3121
        %v3282 = vadd.f32 %v2891, %v3114
        %v3283 = vadd.f32 %v2891, %v3115
        %v3284 = vadd.f32 %v2891, %v3116
        %v3285 = vadd.f32 %v2891, %v3117
        %v3286 = vadd.f32 %v2891, %v3118
        %v3287 = vadd.f32 %v2891, %v3119
        %v3288 = vadd.f32 %v2891, %v3120
        %v3289 = vadd.f32 %v2891, %v3121
        %v3290 = vadd.f32 %v2896, %v3114
        %v3291 = vadd.f32 %v2896, %v3115
        %v3292 = vadd.f32 %v2896, %v3116
        %v3293 = vadd.f32 %v2896, %v3117
        %v3294 = vadd.f32 %v2896, %v3118
        %v3295 = vadd.f32 %v2896, %v3119
        %v3296 = vadd.f32 %v2896, %v3120
        %v3297 = vadd.f32 %v2896, %v3121
        %v3298 = vadd.f32 %v2901, %v3114
        %v3299 = vadd.f32 %v2901, %v3115
        %v3300 = vadd.f32 %v2901, %v3116
        %v3301 = vadd.f32 %v2901, %v3117
        %v3302 = vadd.f32 %v2901, %v3118
        %v3303 = vadd.f32 %v2901, %v3119
        %v3304 = vadd.f32 %v2901, %v3120
        %v3305 = vadd.f32 %v2901, %v3121
        %v3306 = vadd.f32 %v2906, %v3114
        %v3307 = vadd.f32 %v2906, %v3115
        %v3308 = vadd.f32 %v2906, %v3116
        %v3309 = vadd.f32 %v2906, %v3117
        %v3310 = vadd.f32 %v2906, %v3118
        %v3311 = vadd.f32 %v2906, %v3119
        %v3312 = vadd.f32 %v2906, %v3120
        %v3313 = vadd.f32 %v2906, %v3121
        %v3314 = vadd.f32 %v2911, %v3114
        %v3315 = vadd.f32 %v2911, %v3115
        %v3316 = vadd.f32 %v2911, %v3116
        %v3317 = vadd.f32 %v2911, %v3117
        %v3318 = vadd.f32 %v2911, %v3118
        %v3319 = vadd.f32 %v2911, %v3119
        %v3320 = vadd.f32 %v2911, %v3120
        %v3321 = vadd.f32 %v2911, %v3121
        %v3322 = vadd.f32 %v2916, %v3114
        %v3323 = vadd.f32 %v2916, %v3115
        %v3324 = vadd.f32 %v2916, %v3116
        %v3325 = vadd.f32 %v2916, %v3117
        %v3326 = vadd.f32 %v2916, %v3118
        %v3327 = vadd.f32 %v2916, %v3119
        %v3328 = vadd.f32 %v2916, %v3120
        %v3329 = vadd.f32 %v2916, %v3121
        %v3330 = vadd.f32 %v2921, %v3114
        %v3331 = vadd.f32 %v2921, %v3115
        %v3332 = vadd.f32 %v2921, %v3116
        %v3333 = vadd.f32 %v2921, %v3117
        %v3334 = vadd.f32 %v2921, %v3118
        %v3335 = vadd.f32 %v2921, %v3119
        %v3336 = vadd.f32 %v2921, %v3120
        %v3337 = vadd.f32 %v2921, %v3121
        %v3338 = vadd.f32 %v2926, %v3114
        %v3339 = vadd.f32 %v2926, %v3115
        %v3340 = vadd.f32 %v2926, %v3116
        %v3341 = vadd.f32 %v2926, %v3117
        %v3342 = vadd.f32 %v2926, %v3118
        %v3343 = vadd.f32 %v2926, %v3119
        %v3344 = vadd.f32 %v2926, %v3120
        %v3345 = vadd.f32 %v2926, %v3121
        %v3346 = vadd.f32 %v2931, %v3114
        %v3347 = vadd.f32 %v2931, %v3115
        %v3348 = vadd.f32 %v2931, %v3116
        %v3349 = vadd.f32 %v2931, %v3117
        %v3350 = vadd.f32 %v2931, %v3118
        %v3351 = vadd.f32 %v2931, %v3119
        %v3352 = vadd.f32 %v2931, %v3120
        %v3353 = vadd.f32 %v2931, %v3121
        %v3354 = vadd.f32 %v2936, %v3114
        %v3355 = vadd.f32 %v2936, %v3115
        %v3356 = vadd.f32 %v2936, %v3116
        %v3357 = vadd.f32 %v2936, %v3117
        %v3358 = vadd.f32 %v2936, %v3118
        %v3359 = vadd.f32 %v2936, %v3119
        %v3360 = vadd.f32 %v2936, %v3120
        %v3361 = vadd.f32 %v2936, %v3121
        %v3362 = vadd.f32 %v2941, %v3114
        %v3363 = vadd.f32 %v2941, %v3115
        %v3364 = vadd.f32 %v2941, %v3116
        %v3365 = vadd.f32 %v2941, %v3117
        %v3366 = vadd.f32 %v2941, %v3118
        %v3367 = vadd.f32 %v2941, %v3119
        %v3368 = vadd.f32 %v2941, %v3120
        %v3369 = vadd.f32 %v2941, %v3121
        %v3370 = vadd.f32 %v2946, %v3114
        %v3371 = vadd.f32 %v2946, %v3115
        %v3372 = vadd.f32 %v2946, %v3116
        %v3373 = vadd.f32 %v2946, %v3117
        %v3374 = vadd.f32 %v2946, %v3118
        %v3375 = vadd.f32 %v2946, %v3119
        %v3376 = vadd.f32 %v2946, %v3120
        %v3377 = vadd.f32 %v2946, %v3121
        %v3378 = vadd.f32 %v2951, %v3114
        %v3379 = vadd.f32 %v2951, %v3115
        %v3380 = vadd.f32 %v2951, %v3116
        %v3381 = vadd.f32 %v2951, %v3117
        %v3382 = vadd.f32 %v2951, %v3118
        %v3383 = vadd.f32 %v2951, %v3119
        %v3384 = vadd.f32 %v2951, %v3120
        %v3385 = vadd.f32 %v2951, %v3121
        %v3386 = vadd.f32 %v2956, %v3114
        %v3387 = vadd.f32 %v2956, %v3115
        %v3388 = vadd.f32 %v2956, %v3116
        %v3389 = vadd.f32 %v2956, %v3117
        %v3390 = vadd.f32 %v2956, %v3118
        %v3391 = vadd.f32 %v2956, %v3119
        %v3392 = vadd.f32 %v2956, %v3120
        %v3393 = vadd.f32 %v2956, %v3121
        %v3394 = vadd.f32 %v2961, %v3114
        %v3395 = vadd.f32 %v2961, %v3115
        %v3396 = vadd.f32 %v2961, %v3116
        %v3397 = vadd.f32 %v2961, %v3117
        %v3398 = vadd.f32 %v2961, %v3118
        %v3399 = vadd.f32 %v2961, %v3119
        %v3400 = vadd.f32 %v2961, %v3120
        %v3401 = vadd.f32 %v2961, %v3121
        %v3402 = vadd.f32 %v2966, %v3114
        %v3403 = vadd.f32 %v2966, %v3115
        %v3404 = vadd.f32 %v2966, %v3116
        %v3405 = vadd.f32 %v2966, %v3117
        %v3406 = vadd.f32 %v2966, %v3118
        %v3407 = vadd.f32 %v2966, %v3119
        %v3408 = vadd.f32 %v2966, %v3120
        %v3409 = vadd.f32 %v2966, %v3121
        %v3410 = vadd.f32 %v2971, %v3114
        %v3411 = vadd.f32 %v2971, %v3115
        %v3412 = vadd.f32 %v2971, %v3116
        %v3413 = vadd.f32 %v2971, %v3117
        %v3414 = vadd.f32 %v2971, %v3118
        %v3415 = vadd.f32 %v2971, %v3119
        %v3416 = vadd.f32 %v2971, %v3120
        %v3417 = vadd.f32 %v2971, %v3121
        %v3418 = vadd.f32 %v2976, %v3114
        %v3419 = vadd.f32 %v2976, %v3115
        %v3420 = vadd.f32 %v2976, %v3116
        %v3421 = vadd.f32 %v2976, %v3117
        %v3422 = vadd.f32 %v2976, %v3118
        %v3423 = vadd.f32 %v2976, %v3119
        %v3424 = vadd.f32 %v2976, %v3120
        %v3425 = vadd.f32 %v2976, %v3121
        %v3426 = vadd.f32 %v2981, %v3114
        %v3427 = vadd.f32 %v2981, %v3115
        %v3428 = vadd.f32 %v2981, %v3116
        %v3429 = vadd.f32 %v2981, %v3117
        %v3430 = vadd.f32 %v2981, %v3118
        %v3431 = vadd.f32 %v2981, %v3119
        %v3432 = vadd.f32 %v2981, %v3120
        %v3433 = vadd.f32 %v2981, %v3121
        %v3434 = vadd.f32 %v2986, %v3114
        %v3435 = vadd.f32 %v2986, %v3115
        %v3436 = vadd.f32 %v2986, %v3116
        %v3437 = vadd.f32 %v2986, %v3117
        %v3438 = vadd.f32 %v2986, %v3118
        %v3439 = vadd.f32 %v2986, %v3119
        %v3440 = vadd.f32 %v2986, %v3120
        %v3441 = vadd.f32 %v2986, %v3121
        %v3442 = vadd.f32 %v2991, %v3114
        %v3443 = vadd.f32 %v2991, %v3115
        %v3444 = vadd.f32 %v2991, %v3116
        %v3445 = vadd.f32 %v2991, %v3117
        %v3446 = vadd.f32 %v2991, %v3118
        %v3447 = vadd.f32 %v2991, %v3119
        %v3448 = vadd.f32 %v2991, %v3120
        %v3449 = vadd.f32 %v2991, %v3121
        %v3450 = vadd.f32 %v2996, %v3114
        %v3451 = vadd.f32 %v2996, %v3115
        %v3452 = vadd.f32 %v2996, %v3116
        %v3453 = vadd.f32 %v2996, %v3117
        %v3454 = vadd.f32 %v2996, %v3118
        %v3455 = vadd.f32 %v2996, %v3119
        %v3456 = vadd.f32 %v2996, %v3120
        %v3457 = vadd.f32 %v2996, %v3121
        %v3458 = vadd.f32 %v3001, %v3114
        %v3459 = vadd.f32 %v3001, %v3115
        %v3460 = vadd.f32 %v3001, %v3116
        %v3461 = vadd.f32 %v3001, %v3117
        %v3462 = vadd.f32 %v3001, %v3118
        %v3463 = vadd.f32 %v3001, %v3119
        %v3464 = vadd.f32 %v3001, %v3120
        %v3465 = vadd.f32 %v3001, %v3121
        %v3466 = vadd.f32 %v3006, %v3114
        %v3467 = vadd.f32 %v3006, %v3115
        %v3468 = vadd.f32 %v3006, %v3116
        %v3469 = vadd.f32 %v3006, %v3117
        %v3470 = vadd.f32 %v3006, %v3118
        %v3471 = vadd.f32 %v3006, %v3119
        %v3472 = vadd.f32 %v3006, %v3120
        %v3473 = vadd.f32 %v3006, %v3121
        %v3474 = vadd.f32 %v3011, %v3114
        %v3475 = vadd.f32 %v3011, %v3115
        %v3476 = vadd.f32 %v3011, %v3116
        %v3477 = vadd.f32 %v3011, %v3117
        %v3478 = vadd.f32 %v3011, %v3118
        %v3479 = vadd.f32 %v3011, %v3119
        %v3480 = vadd.f32 %v3011, %v3120
        %v3481 = vadd.f32 %v3011, %v3121
        %v3482 = vadd.f32 %v3016, %v3114
        %v3483 = vadd.f32 %v3016, %v3115
        %v3484 = vadd.f32 %v3016, %v3116
        %v3485 = vadd.f32 %v3016, %v3117
        %v3486 = vadd.f32 %v3016, %v3118
        %v3487 = vadd.f32 %v3016, %v3119
        %v3488 = vadd.f32 %v3016, %v3120
        %v3489 = vadd.f32 %v3016, %v3121
        %v3490 = vadd.f32 %v3021, %v3114
        %v3491 = vadd.f32 %v3021, %v3115
        %v3492 = vadd.f32 %v3021, %v3116
        %v3493 = vadd.f32 %v3021, %v3117
        %v3494 = vadd.f32 %v3021, %v3118
        %v3495 = vadd.f32 %v3021, %v3119
        %v3496 = vadd.f32 %v3021, %v3120
        %v3497 = vadd.f32 %v3021, %v3121
        %v3498 = vadd.f32 %v3026, %v3114
        %v3499 = vadd.f32 %v3026, %v3115
        %v3500 = vadd.f32 %v3026, %v3116
        %v3501 = vadd.f32 %v3026, %v3117
        %v3502 = vadd.f32 %v3026, %v3118
        %v3503 = vadd.f32 %v3026, %v3119
        %v3504 = vadd.f32 %v3026, %v3120
        %v3505 = vadd.f32 %v3026, %v3121
        %v3506 = vadd.f32 %v3031, %v3114
        %v3507 = vadd.f32 %v3031, %v3115
        %v3508 = vadd.f32 %v3031, %v3116
        %v3509 = vadd.f32 %v3031, %v3117
        %v3510 = vadd.f32 %v3031, %v3118
        %v3511 = vadd.f32 %v3031, %v3119
        %v3512 = vadd.f32 %v3031, %v3120
        %v3513 = vadd.f32 %v3031, %v3121
        %v3514 = vadd.f32 %v3036, %v3114
        %v3515 = vadd.f32 %v3036, %v3115
        %v3516 = vadd.f32 %v3036, %v3116
        %v3517 = vadd.f32 %v3036, %v3117
        %v3518 = vadd.f32 %v3036, %v3118
        %v3519 = vadd.f32 %v3036, %v3119
        %v3520 = vadd.f32 %v3036, %v3120
        %v3521 = vadd.f32 %v3036, %v3121
        %v3522 = vadd.f32 %v3041, %v3114
        %v3523 = vadd.f32 %v3041, %v3115
        %v3524 = vadd.f32 %v3041, %v3116
        %v3525 = vadd.f32 %v3041, %v3117
        %v3526 = vadd.f32 %v3041, %v3118
        %v3527 = vadd.f32 %v3041, %v3119
        %v3528 = vadd.f32 %v3041, %v3120
        %v3529 = vadd.f32 %v3041, %v3121
        %v3530 = vadd.f32 %v3046, %v3114
        %v3531 = vadd.f32 %v3046, %v3115
        %v3532 = vadd.f32 %v3046, %v3116
        %v3533 = vadd.f32 %v3046, %v3117
        %v3534 = vadd.f32 %v3046, %v3118
        %v3535 = vadd.f32 %v3046, %v3119
        %v3536 = vadd.f32 %v3046, %v3120
        %v3537 = vadd.f32 %v3046, %v3121
        %v3538 = vadd.f32 %v3051, %v3114
        %v3539 = vadd.f32 %v3051, %v3115
        %v3540 = vadd.f32 %v3051, %v3116
        %v3541 = vadd.f32 %v3051, %v3117
        %v3542 = vadd.f32 %v3051, %v3118
        %v3543 = vadd.f32 %v3051, %v3119
        %v3544 = vadd.f32 %v3051, %v3120
        %v3545 = vadd.f32 %v3051, %v3121
        %v3546 = vadd.f32 %v3056, %v3114
        %v3547 = vadd.f32 %v3056, %v3115
        %v3548 = vadd.f32 %v3056, %v3116
        %v3549 = vadd.f32 %v3056, %v3117
        %v3550 = vadd.f32 %v3056, %v3118
        %v3551 = vadd.f32 %v3056, %v3119
        %v3552 = vadd.f32 %v3056, %v3120
        %v3553 = vadd.f32 %v3056, %v3121
        %v3554 = vadd.f32 %v3061, %v3114
        %v3555 = vadd.f32 %v3061, %v3115
        %v3556 = vadd.f32 %v3061, %v3116
        %v3557 = vadd.f32 %v3061, %v3117
        %v3558 = vadd.f32 %v3061, %v3118
        %v3559 = vadd.f32 %v3061, %v3119
        %v3560 = vadd.f32 %v3061, %v3120
        %v3561 = vadd.f32 %v3061, %v3121
        %v3562 = vadd.f32 %v3066, %v3114
        %v3563 = vadd.f32 %v3066, %v3115
        %v3564 = vadd.f32 %v3066, %v3116
        %v3565 = vadd.f32 %v3066, %v3117
        %v3566 = vadd.f32 %v3066, %v3118
        %v3567 = vadd.f32 %v3066, %v3119
        %v3568 = vadd.f32 %v3066, %v3120
        %v3569 = vadd.f32 %v3066, %v3121
        %v3570 = vadd.f32 %v3071, %v3114
        %v3571 = vadd.f32 %v3071, %v3115
        %v3572 = vadd.f32 %v3071, %v3116
        %v3573 = vadd.f32 %v3071, %v3117
        %v3574 = vadd.f32 %v3071, %v3118
        %v3575 = vadd.f32 %v3071, %v3119
        %v3576 = vadd.f32 %v3071, %v3120
        %v3577 = vadd.f32 %v3071, %v3121
        %v3578 = vadd.f32 %v3076, %v3114
        %v3579 = vadd.f32 %v3076, %v3115
        %v3580 = vadd.f32 %v3076, %v3116
        %v3581 = vadd.f32 %v3076, %v3117
        %v3582 = vadd.f32 %v3076, %v3118
        %v3583 = vadd.f32 %v3076, %v3119
        %v3584 = vadd.f32 %v3076, %v3120
        %v3585 = vadd.f32 %v3076, %v3121
        %v3586 = vadd.f32 %v3081, %v3114
        %v3587 = vadd.f32 %v3081, %v3115
        %v3588 = vadd.f32 %v3081, %v3116
        %v3589 = vadd.f32 %v3081, %v3117
        %v3590 = vadd.f32 %v3081, %v3118
        %v3591 = vadd.f32 %v3081, %v3119
        %v3592 = vadd.f32 %v3081, %v3120
        %v3593 = vadd.f32 %v3081, %v3121
        %v3594 = vadd.f32 %v3086, %v3114
        %v3595 = vadd.f32 %v3086, %v3115
        %v3596 = vadd.f32 %v3086, %v3116
        %v3597 = vadd.f32 %v3086, %v3117
        %v3598 = vadd.f32 %v3086, %v3118
        %v3599 = vadd.f32 %v3086, %v3119
        %v3600 = vadd.f32 %v3086, %v3120
        %v3601 = vadd.f32 %v3086, %v3121
        %v3602 = vadd.f32 %v3091, %v3114
        %v3603 = vadd.f32 %v3091, %v3115
        %v3604 = vadd.f32 %v3091, %v3116
        %v3605 = vadd.f32 %v3091, %v3117
        %v3606 = vadd.f32 %v3091, %v3118
        %v3607 = vadd.f32 %v3091, %v3119
        %v3608 = vadd.f32 %v3091, %v3120
        %v3609 = vadd.f32 %v3091, %v3121
        %v3610 = vadd.f32 %v3096, %v3114
        %v3611 = vadd.f32 %v3096, %v3115
        %v3612 = vadd.f32 %v3096, %v3116
        %v3613 = vadd.f32 %v3096, %v3117
        %v3614 = vadd.f32 %v3096, %v3118
        %v3615 = vadd.f32 %v3096, %v3119
        %v3616 = vadd.f32 %v3096, %v3120
        %v3617 = vadd.f32 %v3096, %v3121
        %v3618 = vadd.f32 %v3101, %v3114
        %v3619 = vadd.f32 %v3101, %v3115
        %v3620 = vadd.f32 %v3101, %v3116
        %v3621 = vadd.f32 %v3101, %v3117
        %v3622 = vadd.f32 %v3101, %v3118
        %v3623 = vadd.f32 %v3101, %v3119
        %v3624 = vadd.f32 %v3101, %v3120
        %v3625 = vadd.f32 %v3101, %v3121
        %v3626 = vadd.f32 %v3106, %v3114
        %v3627 = vadd.f32 %v3106, %v3115
        %v3628 = vadd.f32 %v3106, %v3116
        %v3629 = vadd.f32 %v3106, %v3117
        %v3630 = vadd.f32 %v3106, %v3118
        %v3631 = vadd.f32 %v3106, %v3119
        %v3632 = vadd.f32 %v3106, %v3120
        %v3633 = vadd.f32 %v3106, %v3121
        %v3634 = vadd.f32 %v3111, %v3114
        %v3635 = vadd.f32 %v3111, %v3115
        %v3636 = vadd.f32 %v3111, %v3116
        %v3637 = vadd.f32 %v3111, %v3117
        %v3638 = vadd.f32 %v3111, %v3118
        %v3639 = vadd.f32 %v3111, %v3119
        %v3640 = vadd.f32 %v3111, %v3120
        %v3641 = vadd.f32 %v3111, %v3121
        %v3642 = vadd.f32 %v3130, %v1074
        %v3643 = vadd.f32 %v3131, %v1283
        %v3644 = vadd.f32 %v3132, %v1492
        %v3645 = vadd.f32 %v3133, %v1701
        %v3646 = vadd.f32 %v3134, %v1910
        %v3647 = vadd.f32 %v3135, %v2119
        %v3648 = vadd.f32 %v3136, %v2328
        %v3649 = vadd.f32 %v3137, %v2537
        %v3650 = vadd.f32 %v3138, %v1077
        %v3651 = vadd.f32 %v3139, %v1286
        %v3652 = vadd.f32 %v3140, %v1495
        %v3653 = vadd.f32 %v3141, %v1704
        %v3654 = vadd.f32 %v3142, %v1913
        %v3655 = vadd.f32 %v3143, %v2122
        %v3656 = vadd.f32 %v3144, %v2331
        %v3657 = vadd.f32 %v3145, %v2540
        %v3658 = vadd.f32 %v3146, %v1080
        %v3659 = vadd.f32 %v3147, %v1289
        %v3660 = vadd.f32 %v3148, %v1498
        %v3661 = vadd.f32 %v3149, %v1707
        %v3662 = vadd.f32 %v3150, %v1916
        %v3663 = vadd.f32 %v3151, %v2125
        %v3664 = vadd.f32 %v3152, %v2334
        %v3665 = vadd.f32 %v3153, %v2543
        %v3666 = vadd.f32 %v3154, %v1083
        %v3667 = vadd.f32 %v3155, %v1292
        %v3668 = vadd.f32 %v3156, %v1501
        %v3669 = vadd.f32 %v3157, %v1710
        %v3670 = vadd.f32 %v3158, %v1919
        %v3671 = vadd.f32 %v3159, %v2128
        %v3672 = vadd.f32 %v3160, %v2337
        %v3673 = vadd.f32 %v3161, %v2546
        %v3674 = vadd.f32 %v3162, %v1086
        %v3675 = vadd.f32 %v3163, %v1295
        %v3676 = vadd.f32 %v3164, %v1504
        %v3677 = vadd.f32 %v3165, %v1713
        %v3678 = vadd.f32 %v3166, %v1922
        %v3679 = vadd.f32 %v3167, %v2131
        %v3680 = vadd.f32 %v3168, %v2340
        %v3681 = vadd.f32 %v3169, %v2549
        %v3682 = vadd.f32 %v3170, %v1089
        %v3683 = vadd.f32 %v3171, %v1298
        %v3684 = vadd.f32 %v3172, %v1507
        %v3685 = vadd.f32 %v3173, %v1716
        %v3686 = vadd.f32 %v3174, %v1925
        %v3687 = vadd.f32 %v3175, %v2134
        %v3688 = vadd.f32 %v3176, %v2343
        %v3689 = vadd.f32 %v3177, %v2552
        %v3690 = vadd.f32 %v3178, %v1092
        %v3691 = vadd.f32 %v3179, %v1301
        %v3692 = vadd.f32 %v3180, %v1510
        %v3693 = vadd.f32 %v3181, %v1719
        %v3694 = vadd.f32 %v3182, %v1928
        %v3695 = vadd.f32 %v3183, %v2137
        %v3696 = vadd.f32 %v3184, %v2346
        %v3697 = vadd.f32 %v3185, %v2555
        %v3698 = vadd.f32 %v3186, %v1095
        %v3699 = vadd.f32 %v3187, %v1304
        %v3700 = vadd.f32 %v3188, %v1513
        %v3701 = vadd.f32 %v3189, %v1722
        %v3702 = vadd.f32 %v3190, %v1931
        %v3703 = vadd.f32 %v3191, %v2140
        %v3704 = vadd.f32 %v3192, %v2349
        %v3705 = vadd.f32 %v3193, %v2558
        %v3706 = vadd.f32 %v3194, %v1098
        %v3707 = vadd.f32 %v3195, %v1307
        %v3708 = vadd.f32 %v3196, %v1516
        %v3709 = vadd.f32 %v3197, %v1725
        %v3710 = vadd.f32 %v3198, %v1934
        %v3711 = vadd.f32 %v3199, %v2143
        %v3712 = vadd.f32 %v3200, %v2352
        %v3713 = vadd.f32 %v3201, %v2561
        %v3714 = vadd.f32 %v3202, %v1101
        %v3715 = vadd.f32 %v3203, %v1310
        %v3716 = vadd.f32 %v3204, %v1519
        %v3717 = vadd.f32 %v3205, %v1728
        %v3718 = vadd.f32 %v3206, %v1937
        %v3719 = vadd.f32 %v3207, %v2146
        %v3720 = vadd.f32 %v3208, %v2355
        %v3721 = vadd.f32 %v3209, %v2564
        %v3722 = vadd.f32 %v3210, %v1104
        %v3723 = vadd.f32 %v3211, %v1313
        %v3724 = vadd.f32 %v3212, %v1522
        %v3725 = vadd.f32 %v3213, %v1731
        %v3726 = vadd.f32 %v3214, %v1940
        %v3727 = vadd.f32 %v3215, %v2149
        %v3728 = vadd.f32 %v3216, %v2358
        %v3729 = vadd.f32 %v3217, %v2567
        %v3730 = vadd.f32 %v3218, %v1107
        %v3731 = vadd.f32 %v3219, %v1316
        %v3732 = vadd.f32 %v3220, %v1525
        %v3733 = vadd.f32 %v3221, %v1734
        %v3734 = vadd.f32 %v3222, %v1943
        %v3735 = vadd.f32 %v3223, %v2152
        %v3736 = vadd.f32 %v3224, %v2361
        %v3737 = vadd.f32 %v3225, %v2570
        %v3738 = vadd.f32 %v3226, %v1110
        %v3739 = vadd.f32 %v3227, %v1319
        %v3740 = vadd.f32 %v3228, %v1528
        %v3741 = vadd.f32 %v3229, %v1737
        %v3742 = vadd.f32 %v3230, %v1946
        %v3743 = vadd.f32 %v3231, %v2155
        %v3744 = vadd.f32 %v3232, %v2364
        %v3745 = vadd.f32 %v3233, %v2573
        %v3746 = vadd.f32 %v3234, %v1113
        %v3747 = vadd.f32 %v3235, %v1322
        %v3748 = vadd.f32 %v3236, %v1531
        %v3749 = vadd.f32 %v3237, %v1740
        %v3750 = vadd.f32 %v3238, %v1949
        %v3751 = vadd.f32 %v3239, %v2158
        %v3752 = vadd.f32 %v3240, %v2367
        %v3753 = vadd.f32 %v3241, %v2576
        %v3754 = vadd.f32 %v3242, %v1116
        %v3755 = vadd.f32 %v3243, %v1325
        %v3756 = vadd.f32 %v3244, %v1534
        %v3757 = vadd.f32 %v3245, %v1743
        %v3758 = vadd.f32 %v3246, %v1952
        %v3759 = vadd.f32 %v3247, %v2161
        %v3760 = vadd.f32 %v3248, %v2370
        %v3761 = vadd.f32 %v3249, %v2579
        %v3762 = vadd.f32 %v3250, %v1119
        %v3763 = vadd.f32 %v3251, %v1328
        %v3764 = vadd.f32 %v3252, %v1537
        %v3765 = vadd.f32 %v3253, %v1746
        %v3766 = vadd.f32 %v3254, %v1955
        %v3767 = vadd.f32 %v3255, %v2164
        %v3768 = vadd.f32 %v3256, %v2373
        %v3769 = vadd.f32 %v3257, %v2582
        %v3770 = vadd.f32 %v3258, %v1122
        %v3771 = vadd.f32 %v3259, %v1331
        %v3772 = vadd.f32 %v3260, %v1540
        %v3773 = vadd.f32 %v3261, %v1749
        %v3774 = vadd.f32 %v3262, %v1958
        %v3775 = vadd.f32 %v3263, %v2167
        %v3776 = vadd.f32 %v3264, %v2376
        %v3777 = vadd.f32 %v3265, %v2585
        %v3778 = vadd.f32 %v3266, %v1125
        %v3779 = vadd.f32 %v3267, %v1334
        %v3780 = vadd.f32 %v3268, %v1543
        %v3781 = vadd.f32 %v3269, %v1752
        %v3782 = vadd.f32 %v3270, %v1961
        %v3783 = vadd.f32 %v3271, %v2170
        %v3784 = vadd.f32 %v3272, %v2379
        %v3785 = vadd.f32 %v3273, %v2588
        %v3786 = vadd.f32 %v3274, %v1128
        %v3787 = vadd.f32 %v3275, %v1337
        %v3788 = vadd.f32 %v3276, %v1546
        %v3789 = vadd.f32 %v3277, %v1755
        %v3790 = vadd.f32 %v3278, %v1964
        %v3791 = vadd.f32 %v3279, %v2173
        %v3792 = vadd.f32 %v3280, %v2382
        %v3793 = vadd.f32 %v3281, %v2591
        %v3794 = vadd.f32 %v3282, %v1131
        %v3795 = vadd.f32 %v3283, %v1340
        %v3796 = vadd.f32 %v3284, %v1549
        %v3797 = vadd.f32 %v3285, %v1758
        %v3798 = vadd.f32 %v3286, %v1967
        %v3799 = vadd.f32 %v3287, %v2176
        %v3800 = vadd.f32 %v3288, %v2385
        %v3801 = vadd.f32 %v3289, %v2594
        %v3802 = vadd.f32 %v3290, %v1134
        %v3803 = vadd.f32 %v3291, %v1343
        %v3804 = vadd.f32 %v3292, %v1552
        %v3805 = vadd.f32 %v3293, %v1761
        %v3806 = vadd.f32 %v3294, %v1970
        %v3807 = vadd.f32 %v3295, %v2179
        %v3808 = vadd.f32 %v3296, %v2388
        %v3809 = vadd.f32 %v3297, %v2597
        %v3810 = vadd.f32 %v3298, %v1137
        %v3811 = vadd.f32 %v3299, %v1346
        %v3812 = vadd.f32 %v3300, %v1555
        %v3813 = vadd.f32 %v3301, %v1764
        %v3814 = vadd.f32 %v3302, %v1973
        %v3815 = vadd.f32 %v3303, %v2182
        %v3816 = vadd.f32 %v3304, %v2391
        %v3817 = vadd.f32 %v3305, %v2600
        %v3818 = vadd.f32 %v3306, %v1140
        %v3819 = vadd.f32 %v3307, %v1349
        %v3820 = vadd.f32 %v3308, %v1558
        %v3821 = vadd.f32 %v3309, %v1767
        %v3822 = vadd.f32 %v3310, %v1976
        %v3823 = vadd.f32 %v3311, %v2185
        %v3824 = vadd.f32 %v3312, %v2394
        %v3825 = vadd.f32 %v3313, %v2603
        %v3826 = vadd.f32 %v3314, %v1143
        %v3827 = vadd.f32 %v3315, %v1352
        %v3828 = vadd.f32 %v3316, %v1561
        %v3829 = vadd.f32 %v3317, %v1770
        %v3830 = vadd.f32 %v3318, %v1979
        %v3831 = vadd.f32 %v3319, %v2188
        %v3832 = vadd.f32 %v3320, %v2397
        %v3833 = vadd.f32 %v3321, %v2606
        %v3834 = vadd.f32 %v3322, %v1146
        %v3835 = vadd.f32 %v3323, %v1355
        %v3836 = vadd.f32 %v3324, %v1564
        %v3837 = vadd.f32 %v3325, %v1773
        %v3838 = vadd.f32 %v3326, %v1982
        %v3839 = vadd.f32 %v3327, %v2191
        %v3840 = vadd.f32 %v3328, %v2400
        %v3841 = vadd.f32 %v3329, %v2609
        %v3842 = vadd.f32 %v3330, %v1149
        %v3843 = vadd.f32 %v3331, %v1358
        %v3844 = vadd.f32 %v3332, %v1567
        %v3845 = vadd.f32 %v3333, %v1776
        %v3846 = vadd.f32 %v3334, %v1985
        %v3847 = vadd.f32 %v3335, %v2194
        %v3848 = vadd.f32 %v3336, %v2403
        %v3849 = vadd.f32 %v3337, %v2612
        %v3850 = vadd.f32 %v3338, %v1152
        %v3851 = vadd.f32 %v3339, %v1361
        %v3852 = vadd.f32 %v3340, %v1570
        %v3853 = vadd.f32 %v3341, %v1779
        %v3854 = vadd.f32 %v3342, %v1988
        %v3855 = vadd.f32 %v3343, %v2197
        %v3856 = vadd.f32 %v3344, %v2406
        %v3857 = vadd.f32 %v3345, %v2615
        %v3858 = vadd.f32 %v3346, %v1155
        %v3859 = vadd.f32 %v3347, %v1364
        %v3860 = vadd.f32 %v3348, %v1573
        %v3861 = vadd.f32 %v3349, %v1782
        %v3862 = vadd.f32 %v3350, %v1991
        %v3863 = vadd.f32 %v3351, %v2200
        %v3864 = vadd.f32 %v3352, %v2409
        %v3865 = vadd.f32 %v3353, %v2618
        %v3866 = vadd.f32 %v3354, %v1158
        %v3867 = vadd.f32 %v3355, %v1367
        %v3868 = vadd.f32 %v3356, %v1576
        %v3869 = vadd.f32 %v3357, %v1785
        %v3870 = vadd.f32 %v3358, %v1994
        %v3871 = vadd.f32 %v3359, %v2203
        %v3872 = vadd.f32 %v3360, %v2412
        %v3873 = vadd.f32 %v3361, %v2621
        %v3874 = vadd.f32 %v3362, %v1161
        %v3875 = vadd.f32 %v3363, %v1370
        %v3876 = vadd.f32 %v3364, %v1579
        %v3877 = vadd.f32 %v3365, %v1788
        %v3878 = vadd.f32 %v3366, %v1997
        %v3879 = vadd.f32 %v3367, %v2206
        %v3880 = vadd.f32 %v3368, %v2415
        %v3881 = vadd.f32 %v3369, %v2624
        %v3882 = vadd.f32 %v3370, %v1164
        %v3883 = vadd.f32 %v3371, %v1373
        %v3884 = vadd.f32 %v3372, %v1582
        %v3885 = vadd.f32 %v3373, %v1791
        %v3886 = vadd.f32 %v3374, %v2000
        %v3887 = vadd.f32 %v3375, %v2209
        %v3888 = vadd.f32 %v3376, %v2418
        %v3889 = vadd.f32 %v3377, %v2627
        %v3890 = vadd.f32 %v3378, %v1167
        %v3891 = vadd.f32 %v3379, %v1376
        %v3892 = vadd.f32 %v3380, %v1585
        %v3893 = vadd.f32 %v3381, %v1794
        %v3894 = vadd.f32 %v3382, %v2003
        %v3895 = vadd.f32 %v3383, %v2212
        %v3896 = vadd.f32 %v3384, %v2421
        %v3897 = vadd.f32 %v3385, %v2630
        %v3898 = vadd.f32 %v3386, %v1170
        %v3899 = vadd.f32 %v3387, %v1379
        %v3900 = vadd.f32 %v3388, %v1588
        %v3901 = vadd.f32 %v3389, %v1797
        %v3902 = vadd.f32 %v3390, %v2006
        %v3903 = vadd.f32 %v3391, %v2215
        %v3904 = vadd.f32 %v3392, %v2424
        %v3905 = vadd.f32 %v3393, %v2633
        %v3906 = vadd.f32 %v3394, %v1173
        %v3907 = vadd.f32 %v3395, %v1382
        %v3908 = vadd.f32 %v3396, %v1591
        %v3909 = vadd.f32 %v3397, %v1800
        %v3910 = vadd.f32 %v3398, %v2009
        %v3911 = vadd.f32 %v3399, %v2218
        %v3912 = vadd.f32 %v3400, %v2427
        %v3913 = vadd.f32 %v3401, %v2636
        %v3914 = vadd.f32 %v3402, %v1176
        %v3915 = vadd.f32 %v3403, %v1385
        %v3916 = vadd.f32 %v3404, %v1594
        %v3917 = vadd.f32 %v3405, %v1803
        %v3918 = vadd.f32 %v3406, %v2012
        %v3919 = vadd.f32 %v3407, %v2221
        %v3920 = vadd.f32 %v3408, %v2430
        %v3921 = vadd.f32 %v3409, %v2639
        %v3922 = vadd.f32 %v3410, %v1179
        %v3923 = vadd.f32 %v3411, %v1388
        %v3924 = vadd.f32 %v3412, %v1597
        %v3925 = vadd.f32 %v3413, %v1806
        %v3926 = vadd.f32 %v3414, %v2015
        %v3927 = vadd.f32 %v3415, %v2224
        %v3928 = vadd.f32 %v3416, %v2433
        %v3929 = vadd.f32 %v3417, %v2642
        %v3930 = vadd.f32 %v3418, %v1182
        %v3931 = vadd.f32 %v3419, %v1391
        %v3932 = vadd.f32 %v3420, %v1600
        %v3933 = vadd.f32 %v3421, %v1809
        %v3934 = vadd.f32 %v3422, %v2018
        %v3935 = vadd.f32 %v3423, %v2227
        %v3936 = vadd.f32 %v3424, %v2436
        %v3937 = vadd.f32 %v3425, %v2645
        %v3938 = vadd.f32 %v3426, %v1185
        %v3939 = vadd.f32 %v3427, %v1394
        %v3940 = vadd.f32 %v3428, %v1603
        %v3941 = vadd.f32 %v3429, %v1812
        %v3942 = vadd.f32 %v3430, %v2021
        %v3943 = vadd.f32 %v3431, %v2230
        %v3944 = vadd.f32 %v3432, %v2439
        %v3945 = vadd.f32 %v3433, %v2648
        %v3946 = vadd.f32 %v3434, %v1188
        %v3947 = vadd.f32 %v3435, %v1397
        %v3948 = vadd.f32 %v3436, %v1606
        %v3949 = vadd.f32 %v3437, %v1815
        %v3950 = vadd.f32 %v3438, %v2024
        %v3951 = vadd.f32 %v3439, %v2233
        %v3952 = vadd.f32 %v3440, %v2442
        %v3953 = vadd.f32 %v3441, %v2651
        %v3954 = vadd.f32 %v3442, %v1191
        %v3955 = vadd.f32 %v3443, %v1400
        %v3956 = vadd.f32 %v3444, %v1609
        %v3957 = vadd.f32 %v3445, %v1818
        %v3958 = vadd.f32 %v3446, %v2027
        %v3959 = vadd.f32 %v3447, %v2236
        %v3960 = vadd.f32 %v3448, %v2445
        %v3961 = vadd.f32 %v3449, %v2654
        %v3962 = vadd.f32 %v3450, %v1194
        %v3963 = vadd.f32 %v3451, %v1403
        %v3964 = vadd.f32 %v3452, %v1612
        %v3965 = vadd.f32 %v3453, %v1821
        %v3966 = vadd.f32 %v3454, %v2030
        %v3967 = vadd.f32 %v3455, %v2239
        %v3968 = vadd.f32 %v3456, %v2448
        %v3969 = vadd.f32 %v3457, %v2657
        %v3970 = vadd.f32 %v3458, %v1197
        %v3971 = vadd.f32 %v3459, %v1406
        %v3972 = vadd.f32 %v3460, %v1615
        %v3973 = vadd.f32 %v3461, %v1824
        %v3974 = vadd.f32 %v3462, %v2033
        %v3975 = vadd.f32 %v3463, %v2242
        %v3976 = vadd.f32 %v3464, %v2451
        %v3977 = vadd.f32 %v3465, %v2660
        %v3978 = vadd.f32 %v3466, %v1200
        %v3979 = vadd.f32 %v3467, %v1409
        %v3980 = vadd.f32 %v3468, %v1618
        %v3981 = vadd.f32 %v3469, %v1827
        %v3982 = vadd.f32 %v3470, %v2036
        %v3983 = vadd.f32 %v3471, %v2245
        %v3984 = vadd.f32 %v3472, %v2454
        %v3985 = vadd.f32 %v3473, %v2663
        %v3986 = vadd.f32 %v3474, %v1203
        %v3987 = vadd.f32 %v3475, %v1412
        %v3988 = vadd.f32 %v3476, %v1621
        %v3989 = vadd.f32 %v3477, %v1830
        %v3990 = vadd.f32 %v3478, %v2039
        %v3991 = vadd.f32 %v3479, %v2248
        %v3992 = vadd.f32 %v3480, %v2457
        %v3993 = vadd.f32 %v3481, %v2666
        %v3994 = vadd.f32 %v3482, %v1206
        %v3995 = vadd.f32 %v3483, %v1415
        %v3996 = vadd.f32 %v3484, %v1624
        %v3997 = vadd.f32 %v3485, %v1833
        %v3998 = vadd.f32 %v3486, %v2042
        %v3999 = vadd.f32 %v3487, %v2251
        %v4000 = vadd.f32 %v3488, %v2460
        %v4001 = vadd.f32 %v3489, %v2669
        %v4002 = vadd.f32 %v3490, %v1209
        %v4003 = vadd.f32 %v3491, %v1418
        %v4004 = vadd.f32 %v3492, %v1627
        %v4005 = vadd.f32 %v3493, %v1836
        %v4006 = vadd.f32 %v3494, %v2045
        %v4007 = vadd.f32 %v3495, %v2254
        %v4008 = vadd.f32 %v3496, %v2463
        %v4009 = vadd.f32 %v3497, %v2672
        %v4010 = vadd.f32 %v3498, %v1212
        %v4011 = vadd.f32 %v3499, %v1421
        %v4012 = vadd.f32 %v3500, %v1630
        %v4013 = vadd.f32 %v3501, %v1839
        %v4014 = vadd.f32 %v3502, %v2048
        %v4015 = vadd.f32 %v3503, %v2257
        %v4016 = vadd.f32 %v3504, %v2466
        %v4017 = vadd.f32 %v3505, %v2675
        %v4018 = vadd.f32 %v3506, %v1215
        %v4019 = vadd.f32 %v3507, %v1424
        %v4020 = vadd.f32 %v3508, %v1633
        %v4021 = vadd.f32 %v3509, %v1842
        %v4022 = vadd.f32 %v3510, %v2051
        %v4023 = vadd.f32 %v3511, %v2260
        %v4024 = vadd.f32 %v3512, %v2469
        %v4025 = vadd.f32 %v3513, %v2678
        %v4026 = vadd.f32 %v3514, %v1218
        %v4027 = vadd.f32 %v3515, %v1427
        %v4028 = vadd.f32 %v3516, %v1636
        %v4029 = vadd.f32 %v3517, %v1845
        %v4030 = vadd.f32 %v3518, %v2054
        %v4031 = vadd.f32 %v3519, %v2263
        %v4032 = vadd.f32 %v3520, %v2472
        %v4033 = vadd.f32 %v3521, %v2681
        %v4034 = vadd.f32 %v3522, %v1221
        %v4035 = vadd.f32 %v3523, %v1430
        %v4036 = vadd.f32 %v3524, %v1639
        %v4037 = vadd.f32 %v3525, %v1848
        %v4038 = vadd.f32 %v3526, %v2057
        %v4039 = vadd.f32 %v3527, %v2266
        %v4040 = vadd.f32 %v3528, %v2475
        %v4041 = vadd.f32 %v3529, %v2684
        %v4042 = vadd.f32 %v3530, %v1224
        %v4043 = vadd.f32 %v3531, %v1433
        %v4044 = vadd.f32 %v3532, %v1642
        %v4045 = vadd.f32 %v3533, %v1851
        %v4046 = vadd.f32 %v3534, %v2060
        %v4047 = vadd.f32 %v3535, %v2269
        %v4048 = vadd.f32 %v3536, %v2478
        %v4049 = vadd.f32 %v3537, %v2687
        %v4050 = vadd.f32 %v3538, %v1227
        %v4051 = vadd.f32 %v3539, %v1436
        %v4052 = vadd.f32 %v3540, %v1645
        %v4053 = vadd.f32 %v3541, %v1854
        %v4054 = vadd.f32 %v3542, %v2063
        %v4055 = vadd.f32 %v3543, %v2272
        %v4056 = vadd.f32 %v3544, %v2481
        %v4057 = vadd.f32 %v3545, %v2690
        %v4058 = vadd.f32 %v3546, %v1230
        %v4059 = vadd.f32 %v3547, %v1439
        %v4060 = vadd.f32 %v3548, %v1648
        %v4061 = vadd.f32 %v3549, %v1857
        %v4062 = vadd.f32 %v3550, %v2066
        %v4063 = vadd.f32 %v3551, %v2275
        %v4064 = vadd.f32 %v3552, %v2484
        %v4065 = vadd.f32 %v3553, %v2693
        %v4066 = vadd.f32 %v3554, %v1233
        %v4067 = vadd.f32 %v3555, %v1442
        %v4068 = vadd.f32 %v3556, %v1651
        %v4069 = vadd.f32 %v3557, %v1860
        %v4070 = vadd.f32 %v3558, %v2069
        %v4071 = vadd.f32 %v3559, %v2278
        %v4072 = vadd.f32 %v3560, %v2487
        %v4073 = vadd.f32 %v3561, %v2696
        %v4074 = vadd.f32 %v3562, %v1236
        %v4075 = vadd.f32 %v3563, %v1445
        %v4076 = vadd.f32 %v3564, %v1654
        %v4077 = vadd.f32 %v3565, %v1863
        %v4078 = vadd.f32 %v3566, %v2072
        %v4079 = vadd.f32 %v3567, %v2281
        %v4080 = vadd.f32 %v3568, %v2490
        %v4081 = vadd.f32 %v3569, %v2699
        %v4082 = vadd.f32 %v3570, %v1239
        %v4083 = vadd.f32 %v3571, %v1448
        %v4084 = vadd.f32 %v3572, %v1657
        %v4085 = vadd.f32 %v3573, %v1866
        %v4086 = vadd.f32 %v3574, %v2075
        %v4087 = vadd.f32 %v3575, %v2284
        %v4088 = vadd.f32 %v3576, %v2493
        %v4089 = vadd.f32 %v3577, %v2702
        %v4090 = vadd.f32 %v3578, %v1242
        %v4091 = vadd.f32 %v3579, %v1451
        %v4092 = vadd.f32 %v3580, %v1660
        %v4093 = vadd.f32 %v3581, %v1869
        %v4094 = vadd.f32 %v3582, %v2078
        %v4095 = vadd.f32 %v3583, %v2287
        %v4096 = vadd.f32 %v3584, %v2496
        %v4097 = vadd.f32 %v3585, %v2705
        %v4098 = vadd.f32 %v3586, %v1245
        %v4099 = vadd.f32 %v3587, %v1454
        %v4100 = vadd.f32 %v3588, %v1663
        %v4101 = vadd.f32 %v3589, %v1872
        %v4102 = vadd.f32 %v3590, %v2081
        %v4103 = vadd.f32 %v3591, %v2290
        %v4104 = vadd.f32 %v3592, %v2499
        %v4105 = vadd.f32 %v3593, %v2708
        %v4106 = vadd.f32 %v3594, %v1248
        %v4107 = vadd.f32 %v3595, %v1457
        %v4108 = vadd.f32 %v3596, %v1666
        %v4109 = vadd.f32 %v3597, %v1875
        %v4110 = vadd.f32 %v3598, %v2084
        %v4111 = vadd.f32 %v3599, %v2293
        %v4112 = vadd.f32 %v3600, %v2502
        %v4113 = vadd.f32 %v3601, %v2711
        %v4114 = vadd.f32 %v3602, %v1251
        %v4115 = vadd.f32 %v3603, %v1460
        %v4116 = vadd.f32 %v3604, %v1669
        %v4117 = vadd.f32 %v3605, %v1878
        %v4118 = vadd.f32 %v3606, %v2087
        %v4119 = vadd.f32 %v3607, %v2296
        %v4120 = vadd.f32 %v3608, %v2505
        %v4121 = vadd.f32 %v3609, %v2714
        %v4122 = vadd.f32 %v3610, %v1254
        %v4123 = vadd.f32 %v3611, %v1463
        %v4124 = vadd.f32 %v3612, %v1672
        %v4125 = vadd.f32 %v3613, %v1881
        %v4126 = vadd.f32 %v3614, %v2090
        %v4127 = vadd.f32 %v3615, %v2299
        %v4128 = vadd.f32 %v3616, %v2508
        %v4129 = vadd.f32 %v3617, %v2717
        %v4130 = vadd.f32 %v3618, %v1257
        %v4131 = vadd.f32 %v3619, %v1466
        %v4132 = vadd.f32 %v3620, %v1675
        %v4133 = vadd.f32 %v3621, %v1884
        %v4134 = vadd.f32 %v3622, %v2093
        %v4135 = vadd.f32 %v3623, %v2302
        %v4136 = vadd.f32 %v3624, %v2511
        %v4137 = vadd.f32 %v3625, %v2720
        %v4138 = vadd.f32 %v3626, %v1260
        %v4139 = vadd.f32 %v3627, %v1469
        %v4140 = vadd.f32 %v3628, %v1678
        %v4141 = vadd.f32 %v3629, %v1887
        %v4142 = vadd.f32 %v3630, %v2096
        %v4143 = vadd.f32 %v3631, %v2305
        %v4144 = vadd.f32 %v3632, %v2514
        %v4145 = vadd.f32 %v3633, %v2723
        %v4146 = vadd.f32 %v3634, %v1263
        %v4147 = vadd.f32 %v3635, %v1472
        %v4148 = vadd.f32 %v3636, %v1681
        %v4149 = vadd.f32 %v3637, %v1890
        %v4150 = vadd.f32 %v3638, %v2099
        %v4151 = vadd.f32 %v3639, %v2308
        %v4152 = vadd.f32 %v3640, %v2517
        %v4153 = vadd.f32 %v3641, %v2726
        %v4154 = vmin.f32 %v3642, 0.0
        %v4155 = vmin.f32 %v3643, 0.0
        %v4156 = vmin.f32 %v3644, 0.0
        %v4157 = vmin.f32 %v3645, 0.0
        %v4158 = vmin.f32 %v3646, 0.0
        %v4159 = vmin.f32 %v3647, 0.0
        %v4160 = vmin.f32 %v3648, 0.0
        %v4161 = vmin.f32 %v3649, 0.0
        %v4162 = vmin.f32 %v3650, 0.0
        %v4163 = vmin.f32 %v3651, 0.0
        %v4164 = vmin.f32 %v3652, 0.0
        %v4165 = vmin.f32 %v3653, 0.0
        %v4166 = vmin.f32 %v3654, 0.0
        %v4167 = vmin.f32 %v3655, 0.0
        %v4168 = vmin.f32 %v3656, 0.0
        %v4169 = vmin.f32 %v3657, 0.0
        %v4170 = vmin.f32 %v3658, 0.0
        %v4171 = vmin.f32 %v3659, 0.0
        %v4172 = vmin.f32 %v3660, 0.0
        %v4173 = vmin.f32 %v3661, 0.0
        %v4174 = vmin.f32 %v3662, 0.0
        %v4175 = vmin.f32 %v3663, 0.0
        %v4176 = vmin.f32 %v3664, 0.0
        %v4177 = vmin.f32 %v3665, 0.0
        %v4178 = vmin.f32 %v3666, 0.0
        %v4179 = vmin.f32 %v3667, 0.0
        %v4180 = vmin.f32 %v3668, 0.0
        %v4181 = vmin.f32 %v3669, 0.0
        %v4182 = vmin.f32 %v3670, 0.0
        %v4183 = vmin.f32 %v3671, 0.0
        %v4184 = vmin.f32 %v3672, 0.0
        %v4185 = vmin.f32 %v3673, 0.0
        %v4186 = vmin.f32 %v3674, 0.0
        %v4187 = vmin.f32 %v3675, 0.0
        %v4188 = vmin.f32 %v3676, 0.0
        %v4189 = vmin.f32 %v3677, 0.0
        %v4190 = vmin.f32 %v3678, 0.0
        %v4191 = vmin.f32 %v3679, 0.0
        %v4192 = vmin.f32 %v3680, 0.0
        %v4193 = vmin.f32 %v3681, 0.0
        %v4194 = vmin.f32 %v3682, 0.0
        %v4195 = vmin.f32 %v3683, 0.0
        %v4196 = vmin.f32 %v3684, 0.0
        %v4197 = vmin.f32 %v3685, 0.0
        %v4198 = vmin.f32 %v3686, 0.0
        %v4199 = vmin.f32 %v3687, 0.0
        %v4200 = vmin.f32 %v3688, 0.0
        %v4201 = vmin.f32 %v3689, 0.0
        %v4202 = vmin.f32 %v3690, 0.0
        %v4203 = vmin.f32 %v3691, 0.0
        %v4204 = vmin.f32 %v3692, 0.0
        %v4205 = vmin.f32 %v3693, 0.0
        %v4206 = vmin.f32 %v3694, 0.0
        %v4207 = vmin.f32 %v3695, 0.0
        %v4208 = vmin.f32 %v3696, 0.0
        %v4209 = vmin.f32 %v3697, 0.0
        %v4210 = vmin.f32 %v3698, 0.0
        %v4211 = vmin.f32 %v3699, 0.0
        %v4212 = vmin.f32 %v3700, 0.0
        %v4213 = vmin.f32 %v3701, 0.0
        %v4214 = vmin.f32 %v3702, 0.0
        %v4215 = vmin.f32 %v3703, 0.0
        %v4216 = vmin.f32 %v3704, 0.0
        %v4217 = vmin.f32 %v3705, 0.0
        %v4218 = vmin.f32 %v3706, 0.0
        %v4219 = vmin.f32 %v3707, 0.0
        %v4220 = vmin.f32 %v3708, 0.0
        %v4221 = vmin.f32 %v3709, 0.0
        %v4222 = vmin.f32 %v3710, 0.0
        %v4223 = vmin.f32 %v3711, 0.0
        %v4224 = vmin.f32 %v3712, 0.0
        %v4225 = vmin.f32 %v3713, 0.0
        %v4226 = vmin.f32 %v3714, 0.0
        %v4227 = vmin.f32 %v3715, 0.0
        %v4228 = vmin.f32 %v3716, 0.0
        %v4229 = vmin.f32 %v3717, 0.0
        %v4230 = vmin.f32 %v3718, 0.0
        %v4231 = vmin.f32 %v3719, 0.0
        %v4232 = vmin.f32 %v3720, 0.0
        %v4233 = vmin.f32 %v3721, 0.0
        %v4234 = vmin.f32 %v3722, 0.0
        %v4235 = vmin.f32 %v3723, 0.0
        %v4236 = vmin.f32 %v3724, 0.0
        %v4237 = vmin.f32 %v3725, 0.0
        %v4238 = vmin.f32 %v3726, 0.0
        %v4239 = vmin.f32 %v3727, 0.0
        %v4240 = vmin.f32 %v3728, 0.0
        %v4241 = vmin.f32 %v3729, 0.0
        %v4242 = vmin.f32 %v3730, 0.0
        %v4243 = vmin.f32 %v3731, 0.0
        %v4244 = vmin.f32 %v3732, 0.0
        %v4245 = vmin.f32 %v3733, 0.0
        %v4246 = vmin.f32 %v3734, 0.0
        %v4247 = vmin.f32 %v3735, 0.0
        %v4248 = vmin.f32 %v3736, 0.0
        %v4249 = vmin.f32 %v3737, 0.0
        %v4250 = vmin.f32 %v3738, 0.0
        %v4251 = vmin.f32 %v3739, 0.0
        %v4252 = vmin.f32 %v3740, 0.0
        %v4253 = vmin.f32 %v3741, 0.0
        %v4254 = vmin.f32 %v3742, 0.0
        %v4255 = vmin.f32 %v3743, 0.0
        %v4256 = vmin.f32 %v3744, 0.0
        %v4257 = vmin.f32 %v3745, 0.0
        %v4258 = vmin.f32 %v3746, 0.0
        %v4259 = vmin.f32 %v3747, 0.0
        %v4260 = vmin.f32 %v3748, 0.0
        %v4261 = vmin.f32 %v3749, 0.0
        %v4262 = vmin.f32 %v3750, 0.0
        %v4263 = vmin.f32 %v3751, 0.0
        %v4264 = vmin.f32 %v3752, 0.0
        %v4265 = vmin.f32 %v3753, 0.0
        %v4266 = vmin.f32 %v3754, 0.0
        %v4267 = vmin.f32 %v3755, 0.0
        %v4268 = vmin.f32 %v3756, 0.0
        %v4269 = vmin.f32 %v3757, 0.0
        %v4270 = vmin.f32 %v3758, 0.0
        %v4271 = vmin.f32 %v3759, 0.0
        %v4272 = vmin.f32 %v3760, 0.0
        %v4273 = vmin.f32 %v3761, 0.0
        %v4274 = vmin.f32 %v3762, 0.0
        %v4275 = vmin.f32 %v3763, 0.0
        %v4276 = vmin.f32 %v3764, 0.0
        %v4277 = vmin.f32 %v3765, 0.0
        %v4278 = vmin.f32 %v3766, 0.0
        %v4279 = vmin.f32 %v3767, 0.0
        %v4280 = vmin.f32 %v3768, 0.0
        %v4281 = vmin.f32 %v3769, 0.0
        %v4282 = vmin.f32 %v3770, 0.0
        %v4283 = vmin.f32 %v3771, 0.0
        %v4284 = vmin.f32 %v3772, 0.0
        %v4285 = vmin.f32 %v3773, 0.0
        %v4286 = vmin.f32 %v3774, 0.0
        %v4287 = vmin.f32 %v3775, 0.0
        %v4288 = vmin.f32 %v3776, 0.0
        %v4289 = vmin.f32 %v3777, 0.0
        %v4290 = vmin.f32 %v3778, 0.0
        %v4291 = vmin.f32 %v3779, 0.0
        %v4292 = vmin.f32 %v3780, 0.0
        %v4293 = vmin.f32 %v3781, 0.0
        %v4294 = vmin.f32 %v3782, 0.0
        %v4295 = vmin.f32 %v3783, 0.0
        %v4296 = vmin.f32 %v3784, 0.0
        %v4297 = vmin.f32 %v3785, 0.0
        %v4298 = vmin.f32 %v3786, 0.0
        %v4299 = vmin.f32 %v3787, 0.0
        %v4300 = vmin.f32 %v3788, 0.0
        %v4301 = vmin.f32 %v3789, 0.0
        %v4302 = vmin.f32 %v3790, 0.0
        %v4303 = vmin.f32 %v3791, 0.0
        %v4304 = vmin.f32 %v3792, 0.0
        %v4305 = vmin.f32 %v3793, 0.0
        %v4306 = vmin.f32 %v3794, 0.0
        %v4307 = vmin.f32 %v3795, 0.0
        %v4308 = vmin.f32 %v3796, 0.0
        %v4309 = vmin.f32 %v3797, 0.0
        %v4310 = vmin.f32 %v3798, 0.0
        %v4311 = vmin.f32 %v3799, 0.0
        %v4312 = vmin.f32 %v3800, 0.0
        %v4313 = vmin.f32 %v3801, 0.0
        %v4314 = vmin.f32 %v3802, 0.0
        %v4315 = vmin.f32 %v3803, 0.0
        %v4316 = vmin.f32 %v3804, 0.0
        %v4317 = vmin.f32 %v3805, 0.0
        %v4318 = vmin.f32 %v3806, 0.0
        %v4319 = vmin.f32 %v3807, 0.0
        %v4320 = vmin.f32 %v3808, 0.0
        %v4321 = vmin.f32 %v3809, 0.0
        %v4322 = vmin.f32 %v3810, 0.0
        %v4323 = vmin.f32 %v3811, 0.0
        %v4324 = vmin.f32 %v3812, 0.0
        %v4325 = vmin.f32 %v3813, 0.0
        %v4326 = vmin.f32 %v3814, 0.0
        %v4327 = vmin.f32 %v3815, 0.0
        %v4328 = vmin.f32 %v3816, 0.0
        %v4329 = vmin.f32 %v3817, 0.0
        %v4330 = vmin.f32 %v3818, 0.0
        %v4331 = vmin.f32 %v3819, 0.0
        %v4332 = vmin.f32 %v3820, 0.0
        %v4333 = vmin.f32 %v3821, 0.0
        %v4334 = vmin.f32 %v3822, 0.0
        %v4335 = vmin.f32 %v3823, 0.0
        %v4336 = vmin.f32 %v3824, 0.0
        %v4337 = vmin.f32 %v3825, 0.0
        %v4338 = vmin.f32 %v3826, 0.0
        %v4339 = vmin.f32 %v3827, 0.0
        %v4340 = vmin.f32 %v3828, 0.0
        %v4341 = vmin.f32 %v3829, 0.0
        %v4342 = vmin.f32 %v3830, 0.0
        %v4343 = vmin.f32 %v3831, 0.0
        %v4344 = vmin.f32 %v3832, 0.0
        %v4345 = vmin.f32 %v3833, 0.0
        %v4346 = vmin.f32 %v3834, 0.0
        %v4347 = vmin.f32 %v3835, 0.0
        %v4348 = vmin.f32 %v3836, 0.0
        %v4349 = vmin.f32 %v3837, 0.0
        %v4350 = vmin.f32 %v3838, 0.0
        %v4351 = vmin.f32 %v3839, 0.0
        %v4352 = vmin.f32 %v3840, 0.0
        %v4353 = vmin.f32 %v3841, 0.0
        %v4354 = vmin.f32 %v3842, 0.0
        %v4355 = vmin.f32 %v3843, 0.0
        %v4356 = vmin.f32 %v3844, 0.0
        %v4357 = vmin.f32 %v3845, 0.0
        %v4358 = vmin.f32 %v3846, 0.0
        %v4359 = vmin.f32 %v3847, 0.0
        %v4360 = vmin.f32 %v3848, 0.0
        %v4361 = vmin.f32 %v3849, 0.0
        %v4362 = vmin.f32 %v3850, 0.0
        %v4363 = vmin.f32 %v3851, 0.0
        %v4364 = vmin.f32 %v3852, 0.0
        %v4365 = vmin.f32 %v3853, 0.0
        %v4366 = vmin.f32 %v3854, 0.0
        %v4367 = vmin.f32 %v3855, 0.0
        %v4368 = vmin.f32 %v3856, 0.0
        %v4369 = vmin.f32 %v3857, 0.0
        %v4370 = vmin.f32 %v3858, 0.0
        %v4371 = vmin.f32 %v3859, 0.0
        %v4372 = vmin.f32 %v3860, 0.0
        %v4373 = vmin.f32 %v3861, 0.0
        %v4374 = vmin.f32 %v3862, 0.0
        %v4375 = vmin.f32 %v3863, 0.0
        %v4376 = vmin.f32 %v3864, 0.0
        %v4377 = vmin.f32 %v3865, 0.0
        %v4378 = vmin.f32 %v3866, 0.0
        %v4379 = vmin.f32 %v3867, 0.0
        %v4380 = vmin.f32 %v3868, 0.0
        %v4381 = vmin.f32 %v3869, 0.0
        %v4382 = vmin.f32 %v3870, 0.0
        %v4383 = vmin.f32 %v3871, 0.0
        %v4384 = vmin.f32 %v3872, 0.0
        %v4385 = vmin.f32 %v3873, 0.0
        %v4386 = vmin.f32 %v3874, 0.0
        %v4387 = vmin.f32 %v3875, 0.0
        %v4388 = vmin.f32 %v3876, 0.0
        %v4389 = vmin.f32 %v3877, 0.0
        %v4390 = vmin.f32 %v3878, 0.0
        %v4391 = vmin.f32 %v3879, 0.0
        %v4392 = vmin.f32 %v3880, 0.0
        %v4393 = vmin.f32 %v3881, 0.0
        %v4394 = vmin.f32 %v3882, 0.0
        %v4395 = vmin.f32 %v3883, 0.0
        %v4396 = vmin.f32 %v3884, 0.0
        %v4397 = vmin.f32 %v3885, 0.0
        %v4398 = vmin.f32 %v3886, 0.0
        %v4399 = vmin.f32 %v3887, 0.0
        %v4400 = vmin.f32 %v3888, 0.0
        %v4401 = vmin.f32 %v3889, 0.0
        %v4402 = vmin.f32 %v3890, 0.0
        %v4403 = vmin.f32 %v3891, 0.0
        %v4404 = vmin.f32 %v3892, 0.0
        %v4405 = vmin.f32 %v3893, 0.0
        %v4406 = vmin.f32 %v3894, 0.0
        %v4407 = vmin.f32 %v3895, 0.0
        %v4408 = vmin.f32 %v3896, 0.0
        %v4409 = vmin.f32 %v3897, 0.0
        %v4410 = vmin.f32 %v3898, 0.0
        %v4411 = vmin.f32 %v3899, 0.0
        %v4412 = vmin.f32 %v3900, 0.0
        %v4413 = vmin.f32 %v3901, 0.0
        %v4414 = vmin.f32 %v3902, 0.0
        %v4415 = vmin.f32 %v3903, 0.0
        %v4416 = vmin.f32 %v3904, 0.0
        %v4417 = vmin.f32 %v3905, 0.0
        %v4418 = vmin.f32 %v3906, 0.0
        %v4419 = vmin.f32 %v3907, 0.0
        %v4420 = vmin.f32 %v3908, 0.0
        %v4421 = vmin.f32 %v3909, 0.0
        %v4422 = vmin.f32 %v3910, 0.0
        %v4423 = vmin.f32 %v3911, 0.0
        %v4424 = vmin.f32 %v3912, 0.0
        %v4425 = vmin.f32 %v3913, 0.0
        %v4426 = vmin.f32 %v3914, 0.0
        %v4427 = vmin.f32 %v3915, 0.0
        %v4428 = vmin.f32 %v3916, 0.0
        %v4429 = vmin.f32 %v3917, 0.0
        %v4430 = vmin.f32 %v3918, 0.0
        %v4431 = vmin.f32 %v3919, 0.0
        %v4432 = vmin.f32 %v3920, 0.0
        %v4433 = vmin.f32 %v3921, 0.0
        %v4434 = vmin.f32 %v3922, 0.0
        %v4435 = vmin.f32 %v3923, 0.0
        %v4436 = vmin.f32 %v3924, 0.0
        %v4437 = vmin.f32 %v3925, 0.0
        %v4438 = vmin.f32 %v3926, 0.0
        %v4439 = vmin.f32 %v3927, 0.0
        %v4440 = vmin.f32 %v3928, 0.0
        %v4441 = vmin.f32 %v3929, 0.0
        %v4442 = vmin.f32 %v3930, 0.0
        %v4443 = vmin.f32 %v3931, 0.0
        %v4444 = vmin.f32 %v3932, 0.0
        %v4445 = vmin.f32 %v3933, 0.0
        %v4446 = vmin.f32 %v3934, 0.0
        %v4447 = vmin.f32 %v3935, 0.0
        %v4448 = vmin.f32 %v3936, 0.0
        %v4449 = vmin.f32 %v3937, 0.0
        %v4450 = vmin.f32 %v3938, 0.0
        %v4451 = vmin.f32 %v3939, 0.0
        %v4452 = vmin.f32 %v3940, 0.0
        %v4453 = vmin.f32 %v3941, 0.0
        %v4454 = vmin.f32 %v3942, 0.0
        %v4455 = vmin.f32 %v3943, 0.0
        %v4456 = vmin.f32 %v3944, 0.0
        %v4457 = vmin.f32 %v3945, 0.0
        %v4458 = vmin.f32 %v3946, 0.0
        %v4459 = vmin.f32 %v3947, 0.0
        %v4460 = vmin.f32 %v3948, 0.0
        %v4461 = vmin.f32 %v3949, 0.0
        %v4462 = vmin.f32 %v3950, 0.0
        %v4463 = vmin.f32 %v3951, 0.0
        %v4464 = vmin.f32 %v3952, 0.0
        %v4465 = vmin.f32 %v3953, 0.0
        %v4466 = vmin.f32 %v3954, 0.0
        %v4467 = vmin.f32 %v3955, 0.0
        %v4468 = vmin.f32 %v3956, 0.0
        %v4469 = vmin.f32 %v3957, 0.0
        %v4470 = vmin.f32 %v3958, 0.0
        %v4471 = vmin.f32 %v3959, 0.0
        %v4472 = vmin.f32 %v3960, 0.0
        %v4473 = vmin.f32 %v3961, 0.0
        %v4474 = vmin.f32 %v3962, 0.0
        %v4475 = vmin.f32 %v3963, 0.0
        %v4476 = vmin.f32 %v3964, 0.0
        %v4477 = vmin.f32 %v3965, 0.0
        %v4478 = vmin.f32 %v3966, 0.0
        %v4479 = vmin.f32 %v3967, 0.0
        %v4480 = vmin.f32 %v3968, 0.0
        %v4481 = vmin.f32 %v3969, 0.0
        %v4482 = vmin.f32 %v3970, 0.0
        %v4483 = vmin.f32 %v3971, 0.0
        %v4484 = vmin.f32 %v3972, 0.0
        %v4485 = vmin.f32 %v3973, 0.0
        %v4486 = vmin.f32 %v3974, 0.0
        %v4487 = vmin.f32 %v3975, 0.0
        %v4488 = vmin.f32 %v3976, 0.0
        %v4489 = vmin.f32 %v3977, 0.0
        %v4490 = vmin.f32 %v3978, 0.0
        %v4491 = vmin.f32 %v3979, 0.0
        %v4492 = vmin.f32 %v3980, 0.0
        %v4493 = vmin.f32 %v3981, 0.0
        %v4494 = vmin.f32 %v3982, 0.0
        %v4495 = vmin.f32 %v3983, 0.0
        %v4496 = vmin.f32 %v3984, 0.0
        %v4497 = vmin.f32 %v3985, 0.0
        %v4498 = vmin.f32 %v3986, 0.0
        %v4499 = vmin.f32 %v3987, 0.0
        %v4500 = vmin.f32 %v3988, 0.0
        %v4501 = vmin.f32 %v3989, 0.0
        %v4502 = vmin.f32 %v3990, 0.0
        %v4503 = vmin.f32 %v3991, 0.0
        %v4504 = vmin.f32 %v3992, 0.0
        %v4505 = vmin.f32 %v3993, 0.0
        %v4506 = vmin.f32 %v3994, 0.0
        %v4507 = vmin.f32 %v3995, 0.0
        %v4508 = vmin.f32 %v3996, 0.0
        %v4509 = vmin.f32 %v3997, 0.0
        %v4510 = vmin.f32 %v3998, 0.0
        %v4511 = vmin.f32 %v3999, 0.0
        %v4512 = vmin.f32 %v4000, 0.0
        %v4513 = vmin.f32 %v4001, 0.0
        %v4514 = vmin.f32 %v4002, 0.0
        %v4515 = vmin.f32 %v4003, 0.0
        %v4516 = vmin.f32 %v4004, 0.0
        %v4517 = vmin.f32 %v4005, 0.0
        %v4518 = vmin.f32 %v4006, 0.0
        %v4519 = vmin.f32 %v4007, 0.0
        %v4520 = vmin.f32 %v4008, 0.0
        %v4521 = vmin.f32 %v4009, 0.0
        %v4522 = vmin.f32 %v4010, 0.0
        %v4523 = vmin.f32 %v4011, 0.0
        %v4524 = vmin.f32 %v4012, 0.0
        %v4525 = vmin.f32 %v4013, 0.0
        %v4526 = vmin.f32 %v4014, 0.0
        %v4527 = vmin.f32 %v4015, 0.0
        %v4528 = vmin.f32 %v4016, 0.0
        %v4529 = vmin.f32 %v4017, 0.0
        %v4530 = vmin.f32 %v4018, 0.0
        %v4531 = vmin.f32 %v4019, 0.0
        %v4532 = vmin.f32 %v4020, 0.0
        %v4533 = vmin.f32 %v4021, 0.0
        %v4534 = vmin.f32 %v4022, 0.0
        %v4535 = vmin.f32 %v4023, 0.0
        %v4536 = vmin.f32 %v4024, 0.0
        %v4537 = vmin.f32 %v4025, 0.0
        %v4538 = vmin.f32 %v4026, 0.0
        %v4539 = vmin.f32 %v4027, 0.0
        %v4540 = vmin.f32 %v4028, 0.0
        %v4541 = vmin.f32 %v4029, 0.0
        %v4542 = vmin.f32 %v4030, 0.0
        %v4543 = vmin.f32 %v4031, 0.0
        %v4544 = vmin.f32 %v4032, 0.0
        %v4545 = vmin.f32 %v4033, 0.0
        %v4546 = vmin.f32 %v4034, 0.0
        %v4547 = vmin.f32 %v4035, 0.0
        %v4548 = vmin.f32 %v4036, 0.0
        %v4549 = vmin.f32 %v4037, 0.0
        %v4550 = vmin.f32 %v4038, 0.0
        %v4551 = vmin.f32 %v4039, 0.0
        %v4552 = vmin.f32 %v4040, 0.0
        %v4553 = vmin.f32 %v4041, 0.0
        %v4554 = vmin.f32 %v4042, 0.0
        %v4555 = vmin.f32 %v4043, 0.0
        %v4556 = vmin.f32 %v4044, 0.0
        %v4557 = vmin.f32 %v4045, 0.0
        %v4558 = vmin.f32 %v4046, 0.0
        %v4559 = vmin.f32 %v4047, 0.0
        %v4560 = vmin.f32 %v4048, 0.0
        %v4561 = vmin.f32 %v4049, 0.0
        %v4562 = vmin.f32 %v4050, 0.0
        %v4563 = vmin.f32 %v4051, 0.0
        %v4564 = vmin.f32 %v4052, 0.0
        %v4565 = vmin.f32 %v4053, 0.0
        %v4566 = vmin.f32 %v4054, 0.0
        %v4567 = vmin.f32 %v4055, 0.0
        %v4568 = vmin.f32 %v4056, 0.0
        %v4569 = vmin.f32 %v4057, 0.0
        %v4570 = vmin.f32 %v4058, 0.0
        %v4571 = vmin.f32 %v4059, 0.0
        %v4572 = vmin.f32 %v4060, 0.0
        %v4573 = vmin.f32 %v4061, 0.0
        %v4574 = vmin.f32 %v4062, 0.0
        %v4575 = vmin.f32 %v4063, 0.0
        %v4576 = vmin.f32 %v4064, 0.0
        %v4577 = vmin.f32 %v4065, 0.0
        %v4578 = vmin.f32 %v4066, 0.0
        %v4579 = vmin.f32 %v4067, 0.0
        %v4580 = vmin.f32 %v4068, 0.0
        %v4581 = vmin.f32 %v4069, 0.0
        %v4582 = vmin.f32 %v4070, 0.0
        %v4583 = vmin.f32 %v4071, 0.0
        %v4584 = vmin.f32 %v4072, 0.0
        %v4585 = vmin.f32 %v4073, 0.0
        %v4586 = vmin.f32 %v4074, 0.0
        %v4587 = vmin.f32 %v4075, 0.0
        %v4588 = vmin.f32 %v4076, 0.0
        %v4589 = vmin.f32 %v4077, 0.0
        %v4590 = vmin.f32 %v4078, 0.0
        %v4591 = vmin.f32 %v4079, 0.0
        %v4592 = vmin.f32 %v4080, 0.0
        %v4593 = vmin.f32 %v4081, 0.0
        %v4594 = vmin.f32 %v4082, 0.0
        %v4595 = vmin.f32 %v4083, 0.0
        %v4596 = vmin.f32 %v4084, 0.0
        %v4597 = vmin.f32 %v4085, 0.0
        %v4598 = vmin.f32 %v4086, 0.0
        %v4599 = vmin.f32 %v4087, 0.0
        %v4600 = vmin.f32 %v4088, 0.0
        %v4601 = vmin.f32 %v4089, 0.0
        %v4602 = vmin.f32 %v4090, 0.0
        %v4603 = vmin.f32 %v4091, 0.0
        %v4604 = vmin.f32 %v4092, 0.0
        %v4605 = vmin.f32 %v4093, 0.0
        %v4606 = vmin.f32 %v4094, 0.0
        %v4607 = vmin.f32 %v4095, 0.0
        %v4608 = vmin.f32 %v4096, 0.0
        %v4609 = vmin.f32 %v4097, 0.0
        %v4610 = vmin.f32 %v4098, 0.0
        %v4611 = vmin.f32 %v4099, 0.0
        %v4612 = vmin.f32 %v4100, 0.0
        %v4613 = vmin.f32 %v4101, 0.0
        %v4614 = vmin.f32 %v4102, 0.0
        %v4615 = vmin.f32 %v4103, 0.0
        %v4616 = vmin.f32 %v4104, 0.0
        %v4617 = vmin.f32 %v4105, 0.0
        %v4618 = vmin.f32 %v4106, 0.0
        %v4619 = vmin.f32 %v4107, 0.0
        %v4620 = vmin.f32 %v4108, 0.0
        %v4621 = vmin.f32 %v4109, 0.0
        %v4622 = vmin.f32 %v4110, 0.0
        %v4623 = vmin.f32 %v4111, 0.0
        %v4624 = vmin.f32 %v4112, 0.0
        %v4625 = vmin.f32 %v4113, 0.0
        %v4626 = vmin.f32 %v4114, 0.0
        %v4627 = vmin.f32 %v4115, 0.0
        %v4628 = vmin.f32 %v4116, 0.0
        %v4629 = vmin.f32 %v4117, 0.0
        %v4630 = vmin.f32 %v4118, 0.0
        %v4631 = vmin.f32 %v4119, 0.0
        %v4632 = vmin.f32 %v4120, 0.0
        %v4633 = vmin.f32 %v4121, 0.0
        %v4634 = vmin.f32 %v4122, 0.0
        %v4635 = vmin.f32 %v4123, 0.0
        %v4636 = vmin.f32 %v4124, 0.0
        %v4637 = vmin.f32 %v4125, 0.0
        %v4638 = vmin.f32 %v4126, 0.0
        %v4639 = vmin.f32 %v4127, 0.0
        %v4640 = vmin.f32 %v4128, 0.0
        %v4641 = vmin.f32 %v4129, 0.0
        %v4642 = vmin.f32 %v4130, 0.0
        %v4643 = vmin.f32 %v4131, 0.0
        %v4644 = vmin.f32 %v4132, 0.0
        %v4645 = vmin.f32 %v4133, 0.0
        %v4646 = vmin.f32 %v4134, 0.0
        %v4647 = vmin.f32 %v4135, 0.0
        %v4648 = vmin.f32 %v4136, 0.0
        %v4649 = vmin.f32 %v4137, 0.0
        %v4650 = vmin.f32 %v4138, 0.0
        %v4651 = vmin.f32 %v4139, 0.0
        %v4652 = vmin.f32 %v4140, 0.0
        %v4653 = vmin.f32 %v4141, 0.0
        %v4654 = vmin.f32 %v4142, 0.0
        %v4655 = vmin.f32 %v4143, 0.0
        %v4656 = vmin.f32 %v4144, 0.0
        %v4657 = vmin.f32 %v4145, 0.0
        %v4658 = vmin.f32 %v4146, 0.0
        %v4659 = vmin.f32 %v4147, 0.0
        %v4660 = vmin.f32 %v4148, 0.0
        %v4661 = vmin.f32 %v4149, 0.0
        %v4662 = vmin.f32 %v4150, 0.0
        %v4663 = vmin.f32 %v4151, 0.0
        %v4664 = vmin.f32 %v4152, 0.0
        %v4665 = vmin.f32 %v4153, 0.0
        %v4666 = vmul.f32 %v4154, 1.442695
        %v4667 = vpow.pop %v4666
        %v4668 = vmul.f32 %v4155, 1.442695
        %v4669 = vpow.pop %v4668
        %v4670 = vmul.f32 %v4156, 1.442695
        %v4671 = vpow.pop %v4670
        %v4672 = vmul.f32 %v4157, 1.442695
        %v4673 = vpow.pop %v4672
        %v4674 = vmul.f32 %v4158, 1.442695
        %v4675 = vpow.pop %v4674
        %v4676 = vmul.f32 %v4159, 1.442695
        %v4677 = vpow.pop %v4676
        %v4678 = vmul.f32 %v4160, 1.442695
        %v4679 = vpow.pop %v4678
        %v4680 = vmul.f32 %v4161, 1.442695
        %v4681 = vpow.pop %v4680
        %v4682 = vmul.f32 %v4162, 1.442695
        %v4683 = vpow.pop %v4682
        %v4684 = vmul.f32 %v4163, 1.442695
        %v4685 = vpow.pop %v4684
        %v4686 = vmul.f32 %v4164, 1.442695
        %v4687 = vpow.pop %v4686
        %v4688 = vmul.f32 %v4165, 1.442695
        %v4689 = vpow.pop %v4688
        %v4690 = vmul.f32 %v4166, 1.442695
        %v4691 = vpow.pop %v4690
        %v4692 = vmul.f32 %v4167, 1.442695
        %v4693 = vpow.pop %v4692
        %v4694 = vmul.f32 %v4168, 1.442695
        %v4695 = vpow.pop %v4694
        %v4696 = vmul.f32 %v4169, 1.442695
        %v4697 = vpow.pop %v4696
        %v4698 = vmul.f32 %v4170, 1.442695
        %v4699 = vpow.pop %v4698
        %v4700 = vmul.f32 %v4171, 1.442695
        %v4701 = vpow.pop %v4700
        %v4702 = vmul.f32 %v4172, 1.442695
        %v4703 = vpow.pop %v4702
        %v4704 = vmul.f32 %v4173, 1.442695
        %v4705 = vpow.pop %v4704
        %v4706 = vmul.f32 %v4174, 1.442695
        %v4707 = vpow.pop %v4706
        %v4708 = vmul.f32 %v4175, 1.442695
        %v4709 = vpow.pop %v4708
        %v4710 = vmul.f32 %v4176, 1.442695
        %v4711 = vpow.pop %v4710
        %v4712 = vmul.f32 %v4177, 1.442695
        %v4713 = vpow.pop %v4712
        %v4714 = vmul.f32 %v4178, 1.442695
        %v4715 = vpow.pop %v4714
        %v4716 = vmul.f32 %v4179, 1.442695
        %v4717 = vpow.pop %v4716
        %v4718 = vmul.f32 %v4180, 1.442695
        %v4719 = vpow.pop %v4718
        %v4720 = vmul.f32 %v4181, 1.442695
        %v4721 = vpow.pop %v4720
        %v4722 = vmul.f32 %v4182, 1.442695
        %v4723 = vpow.pop %v4722
        %v4724 = vmul.f32 %v4183, 1.442695
        %v4725 = vpow.pop %v4724
        %v4726 = vmul.f32 %v4184, 1.442695
        %v4727 = vpow.pop %v4726
        %v4728 = vmul.f32 %v4185, 1.442695
        %v4729 = vpow.pop %v4728
        %v4730 = vmul.f32 %v4186, 1.442695
        %v4731 = vpow.pop %v4730
        %v4732 = vmul.f32 %v4187, 1.442695
        %v4733 = vpow.pop %v4732
        %v4734 = vmul.f32 %v4188, 1.442695
        %v4735 = vpow.pop %v4734
        %v4736 = vmul.f32 %v4189, 1.442695
        %v4737 = vpow.pop %v4736
        %v4738 = vmul.f32 %v4190, 1.442695
        %v4739 = vpow.pop %v4738
        %v4740 = vmul.f32 %v4191, 1.442695
        %v4741 = vpow.pop %v4740
        %v4742 = vmul.f32 %v4192, 1.442695
        %v4743 = vpow.pop %v4742
        %v4744 = vmul.f32 %v4193, 1.442695
        %v4745 = vpow.pop %v4744
        %v4746 = vmul.f32 %v4194, 1.442695
        %v4747 = vpow.pop %v4746
        %v4748 = vmul.f32 %v4195, 1.442695
        %v4749 = vpow.pop %v4748
        %v4750 = vmul.f32 %v4196, 1.442695
        %v4751 = vpow.pop %v4750
        %v4752 = vmul.f32 %v4197, 1.442695
        %v4753 = vpow.pop %v4752
        %v4754 = vmul.f32 %v4198, 1.442695
        %v4755 = vpow.pop %v4754
        %v4756 = vmul.f32 %v4199, 1.442695
        %v4757 = vpow.pop %v4756
        %v4758 = vmul.f32 %v4200, 1.442695
        %v4759 = vpow.pop %v4758
        %v4760 = vmul.f32 %v4201, 1.442695
        %v4761 = vpow.pop %v4760
        %v4762 = vmul.f32 %v4202, 1.442695
        %v4763 = vpow.pop %v4762
        %v4764 = vmul.f32 %v4203, 1.442695
        %v4765 = vpow.pop %v4764
        %v4766 = vmul.f32 %v4204, 1.442695
        %v4767 = vpow.pop %v4766
        %v4768 = vmul.f32 %v4205, 1.442695
        %v4769 = vpow.pop %v4768
        %v4770 = vmul.f32 %v4206, 1.442695
        %v4771 = vpow.pop %v4770
        %v4772 = vmul.f32 %v4207, 1.442695
        %v4773 = vpow.pop %v4772
        %v4774 = vmul.f32 %v4208, 1.442695
        %v4775 = vpow.pop %v4774
        %v4776 = vmul.f32 %v4209, 1.442695
        %v4777 = vpow.pop %v4776
        %v4778 = vmul.f32 %v4210, 1.442695
        %v4779 = vpow.pop %v4778
        %v4780 = vmul.f32 %v4211, 1.442695
        %v4781 = vpow.pop %v4780
        %v4782 = vmul.f32 %v4212, 1.442695
        %v4783 = vpow.pop %v4782
        %v4784 = vmul.f32 %v4213, 1.442695
        %v4785 = vpow.pop %v4784
        %v4786 = vmul.f32 %v4214, 1.442695
        %v4787 = vpow.pop %v4786
        %v4788 = vmul.f32 %v4215, 1.442695
        %v4789 = vpow.pop %v4788
        %v4790 = vmul.f32 %v4216, 1.442695
        %v4791 = vpow.pop %v4790
        %v4792 = vmul.f32 %v4217, 1.442695
        %v4793 = vpow.pop %v4792
        %v4794 = vmul.f32 %v4218, 1.442695
        %v4795 = vpow.pop %v4794
        %v4796 = vmul.f32 %v4219, 1.442695
        %v4797 = vpow.pop %v4796
        %v4798 = vmul.f32 %v4220, 1.442695
        %v4799 = vpow.pop %v4798
        %v4800 = vmul.f32 %v4221, 1.442695
        %v4801 = vpow.pop %v4800
        %v4802 = vmul.f32 %v4222, 1.442695
        %v4803 = vpow.pop %v4802
        %v4804 = vmul.f32 %v4223, 1.442695
        %v4805 = vpow.pop %v4804
        %v4806 = vmul.f32 %v4224, 1.442695
        %v4807 = vpow.pop %v4806
        %v4808 = vmul.f32 %v4225, 1.442695
        %v4809 = vpow.pop %v4808
        %v4810 = vmul.f32 %v4226, 1.442695
        %v4811 = vpow.pop %v4810
        %v4812 = vmul.f32 %v4227, 1.442695
        %v4813 = vpow.pop %v4812
        %v4814 = vmul.f32 %v4228, 1.442695
        %v4815 = vpow.pop %v4814
        %v4816 = vmul.f32 %v4229, 1.442695
        %v4817 = vpow.pop %v4816
        %v4818 = vmul.f32 %v4230, 1.442695
        %v4819 = vpow.pop %v4818
        %v4820 = vmul.f32 %v4231, 1.442695
        %v4821 = vpow.pop %v4820
        %v4822 = vmul.f32 %v4232, 1.442695
        %v4823 = vpow.pop %v4822
        %v4824 = vmul.f32 %v4233, 1.442695
        %v4825 = vpow.pop %v4824
        %v4826 = vmul.f32 %v4234, 1.442695
        %v4827 = vpow.pop %v4826
        %v4828 = vmul.f32 %v4235, 1.442695
        %v4829 = vpow.pop %v4828
        %v4830 = vmul.f32 %v4236, 1.442695
        %v4831 = vpow.pop %v4830
        %v4832 = vmul.f32 %v4237, 1.442695
        %v4833 = vpow.pop %v4832
        %v4834 = vmul.f32 %v4238, 1.442695
        %v4835 = vpow.pop %v4834
        %v4836 = vmul.f32 %v4239, 1.442695
        %v4837 = vpow.pop %v4836
        %v4838 = vmul.f32 %v4240, 1.442695
        %v4839 = vpow.pop %v4838
        %v4840 = vmul.f32 %v4241, 1.442695
        %v4841 = vpow.pop %v4840
        %v4842 = vmul.f32 %v4242, 1.442695
        %v4843 = vpow.pop %v4842
        %v4844 = vmul.f32 %v4243, 1.442695
        %v4845 = vpow.pop %v4844
        %v4846 = vmul.f32 %v4244, 1.442695
        %v4847 = vpow.pop %v4846
        %v4848 = vmul.f32 %v4245, 1.442695
        %v4849 = vpow.pop %v4848
        %v4850 = vmul.f32 %v4246, 1.442695
        %v4851 = vpow.pop %v4850
        %v4852 = vmul.f32 %v4247, 1.442695
        %v4853 = vpow.pop %v4852
        %v4854 = vmul.f32 %v4248, 1.442695
        %v4855 = vpow.pop %v4854
        %v4856 = vmul.f32 %v4249, 1.442695
        %v4857 = vpow.pop %v4856
        %v4858 = vmul.f32 %v4250, 1.442695
        %v4859 = vpow.pop %v4858
        %v4860 = vmul.f32 %v4251, 1.442695
        %v4861 = vpow.pop %v4860
        %v4862 = vmul.f32 %v4252, 1.442695
        %v4863 = vpow.pop %v4862
        %v4864 = vmul.f32 %v4253, 1.442695
        %v4865 = vpow.pop %v4864
        %v4866 = vmul.f32 %v4254, 1.442695
        %v4867 = vpow.pop %v4866
        %v4868 = vmul.f32 %v4255, 1.442695
        %v4869 = vpow.pop %v4868
        %v4870 = vmul.f32 %v4256, 1.442695
        %v4871 = vpow.pop %v4870
        %v4872 = vmul.f32 %v4257, 1.442695
        %v4873 = vpow.pop %v4872
        %v4874 = vmul.f32 %v4258, 1.442695
        %v4875 = vpow.pop %v4874
        %v4876 = vmul.f32 %v4259, 1.442695
        %v4877 = vpow.pop %v4876
        %v4878 = vmul.f32 %v4260, 1.442695
        %v4879 = vpow.pop %v4878
        %v4880 = vmul.f32 %v4261, 1.442695
        %v4881 = vpow.pop %v4880
        %v4882 = vmul.f32 %v4262, 1.442695
        %v4883 = vpow.pop %v4882
        %v4884 = vmul.f32 %v4263, 1.442695
        %v4885 = vpow.pop %v4884
        %v4886 = vmul.f32 %v4264, 1.442695
        %v4887 = vpow.pop %v4886
        %v4888 = vmul.f32 %v4265, 1.442695
        %v4889 = vpow.pop %v4888
        %v4890 = vmul.f32 %v4266, 1.442695
        %v4891 = vpow.pop %v4890
        %v4892 = vmul.f32 %v4267, 1.442695
        %v4893 = vpow.pop %v4892
        %v4894 = vmul.f32 %v4268, 1.442695
        %v4895 = vpow.pop %v4894
        %v4896 = vmul.f32 %v4269, 1.442695
        %v4897 = vpow.pop %v4896
        %v4898 = vmul.f32 %v4270, 1.442695
        %v4899 = vpow.pop %v4898
        %v4900 = vmul.f32 %v4271, 1.442695
        %v4901 = vpow.pop %v4900
        %v4902 = vmul.f32 %v4272, 1.442695
        %v4903 = vpow.pop %v4902
        %v4904 = vmul.f32 %v4273, 1.442695
        %v4905 = vpow.pop %v4904
        %v4906 = vmul.f32 %v4274, 1.442695
        %v4907 = vpow.pop %v4906
        %v4908 = vmul.f32 %v4275, 1.442695
        %v4909 = vpow.pop %v4908
        %v4910 = vmul.f32 %v4276, 1.442695
        %v4911 = vpow.pop %v4910
        %v4912 = vmul.f32 %v4277, 1.442695
        %v4913 = vpow.pop %v4912
        %v4914 = vmul.f32 %v4278, 1.442695
        %v4915 = vpow.pop %v4914
        %v4916 = vmul.f32 %v4279, 1.442695
        %v4917 = vpow.pop %v4916
        %v4918 = vmul.f32 %v4280, 1.442695
        %v4919 = vpow.pop %v4918
        %v4920 = vmul.f32 %v4281, 1.442695
        %v4921 = vpow.pop %v4920
        %v4922 = vmul.f32 %v4282, 1.442695
        %v4923 = vpow.pop %v4922
        %v4924 = vmul.f32 %v4283, 1.442695
        %v4925 = vpow.pop %v4924
        %v4926 = vmul.f32 %v4284, 1.442695
        %v4927 = vpow.pop %v4926
        %v4928 = vmul.f32 %v4285, 1.442695
        %v4929 = vpow.pop %v4928
        %v4930 = vmul.f32 %v4286, 1.442695
        %v4931 = vpow.pop %v4930
        %v4932 = vmul.f32 %v4287, 1.442695
        %v4933 = vpow.pop %v4932
        %v4934 = vmul.f32 %v4288, 1.442695
        %v4935 = vpow.pop %v4934
        %v4936 = vmul.f32 %v4289, 1.442695
        %v4937 = vpow.pop %v4936
        %v4938 = vmul.f32 %v4290, 1.442695
        %v4939 = vpow.pop %v4938
        %v4940 = vmul.f32 %v4291, 1.442695
        %v4941 = vpow.pop %v4940
        %v4942 = vmul.f32 %v4292, 1.442695
        %v4943 = vpow.pop %v4942
        %v4944 = vmul.f32 %v4293, 1.442695
        %v4945 = vpow.pop %v4944
        %v4946 = vmul.f32 %v4294, 1.442695
        %v4947 = vpow.pop %v4946
        %v4948 = vmul.f32 %v4295, 1.442695
        %v4949 = vpow.pop %v4948
        %v4950 = vmul.f32 %v4296, 1.442695
        %v4951 = vpow.pop %v4950
        %v4952 = vmul.f32 %v4297, 1.442695
        %v4953 = vpow.pop %v4952
        %v4954 = vmul.f32 %v4298, 1.442695
        %v4955 = vpow.pop %v4954
        %v4956 = vmul.f32 %v4299, 1.442695
        %v4957 = vpow.pop %v4956
        %v4958 = vmul.f32 %v4300, 1.442695
        %v4959 = vpow.pop %v4958
        %v4960 = vmul.f32 %v4301, 1.442695
        %v4961 = vpow.pop %v4960
        %v4962 = vmul.f32 %v4302, 1.442695
        %v4963 = vpow.pop %v4962
        %v4964 = vmul.f32 %v4303, 1.442695
        %v4965 = vpow.pop %v4964
        %v4966 = vmul.f32 %v4304, 1.442695
        %v4967 = vpow.pop %v4966
        %v4968 = vmul.f32 %v4305, 1.442695
        %v4969 = vpow.pop %v4968
        %v4970 = vmul.f32 %v4306, 1.442695
        %v4971 = vpow.pop %v4970
        %v4972 = vmul.f32 %v4307, 1.442695
        %v4973 = vpow.pop %v4972
        %v4974 = vmul.f32 %v4308, 1.442695
        %v4975 = vpow.pop %v4974
        %v4976 = vmul.f32 %v4309, 1.442695
        %v4977 = vpow.pop %v4976
        %v4978 = vmul.f32 %v4310, 1.442695
        %v4979 = vpow.pop %v4978
        %v4980 = vmul.f32 %v4311, 1.442695
        %v4981 = vpow.pop %v4980
        %v4982 = vmul.f32 %v4312, 1.442695
        %v4983 = vpow.pop %v4982
        %v4984 = vmul.f32 %v4313, 1.442695
        %v4985 = vpow.pop %v4984
        %v4986 = vmul.f32 %v4314, 1.442695
        %v4987 = vpow.pop %v4986
        %v4988 = vmul.f32 %v4315, 1.442695
        %v4989 = vpow.pop %v4988
        %v4990 = vmul.f32 %v4316, 1.442695
        %v4991 = vpow.pop %v4990
        %v4992 = vmul.f32 %v4317, 1.442695
        %v4993 = vpow.pop %v4992
        %v4994 = vmul.f32 %v4318, 1.442695
        %v4995 = vpow.pop %v4994
        %v4996 = vmul.f32 %v4319, 1.442695
        %v4997 = vpow.pop %v4996
        %v4998 = vmul.f32 %v4320, 1.442695
        %v4999 = vpow.pop %v4998
        %v5000 = vmul.f32 %v4321, 1.442695
        %v5001 = vpow.pop %v5000
        %v5002 = vmul.f32 %v4322, 1.442695
        %v5003 = vpow.pop %v5002
        %v5004 = vmul.f32 %v4323, 1.442695
        %v5005 = vpow.pop %v5004
        %v5006 = vmul.f32 %v4324, 1.442695
        %v5007 = vpow.pop %v5006
        %v5008 = vmul.f32 %v4325, 1.442695
        %v5009 = vpow.pop %v5008
        %v5010 = vmul.f32 %v4326, 1.442695
        %v5011 = vpow.pop %v5010
        %v5012 = vmul.f32 %v4327, 1.442695
        %v5013 = vpow.pop %v5012
        %v5014 = vmul.f32 %v4328, 1.442695
        %v5015 = vpow.pop %v5014
        %v5016 = vmul.f32 %v4329, 1.442695
        %v5017 = vpow.pop %v5016
        %v5018 = vmul.f32 %v4330, 1.442695
        %v5019 = vpow.pop %v5018
        %v5020 = vmul.f32 %v4331, 1.442695
        %v5021 = vpow.pop %v5020
        %v5022 = vmul.f32 %v4332, 1.442695
        %v5023 = vpow.pop %v5022
        %v5024 = vmul.f32 %v4333, 1.442695
        %v5025 = vpow.pop %v5024
        %v5026 = vmul.f32 %v4334, 1.442695
        %v5027 = vpow.pop %v5026
        %v5028 = vmul.f32 %v4335, 1.442695
        %v5029 = vpow.pop %v5028
        %v5030 = vmul.f32 %v4336, 1.442695
        %v5031 = vpow.pop %v5030
        %v5032 = vmul.f32 %v4337, 1.442695
        %v5033 = vpow.pop %v5032
        %v5034 = vmul.f32 %v4338, 1.442695
        %v5035 = vpow.pop %v5034
        %v5036 = vmul.f32 %v4339, 1.442695
        %v5037 = vpow.pop %v5036
        %v5038 = vmul.f32 %v4340, 1.442695
        %v5039 = vpow.pop %v5038
        %v5040 = vmul.f32 %v4341, 1.442695
        %v5041 = vpow.pop %v5040
        %v5042 = vmul.f32 %v4342, 1.442695
        %v5043 = vpow.pop %v5042
        %v5044 = vmul.f32 %v4343, 1.442695
        %v5045 = vpow.pop %v5044
        %v5046 = vmul.f32 %v4344, 1.442695
        %v5047 = vpow.pop %v5046
        %v5048 = vmul.f32 %v4345, 1.442695
        %v5049 = vpow.pop %v5048
        %v5050 = vmul.f32 %v4346, 1.442695
        %v5051 = vpow.pop %v5050
        %v5052 = vmul.f32 %v4347, 1.442695
        %v5053 = vpow.pop %v5052
        %v5054 = vmul.f32 %v4348, 1.442695
        %v5055 = vpow.pop %v5054
        %v5056 = vmul.f32 %v4349, 1.442695
        %v5057 = vpow.pop %v5056
        %v5058 = vmul.f32 %v4350, 1.442695
        %v5059 = vpow.pop %v5058
        %v5060 = vmul.f32 %v4351, 1.442695
        %v5061 = vpow.pop %v5060
        %v5062 = vmul.f32 %v4352, 1.442695
        %v5063 = vpow.pop %v5062
        %v5064 = vmul.f32 %v4353, 1.442695
        %v5065 = vpow.pop %v5064
        %v5066 = vmul.f32 %v4354, 1.442695
        %v5067 = vpow.pop %v5066
        %v5068 = vmul.f32 %v4355, 1.442695
        %v5069 = vpow.pop %v5068
        %v5070 = vmul.f32 %v4356, 1.442695
        %v5071 = vpow.pop %v5070
        %v5072 = vmul.f32 %v4357, 1.442695
        %v5073 = vpow.pop %v5072
        %v5074 = vmul.f32 %v4358, 1.442695
        %v5075 = vpow.pop %v5074
        %v5076 = vmul.f32 %v4359, 1.442695
        %v5077 = vpow.pop %v5076
        %v5078 = vmul.f32 %v4360, 1.442695
        %v5079 = vpow.pop %v5078
        %v5080 = vmul.f32 %v4361, 1.442695
        %v5081 = vpow.pop %v5080
        %v5082 = vmul.f32 %v4362, 1.442695
        %v5083 = vpow.pop %v5082
        %v5084 = vmul.f32 %v4363, 1.442695
        %v5085 = vpow.pop %v5084
        %v5086 = vmul.f32 %v4364, 1.442695
        %v5087 = vpow.pop %v5086
        %v5088 = vmul.f32 %v4365, 1.442695
        %v5089 = vpow.pop %v5088
        %v5090 = vmul.f32 %v4366, 1.442695
        %v5091 = vpow.pop %v5090
        %v5092 = vmul.f32 %v4367, 1.442695
        %v5093 = vpow.pop %v5092
        %v5094 = vmul.f32 %v4368, 1.442695
        %v5095 = vpow.pop %v5094
        %v5096 = vmul.f32 %v4369, 1.442695
        %v5097 = vpow.pop %v5096
        %v5098 = vmul.f32 %v4370, 1.442695
        %v5099 = vpow.pop %v5098
        %v5100 = vmul.f32 %v4371, 1.442695
        %v5101 = vpow.pop %v5100
        %v5102 = vmul.f32 %v4372, 1.442695
        %v5103 = vpow.pop %v5102
        %v5104 = vmul.f32 %v4373, 1.442695
        %v5105 = vpow.pop %v5104
        %v5106 = vmul.f32 %v4374, 1.442695
        %v5107 = vpow.pop %v5106
        %v5108 = vmul.f32 %v4375, 1.442695
        %v5109 = vpow.pop %v5108
        %v5110 = vmul.f32 %v4376, 1.442695
        %v5111 = vpow.pop %v5110
        %v5112 = vmul.f32 %v4377, 1.442695
        %v5113 = vpow.pop %v5112
        %v5114 = vmul.f32 %v4378, 1.442695
        %v5115 = vpow.pop %v5114
        %v5116 = vmul.f32 %v4379, 1.442695
        %v5117 = vpow.pop %v5116
        %v5118 = vmul.f32 %v4380, 1.442695
        %v5119 = vpow.pop %v5118
        %v5120 = vmul.f32 %v4381, 1.442695
        %v5121 = vpow.pop %v5120
        %v5122 = vmul.f32 %v4382, 1.442695
        %v5123 = vpow.pop %v5122
        %v5124 = vmul.f32 %v4383, 1.442695
        %v5125 = vpow.pop %v5124
        %v5126 = vmul.f32 %v4384, 1.442695
        %v5127 = vpow.pop %v5126
        %v5128 = vmul.f32 %v4385, 1.442695
        %v5129 = vpow.pop %v5128
        %v5130 = vmul.f32 %v4386, 1.442695
        %v5131 = vpow.pop %v5130
        %v5132 = vmul.f32 %v4387, 1.442695
        %v5133 = vpow.pop %v5132
        %v5134 = vmul.f32 %v4388, 1.442695
        %v5135 = vpow.pop %v5134
        %v5136 = vmul.f32 %v4389, 1.442695
        %v5137 = vpow.pop %v5136
        %v5138 = vmul.f32 %v4390, 1.442695
        %v5139 = vpow.pop %v5138
        %v5140 = vmul.f32 %v4391, 1.442695
        %v5141 = vpow.pop %v5140
        %v5142 = vmul.f32 %v4392, 1.442695
        %v5143 = vpow.pop %v5142
        %v5144 = vmul.f32 %v4393, 1.442695
        %v5145 = vpow.pop %v5144
        %v5146 = vmul.f32 %v4394, 1.442695
        %v5147 = vpow.pop %v5146
        %v5148 = vmul.f32 %v4395, 1.442695
        %v5149 = vpow.pop %v5148
        %v5150 = vmul.f32 %v4396, 1.442695
        %v5151 = vpow.pop %v5150
        %v5152 = vmul.f32 %v4397, 1.442695
        %v5153 = vpow.pop %v5152
        %v5154 = vmul.f32 %v4398, 1.442695
        %v5155 = vpow.pop %v5154
        %v5156 = vmul.f32 %v4399, 1.442695
        %v5157 = vpow.pop %v5156
        %v5158 = vmul.f32 %v4400, 1.442695
        %v5159 = vpow.pop %v5158
        %v5160 = vmul.f32 %v4401, 1.442695
        %v5161 = vpow.pop %v5160
        %v5162 = vmul.f32 %v4402, 1.442695
        %v5163 = vpow.pop %v5162
        %v5164 = vmul.f32 %v4403, 1.442695
        %v5165 = vpow.pop %v5164
        %v5166 = vmul.f32 %v4404, 1.442695
        %v5167 = vpow.pop %v5166
        %v5168 = vmul.f32 %v4405, 1.442695
        %v5169 = vpow.pop %v5168
        %v5170 = vmul.f32 %v4406, 1.442695
        %v5171 = vpow.pop %v5170
        %v5172 = vmul.f32 %v4407, 1.442695
        %v5173 = vpow.pop %v5172
        %v5174 = vmul.f32 %v4408, 1.442695
        %v5175 = vpow.pop %v5174
        %v5176 = vmul.f32 %v4409, 1.442695
        %v5177 = vpow.pop %v5176
        %v5178 = vmul.f32 %v4410, 1.442695
        %v5179 = vpow.pop %v5178
        %v5180 = vmul.f32 %v4411, 1.442695
        %v5181 = vpow.pop %v5180
        %v5182 = vmul.f32 %v4412, 1.442695
        %v5183 = vpow.pop %v5182
        %v5184 = vmul.f32 %v4413, 1.442695
        %v5185 = vpow.pop %v5184
        %v5186 = vmul.f32 %v4414, 1.442695
        %v5187 = vpow.pop %v5186
        %v5188 = vmul.f32 %v4415, 1.442695
        %v5189 = vpow.pop %v5188
        %v5190 = vmul.f32 %v4416, 1.442695
        %v5191 = vpow.pop %v5190
        %v5192 = vmul.f32 %v4417, 1.442695
        %v5193 = vpow.pop %v5192
        %v5194 = vmul.f32 %v4418, 1.442695
        %v5195 = vpow.pop %v5194
        %v5196 = vmul.f32 %v4419, 1.442695
        %v5197 = vpow.pop %v5196
        %v5198 = vmul.f32 %v4420, 1.442695
        %v5199 = vpow.pop %v5198
        %v5200 = vmul.f32 %v4421, 1.442695
        %v5201 = vpow.pop %v5200
        %v5202 = vmul.f32 %v4422, 1.442695
        %v5203 = vpow.pop %v5202
        %v5204 = vmul.f32 %v4423, 1.442695
        %v5205 = vpow.pop %v5204
        %v5206 = vmul.f32 %v4424, 1.442695
        %v5207 = vpow.pop %v5206
        %v5208 = vmul.f32 %v4425, 1.442695
        %v5209 = vpow.pop %v5208
        %v5210 = vmul.f32 %v4426, 1.442695
        %v5211 = vpow.pop %v5210
        %v5212 = vmul.f32 %v4427, 1.442695
        %v5213 = vpow.pop %v5212
        %v5214 = vmul.f32 %v4428, 1.442695
        %v5215 = vpow.pop %v5214
        %v5216 = vmul.f32 %v4429, 1.442695
        %v5217 = vpow.pop %v5216
        %v5218 = vmul.f32 %v4430, 1.442695
        %v5219 = vpow.pop %v5218
        %v5220 = vmul.f32 %v4431, 1.442695
        %v5221 = vpow.pop %v5220
        %v5222 = vmul.f32 %v4432, 1.442695
        %v5223 = vpow.pop %v5222
        %v5224 = vmul.f32 %v4433, 1.442695
        %v5225 = vpow.pop %v5224
        %v5226 = vmul.f32 %v4434, 1.442695
        %v5227 = vpow.pop %v5226
        %v5228 = vmul.f32 %v4435, 1.442695
        %v5229 = vpow.pop %v5228
        %v5230 = vmul.f32 %v4436, 1.442695
        %v5231 = vpow.pop %v5230
        %v5232 = vmul.f32 %v4437, 1.442695
        %v5233 = vpow.pop %v5232
        %v5234 = vmul.f32 %v4438, 1.442695
        %v5235 = vpow.pop %v5234
        %v5236 = vmul.f32 %v4439, 1.442695
        %v5237 = vpow.pop %v5236
        %v5238 = vmul.f32 %v4440, 1.442695
        %v5239 = vpow.pop %v5238
        %v5240 = vmul.f32 %v4441, 1.442695
        %v5241 = vpow.pop %v5240
        %v5242 = vmul.f32 %v4442, 1.442695
        %v5243 = vpow.pop %v5242
        %v5244 = vmul.f32 %v4443, 1.442695
        %v5245 = vpow.pop %v5244
        %v5246 = vmul.f32 %v4444, 1.442695
        %v5247 = vpow.pop %v5246
        %v5248 = vmul.f32 %v4445, 1.442695
        %v5249 = vpow.pop %v5248
        %v5250 = vmul.f32 %v4446, 1.442695
        %v5251 = vpow.pop %v5250
        %v5252 = vmul.f32 %v4447, 1.442695
        %v5253 = vpow.pop %v5252
        %v5254 = vmul.f32 %v4448, 1.442695
        %v5255 = vpow.pop %v5254
        %v5256 = vmul.f32 %v4449, 1.442695
        %v5257 = vpow.pop %v5256
        %v5258 = vmul.f32 %v4450, 1.442695
        %v5259 = vpow.pop %v5258
        %v5260 = vmul.f32 %v4451, 1.442695
        %v5261 = vpow.pop %v5260
        %v5262 = vmul.f32 %v4452, 1.442695
        %v5263 = vpow.pop %v5262
        %v5264 = vmul.f32 %v4453, 1.442695
        %v5265 = vpow.pop %v5264
        %v5266 = vmul.f32 %v4454, 1.442695
        %v5267 = vpow.pop %v5266
        %v5268 = vmul.f32 %v4455, 1.442695
        %v5269 = vpow.pop %v5268
        %v5270 = vmul.f32 %v4456, 1.442695
        %v5271 = vpow.pop %v5270
        %v5272 = vmul.f32 %v4457, 1.442695
        %v5273 = vpow.pop %v5272
        %v5274 = vmul.f32 %v4458, 1.442695
        %v5275 = vpow.pop %v5274
        %v5276 = vmul.f32 %v4459, 1.442695
        %v5277 = vpow.pop %v5276
        %v5278 = vmul.f32 %v4460, 1.442695
        %v5279 = vpow.pop %v5278
        %v5280 = vmul.f32 %v4461, 1.442695
        %v5281 = vpow.pop %v5280
        %v5282 = vmul.f32 %v4462, 1.442695
        %v5283 = vpow.pop %v5282
        %v5284 = vmul.f32 %v4463, 1.442695
        %v5285 = vpow.pop %v5284
        %v5286 = vmul.f32 %v4464, 1.442695
        %v5287 = vpow.pop %v5286
        %v5288 = vmul.f32 %v4465, 1.442695
        %v5289 = vpow.pop %v5288
        %v5290 = vmul.f32 %v4466, 1.442695
        %v5291 = vpow.pop %v5290
        %v5292 = vmul.f32 %v4467, 1.442695
        %v5293 = vpow.pop %v5292
        %v5294 = vmul.f32 %v4468, 1.442695
        %v5295 = vpow.pop %v5294
        %v5296 = vmul.f32 %v4469, 1.442695
        %v5297 = vpow.pop %v5296
        %v5298 = vmul.f32 %v4470, 1.442695
        %v5299 = vpow.pop %v5298
        %v5300 = vmul.f32 %v4471, 1.442695
        %v5301 = vpow.pop %v5300
        %v5302 = vmul.f32 %v4472, 1.442695
        %v5303 = vpow.pop %v5302
        %v5304 = vmul.f32 %v4473, 1.442695
        %v5305 = vpow.pop %v5304
        %v5306 = vmul.f32 %v4474, 1.442695
        %v5307 = vpow.pop %v5306
        %v5308 = vmul.f32 %v4475, 1.442695
        %v5309 = vpow.pop %v5308
        %v5310 = vmul.f32 %v4476, 1.442695
        %v5311 = vpow.pop %v5310
        %v5312 = vmul.f32 %v4477, 1.442695
        %v5313 = vpow.pop %v5312
        %v5314 = vmul.f32 %v4478, 1.442695
        %v5315 = vpow.pop %v5314
        %v5316 = vmul.f32 %v4479, 1.442695
        %v5317 = vpow.pop %v5316
        %v5318 = vmul.f32 %v4480, 1.442695
        %v5319 = vpow.pop %v5318
        %v5320 = vmul.f32 %v4481, 1.442695
        %v5321 = vpow.pop %v5320
        %v5322 = vmul.f32 %v4482, 1.442695
        %v5323 = vpow.pop %v5322
        %v5324 = vmul.f32 %v4483, 1.442695
        %v5325 = vpow.pop %v5324
        %v5326 = vmul.f32 %v4484, 1.442695
        %v5327 = vpow.pop %v5326
        %v5328 = vmul.f32 %v4485, 1.442695
        %v5329 = vpow.pop %v5328
        %v5330 = vmul.f32 %v4486, 1.442695
        %v5331 = vpow.pop %v5330
        %v5332 = vmul.f32 %v4487, 1.442695
        %v5333 = vpow.pop %v5332
        %v5334 = vmul.f32 %v4488, 1.442695
        %v5335 = vpow.pop %v5334
        %v5336 = vmul.f32 %v4489, 1.442695
        %v5337 = vpow.pop %v5336
        %v5338 = vmul.f32 %v4490, 1.442695
        %v5339 = vpow.pop %v5338
        %v5340 = vmul.f32 %v4491, 1.442695
        %v5341 = vpow.pop %v5340
        %v5342 = vmul.f32 %v4492, 1.442695
        %v5343 = vpow.pop %v5342
        %v5344 = vmul.f32 %v4493, 1.442695
        %v5345 = vpow.pop %v5344
        %v5346 = vmul.f32 %v4494, 1.442695
        %v5347 = vpow.pop %v5346
        %v5348 = vmul.f32 %v4495, 1.442695
        %v5349 = vpow.pop %v5348
        %v5350 = vmul.f32 %v4496, 1.442695
        %v5351 = vpow.pop %v5350
        %v5352 = vmul.f32 %v4497, 1.442695
        %v5353 = vpow.pop %v5352
        %v5354 = vmul.f32 %v4498, 1.442695
        %v5355 = vpow.pop %v5354
        %v5356 = vmul.f32 %v4499, 1.442695
        %v5357 = vpow.pop %v5356
        %v5358 = vmul.f32 %v4500, 1.442695
        %v5359 = vpow.pop %v5358
        %v5360 = vmul.f32 %v4501, 1.442695
        %v5361 = vpow.pop %v5360
        %v5362 = vmul.f32 %v4502, 1.442695
        %v5363 = vpow.pop %v5362
        %v5364 = vmul.f32 %v4503, 1.442695
        %v5365 = vpow.pop %v5364
        %v5366 = vmul.f32 %v4504, 1.442695
        %v5367 = vpow.pop %v5366
        %v5368 = vmul.f32 %v4505, 1.442695
        %v5369 = vpow.pop %v5368
        %v5370 = vmul.f32 %v4506, 1.442695
        %v5371 = vpow.pop %v5370
        %v5372 = vmul.f32 %v4507, 1.442695
        %v5373 = vpow.pop %v5372
        %v5374 = vmul.f32 %v4508, 1.442695
        %v5375 = vpow.pop %v5374
        %v5376 = vmul.f32 %v4509, 1.442695
        %v5377 = vpow.pop %v5376
        %v5378 = vmul.f32 %v4510, 1.442695
        %v5379 = vpow.pop %v5378
        %v5380 = vmul.f32 %v4511, 1.442695
        %v5381 = vpow.pop %v5380
        %v5382 = vmul.f32 %v4512, 1.442695
        %v5383 = vpow.pop %v5382
        %v5384 = vmul.f32 %v4513, 1.442695
        %v5385 = vpow.pop %v5384
        %v5386 = vmul.f32 %v4514, 1.442695
        %v5387 = vpow.pop %v5386
        %v5388 = vmul.f32 %v4515, 1.442695
        %v5389 = vpow.pop %v5388
        %v5390 = vmul.f32 %v4516, 1.442695
        %v5391 = vpow.pop %v5390
        %v5392 = vmul.f32 %v4517, 1.442695
        %v5393 = vpow.pop %v5392
        %v5394 = vmul.f32 %v4518, 1.442695
        %v5395 = vpow.pop %v5394
        %v5396 = vmul.f32 %v4519, 1.442695
        %v5397 = vpow.pop %v5396
        %v5398 = vmul.f32 %v4520, 1.442695
        %v5399 = vpow.pop %v5398
        %v5400 = vmul.f32 %v4521, 1.442695
        %v5401 = vpow.pop %v5400
        %v5402 = vmul.f32 %v4522, 1.442695
        %v5403 = vpow.pop %v5402
        %v5404 = vmul.f32 %v4523, 1.442695
        %v5405 = vpow.pop %v5404
        %v5406 = vmul.f32 %v4524, 1.442695
        %v5407 = vpow.pop %v5406
        %v5408 = vmul.f32 %v4525, 1.442695
        %v5409 = vpow.pop %v5408
        %v5410 = vmul.f32 %v4526, 1.442695
        %v5411 = vpow.pop %v5410
        %v5412 = vmul.f32 %v4527, 1.442695
        %v5413 = vpow.pop %v5412
        %v5414 = vmul.f32 %v4528, 1.442695
        %v5415 = vpow.pop %v5414
        %v5416 = vmul.f32 %v4529, 1.442695
        %v5417 = vpow.pop %v5416
        %v5418 = vmul.f32 %v4530, 1.442695
        %v5419 = vpow.pop %v5418
        %v5420 = vmul.f32 %v4531, 1.442695
        %v5421 = vpow.pop %v5420
        %v5422 = vmul.f32 %v4532, 1.442695
        %v5423 = vpow.pop %v5422
        %v5424 = vmul.f32 %v4533, 1.442695
        %v5425 = vpow.pop %v5424
        %v5426 = vmul.f32 %v4534, 1.442695
        %v5427 = vpow.pop %v5426
        %v5428 = vmul.f32 %v4535, 1.442695
        %v5429 = vpow.pop %v5428
        %v5430 = vmul.f32 %v4536, 1.442695
        %v5431 = vpow.pop %v5430
        %v5432 = vmul.f32 %v4537, 1.442695
        %v5433 = vpow.pop %v5432
        %v5434 = vmul.f32 %v4538, 1.442695
        %v5435 = vpow.pop %v5434
        %v5436 = vmul.f32 %v4539, 1.442695
        %v5437 = vpow.pop %v5436
        %v5438 = vmul.f32 %v4540, 1.442695
        %v5439 = vpow.pop %v5438
        %v5440 = vmul.f32 %v4541, 1.442695
        %v5441 = vpow.pop %v5440
        %v5442 = vmul.f32 %v4542, 1.442695
        %v5443 = vpow.pop %v5442
        %v5444 = vmul.f32 %v4543, 1.442695
        %v5445 = vpow.pop %v5444
        %v5446 = vmul.f32 %v4544, 1.442695
        %v5447 = vpow.pop %v5446
        %v5448 = vmul.f32 %v4545, 1.442695
        %v5449 = vpow.pop %v5448
        %v5450 = vmul.f32 %v4546, 1.442695
        %v5451 = vpow.pop %v5450
        %v5452 = vmul.f32 %v4547, 1.442695
        %v5453 = vpow.pop %v5452
        %v5454 = vmul.f32 %v4548, 1.442695
        %v5455 = vpow.pop %v5454
        %v5456 = vmul.f32 %v4549, 1.442695
        %v5457 = vpow.pop %v5456
        %v5458 = vmul.f32 %v4550, 1.442695
        %v5459 = vpow.pop %v5458
        %v5460 = vmul.f32 %v4551, 1.442695
        %v5461 = vpow.pop %v5460
        %v5462 = vmul.f32 %v4552, 1.442695
        %v5463 = vpow.pop %v5462
        %v5464 = vmul.f32 %v4553, 1.442695
        %v5465 = vpow.pop %v5464
        %v5466 = vmul.f32 %v4554, 1.442695
        %v5467 = vpow.pop %v5466
        %v5468 = vmul.f32 %v4555, 1.442695
        %v5469 = vpow.pop %v5468
        %v5470 = vmul.f32 %v4556, 1.442695
        %v5471 = vpow.pop %v5470
        %v5472 = vmul.f32 %v4557, 1.442695
        %v5473 = vpow.pop %v5472
        %v5474 = vmul.f32 %v4558, 1.442695
        %v5475 = vpow.pop %v5474
        %v5476 = vmul.f32 %v4559, 1.442695
        %v5477 = vpow.pop %v5476
        %v5478 = vmul.f32 %v4560, 1.442695
        %v5479 = vpow.pop %v5478
        %v5480 = vmul.f32 %v4561, 1.442695
        %v5481 = vpow.pop %v5480
        %v5482 = vmul.f32 %v4562, 1.442695
        %v5483 = vpow.pop %v5482
        %v5484 = vmul.f32 %v4563, 1.442695
        %v5485 = vpow.pop %v5484
        %v5486 = vmul.f32 %v4564, 1.442695
        %v5487 = vpow.pop %v5486
        %v5488 = vmul.f32 %v4565, 1.442695
        %v5489 = vpow.pop %v5488
        %v5490 = vmul.f32 %v4566, 1.442695
        %v5491 = vpow.pop %v5490
        %v5492 = vmul.f32 %v4567, 1.442695
        %v5493 = vpow.pop %v5492
        %v5494 = vmul.f32 %v4568, 1.442695
        %v5495 = vpow.pop %v5494
        %v5496 = vmul.f32 %v4569, 1.442695
        %v5497 = vpow.pop %v5496
        %v5498 = vmul.f32 %v4570, 1.442695
        %v5499 = vpow.pop %v5498
        %v5500 = vmul.f32 %v4571, 1.442695
        %v5501 = vpow.pop %v5500
        %v5502 = vmul.f32 %v4572, 1.442695
        %v5503 = vpow.pop %v5502
        %v5504 = vmul.f32 %v4573, 1.442695
        %v5505 = vpow.pop %v5504
        %v5506 = vmul.f32 %v4574, 1.442695
        %v5507 = vpow.pop %v5506
        %v5508 = vmul.f32 %v4575, 1.442695
        %v5509 = vpow.pop %v5508
        %v5510 = vmul.f32 %v4576, 1.442695
        %v5511 = vpow.pop %v5510
        %v5512 = vmul.f32 %v4577, 1.442695
        %v5513 = vpow.pop %v5512
        %v5514 = vmul.f32 %v4578, 1.442695
        %v5515 = vpow.pop %v5514
        %v5516 = vmul.f32 %v4579, 1.442695
        %v5517 = vpow.pop %v5516
        %v5518 = vmul.f32 %v4580, 1.442695
        %v5519 = vpow.pop %v5518
        %v5520 = vmul.f32 %v4581, 1.442695
        %v5521 = vpow.pop %v5520
        %v5522 = vmul.f32 %v4582, 1.442695
        %v5523 = vpow.pop %v5522
        %v5524 = vmul.f32 %v4583, 1.442695
        %v5525 = vpow.pop %v5524
        %v5526 = vmul.f32 %v4584, 1.442695
        %v5527 = vpow.pop %v5526
        %v5528 = vmul.f32 %v4585, 1.442695
        %v5529 = vpow.pop %v5528
        %v5530 = vmul.f32 %v4586, 1.442695
        %v5531 = vpow.pop %v5530
        %v5532 = vmul.f32 %v4587, 1.442695
        %v5533 = vpow.pop %v5532
        %v5534 = vmul.f32 %v4588, 1.442695
        %v5535 = vpow.pop %v5534
        %v5536 = vmul.f32 %v4589, 1.442695
        %v5537 = vpow.pop %v5536
        %v5538 = vmul.f32 %v4590, 1.442695
        %v5539 = vpow.pop %v5538
        %v5540 = vmul.f32 %v4591, 1.442695
        %v5541 = vpow.pop %v5540
        %v5542 = vmul.f32 %v4592, 1.442695
        %v5543 = vpow.pop %v5542
        %v5544 = vmul.f32 %v4593, 1.442695
        %v5545 = vpow.pop %v5544
        %v5546 = vmul.f32 %v4594, 1.442695
        %v5547 = vpow.pop %v5546
        %v5548 = vmul.f32 %v4595, 1.442695
        %v5549 = vpow.pop %v5548
        %v5550 = vmul.f32 %v4596, 1.442695
        %v5551 = vpow.pop %v5550
        %v5552 = vmul.f32 %v4597, 1.442695
        %v5553 = vpow.pop %v5552
        %v5554 = vmul.f32 %v4598, 1.442695
        %v5555 = vpow.pop %v5554
        %v5556 = vmul.f32 %v4599, 1.442695
        %v5557 = vpow.pop %v5556
        %v5558 = vmul.f32 %v4600, 1.442695
        %v5559 = vpow.pop %v5558
        %v5560 = vmul.f32 %v4601, 1.442695
        %v5561 = vpow.pop %v5560
        %v5562 = vmul.f32 %v4602, 1.442695
        %v5563 = vpow.pop %v5562
        %v5564 = vmul.f32 %v4603, 1.442695
        %v5565 = vpow.pop %v5564
        %v5566 = vmul.f32 %v4604, 1.442695
        %v5567 = vpow.pop %v5566
        %v5568 = vmul.f32 %v4605, 1.442695
        %v5569 = vpow.pop %v5568
        %v5570 = vmul.f32 %v4606, 1.442695
        %v5571 = vpow.pop %v5570
        %v5572 = vmul.f32 %v4607, 1.442695
        %v5573 = vpow.pop %v5572
        %v5574 = vmul.f32 %v4608, 1.442695
        %v5575 = vpow.pop %v5574
        %v5576 = vmul.f32 %v4609, 1.442695
        %v5577 = vpow.pop %v5576
        %v5578 = vmul.f32 %v4610, 1.442695
        %v5579 = vpow.pop %v5578
        %v5580 = vmul.f32 %v4611, 1.442695
        %v5581 = vpow.pop %v5580
        %v5582 = vmul.f32 %v4612, 1.442695
        %v5583 = vpow.pop %v5582
        %v5584 = vmul.f32 %v4613, 1.442695
        %v5585 = vpow.pop %v5584
        %v5586 = vmul.f32 %v4614, 1.442695
        %v5587 = vpow.pop %v5586
        %v5588 = vmul.f32 %v4615, 1.442695
        %v5589 = vpow.pop %v5588
        %v5590 = vmul.f32 %v4616, 1.442695
        %v5591 = vpow.pop %v5590
        %v5592 = vmul.f32 %v4617, 1.442695
        %v5593 = vpow.pop %v5592
        %v5594 = vmul.f32 %v4618, 1.442695
        %v5595 = vpow.pop %v5594
        %v5596 = vmul.f32 %v4619, 1.442695
        %v5597 = vpow.pop %v5596
        %v5598 = vmul.f32 %v4620, 1.442695
        %v5599 = vpow.pop %v5598
        %v5600 = vmul.f32 %v4621, 1.442695
        %v5601 = vpow.pop %v5600
        %v5602 = vmul.f32 %v4622, 1.442695
        %v5603 = vpow.pop %v5602
        %v5604 = vmul.f32 %v4623, 1.442695
        %v5605 = vpow.pop %v5604
        %v5606 = vmul.f32 %v4624, 1.442695
        %v5607 = vpow.pop %v5606
        %v5608 = vmul.f32 %v4625, 1.442695
        %v5609 = vpow.pop %v5608
        %v5610 = vmul.f32 %v4626, 1.442695
        %v5611 = vpow.pop %v5610
        %v5612 = vmul.f32 %v4627, 1.442695
        %v5613 = vpow.pop %v5612
        %v5614 = vmul.f32 %v4628, 1.442695
        %v5615 = vpow.pop %v5614
        %v5616 = vmul.f32 %v4629, 1.442695
        %v5617 = vpow.pop %v5616
        %v5618 = vmul.f32 %v4630, 1.442695
        %v5619 = vpow.pop %v5618
        %v5620 = vmul.f32 %v4631, 1.442695
        %v5621 = vpow.pop %v5620
        %v5622 = vmul.f32 %v4632, 1.442695
        %v5623 = vpow.pop %v5622
        %v5624 = vmul.f32 %v4633, 1.442695
        %v5625 = vpow.pop %v5624
        %v5626 = vmul.f32 %v4634, 1.442695
        %v5627 = vpow.pop %v5626
        %v5628 = vmul.f32 %v4635, 1.442695
        %v5629 = vpow.pop %v5628
        %v5630 = vmul.f32 %v4636, 1.442695
        %v5631 = vpow.pop %v5630
        %v5632 = vmul.f32 %v4637, 1.442695
        %v5633 = vpow.pop %v5632
        %v5634 = vmul.f32 %v4638, 1.442695
        %v5635 = vpow.pop %v5634
        %v5636 = vmul.f32 %v4639, 1.442695
        %v5637 = vpow.pop %v5636
        %v5638 = vmul.f32 %v4640, 1.442695
        %v5639 = vpow.pop %v5638
        %v5640 = vmul.f32 %v4641, 1.442695
        %v5641 = vpow.pop %v5640
        %v5642 = vmul.f32 %v4642, 1.442695
        %v5643 = vpow.pop %v5642
        %v5644 = vmul.f32 %v4643, 1.442695
        %v5645 = vpow.pop %v5644
        %v5646 = vmul.f32 %v4644, 1.442695
        %v5647 = vpow.pop %v5646
        %v5648 = vmul.f32 %v4645, 1.442695
        %v5649 = vpow.pop %v5648
        %v5650 = vmul.f32 %v4646, 1.442695
        %v5651 = vpow.pop %v5650
        %v5652 = vmul.f32 %v4647, 1.442695
        %v5653 = vpow.pop %v5652
        %v5654 = vmul.f32 %v4648, 1.442695
        %v5655 = vpow.pop %v5654
        %v5656 = vmul.f32 %v4649, 1.442695
        %v5657 = vpow.pop %v5656
        %v5658 = vmul.f32 %v4650, 1.442695
        %v5659 = vpow.pop %v5658
        %v5660 = vmul.f32 %v4651, 1.442695
        %v5661 = vpow.pop %v5660
        %v5662 = vmul.f32 %v4652, 1.442695
        %v5663 = vpow.pop %v5662
        %v5664 = vmul.f32 %v4653, 1.442695
        %v5665 = vpow.pop %v5664
        %v5666 = vmul.f32 %v4654, 1.442695
        %v5667 = vpow.pop %v5666
        %v5668 = vmul.f32 %v4655, 1.442695
        %v5669 = vpow.pop %v5668
        %v5670 = vmul.f32 %v4656, 1.442695
        %v5671 = vpow.pop %v5670
        %v5672 = vmul.f32 %v4657, 1.442695
        %v5673 = vpow.pop %v5672
        %v5674 = vmul.f32 %v4658, 1.442695
        %v5675 = vpow.pop %v5674
        %v5676 = vmul.f32 %v4659, 1.442695
        %v5677 = vpow.pop %v5676
        %v5678 = vmul.f32 %v4660, 1.442695
        %v5679 = vpow.pop %v5678
        %v5680 = vmul.f32 %v4661, 1.442695
        %v5681 = vpow.pop %v5680
        %v5682 = vmul.f32 %v4662, 1.442695
        %v5683 = vpow.pop %v5682
        %v5684 = vmul.f32 %v4663, 1.442695
        %v5685 = vpow.pop %v5684
        %v5686 = vmul.f32 %v4664, 1.442695
        %v5687 = vpow.pop %v5686
        %v5688 = vmul.f32 %v4665, 1.442695
        %v5689 = vpow.pop %v5688
        %s5690 = sadd.s32 %s286, 1024
        %p5691 = scmp.lt.s32.totalorder %s285, %s5690
        %s5692 = sadd.s32 %s285, 512
        %p5693 = scmp.lt.s32.totalorder %s286, %s5692
        %p5694 = pnand %p5691, %p5693
        %p5695 = pneg %p5694
        // Predicated region
        $region37: #{gp_train_forward.1} parent=35 // pred_check
          _
        $region38: #{gp_train_forward.1} parent=35 // pred_check_branch
          %5697 = sbr.rel (%p5694) target = $region40
        $region39: #{gp_train_forward.1} parent=35 // pred_region
          %v5698 = vlaneseq
          %v5699 = vand.u32 %v5698, 127
          %v5700 = vadd.s32 %v5699, 128
          %v5701 = vadd.s32 %v5699, 256
          %v5702 = vadd.s32 %v5699, 384
          %v5703 = vadd.s32 %v5699, 512
          %v5704 = vadd.s32 %v5699, 640
          %v5705 = vadd.s32 %v5699, 768
          %v5706 = vadd.s32 %v5699, 896
          %v5707 = vlaneseq
          %v5708 = vshrl.u32 %v5707, 7
          %v5709 = vadd.s32 %v5708, 8
          %v5710 = vadd.s32 %v5708, 16
          %v5711 = vadd.s32 %v5708, 24
          %v5712 = vadd.s32 %v5708, 32
          %v5713 = vadd.s32 %v5708, 40
          %v5714 = vadd.s32 %v5708, 48
          %v5715 = vadd.s32 %v5708, 56
          %v5716 = vadd.s32 %v5708, 64
          %v5717 = vadd.s32 %v5708, 72
          %v5718 = vadd.s32 %v5708, 80
          %v5719 = vadd.s32 %v5708, 88
          %v5720 = vadd.s32 %v5708, 96
          %v5721 = vadd.s32 %v5708, 104
          %v5722 = vadd.s32 %v5708, 112
          %v5723 = vadd.s32 %v5708, 120
          %v5724 = vadd.s32 %v5708, 128
          %v5725 = vadd.s32 %v5708, 136
          %v5726 = vadd.s32 %v5708, 144
          %v5727 = vadd.s32 %v5708, 152
          %v5728 = vadd.s32 %v5708, 160
          %v5729 = vadd.s32 %v5708, 168
          %v5730 = vadd.s32 %v5708, 176
          %v5731 = vadd.s32 %v5708, 184
          %v5732 = vadd.s32 %v5708, 192
          %v5733 = vadd.s32 %v5708, 200
          %v5734 = vadd.s32 %v5708, 208
          %v5735 = vadd.s32 %v5708, 216
          %v5736 = vadd.s32 %v5708, 224
          %v5737 = vadd.s32 %v5708, 232
          %v5738 = vadd.s32 %v5708, 240
          %v5739 = vadd.s32 %v5708, 248
          %v5740 = vadd.s32 %v5708, 256
          %v5741 = vadd.s32 %v5708, 264
          %v5742 = vadd.s32 %v5708, 272
          %v5743 = vadd.s32 %v5708, 280
          %v5744 = vadd.s32 %v5708, 288
          %v5745 = vadd.s32 %v5708, 296
          %v5746 = vadd.s32 %v5708, 304
          %v5747 = vadd.s32 %v5708, 312
          %v5748 = vadd.s32 %v5708, 320
          %v5749 = vadd.s32 %v5708, 328
          %v5750 = vadd.s32 %v5708, 336
          %v5751 = vadd.s32 %v5708, 344
          %v5752 = vadd.s32 %v5708, 352
          %v5753 = vadd.s32 %v5708, 360
          %v5754 = vadd.s32 %v5708, 368
          %v5755 = vadd.s32 %v5708, 376
          %v5756 = vadd.s32 %v5708, 384
          %v5757 = vadd.s32 %v5708, 392
          %v5758 = vadd.s32 %v5708, 400
          %v5759 = vadd.s32 %v5708, 408
          %v5760 = vadd.s32 %v5708, 416
          %v5761 = vadd.s32 %v5708, 424
          %v5762 = vadd.s32 %v5708, 432
          %v5763 = vadd.s32 %v5708, 440
          %v5764 = vadd.s32 %v5708, 448
          %v5765 = vadd.s32 %v5708, 456
          %v5766 = vadd.s32 %v5708, 464
          %v5767 = vadd.s32 %v5708, 472
          %v5768 = vadd.s32 %v5708, 480
          %v5769 = vadd.s32 %v5708, 488
          %v5770 = vadd.s32 %v5708, 496
          %v5771 = vadd.s32 %v5708, 504
          %s5772 = ssub.s32 %s285, %s286
          %v5773 = vstv %s5772
          %v5774 = vadd.s32 %v5708, %v5773
          %v5775 = vadd.s32 %v5709, %v5773
          %v5776 = vadd.s32 %v5710, %v5773
          %v5777 = vadd.s32 %v5711, %v5773
          %v5778 = vadd.s32 %v5712, %v5773
          %v5779 = vadd.s32 %v5713, %v5773
          %v5780 = vadd.s32 %v5714, %v5773
          %v5781 = vadd.s32 %v5715, %v5773
          %v5782 = vadd.s32 %v5716, %v5773
          %v5783 = vadd.s32 %v5717, %v5773
          %v5784 = vadd.s32 %v5718, %v5773
          %v5785 = vadd.s32 %v5719, %v5773
          %v5786 = vadd.s32 %v5720, %v5773
          %v5787 = vadd.s32 %v5721, %v5773
          %v5788 = vadd.s32 %v5722, %v5773
          %v5789 = vadd.s32 %v5723, %v5773
          %v5790 = vadd.s32 %v5724, %v5773
          %v5791 = vadd.s32 %v5725, %v5773
          %v5792 = vadd.s32 %v5726, %v5773
          %v5793 = vadd.s32 %v5727, %v5773
          %v5794 = vadd.s32 %v5728, %v5773
          %v5795 = vadd.s32 %v5729, %v5773
          %v5796 = vadd.s32 %v5730, %v5773
          %v5797 = vadd.s32 %v5731, %v5773
          %v5798 = vadd.s32 %v5732, %v5773
          %v5799 = vadd.s32 %v5733, %v5773
          %v5800 = vadd.s32 %v5734, %v5773
          %v5801 = vadd.s32 %v5735, %v5773
          %v5802 = vadd.s32 %v5736, %v5773
          %v5803 = vadd.s32 %v5737, %v5773
          %v5804 = vadd.s32 %v5738, %v5773
          %v5805 = vadd.s32 %v5739, %v5773
          %v5806 = vadd.s32 %v5740, %v5773
          %v5807 = vadd.s32 %v5741, %v5773
          %v5808 = vadd.s32 %v5742, %v5773
          %v5809 = vadd.s32 %v5743, %v5773
          %v5810 = vadd.s32 %v5744, %v5773
          %v5811 = vadd.s32 %v5745, %v5773
          %v5812 = vadd.s32 %v5746, %v5773
          %v5813 = vadd.s32 %v5747, %v5773
          %v5814 = vadd.s32 %v5748, %v5773
          %v5815 = vadd.s32 %v5749, %v5773
          %v5816 = vadd.s32 %v5750, %v5773
          %v5817 = vadd.s32 %v5751, %v5773
          %v5818 = vadd.s32 %v5752, %v5773
          %v5819 = vadd.s32 %v5753, %v5773
          %v5820 = vadd.s32 %v5754, %v5773
          %v5821 = vadd.s32 %v5755, %v5773
          %v5822 = vadd.s32 %v5756, %v5773
          %v5823 = vadd.s32 %v5757, %v5773
          %v5824 = vadd.s32 %v5758, %v5773
          %v5825 = vadd.s32 %v5759, %v5773
          %v5826 = vadd.s32 %v5760, %v5773
          %v5827 = vadd.s32 %v5761, %v5773
          %v5828 = vadd.s32 %v5762, %v5773
          %v5829 = vadd.s32 %v5763, %v5773
          %v5830 = vadd.s32 %v5764, %v5773
          %v5831 = vadd.s32 %v5765, %v5773
          %v5832 = vadd.s32 %v5766, %v5773
          %v5833 = vadd.s32 %v5767, %v5773
          %v5834 = vadd.s32 %v5768, %v5773
          %v5835 = vadd.s32 %v5769, %v5773
          %v5836 = vadd.s32 %v5770, %v5773
          %v5837 = vadd.s32 %v5771, %v5773
          %vm5838 = vcmp.eq.s32.totalorder %v5699, %v5774
          %vm5839 = vcmp.eq.s32.totalorder %v5700, %v5774
          %vm5840 = vcmp.eq.s32.totalorder %v5701, %v5774
          %vm5841 = vcmp.eq.s32.totalorder %v5702, %v5774
          %vm5842 = vcmp.eq.s32.totalorder %v5703, %v5774
          %vm5843 = vcmp.eq.s32.totalorder %v5704, %v5774
          %vm5844 = vcmp.eq.s32.totalorder %v5705, %v5774
          %vm5845 = vcmp.eq.s32.totalorder %v5706, %v5774
          %vm5846 = vcmp.eq.s32.totalorder %v5699, %v5775
          %vm5847 = vcmp.eq.s32.totalorder %v5700, %v5775
          %vm5848 = vcmp.eq.s32.totalorder %v5701, %v5775
          %vm5849 = vcmp.eq.s32.totalorder %v5702, %v5775
          %vm5850 = vcmp.eq.s32.totalorder %v5703, %v5775
          %vm5851 = vcmp.eq.s32.totalorder %v5704, %v5775
          %vm5852 = vcmp.eq.s32.totalorder %v5705, %v5775
          %vm5853 = vcmp.eq.s32.totalorder %v5706, %v5775
          %vm5854 = vcmp.eq.s32.totalorder %v5699, %v5776
          %vm5855 = vcmp.eq.s32.totalorder %v5700, %v5776
          %vm5856 = vcmp.eq.s32.totalorder %v5701, %v5776
          %vm5857 = vcmp.eq.s32.totalorder %v5702, %v5776
          %vm5858 = vcmp.eq.s32.totalorder %v5703, %v5776
          %vm5859 = vcmp.eq.s32.totalorder %v5704, %v5776
          %vm5860 = vcmp.eq.s32.totalorder %v5705, %v5776
          %vm5861 = vcmp.eq.s32.totalorder %v5706, %v5776
          %vm5862 = vcmp.eq.s32.totalorder %v5699, %v5777
          %vm5863 = vcmp.eq.s32.totalorder %v5700, %v5777
          %vm5864 = vcmp.eq.s32.totalorder %v5701, %v5777
          %vm5865 = vcmp.eq.s32.totalorder %v5702, %v5777
          %vm5866 = vcmp.eq.s32.totalorder %v5703, %v5777
          %vm5867 = vcmp.eq.s32.totalorder %v5704, %v5777
          %vm5868 = vcmp.eq.s32.totalorder %v5705, %v5777
          %vm5869 = vcmp.eq.s32.totalorder %v5706, %v5777
          %vm5870 = vcmp.eq.s32.totalorder %v5699, %v5778
          %vm5871 = vcmp.eq.s32.totalorder %v5700, %v5778
          %vm5872 = vcmp.eq.s32.totalorder %v5701, %v5778
          %vm5873 = vcmp.eq.s32.totalorder %v5702, %v5778
          %vm5874 = vcmp.eq.s32.totalorder %v5703, %v5778
          %vm5875 = vcmp.eq.s32.totalorder %v5704, %v5778
          %vm5876 = vcmp.eq.s32.totalorder %v5705, %v5778
          %vm5877 = vcmp.eq.s32.totalorder %v5706, %v5778
          %vm5878 = vcmp.eq.s32.totalorder %v5699, %v5779
          %vm5879 = vcmp.eq.s32.totalorder %v5700, %v5779
          %vm5880 = vcmp.eq.s32.totalorder %v5701, %v5779
          %vm5881 = vcmp.eq.s32.totalorder %v5702, %v5779
          %vm5882 = vcmp.eq.s32.totalorder %v5703, %v5779
          %vm5883 = vcmp.eq.s32.totalorder %v5704, %v5779
          %vm5884 = vcmp.eq.s32.totalorder %v5705, %v5779
          %vm5885 = vcmp.eq.s32.totalorder %v5706, %v5779
          %vm5886 = vcmp.eq.s32.totalorder %v5699, %v5780
          %vm5887 = vcmp.eq.s32.totalorder %v5700, %v5780
          %vm5888 = vcmp.eq.s32.totalorder %v5701, %v5780
          %vm5889 = vcmp.eq.s32.totalorder %v5702, %v5780
          %vm5890 = vcmp.eq.s32.totalorder %v5703, %v5780
          %vm5891 = vcmp.eq.s32.totalorder %v5704, %v5780
          %vm5892 = vcmp.eq.s32.totalorder %v5705, %v5780
          %vm5893 = vcmp.eq.s32.totalorder %v5706, %v5780
          %vm5894 = vcmp.eq.s32.totalorder %v5699, %v5781
          %vm5895 = vcmp.eq.s32.totalorder %v5700, %v5781
          %vm5896 = vcmp.eq.s32.totalorder %v5701, %v5781
          %vm5897 = vcmp.eq.s32.totalorder %v5702, %v5781
          %vm5898 = vcmp.eq.s32.totalorder %v5703, %v5781
          %vm5899 = vcmp.eq.s32.totalorder %v5704, %v5781
          %vm5900 = vcmp.eq.s32.totalorder %v5705, %v5781
          %vm5901 = vcmp.eq.s32.totalorder %v5706, %v5781
          %vm5902 = vcmp.eq.s32.totalorder %v5699, %v5782
          %vm5903 = vcmp.eq.s32.totalorder %v5700, %v5782
          %vm5904 = vcmp.eq.s32.totalorder %v5701, %v5782
          %vm5905 = vcmp.eq.s32.totalorder %v5702, %v5782
          %vm5906 = vcmp.eq.s32.totalorder %v5703, %v5782
          %vm5907 = vcmp.eq.s32.totalorder %v5704, %v5782
          %vm5908 = vcmp.eq.s32.totalorder %v5705, %v5782
          %vm5909 = vcmp.eq.s32.totalorder %v5706, %v5782
          %vm5910 = vcmp.eq.s32.totalorder %v5699, %v5783
          %vm5911 = vcmp.eq.s32.totalorder %v5700, %v5783
          %vm5912 = vcmp.eq.s32.totalorder %v5701, %v5783
          %vm5913 = vcmp.eq.s32.totalorder %v5702, %v5783
          %vm5914 = vcmp.eq.s32.totalorder %v5703, %v5783
          %vm5915 = vcmp.eq.s32.totalorder %v5704, %v5783
          %vm5916 = vcmp.eq.s32.totalorder %v5705, %v5783
          %vm5917 = vcmp.eq.s32.totalorder %v5706, %v5783
          %vm5918 = vcmp.eq.s32.totalorder %v5699, %v5784
          %vm5919 = vcmp.eq.s32.totalorder %v5700, %v5784
          %vm5920 = vcmp.eq.s32.totalorder %v5701, %v5784
          %vm5921 = vcmp.eq.s32.totalorder %v5702, %v5784
          %vm5922 = vcmp.eq.s32.totalorder %v5703, %v5784
          %vm5923 = vcmp.eq.s32.totalorder %v5704, %v5784
          %vm5924 = vcmp.eq.s32.totalorder %v5705, %v5784
          %vm5925 = vcmp.eq.s32.totalorder %v5706, %v5784
          %vm5926 = vcmp.eq.s32.totalorder %v5699, %v5785
          %vm5927 = vcmp.eq.s32.totalorder %v5700, %v5785
          %vm5928 = vcmp.eq.s32.totalorder %v5701, %v5785
          %vm5929 = vcmp.eq.s32.totalorder %v5702, %v5785
          %vm5930 = vcmp.eq.s32.totalorder %v5703, %v5785
          %vm5931 = vcmp.eq.s32.totalorder %v5704, %v5785
          %vm5932 = vcmp.eq.s32.totalorder %v5705, %v5785
          %vm5933 = vcmp.eq.s32.totalorder %v5706, %v5785
          %vm5934 = vcmp.eq.s32.totalorder %v5699, %v5786
          %vm5935 = vcmp.eq.s32.totalorder %v5700, %v5786
          %vm5936 = vcmp.eq.s32.totalorder %v5701, %v5786
          %vm5937 = vcmp.eq.s32.totalorder %v5702, %v5786
          %vm5938 = vcmp.eq.s32.totalorder %v5703, %v5786
          %vm5939 = vcmp.eq.s32.totalorder %v5704, %v5786
          %vm5940 = vcmp.eq.s32.totalorder %v5705, %v5786
          %vm5941 = vcmp.eq.s32.totalorder %v5706, %v5786
          %vm5942 = vcmp.eq.s32.totalorder %v5699, %v5787
          %vm5943 = vcmp.eq.s32.totalorder %v5700, %v5787
          %vm5944 = vcmp.eq.s32.totalorder %v5701, %v5787
          %vm5945 = vcmp.eq.s32.totalorder %v5702, %v5787
          %vm5946 = vcmp.eq.s32.totalorder %v5703, %v5787
          %vm5947 = vcmp.eq.s32.totalorder %v5704, %v5787
          %vm5948 = vcmp.eq.s32.totalorder %v5705, %v5787
          %vm5949 = vcmp.eq.s32.totalorder %v5706, %v5787
          %vm5950 = vcmp.eq.s32.totalorder %v5699, %v5788
          %vm5951 = vcmp.eq.s32.totalorder %v5700, %v5788
          %vm5952 = vcmp.eq.s32.totalorder %v5701, %v5788
          %vm5953 = vcmp.eq.s32.totalorder %v5702, %v5788
          %vm5954 = vcmp.eq.s32.totalorder %v5703, %v5788
          %vm5955 = vcmp.eq.s32.totalorder %v5704, %v5788
          %vm5956 = vcmp.eq.s32.totalorder %v5705, %v5788
          %vm5957 = vcmp.eq.s32.totalorder %v5706, %v5788
          %vm5958 = vcmp.eq.s32.totalorder %v5699, %v5789
          %vm5959 = vcmp.eq.s32.totalorder %v5700, %v5789
          %vm5960 = vcmp.eq.s32.totalorder %v5701, %v5789
          %vm5961 = vcmp.eq.s32.totalorder %v5702, %v5789
          %vm5962 = vcmp.eq.s32.totalorder %v5703, %v5789
          %vm5963 = vcmp.eq.s32.totalorder %v5704, %v5789
          %vm5964 = vcmp.eq.s32.totalorder %v5705, %v5789
          %vm5965 = vcmp.eq.s32.totalorder %v5706, %v5789
          %vm5966 = vcmp.eq.s32.totalorder %v5699, %v5790
          %vm5967 = vcmp.eq.s32.totalorder %v5700, %v5790
          %vm5968 = vcmp.eq.s32.totalorder %v5701, %v5790
          %vm5969 = vcmp.eq.s32.totalorder %v5702, %v5790
          %vm5970 = vcmp.eq.s32.totalorder %v5703, %v5790
          %vm5971 = vcmp.eq.s32.totalorder %v5704, %v5790
          %vm5972 = vcmp.eq.s32.totalorder %v5705, %v5790
          %vm5973 = vcmp.eq.s32.totalorder %v5706, %v5790
          %vm5974 = vcmp.eq.s32.totalorder %v5699, %v5791
          %vm5975 = vcmp.eq.s32.totalorder %v5700, %v5791
          %vm5976 = vcmp.eq.s32.totalorder %v5701, %v5791
          %vm5977 = vcmp.eq.s32.totalorder %v5702, %v5791
          %vm5978 = vcmp.eq.s32.totalorder %v5703, %v5791
          %vm5979 = vcmp.eq.s32.totalorder %v5704, %v5791
          %vm5980 = vcmp.eq.s32.totalorder %v5705, %v5791
          %vm5981 = vcmp.eq.s32.totalorder %v5706, %v5791
          %vm5982 = vcmp.eq.s32.totalorder %v5699, %v5792
          %vm5983 = vcmp.eq.s32.totalorder %v5700, %v5792
          %vm5984 = vcmp.eq.s32.totalorder %v5701, %v5792
          %vm5985 = vcmp.eq.s32.totalorder %v5702, %v5792
          %vm5986 = vcmp.eq.s32.totalorder %v5703, %v5792
          %vm5987 = vcmp.eq.s32.totalorder %v5704, %v5792
          %vm5988 = vcmp.eq.s32.totalorder %v5705, %v5792
          %vm5989 = vcmp.eq.s32.totalorder %v5706, %v5792
          %vm5990 = vcmp.eq.s32.totalorder %v5699, %v5793
          %vm5991 = vcmp.eq.s32.totalorder %v5700, %v5793
          %vm5992 = vcmp.eq.s32.totalorder %v5701, %v5793
          %vm5993 = vcmp.eq.s32.totalorder %v5702, %v5793
          %vm5994 = vcmp.eq.s32.totalorder %v5703, %v5793
          %vm5995 = vcmp.eq.s32.totalorder %v5704, %v5793
          %vm5996 = vcmp.eq.s32.totalorder %v5705, %v5793
          %vm5997 = vcmp.eq.s32.totalorder %v5706, %v5793
          %vm5998 = vcmp.eq.s32.totalorder %v5699, %v5794
          %vm5999 = vcmp.eq.s32.totalorder %v5700, %v5794
          %vm6000 = vcmp.eq.s32.totalorder %v5701, %v5794
          %vm6001 = vcmp.eq.s32.totalorder %v5702, %v5794
          %vm6002 = vcmp.eq.s32.totalorder %v5703, %v5794
          %vm6003 = vcmp.eq.s32.totalorder %v5704, %v5794
          %vm6004 = vcmp.eq.s32.totalorder %v5705, %v5794
          %vm6005 = vcmp.eq.s32.totalorder %v5706, %v5794
          %vm6006 = vcmp.eq.s32.totalorder %v5699, %v5795
          %vm6007 = vcmp.eq.s32.totalorder %v5700, %v5795
          %vm6008 = vcmp.eq.s32.totalorder %v5701, %v5795
          %vm6009 = vcmp.eq.s32.totalorder %v5702, %v5795
          %vm6010 = vcmp.eq.s32.totalorder %v5703, %v5795
          %vm6011 = vcmp.eq.s32.totalorder %v5704, %v5795
          %vm6012 = vcmp.eq.s32.totalorder %v5705, %v5795
          %vm6013 = vcmp.eq.s32.totalorder %v5706, %v5795
          %vm6014 = vcmp.eq.s32.totalorder %v5699, %v5796
          %vm6015 = vcmp.eq.s32.totalorder %v5700, %v5796
          %vm6016 = vcmp.eq.s32.totalorder %v5701, %v5796
          %vm6017 = vcmp.eq.s32.totalorder %v5702, %v5796
          %vm6018 = vcmp.eq.s32.totalorder %v5703, %v5796
          %vm6019 = vcmp.eq.s32.totalorder %v5704, %v5796
          %vm6020 = vcmp.eq.s32.totalorder %v5705, %v5796
          %vm6021 = vcmp.eq.s32.totalorder %v5706, %v5796
          %vm6022 = vcmp.eq.s32.totalorder %v5699, %v5797
          %vm6023 = vcmp.eq.s32.totalorder %v5700, %v5797
          %vm6024 = vcmp.eq.s32.totalorder %v5701, %v5797
          %vm6025 = vcmp.eq.s32.totalorder %v5702, %v5797
          %vm6026 = vcmp.eq.s32.totalorder %v5703, %v5797
          %vm6027 = vcmp.eq.s32.totalorder %v5704, %v5797
          %vm6028 = vcmp.eq.s32.totalorder %v5705, %v5797
          %vm6029 = vcmp.eq.s32.totalorder %v5706, %v5797
          %vm6030 = vcmp.eq.s32.totalorder %v5699, %v5798
          %vm6031 = vcmp.eq.s32.totalorder %v5700, %v5798
          %vm6032 = vcmp.eq.s32.totalorder %v5701, %v5798
          %vm6033 = vcmp.eq.s32.totalorder %v5702, %v5798
          %vm6034 = vcmp.eq.s32.totalorder %v5703, %v5798
          %vm6035 = vcmp.eq.s32.totalorder %v5704, %v5798
          %vm6036 = vcmp.eq.s32.totalorder %v5705, %v5798
          %vm6037 = vcmp.eq.s32.totalorder %v5706, %v5798
          %vm6038 = vcmp.eq.s32.totalorder %v5699, %v5799
          %vm6039 = vcmp.eq.s32.totalorder %v5700, %v5799
          %vm6040 = vcmp.eq.s32.totalorder %v5701, %v5799
          %vm6041 = vcmp.eq.s32.totalorder %v5702, %v5799
          %vm6042 = vcmp.eq.s32.totalorder %v5703, %v5799
          %vm6043 = vcmp.eq.s32.totalorder %v5704, %v5799
          %vm6044 = vcmp.eq.s32.totalorder %v5705, %v5799
          %vm6045 = vcmp.eq.s32.totalorder %v5706, %v5799
          %vm6046 = vcmp.eq.s32.totalorder %v5699, %v5800
          %vm6047 = vcmp.eq.s32.totalorder %v5700, %v5800
          %vm6048 = vcmp.eq.s32.totalorder %v5701, %v5800
          %vm6049 = vcmp.eq.s32.totalorder %v5702, %v5800
          %vm6050 = vcmp.eq.s32.totalorder %v5703, %v5800
          %vm6051 = vcmp.eq.s32.totalorder %v5704, %v5800
          %vm6052 = vcmp.eq.s32.totalorder %v5705, %v5800
          %vm6053 = vcmp.eq.s32.totalorder %v5706, %v5800
          %vm6054 = vcmp.eq.s32.totalorder %v5699, %v5801
          %vm6055 = vcmp.eq.s32.totalorder %v5700, %v5801
          %vm6056 = vcmp.eq.s32.totalorder %v5701, %v5801
          %vm6057 = vcmp.eq.s32.totalorder %v5702, %v5801
          %vm6058 = vcmp.eq.s32.totalorder %v5703, %v5801
          %vm6059 = vcmp.eq.s32.totalorder %v5704, %v5801
          %vm6060 = vcmp.eq.s32.totalorder %v5705, %v5801
          %vm6061 = vcmp.eq.s32.totalorder %v5706, %v5801
          %vm6062 = vcmp.eq.s32.totalorder %v5699, %v5802
          %vm6063 = vcmp.eq.s32.totalorder %v5700, %v5802
          %vm6064 = vcmp.eq.s32.totalorder %v5701, %v5802
          %vm6065 = vcmp.eq.s32.totalorder %v5702, %v5802
          %vm6066 = vcmp.eq.s32.totalorder %v5703, %v5802
          %vm6067 = vcmp.eq.s32.totalorder %v5704, %v5802
          %vm6068 = vcmp.eq.s32.totalorder %v5705, %v5802
          %vm6069 = vcmp.eq.s32.totalorder %v5706, %v5802
          %vm6070 = vcmp.eq.s32.totalorder %v5699, %v5803
          %vm6071 = vcmp.eq.s32.totalorder %v5700, %v5803
          %vm6072 = vcmp.eq.s32.totalorder %v5701, %v5803
          %vm6073 = vcmp.eq.s32.totalorder %v5702, %v5803
          %vm6074 = vcmp.eq.s32.totalorder %v5703, %v5803
          %vm6075 = vcmp.eq.s32.totalorder %v5704, %v5803
          %vm6076 = vcmp.eq.s32.totalorder %v5705, %v5803
          %vm6077 = vcmp.eq.s32.totalorder %v5706, %v5803
          %vm6078 = vcmp.eq.s32.totalorder %v5699, %v5804
          %vm6079 = vcmp.eq.s32.totalorder %v5700, %v5804
          %vm6080 = vcmp.eq.s32.totalorder %v5701, %v5804
          %vm6081 = vcmp.eq.s32.totalorder %v5702, %v5804
          %vm6082 = vcmp.eq.s32.totalorder %v5703, %v5804
          %vm6083 = vcmp.eq.s32.totalorder %v5704, %v5804
          %vm6084 = vcmp.eq.s32.totalorder %v5705, %v5804
          %vm6085 = vcmp.eq.s32.totalorder %v5706, %v5804
          %vm6086 = vcmp.eq.s32.totalorder %v5699, %v5805
          %vm6087 = vcmp.eq.s32.totalorder %v5700, %v5805
          %vm6088 = vcmp.eq.s32.totalorder %v5701, %v5805
          %vm6089 = vcmp.eq.s32.totalorder %v5702, %v5805
          %vm6090 = vcmp.eq.s32.totalorder %v5703, %v5805
          %vm6091 = vcmp.eq.s32.totalorder %v5704, %v5805
          %vm6092 = vcmp.eq.s32.totalorder %v5705, %v5805
          %vm6093 = vcmp.eq.s32.totalorder %v5706, %v5805
          %vm6094 = vcmp.eq.s32.totalorder %v5699, %v5806
          %vm6095 = vcmp.eq.s32.totalorder %v5700, %v5806
          %vm6096 = vcmp.eq.s32.totalorder %v5701, %v5806
          %vm6097 = vcmp.eq.s32.totalorder %v5702, %v5806
          %vm6098 = vcmp.eq.s32.totalorder %v5703, %v5806
          %vm6099 = vcmp.eq.s32.totalorder %v5704, %v5806
          %vm6100 = vcmp.eq.s32.totalorder %v5705, %v5806
          %vm6101 = vcmp.eq.s32.totalorder %v5706, %v5806
          %vm6102 = vcmp.eq.s32.totalorder %v5699, %v5807
          %vm6103 = vcmp.eq.s32.totalorder %v5700, %v5807
          %vm6104 = vcmp.eq.s32.totalorder %v5701, %v5807
          %vm6105 = vcmp.eq.s32.totalorder %v5702, %v5807
          %vm6106 = vcmp.eq.s32.totalorder %v5703, %v5807
          %vm6107 = vcmp.eq.s32.totalorder %v5704, %v5807
          %vm6108 = vcmp.eq.s32.totalorder %v5705, %v5807
          %vm6109 = vcmp.eq.s32.totalorder %v5706, %v5807
          %vm6110 = vcmp.eq.s32.totalorder %v5699, %v5808
          %vm6111 = vcmp.eq.s32.totalorder %v5700, %v5808
          %vm6112 = vcmp.eq.s32.totalorder %v5701, %v5808
          %vm6113 = vcmp.eq.s32.totalorder %v5702, %v5808
          %vm6114 = vcmp.eq.s32.totalorder %v5703, %v5808
          %vm6115 = vcmp.eq.s32.totalorder %v5704, %v5808
          %vm6116 = vcmp.eq.s32.totalorder %v5705, %v5808
          %vm6117 = vcmp.eq.s32.totalorder %v5706, %v5808
          %vm6118 = vcmp.eq.s32.totalorder %v5699, %v5809
          %vm6119 = vcmp.eq.s32.totalorder %v5700, %v5809
          %vm6120 = vcmp.eq.s32.totalorder %v5701, %v5809
          %vm6121 = vcmp.eq.s32.totalorder %v5702, %v5809
          %vm6122 = vcmp.eq.s32.totalorder %v5703, %v5809
          %vm6123 = vcmp.eq.s32.totalorder %v5704, %v5809
          %vm6124 = vcmp.eq.s32.totalorder %v5705, %v5809
          %vm6125 = vcmp.eq.s32.totalorder %v5706, %v5809
          %vm6126 = vcmp.eq.s32.totalorder %v5699, %v5810
          %vm6127 = vcmp.eq.s32.totalorder %v5700, %v5810
          %vm6128 = vcmp.eq.s32.totalorder %v5701, %v5810
          %vm6129 = vcmp.eq.s32.totalorder %v5702, %v5810
          %vm6130 = vcmp.eq.s32.totalorder %v5703, %v5810
          %vm6131 = vcmp.eq.s32.totalorder %v5704, %v5810
          %vm6132 = vcmp.eq.s32.totalorder %v5705, %v5810
          %vm6133 = vcmp.eq.s32.totalorder %v5706, %v5810
          %vm6134 = vcmp.eq.s32.totalorder %v5699, %v5811
          %vm6135 = vcmp.eq.s32.totalorder %v5700, %v5811
          %vm6136 = vcmp.eq.s32.totalorder %v5701, %v5811
          %vm6137 = vcmp.eq.s32.totalorder %v5702, %v5811
          %vm6138 = vcmp.eq.s32.totalorder %v5703, %v5811
          %vm6139 = vcmp.eq.s32.totalorder %v5704, %v5811
          %vm6140 = vcmp.eq.s32.totalorder %v5705, %v5811
          %vm6141 = vcmp.eq.s32.totalorder %v5706, %v5811
          %vm6142 = vcmp.eq.s32.totalorder %v5699, %v5812
          %vm6143 = vcmp.eq.s32.totalorder %v5700, %v5812
          %vm6144 = vcmp.eq.s32.totalorder %v5701, %v5812
          %vm6145 = vcmp.eq.s32.totalorder %v5702, %v5812
          %vm6146 = vcmp.eq.s32.totalorder %v5703, %v5812
          %vm6147 = vcmp.eq.s32.totalorder %v5704, %v5812
          %vm6148 = vcmp.eq.s32.totalorder %v5705, %v5812
          %vm6149 = vcmp.eq.s32.totalorder %v5706, %v5812
          %vm6150 = vcmp.eq.s32.totalorder %v5699, %v5813
          %vm6151 = vcmp.eq.s32.totalorder %v5700, %v5813
          %vm6152 = vcmp.eq.s32.totalorder %v5701, %v5813
          %vm6153 = vcmp.eq.s32.totalorder %v5702, %v5813
          %vm6154 = vcmp.eq.s32.totalorder %v5703, %v5813
          %vm6155 = vcmp.eq.s32.totalorder %v5704, %v5813
          %vm6156 = vcmp.eq.s32.totalorder %v5705, %v5813
          %vm6157 = vcmp.eq.s32.totalorder %v5706, %v5813
          %vm6158 = vcmp.eq.s32.totalorder %v5699, %v5814
          %vm6159 = vcmp.eq.s32.totalorder %v5700, %v5814
          %vm6160 = vcmp.eq.s32.totalorder %v5701, %v5814
          %vm6161 = vcmp.eq.s32.totalorder %v5702, %v5814
          %vm6162 = vcmp.eq.s32.totalorder %v5703, %v5814
          %vm6163 = vcmp.eq.s32.totalorder %v5704, %v5814
          %vm6164 = vcmp.eq.s32.totalorder %v5705, %v5814
          %vm6165 = vcmp.eq.s32.totalorder %v5706, %v5814
          %vm6166 = vcmp.eq.s32.totalorder %v5699, %v5815
          %vm6167 = vcmp.eq.s32.totalorder %v5700, %v5815
          %vm6168 = vcmp.eq.s32.totalorder %v5701, %v5815
          %vm6169 = vcmp.eq.s32.totalorder %v5702, %v5815
          %vm6170 = vcmp.eq.s32.totalorder %v5703, %v5815
          %vm6171 = vcmp.eq.s32.totalorder %v5704, %v5815
          %vm6172 = vcmp.eq.s32.totalorder %v5705, %v5815
          %vm6173 = vcmp.eq.s32.totalorder %v5706, %v5815
          %vm6174 = vcmp.eq.s32.totalorder %v5699, %v5816
          %vm6175 = vcmp.eq.s32.totalorder %v5700, %v5816
          %vm6176 = vcmp.eq.s32.totalorder %v5701, %v5816
          %vm6177 = vcmp.eq.s32.totalorder %v5702, %v5816
          %vm6178 = vcmp.eq.s32.totalorder %v5703, %v5816
          %vm6179 = vcmp.eq.s32.totalorder %v5704, %v5816
          %vm6180 = vcmp.eq.s32.totalorder %v5705, %v5816
          %vm6181 = vcmp.eq.s32.totalorder %v5706, %v5816
          %vm6182 = vcmp.eq.s32.totalorder %v5699, %v5817
          %vm6183 = vcmp.eq.s32.totalorder %v5700, %v5817
          %vm6184 = vcmp.eq.s32.totalorder %v5701, %v5817
          %vm6185 = vcmp.eq.s32.totalorder %v5702, %v5817
          %vm6186 = vcmp.eq.s32.totalorder %v5703, %v5817
          %vm6187 = vcmp.eq.s32.totalorder %v5704, %v5817
          %vm6188 = vcmp.eq.s32.totalorder %v5705, %v5817
          %vm6189 = vcmp.eq.s32.totalorder %v5706, %v5817
          %vm6190 = vcmp.eq.s32.totalorder %v5699, %v5818
          %vm6191 = vcmp.eq.s32.totalorder %v5700, %v5818
          %vm6192 = vcmp.eq.s32.totalorder %v5701, %v5818
          %vm6193 = vcmp.eq.s32.totalorder %v5702, %v5818
          %vm6194 = vcmp.eq.s32.totalorder %v5703, %v5818
          %vm6195 = vcmp.eq.s32.totalorder %v5704, %v5818
          %vm6196 = vcmp.eq.s32.totalorder %v5705, %v5818
          %vm6197 = vcmp.eq.s32.totalorder %v5706, %v5818
          %vm6198 = vcmp.eq.s32.totalorder %v5699, %v5819
          %vm6199 = vcmp.eq.s32.totalorder %v5700, %v5819
          %vm6200 = vcmp.eq.s32.totalorder %v5701, %v5819
          %vm6201 = vcmp.eq.s32.totalorder %v5702, %v5819
          %vm6202 = vcmp.eq.s32.totalorder %v5703, %v5819
          %vm6203 = vcmp.eq.s32.totalorder %v5704, %v5819
          %vm6204 = vcmp.eq.s32.totalorder %v5705, %v5819
          %vm6205 = vcmp.eq.s32.totalorder %v5706, %v5819
          %vm6206 = vcmp.eq.s32.totalorder %v5699, %v5820
          %vm6207 = vcmp.eq.s32.totalorder %v5700, %v5820
          %vm6208 = vcmp.eq.s32.totalorder %v5701, %v5820
          %vm6209 = vcmp.eq.s32.totalorder %v5702, %v5820
          %vm6210 = vcmp.eq.s32.totalorder %v5703, %v5820
          %vm6211 = vcmp.eq.s32.totalorder %v5704, %v5820
          %vm6212 = vcmp.eq.s32.totalorder %v5705, %v5820
          %vm6213 = vcmp.eq.s32.totalorder %v5706, %v5820
          %vm6214 = vcmp.eq.s32.totalorder %v5699, %v5821
          %vm6215 = vcmp.eq.s32.totalorder %v5700, %v5821
          %vm6216 = vcmp.eq.s32.totalorder %v5701, %v5821
          %vm6217 = vcmp.eq.s32.totalorder %v5702, %v5821
          %vm6218 = vcmp.eq.s32.totalorder %v5703, %v5821
          %vm6219 = vcmp.eq.s32.totalorder %v5704, %v5821
          %vm6220 = vcmp.eq.s32.totalorder %v5705, %v5821
          %vm6221 = vcmp.eq.s32.totalorder %v5706, %v5821
          %vm6222 = vcmp.eq.s32.totalorder %v5699, %v5822
          %vm6223 = vcmp.eq.s32.totalorder %v5700, %v5822
          %vm6224 = vcmp.eq.s32.totalorder %v5701, %v5822
          %vm6225 = vcmp.eq.s32.totalorder %v5702, %v5822
          %vm6226 = vcmp.eq.s32.totalorder %v5703, %v5822
          %vm6227 = vcmp.eq.s32.totalorder %v5704, %v5822
          %vm6228 = vcmp.eq.s32.totalorder %v5705, %v5822
          %vm6229 = vcmp.eq.s32.totalorder %v5706, %v5822
          %vm6230 = vcmp.eq.s32.totalorder %v5699, %v5823
          %vm6231 = vcmp.eq.s32.totalorder %v5700, %v5823
          %vm6232 = vcmp.eq.s32.totalorder %v5701, %v5823
          %vm6233 = vcmp.eq.s32.totalorder %v5702, %v5823
          %vm6234 = vcmp.eq.s32.totalorder %v5703, %v5823
          %vm6235 = vcmp.eq.s32.totalorder %v5704, %v5823
          %vm6236 = vcmp.eq.s32.totalorder %v5705, %v5823
          %vm6237 = vcmp.eq.s32.totalorder %v5706, %v5823
          %vm6238 = vcmp.eq.s32.totalorder %v5699, %v5824
          %vm6239 = vcmp.eq.s32.totalorder %v5700, %v5824
          %vm6240 = vcmp.eq.s32.totalorder %v5701, %v5824
          %vm6241 = vcmp.eq.s32.totalorder %v5702, %v5824
          %vm6242 = vcmp.eq.s32.totalorder %v5703, %v5824
          %vm6243 = vcmp.eq.s32.totalorder %v5704, %v5824
          %vm6244 = vcmp.eq.s32.totalorder %v5705, %v5824
          %vm6245 = vcmp.eq.s32.totalorder %v5706, %v5824
          %vm6246 = vcmp.eq.s32.totalorder %v5699, %v5825
          %vm6247 = vcmp.eq.s32.totalorder %v5700, %v5825
          %vm6248 = vcmp.eq.s32.totalorder %v5701, %v5825
          %vm6249 = vcmp.eq.s32.totalorder %v5702, %v5825
          %vm6250 = vcmp.eq.s32.totalorder %v5703, %v5825
          %vm6251 = vcmp.eq.s32.totalorder %v5704, %v5825
          %vm6252 = vcmp.eq.s32.totalorder %v5705, %v5825
          %vm6253 = vcmp.eq.s32.totalorder %v5706, %v5825
          %vm6254 = vcmp.eq.s32.totalorder %v5699, %v5826
          %vm6255 = vcmp.eq.s32.totalorder %v5700, %v5826
          %vm6256 = vcmp.eq.s32.totalorder %v5701, %v5826
          %vm6257 = vcmp.eq.s32.totalorder %v5702, %v5826
          %vm6258 = vcmp.eq.s32.totalorder %v5703, %v5826
          %vm6259 = vcmp.eq.s32.totalorder %v5704, %v5826
          %vm6260 = vcmp.eq.s32.totalorder %v5705, %v5826
          %vm6261 = vcmp.eq.s32.totalorder %v5706, %v5826
          %vm6262 = vcmp.eq.s32.totalorder %v5699, %v5827
          %vm6263 = vcmp.eq.s32.totalorder %v5700, %v5827
          %vm6264 = vcmp.eq.s32.totalorder %v5701, %v5827
          %vm6265 = vcmp.eq.s32.totalorder %v5702, %v5827
          %vm6266 = vcmp.eq.s32.totalorder %v5703, %v5827
          %vm6267 = vcmp.eq.s32.totalorder %v5704, %v5827
          %vm6268 = vcmp.eq.s32.totalorder %v5705, %v5827
          %vm6269 = vcmp.eq.s32.totalorder %v5706, %v5827
          %vm6270 = vcmp.eq.s32.totalorder %v5699, %v5828
          %vm6271 = vcmp.eq.s32.totalorder %v5700, %v5828
          %vm6272 = vcmp.eq.s32.totalorder %v5701, %v5828
          %vm6273 = vcmp.eq.s32.totalorder %v5702, %v5828
          %vm6274 = vcmp.eq.s32.totalorder %v5703, %v5828
          %vm6275 = vcmp.eq.s32.totalorder %v5704, %v5828
          %vm6276 = vcmp.eq.s32.totalorder %v5705, %v5828
          %vm6277 = vcmp.eq.s32.totalorder %v5706, %v5828
          %vm6278 = vcmp.eq.s32.totalorder %v5699, %v5829
          %vm6279 = vcmp.eq.s32.totalorder %v5700, %v5829
          %vm6280 = vcmp.eq.s32.totalorder %v5701, %v5829
          %vm6281 = vcmp.eq.s32.totalorder %v5702, %v5829
          %vm6282 = vcmp.eq.s32.totalorder %v5703, %v5829
          %vm6283 = vcmp.eq.s32.totalorder %v5704, %v5829
          %vm6284 = vcmp.eq.s32.totalorder %v5705, %v5829
          %vm6285 = vcmp.eq.s32.totalorder %v5706, %v5829
          %vm6286 = vcmp.eq.s32.totalorder %v5699, %v5830
          %vm6287 = vcmp.eq.s32.totalorder %v5700, %v5830
          %vm6288 = vcmp.eq.s32.totalorder %v5701, %v5830
          %vm6289 = vcmp.eq.s32.totalorder %v5702, %v5830
          %vm6290 = vcmp.eq.s32.totalorder %v5703, %v5830
          %vm6291 = vcmp.eq.s32.totalorder %v5704, %v5830
          %vm6292 = vcmp.eq.s32.totalorder %v5705, %v5830
          %vm6293 = vcmp.eq.s32.totalorder %v5706, %v5830
          %vm6294 = vcmp.eq.s32.totalorder %v5699, %v5831
          %vm6295 = vcmp.eq.s32.totalorder %v5700, %v5831
          %vm6296 = vcmp.eq.s32.totalorder %v5701, %v5831
          %vm6297 = vcmp.eq.s32.totalorder %v5702, %v5831
          %vm6298 = vcmp.eq.s32.totalorder %v5703, %v5831
          %vm6299 = vcmp.eq.s32.totalorder %v5704, %v5831
          %vm6300 = vcmp.eq.s32.totalorder %v5705, %v5831
          %vm6301 = vcmp.eq.s32.totalorder %v5706, %v5831
          %vm6302 = vcmp.eq.s32.totalorder %v5699, %v5832
          %vm6303 = vcmp.eq.s32.totalorder %v5700, %v5832
          %vm6304 = vcmp.eq.s32.totalorder %v5701, %v5832
          %vm6305 = vcmp.eq.s32.totalorder %v5702, %v5832
          %vm6306 = vcmp.eq.s32.totalorder %v5703, %v5832
          %vm6307 = vcmp.eq.s32.totalorder %v5704, %v5832
          %vm6308 = vcmp.eq.s32.totalorder %v5705, %v5832
          %vm6309 = vcmp.eq.s32.totalorder %v5706, %v5832
          %vm6310 = vcmp.eq.s32.totalorder %v5699, %v5833
          %vm6311 = vcmp.eq.s32.totalorder %v5700, %v5833
          %vm6312 = vcmp.eq.s32.totalorder %v5701, %v5833
          %vm6313 = vcmp.eq.s32.totalorder %v5702, %v5833
          %vm6314 = vcmp.eq.s32.totalorder %v5703, %v5833
          %vm6315 = vcmp.eq.s32.totalorder %v5704, %v5833
          %vm6316 = vcmp.eq.s32.totalorder %v5705, %v5833
          %vm6317 = vcmp.eq.s32.totalorder %v5706, %v5833
          %vm6318 = vcmp.eq.s32.totalorder %v5699, %v5834
          %vm6319 = vcmp.eq.s32.totalorder %v5700, %v5834
          %vm6320 = vcmp.eq.s32.totalorder %v5701, %v5834
          %vm6321 = vcmp.eq.s32.totalorder %v5702, %v5834
          %vm6322 = vcmp.eq.s32.totalorder %v5703, %v5834
          %vm6323 = vcmp.eq.s32.totalorder %v5704, %v5834
          %vm6324 = vcmp.eq.s32.totalorder %v5705, %v5834
          %vm6325 = vcmp.eq.s32.totalorder %v5706, %v5834
          %vm6326 = vcmp.eq.s32.totalorder %v5699, %v5835
          %vm6327 = vcmp.eq.s32.totalorder %v5700, %v5835
          %vm6328 = vcmp.eq.s32.totalorder %v5701, %v5835
          %vm6329 = vcmp.eq.s32.totalorder %v5702, %v5835
          %vm6330 = vcmp.eq.s32.totalorder %v5703, %v5835
          %vm6331 = vcmp.eq.s32.totalorder %v5704, %v5835
          %vm6332 = vcmp.eq.s32.totalorder %v5705, %v5835
          %vm6333 = vcmp.eq.s32.totalorder %v5706, %v5835
          %vm6334 = vcmp.eq.s32.totalorder %v5699, %v5836
          %vm6335 = vcmp.eq.s32.totalorder %v5700, %v5836
          %vm6336 = vcmp.eq.s32.totalorder %v5701, %v5836
          %vm6337 = vcmp.eq.s32.totalorder %v5702, %v5836
          %vm6338 = vcmp.eq.s32.totalorder %v5703, %v5836
          %vm6339 = vcmp.eq.s32.totalorder %v5704, %v5836
          %vm6340 = vcmp.eq.s32.totalorder %v5705, %v5836
          %vm6341 = vcmp.eq.s32.totalorder %v5706, %v5836
          %vm6342 = vcmp.eq.s32.totalorder %v5699, %v5837
          %vm6343 = vcmp.eq.s32.totalorder %v5700, %v5837
          %vm6344 = vcmp.eq.s32.totalorder %v5701, %v5837
          %vm6345 = vcmp.eq.s32.totalorder %v5702, %v5837
          %vm6346 = vcmp.eq.s32.totalorder %v5703, %v5837
          %vm6347 = vcmp.eq.s32.totalorder %v5704, %v5837
          %vm6348 = vcmp.eq.s32.totalorder %v5705, %v5837
          %vm6349 = vcmp.eq.s32.totalorder %v5706, %v5837
          %v6350 = vstv %s284
          %v6351 = vsel %vm5838, %v6350, 0.0
          %v6352 = vsel %vm5839, %v6350, 0.0
          %v6353 = vsel %vm5840, %v6350, 0.0
          %v6354 = vsel %vm5841, %v6350, 0.0
          %v6355 = vsel %vm5842, %v6350, 0.0
          %v6356 = vsel %vm5843, %v6350, 0.0
          %v6357 = vsel %vm5844, %v6350, 0.0
          %v6358 = vsel %vm5845, %v6350, 0.0
          %v6359 = vsel %vm5846, %v6350, 0.0
          %v6360 = vsel %vm5847, %v6350, 0.0
          %v6361 = vsel %vm5848, %v6350, 0.0
          %v6362 = vsel %vm5849, %v6350, 0.0
          %v6363 = vsel %vm5850, %v6350, 0.0
          %v6364 = vsel %vm5851, %v6350, 0.0
          %v6365 = vsel %vm5852, %v6350, 0.0
          %v6366 = vsel %vm5853, %v6350, 0.0
          %v6367 = vsel %vm5854, %v6350, 0.0
          %v6368 = vsel %vm5855, %v6350, 0.0
          %v6369 = vsel %vm5856, %v6350, 0.0
          %v6370 = vsel %vm5857, %v6350, 0.0
          %v6371 = vsel %vm5858, %v6350, 0.0
          %v6372 = vsel %vm5859, %v6350, 0.0
          %v6373 = vsel %vm5860, %v6350, 0.0
          %v6374 = vsel %vm5861, %v6350, 0.0
          %v6375 = vsel %vm5862, %v6350, 0.0
          %v6376 = vsel %vm5863, %v6350, 0.0
          %v6377 = vsel %vm5864, %v6350, 0.0
          %v6378 = vsel %vm5865, %v6350, 0.0
          %v6379 = vsel %vm5866, %v6350, 0.0
          %v6380 = vsel %vm5867, %v6350, 0.0
          %v6381 = vsel %vm5868, %v6350, 0.0
          %v6382 = vsel %vm5869, %v6350, 0.0
          %v6383 = vsel %vm5870, %v6350, 0.0
          %v6384 = vsel %vm5871, %v6350, 0.0
          %v6385 = vsel %vm5872, %v6350, 0.0
          %v6386 = vsel %vm5873, %v6350, 0.0
          %v6387 = vsel %vm5874, %v6350, 0.0
          %v6388 = vsel %vm5875, %v6350, 0.0
          %v6389 = vsel %vm5876, %v6350, 0.0
          %v6390 = vsel %vm5877, %v6350, 0.0
          %v6391 = vsel %vm5878, %v6350, 0.0
          %v6392 = vsel %vm5879, %v6350, 0.0
          %v6393 = vsel %vm5880, %v6350, 0.0
          %v6394 = vsel %vm5881, %v6350, 0.0
          %v6395 = vsel %vm5882, %v6350, 0.0
          %v6396 = vsel %vm5883, %v6350, 0.0
          %v6397 = vsel %vm5884, %v6350, 0.0
          %v6398 = vsel %vm5885, %v6350, 0.0
          %v6399 = vsel %vm5886, %v6350, 0.0
          %v6400 = vsel %vm5887, %v6350, 0.0
          %v6401 = vsel %vm5888, %v6350, 0.0
          %v6402 = vsel %vm5889, %v6350, 0.0
          %v6403 = vsel %vm5890, %v6350, 0.0
          %v6404 = vsel %vm5891, %v6350, 0.0
          %v6405 = vsel %vm5892, %v6350, 0.0
          %v6406 = vsel %vm5893, %v6350, 0.0
          %v6407 = vsel %vm5894, %v6350, 0.0
          %v6408 = vsel %vm5895, %v6350, 0.0
          %v6409 = vsel %vm5896, %v6350, 0.0
          %v6410 = vsel %vm5897, %v6350, 0.0
          %v6411 = vsel %vm5898, %v6350, 0.0
          %v6412 = vsel %vm5899, %v6350, 0.0
          %v6413 = vsel %vm5900, %v6350, 0.0
          %v6414 = vsel %vm5901, %v6350, 0.0
          %v6415 = vsel %vm5902, %v6350, 0.0
          %v6416 = vsel %vm5903, %v6350, 0.0
          %v6417 = vsel %vm5904, %v6350, 0.0
          %v6418 = vsel %vm5905, %v6350, 0.0
          %v6419 = vsel %vm5906, %v6350, 0.0
          %v6420 = vsel %vm5907, %v6350, 0.0
          %v6421 = vsel %vm5908, %v6350, 0.0
          %v6422 = vsel %vm5909, %v6350, 0.0
          %v6423 = vsel %vm5910, %v6350, 0.0
          %v6424 = vsel %vm5911, %v6350, 0.0
          %v6425 = vsel %vm5912, %v6350, 0.0
          %v6426 = vsel %vm5913, %v6350, 0.0
          %v6427 = vsel %vm5914, %v6350, 0.0
          %v6428 = vsel %vm5915, %v6350, 0.0
          %v6429 = vsel %vm5916, %v6350, 0.0
          %v6430 = vsel %vm5917, %v6350, 0.0
          %v6431 = vsel %vm5918, %v6350, 0.0
          %v6432 = vsel %vm5919, %v6350, 0.0
          %v6433 = vsel %vm5920, %v6350, 0.0
          %v6434 = vsel %vm5921, %v6350, 0.0
          %v6435 = vsel %vm5922, %v6350, 0.0
          %v6436 = vsel %vm5923, %v6350, 0.0
          %v6437 = vsel %vm5924, %v6350, 0.0
          %v6438 = vsel %vm5925, %v6350, 0.0
          %v6439 = vsel %vm5926, %v6350, 0.0
          %v6440 = vsel %vm5927, %v6350, 0.0
          %v6441 = vsel %vm5928, %v6350, 0.0
          %v6442 = vsel %vm5929, %v6350, 0.0
          %v6443 = vsel %vm5930, %v6350, 0.0
          %v6444 = vsel %vm5931, %v6350, 0.0
          %v6445 = vsel %vm5932, %v6350, 0.0
          %v6446 = vsel %vm5933, %v6350, 0.0
          %v6447 = vsel %vm5934, %v6350, 0.0
          %v6448 = vsel %vm5935, %v6350, 0.0
          %v6449 = vsel %vm5936, %v6350, 0.0
          %v6450 = vsel %vm5937, %v6350, 0.0
          %v6451 = vsel %vm5938, %v6350, 0.0
          %v6452 = vsel %vm5939, %v6350, 0.0
          %v6453 = vsel %vm5940, %v6350, 0.0
          %v6454 = vsel %vm5941, %v6350, 0.0
          %v6455 = vsel %vm5942, %v6350, 0.0
          %v6456 = vsel %vm5943, %v6350, 0.0
          %v6457 = vsel %vm5944, %v6350, 0.0
          %v6458 = vsel %vm5945, %v6350, 0.0
          %v6459 = vsel %vm5946, %v6350, 0.0
          %v6460 = vsel %vm5947, %v6350, 0.0
          %v6461 = vsel %vm5948, %v6350, 0.0
          %v6462 = vsel %vm5949, %v6350, 0.0
          %v6463 = vsel %vm5950, %v6350, 0.0
          %v6464 = vsel %vm5951, %v6350, 0.0
          %v6465 = vsel %vm5952, %v6350, 0.0
          %v6466 = vsel %vm5953, %v6350, 0.0
          %v6467 = vsel %vm5954, %v6350, 0.0
          %v6468 = vsel %vm5955, %v6350, 0.0
          %v6469 = vsel %vm5956, %v6350, 0.0
          %v6470 = vsel %vm5957, %v6350, 0.0
          %v6471 = vsel %vm5958, %v6350, 0.0
          %v6472 = vsel %vm5959, %v6350, 0.0
          %v6473 = vsel %vm5960, %v6350, 0.0
          %v6474 = vsel %vm5961, %v6350, 0.0
          %v6475 = vsel %vm5962, %v6350, 0.0
          %v6476 = vsel %vm5963, %v6350, 0.0
          %v6477 = vsel %vm5964, %v6350, 0.0
          %v6478 = vsel %vm5965, %v6350, 0.0
          %v6479 = vsel %vm5966, %v6350, 0.0
          %v6480 = vsel %vm5967, %v6350, 0.0
          %v6481 = vsel %vm5968, %v6350, 0.0
          %v6482 = vsel %vm5969, %v6350, 0.0
          %v6483 = vsel %vm5970, %v6350, 0.0
          %v6484 = vsel %vm5971, %v6350, 0.0
          %v6485 = vsel %vm5972, %v6350, 0.0
          %v6486 = vsel %vm5973, %v6350, 0.0
          %v6487 = vsel %vm5974, %v6350, 0.0
          %v6488 = vsel %vm5975, %v6350, 0.0
          %v6489 = vsel %vm5976, %v6350, 0.0
          %v6490 = vsel %vm5977, %v6350, 0.0
          %v6491 = vsel %vm5978, %v6350, 0.0
          %v6492 = vsel %vm5979, %v6350, 0.0
          %v6493 = vsel %vm5980, %v6350, 0.0
          %v6494 = vsel %vm5981, %v6350, 0.0
          %v6495 = vsel %vm5982, %v6350, 0.0
          %v6496 = vsel %vm5983, %v6350, 0.0
          %v6497 = vsel %vm5984, %v6350, 0.0
          %v6498 = vsel %vm5985, %v6350, 0.0
          %v6499 = vsel %vm5986, %v6350, 0.0
          %v6500 = vsel %vm5987, %v6350, 0.0
          %v6501 = vsel %vm5988, %v6350, 0.0
          %v6502 = vsel %vm5989, %v6350, 0.0
          %v6503 = vsel %vm5990, %v6350, 0.0
          %v6504 = vsel %vm5991, %v6350, 0.0
          %v6505 = vsel %vm5992, %v6350, 0.0
          %v6506 = vsel %vm5993, %v6350, 0.0
          %v6507 = vsel %vm5994, %v6350, 0.0
          %v6508 = vsel %vm5995, %v6350, 0.0
          %v6509 = vsel %vm5996, %v6350, 0.0
          %v6510 = vsel %vm5997, %v6350, 0.0
          %v6511 = vsel %vm5998, %v6350, 0.0
          %v6512 = vsel %vm5999, %v6350, 0.0
          %v6513 = vsel %vm6000, %v6350, 0.0
          %v6514 = vsel %vm6001, %v6350, 0.0
          %v6515 = vsel %vm6002, %v6350, 0.0
          %v6516 = vsel %vm6003, %v6350, 0.0
          %v6517 = vsel %vm6004, %v6350, 0.0
          %v6518 = vsel %vm6005, %v6350, 0.0
          %v6519 = vsel %vm6006, %v6350, 0.0
          %v6520 = vsel %vm6007, %v6350, 0.0
          %v6521 = vsel %vm6008, %v6350, 0.0
          %v6522 = vsel %vm6009, %v6350, 0.0
          %v6523 = vsel %vm6010, %v6350, 0.0
          %v6524 = vsel %vm6011, %v6350, 0.0
          %v6525 = vsel %vm6012, %v6350, 0.0
          %v6526 = vsel %vm6013, %v6350, 0.0
          %v6527 = vsel %vm6014, %v6350, 0.0
          %v6528 = vsel %vm6015, %v6350, 0.0
          %v6529 = vsel %vm6016, %v6350, 0.0
          %v6530 = vsel %vm6017, %v6350, 0.0
          %v6531 = vsel %vm6018, %v6350, 0.0
          %v6532 = vsel %vm6019, %v6350, 0.0
          %v6533 = vsel %vm6020, %v6350, 0.0
          %v6534 = vsel %vm6021, %v6350, 0.0
          %v6535 = vsel %vm6022, %v6350, 0.0
          %v6536 = vsel %vm6023, %v6350, 0.0
          %v6537 = vsel %vm6024, %v6350, 0.0
          %v6538 = vsel %vm6025, %v6350, 0.0
          %v6539 = vsel %vm6026, %v6350, 0.0
          %v6540 = vsel %vm6027, %v6350, 0.0
          %v6541 = vsel %vm6028, %v6350, 0.0
          %v6542 = vsel %vm6029, %v6350, 0.0
          %v6543 = vsel %vm6030, %v6350, 0.0
          %v6544 = vsel %vm6031, %v6350, 0.0
          %v6545 = vsel %vm6032, %v6350, 0.0
          %v6546 = vsel %vm6033, %v6350, 0.0
          %v6547 = vsel %vm6034, %v6350, 0.0
          %v6548 = vsel %vm6035, %v6350, 0.0
          %v6549 = vsel %vm6036, %v6350, 0.0
          %v6550 = vsel %vm6037, %v6350, 0.0
          %v6551 = vsel %vm6038, %v6350, 0.0
          %v6552 = vsel %vm6039, %v6350, 0.0
          %v6553 = vsel %vm6040, %v6350, 0.0
          %v6554 = vsel %vm6041, %v6350, 0.0
          %v6555 = vsel %vm6042, %v6350, 0.0
          %v6556 = vsel %vm6043, %v6350, 0.0
          %v6557 = vsel %vm6044, %v6350, 0.0
          %v6558 = vsel %vm6045, %v6350, 0.0
          %v6559 = vsel %vm6046, %v6350, 0.0
          %v6560 = vsel %vm6047, %v6350, 0.0
          %v6561 = vsel %vm6048, %v6350, 0.0
          %v6562 = vsel %vm6049, %v6350, 0.0
          %v6563 = vsel %vm6050, %v6350, 0.0
          %v6564 = vsel %vm6051, %v6350, 0.0
          %v6565 = vsel %vm6052, %v6350, 0.0
          %v6566 = vsel %vm6053, %v6350, 0.0
          %v6567 = vsel %vm6054, %v6350, 0.0
          %v6568 = vsel %vm6055, %v6350, 0.0
          %v6569 = vsel %vm6056, %v6350, 0.0
          %v6570 = vsel %vm6057, %v6350, 0.0
          %v6571 = vsel %vm6058, %v6350, 0.0
          %v6572 = vsel %vm6059, %v6350, 0.0
          %v6573 = vsel %vm6060, %v6350, 0.0
          %v6574 = vsel %vm6061, %v6350, 0.0
          %v6575 = vsel %vm6062, %v6350, 0.0
          %v6576 = vsel %vm6063, %v6350, 0.0
          %v6577 = vsel %vm6064, %v6350, 0.0
          %v6578 = vsel %vm6065, %v6350, 0.0
          %v6579 = vsel %vm6066, %v6350, 0.0
          %v6580 = vsel %vm6067, %v6350, 0.0
          %v6581 = vsel %vm6068, %v6350, 0.0
          %v6582 = vsel %vm6069, %v6350, 0.0
          %v6583 = vsel %vm6070, %v6350, 0.0
          %v6584 = vsel %vm6071, %v6350, 0.0
          %v6585 = vsel %vm6072, %v6350, 0.0
          %v6586 = vsel %vm6073, %v6350, 0.0
          %v6587 = vsel %vm6074, %v6350, 0.0
          %v6588 = vsel %vm6075, %v6350, 0.0
          %v6589 = vsel %vm6076, %v6350, 0.0
          %v6590 = vsel %vm6077, %v6350, 0.0
          %v6591 = vsel %vm6078, %v6350, 0.0
          %v6592 = vsel %vm6079, %v6350, 0.0
          %v6593 = vsel %vm6080, %v6350, 0.0
          %v6594 = vsel %vm6081, %v6350, 0.0
          %v6595 = vsel %vm6082, %v6350, 0.0
          %v6596 = vsel %vm6083, %v6350, 0.0
          %v6597 = vsel %vm6084, %v6350, 0.0
          %v6598 = vsel %vm6085, %v6350, 0.0
          %v6599 = vsel %vm6086, %v6350, 0.0
          %v6600 = vsel %vm6087, %v6350, 0.0
          %v6601 = vsel %vm6088, %v6350, 0.0
          %v6602 = vsel %vm6089, %v6350, 0.0
          %v6603 = vsel %vm6090, %v6350, 0.0
          %v6604 = vsel %vm6091, %v6350, 0.0
          %v6605 = vsel %vm6092, %v6350, 0.0
          %v6606 = vsel %vm6093, %v6350, 0.0
          %v6607 = vsel %vm6094, %v6350, 0.0
          %v6608 = vsel %vm6095, %v6350, 0.0
          %v6609 = vsel %vm6096, %v6350, 0.0
          %v6610 = vsel %vm6097, %v6350, 0.0
          %v6611 = vsel %vm6098, %v6350, 0.0
          %v6612 = vsel %vm6099, %v6350, 0.0
          %v6613 = vsel %vm6100, %v6350, 0.0
          %v6614 = vsel %vm6101, %v6350, 0.0
          %v6615 = vsel %vm6102, %v6350, 0.0
          %v6616 = vsel %vm6103, %v6350, 0.0
          %v6617 = vsel %vm6104, %v6350, 0.0
          %v6618 = vsel %vm6105, %v6350, 0.0
          %v6619 = vsel %vm6106, %v6350, 0.0
          %v6620 = vsel %vm6107, %v6350, 0.0
          %v6621 = vsel %vm6108, %v6350, 0.0
          %v6622 = vsel %vm6109, %v6350, 0.0
          %v6623 = vsel %vm6110, %v6350, 0.0
          %v6624 = vsel %vm6111, %v6350, 0.0
          %v6625 = vsel %vm6112, %v6350, 0.0
          %v6626 = vsel %vm6113, %v6350, 0.0
          %v6627 = vsel %vm6114, %v6350, 0.0
          %v6628 = vsel %vm6115, %v6350, 0.0
          %v6629 = vsel %vm6116, %v6350, 0.0
          %v6630 = vsel %vm6117, %v6350, 0.0
          %v6631 = vsel %vm6118, %v6350, 0.0
          %v6632 = vsel %vm6119, %v6350, 0.0
          %v6633 = vsel %vm6120, %v6350, 0.0
          %v6634 = vsel %vm6121, %v6350, 0.0
          %v6635 = vsel %vm6122, %v6350, 0.0
          %v6636 = vsel %vm6123, %v6350, 0.0
          %v6637 = vsel %vm6124, %v6350, 0.0
          %v6638 = vsel %vm6125, %v6350, 0.0
          %v6639 = vsel %vm6126, %v6350, 0.0
          %v6640 = vsel %vm6127, %v6350, 0.0
          %v6641 = vsel %vm6128, %v6350, 0.0
          %v6642 = vsel %vm6129, %v6350, 0.0
          %v6643 = vsel %vm6130, %v6350, 0.0
          %v6644 = vsel %vm6131, %v6350, 0.0
          %v6645 = vsel %vm6132, %v6350, 0.0
          %v6646 = vsel %vm6133, %v6350, 0.0
          %v6647 = vsel %vm6134, %v6350, 0.0
          %v6648 = vsel %vm6135, %v6350, 0.0
          %v6649 = vsel %vm6136, %v6350, 0.0
          %v6650 = vsel %vm6137, %v6350, 0.0
          %v6651 = vsel %vm6138, %v6350, 0.0
          %v6652 = vsel %vm6139, %v6350, 0.0
          %v6653 = vsel %vm6140, %v6350, 0.0
          %v6654 = vsel %vm6141, %v6350, 0.0
          %v6655 = vsel %vm6142, %v6350, 0.0
          %v6656 = vsel %vm6143, %v6350, 0.0
          %v6657 = vsel %vm6144, %v6350, 0.0
          %v6658 = vsel %vm6145, %v6350, 0.0
          %v6659 = vsel %vm6146, %v6350, 0.0
          %v6660 = vsel %vm6147, %v6350, 0.0
          %v6661 = vsel %vm6148, %v6350, 0.0
          %v6662 = vsel %vm6149, %v6350, 0.0
          %v6663 = vsel %vm6150, %v6350, 0.0
          %v6664 = vsel %vm6151, %v6350, 0.0
          %v6665 = vsel %vm6152, %v6350, 0.0
          %v6666 = vsel %vm6153, %v6350, 0.0
          %v6667 = vsel %vm6154, %v6350, 0.0
          %v6668 = vsel %vm6155, %v6350, 0.0
          %v6669 = vsel %vm6156, %v6350, 0.0
          %v6670 = vsel %vm6157, %v6350, 0.0
          %v6671 = vsel %vm6158, %v6350, 0.0
          %v6672 = vsel %vm6159, %v6350, 0.0
          %v6673 = vsel %vm6160, %v6350, 0.0
          %v6674 = vsel %vm6161, %v6350, 0.0
          %v6675 = vsel %vm6162, %v6350, 0.0
          %v6676 = vsel %vm6163, %v6350, 0.0
          %v6677 = vsel %vm6164, %v6350, 0.0
          %v6678 = vsel %vm6165, %v6350, 0.0
          %v6679 = vsel %vm6166, %v6350, 0.0
          %v6680 = vsel %vm6167, %v6350, 0.0
          %v6681 = vsel %vm6168, %v6350, 0.0
          %v6682 = vsel %vm6169, %v6350, 0.0
          %v6683 = vsel %vm6170, %v6350, 0.0
          %v6684 = vsel %vm6171, %v6350, 0.0
          %v6685 = vsel %vm6172, %v6350, 0.0
          %v6686 = vsel %vm6173, %v6350, 0.0
          %v6687 = vsel %vm6174, %v6350, 0.0
          %v6688 = vsel %vm6175, %v6350, 0.0
          %v6689 = vsel %vm6176, %v6350, 0.0
          %v6690 = vsel %vm6177, %v6350, 0.0
          %v6691 = vsel %vm6178, %v6350, 0.0
          %v6692 = vsel %vm6179, %v6350, 0.0
          %v6693 = vsel %vm6180, %v6350, 0.0
          %v6694 = vsel %vm6181, %v6350, 0.0
          %v6695 = vsel %vm6182, %v6350, 0.0
          %v6696 = vsel %vm6183, %v6350, 0.0
          %v6697 = vsel %vm6184, %v6350, 0.0
          %v6698 = vsel %vm6185, %v6350, 0.0
          %v6699 = vsel %vm6186, %v6350, 0.0
          %v6700 = vsel %vm6187, %v6350, 0.0
          %v6701 = vsel %vm6188, %v6350, 0.0
          %v6702 = vsel %vm6189, %v6350, 0.0
          %v6703 = vsel %vm6190, %v6350, 0.0
          %v6704 = vsel %vm6191, %v6350, 0.0
          %v6705 = vsel %vm6192, %v6350, 0.0
          %v6706 = vsel %vm6193, %v6350, 0.0
          %v6707 = vsel %vm6194, %v6350, 0.0
          %v6708 = vsel %vm6195, %v6350, 0.0
          %v6709 = vsel %vm6196, %v6350, 0.0
          %v6710 = vsel %vm6197, %v6350, 0.0
          %v6711 = vsel %vm6198, %v6350, 0.0
          %v6712 = vsel %vm6199, %v6350, 0.0
          %v6713 = vsel %vm6200, %v6350, 0.0
          %v6714 = vsel %vm6201, %v6350, 0.0
          %v6715 = vsel %vm6202, %v6350, 0.0
          %v6716 = vsel %vm6203, %v6350, 0.0
          %v6717 = vsel %vm6204, %v6350, 0.0
          %v6718 = vsel %vm6205, %v6350, 0.0
          %v6719 = vsel %vm6206, %v6350, 0.0
          %v6720 = vsel %vm6207, %v6350, 0.0
          %v6721 = vsel %vm6208, %v6350, 0.0
          %v6722 = vsel %vm6209, %v6350, 0.0
          %v6723 = vsel %vm6210, %v6350, 0.0
          %v6724 = vsel %vm6211, %v6350, 0.0
          %v6725 = vsel %vm6212, %v6350, 0.0
          %v6726 = vsel %vm6213, %v6350, 0.0
          %v6727 = vsel %vm6214, %v6350, 0.0
          %v6728 = vsel %vm6215, %v6350, 0.0
          %v6729 = vsel %vm6216, %v6350, 0.0
          %v6730 = vsel %vm6217, %v6350, 0.0
          %v6731 = vsel %vm6218, %v6350, 0.0
          %v6732 = vsel %vm6219, %v6350, 0.0
          %v6733 = vsel %vm6220, %v6350, 0.0
          %v6734 = vsel %vm6221, %v6350, 0.0
          %v6735 = vsel %vm6222, %v6350, 0.0
          %v6736 = vsel %vm6223, %v6350, 0.0
          %v6737 = vsel %vm6224, %v6350, 0.0
          %v6738 = vsel %vm6225, %v6350, 0.0
          %v6739 = vsel %vm6226, %v6350, 0.0
          %v6740 = vsel %vm6227, %v6350, 0.0
          %v6741 = vsel %vm6228, %v6350, 0.0
          %v6742 = vsel %vm6229, %v6350, 0.0
          %v6743 = vsel %vm6230, %v6350, 0.0
          %v6744 = vsel %vm6231, %v6350, 0.0
          %v6745 = vsel %vm6232, %v6350, 0.0
          %v6746 = vsel %vm6233, %v6350, 0.0
          %v6747 = vsel %vm6234, %v6350, 0.0
          %v6748 = vsel %vm6235, %v6350, 0.0
          %v6749 = vsel %vm6236, %v6350, 0.0
          %v6750 = vsel %vm6237, %v6350, 0.0
          %v6751 = vsel %vm6238, %v6350, 0.0
          %v6752 = vsel %vm6239, %v6350, 0.0
          %v6753 = vsel %vm6240, %v6350, 0.0
          %v6754 = vsel %vm6241, %v6350, 0.0
          %v6755 = vsel %vm6242, %v6350, 0.0
          %v6756 = vsel %vm6243, %v6350, 0.0
          %v6757 = vsel %vm6244, %v6350, 0.0
          %v6758 = vsel %vm6245, %v6350, 0.0
          %v6759 = vsel %vm6246, %v6350, 0.0
          %v6760 = vsel %vm6247, %v6350, 0.0
          %v6761 = vsel %vm6248, %v6350, 0.0
          %v6762 = vsel %vm6249, %v6350, 0.0
          %v6763 = vsel %vm6250, %v6350, 0.0
          %v6764 = vsel %vm6251, %v6350, 0.0
          %v6765 = vsel %vm6252, %v6350, 0.0
          %v6766 = vsel %vm6253, %v6350, 0.0
          %v6767 = vsel %vm6254, %v6350, 0.0
          %v6768 = vsel %vm6255, %v6350, 0.0
          %v6769 = vsel %vm6256, %v6350, 0.0
          %v6770 = vsel %vm6257, %v6350, 0.0
          %v6771 = vsel %vm6258, %v6350, 0.0
          %v6772 = vsel %vm6259, %v6350, 0.0
          %v6773 = vsel %vm6260, %v6350, 0.0
          %v6774 = vsel %vm6261, %v6350, 0.0
          %v6775 = vsel %vm6262, %v6350, 0.0
          %v6776 = vsel %vm6263, %v6350, 0.0
          %v6777 = vsel %vm6264, %v6350, 0.0
          %v6778 = vsel %vm6265, %v6350, 0.0
          %v6779 = vsel %vm6266, %v6350, 0.0
          %v6780 = vsel %vm6267, %v6350, 0.0
          %v6781 = vsel %vm6268, %v6350, 0.0
          %v6782 = vsel %vm6269, %v6350, 0.0
          %v6783 = vsel %vm6270, %v6350, 0.0
          %v6784 = vsel %vm6271, %v6350, 0.0
          %v6785 = vsel %vm6272, %v6350, 0.0
          %v6786 = vsel %vm6273, %v6350, 0.0
          %v6787 = vsel %vm6274, %v6350, 0.0
          %v6788 = vsel %vm6275, %v6350, 0.0
          %v6789 = vsel %vm6276, %v6350, 0.0
          %v6790 = vsel %vm6277, %v6350, 0.0
          %v6791 = vsel %vm6278, %v6350, 0.0
          %v6792 = vsel %vm6279, %v6350, 0.0
          %v6793 = vsel %vm6280, %v6350, 0.0
          %v6794 = vsel %vm6281, %v6350, 0.0
          %v6795 = vsel %vm6282, %v6350, 0.0
          %v6796 = vsel %vm6283, %v6350, 0.0
          %v6797 = vsel %vm6284, %v6350, 0.0
          %v6798 = vsel %vm6285, %v6350, 0.0
          %v6799 = vsel %vm6286, %v6350, 0.0
          %v6800 = vsel %vm6287, %v6350, 0.0
          %v6801 = vsel %vm6288, %v6350, 0.0
          %v6802 = vsel %vm6289, %v6350, 0.0
          %v6803 = vsel %vm6290, %v6350, 0.0
          %v6804 = vsel %vm6291, %v6350, 0.0
          %v6805 = vsel %vm6292, %v6350, 0.0
          %v6806 = vsel %vm6293, %v6350, 0.0
          %v6807 = vsel %vm6294, %v6350, 0.0
          %v6808 = vsel %vm6295, %v6350, 0.0
          %v6809 = vsel %vm6296, %v6350, 0.0
          %v6810 = vsel %vm6297, %v6350, 0.0
          %v6811 = vsel %vm6298, %v6350, 0.0
          %v6812 = vsel %vm6299, %v6350, 0.0
          %v6813 = vsel %vm6300, %v6350, 0.0
          %v6814 = vsel %vm6301, %v6350, 0.0
          %v6815 = vsel %vm6302, %v6350, 0.0
          %v6816 = vsel %vm6303, %v6350, 0.0
          %v6817 = vsel %vm6304, %v6350, 0.0
          %v6818 = vsel %vm6305, %v6350, 0.0
          %v6819 = vsel %vm6306, %v6350, 0.0
          %v6820 = vsel %vm6307, %v6350, 0.0
          %v6821 = vsel %vm6308, %v6350, 0.0
          %v6822 = vsel %vm6309, %v6350, 0.0
          %v6823 = vsel %vm6310, %v6350, 0.0
          %v6824 = vsel %vm6311, %v6350, 0.0
          %v6825 = vsel %vm6312, %v6350, 0.0
          %v6826 = vsel %vm6313, %v6350, 0.0
          %v6827 = vsel %vm6314, %v6350, 0.0
          %v6828 = vsel %vm6315, %v6350, 0.0
          %v6829 = vsel %vm6316, %v6350, 0.0
          %v6830 = vsel %vm6317, %v6350, 0.0
          %v6831 = vsel %vm6318, %v6350, 0.0
          %v6832 = vsel %vm6319, %v6350, 0.0
          %v6833 = vsel %vm6320, %v6350, 0.0
          %v6834 = vsel %vm6321, %v6350, 0.0
          %v6835 = vsel %vm6322, %v6350, 0.0
          %v6836 = vsel %vm6323, %v6350, 0.0
          %v6837 = vsel %vm6324, %v6350, 0.0
          %v6838 = vsel %vm6325, %v6350, 0.0
          %v6839 = vsel %vm6326, %v6350, 0.0
          %v6840 = vsel %vm6327, %v6350, 0.0
          %v6841 = vsel %vm6328, %v6350, 0.0
          %v6842 = vsel %vm6329, %v6350, 0.0
          %v6843 = vsel %vm6330, %v6350, 0.0
          %v6844 = vsel %vm6331, %v6350, 0.0
          %v6845 = vsel %vm6332, %v6350, 0.0
          %v6846 = vsel %vm6333, %v6350, 0.0
          %v6847 = vsel %vm6334, %v6350, 0.0
          %v6848 = vsel %vm6335, %v6350, 0.0
          %v6849 = vsel %vm6336, %v6350, 0.0
          %v6850 = vsel %vm6337, %v6350, 0.0
          %v6851 = vsel %vm6338, %v6350, 0.0
          %v6852 = vsel %vm6339, %v6350, 0.0
          %v6853 = vsel %vm6340, %v6350, 0.0
          %v6854 = vsel %vm6341, %v6350, 0.0
          %v6855 = vsel %vm6342, %v6350, 0.0
          %v6856 = vsel %vm6343, %v6350, 0.0
          %v6857 = vsel %vm6344, %v6350, 0.0
          %v6858 = vsel %vm6345, %v6350, 0.0
          %v6859 = vsel %vm6346, %v6350, 0.0
          %v6860 = vsel %vm6347, %v6350, 0.0
          %v6861 = vsel %vm6348, %v6350, 0.0
          %v6862 = vsel %vm6349, %v6350, 0.0
          %v6863 = vadd.f32 %v4667, %v6351
          %v6864 = vadd.f32 %v4669, %v6352
          %v6865 = vadd.f32 %v4671, %v6353
          %v6866 = vadd.f32 %v4673, %v6354
          %v6867 = vadd.f32 %v4675, %v6355
          %v6868 = vadd.f32 %v4677, %v6356
          %v6869 = vadd.f32 %v4679, %v6357
          %v6870 = vadd.f32 %v4681, %v6358
          %v6871 = vadd.f32 %v4683, %v6359
          %v6872 = vadd.f32 %v4685, %v6360
          %v6873 = vadd.f32 %v4687, %v6361
          %v6874 = vadd.f32 %v4689, %v6362
          %v6875 = vadd.f32 %v4691, %v6363
          %v6876 = vadd.f32 %v4693, %v6364
          %v6877 = vadd.f32 %v4695, %v6365
          %v6878 = vadd.f32 %v4697, %v6366
          %v6879 = vadd.f32 %v4699, %v6367
          %v6880 = vadd.f32 %v4701, %v6368
          %v6881 = vadd.f32 %v4703, %v6369
          %v6882 = vadd.f32 %v4705, %v6370
          %v6883 = vadd.f32 %v4707, %v6371
          %v6884 = vadd.f32 %v4709, %v6372
          %v6885 = vadd.f32 %v4711, %v6373
          %v6886 = vadd.f32 %v4713, %v6374
          %v6887 = vadd.f32 %v4715, %v6375
          %v6888 = vadd.f32 %v4717, %v6376
          %v6889 = vadd.f32 %v4719, %v6377
          %v6890 = vadd.f32 %v4721, %v6378
          %v6891 = vadd.f32 %v4723, %v6379
          %v6892 = vadd.f32 %v4725, %v6380
          %v6893 = vadd.f32 %v4727, %v6381
          %v6894 = vadd.f32 %v4729, %v6382
          %v6895 = vadd.f32 %v4731, %v6383
          %v6896 = vadd.f32 %v4733, %v6384
          %v6897 = vadd.f32 %v4735, %v6385
          %v6898 = vadd.f32 %v4737, %v6386
          %v6899 = vadd.f32 %v4739, %v6387
          %v6900 = vadd.f32 %v4741, %v6388
          %v6901 = vadd.f32 %v4743, %v6389
          %v6902 = vadd.f32 %v4745, %v6390
          %v6903 = vadd.f32 %v4747, %v6391
          %v6904 = vadd.f32 %v4749, %v6392
          %v6905 = vadd.f32 %v4751, %v6393
          %v6906 = vadd.f32 %v4753, %v6394
          %v6907 = vadd.f32 %v4755, %v6395
          %v6908 = vadd.f32 %v4757, %v6396
          %v6909 = vadd.f32 %v4759, %v6397
          %v6910 = vadd.f32 %v4761, %v6398
          %v6911 = vadd.f32 %v4763, %v6399
          %v6912 = vadd.f32 %v4765, %v6400
          %v6913 = vadd.f32 %v4767, %v6401
          %v6914 = vadd.f32 %v4769, %v6402
          %v6915 = vadd.f32 %v4771, %v6403
          %v6916 = vadd.f32 %v4773, %v6404
          %v6917 = vadd.f32 %v4775, %v6405
          %v6918 = vadd.f32 %v4777, %v6406
          %v6919 = vadd.f32 %v4779, %v6407
          %v6920 = vadd.f32 %v4781, %v6408
          %v6921 = vadd.f32 %v4783, %v6409
          %v6922 = vadd.f32 %v4785, %v6410
          %v6923 = vadd.f32 %v4787, %v6411
          %v6924 = vadd.f32 %v4789, %v6412
          %v6925 = vadd.f32 %v4791, %v6413
          %v6926 = vadd.f32 %v4793, %v6414
          %v6927 = vadd.f32 %v4795, %v6415
          %v6928 = vadd.f32 %v4797, %v6416
          %v6929 = vadd.f32 %v4799, %v6417
          %v6930 = vadd.f32 %v4801, %v6418
          %v6931 = vadd.f32 %v4803, %v6419
          %v6932 = vadd.f32 %v4805, %v6420
          %v6933 = vadd.f32 %v4807, %v6421
          %v6934 = vadd.f32 %v4809, %v6422
          %v6935 = vadd.f32 %v4811, %v6423
          %v6936 = vadd.f32 %v4813, %v6424
          %v6937 = vadd.f32 %v4815, %v6425
          %v6938 = vadd.f32 %v4817, %v6426
          %v6939 = vadd.f32 %v4819, %v6427
          %v6940 = vadd.f32 %v4821, %v6428
          %v6941 = vadd.f32 %v4823, %v6429
          %v6942 = vadd.f32 %v4825, %v6430
          %v6943 = vadd.f32 %v4827, %v6431
          %v6944 = vadd.f32 %v4829, %v6432
          %v6945 = vadd.f32 %v4831, %v6433
          %v6946 = vadd.f32 %v4833, %v6434
          %v6947 = vadd.f32 %v4835, %v6435
          %v6948 = vadd.f32 %v4837, %v6436
          %v6949 = vadd.f32 %v4839, %v6437
          %v6950 = vadd.f32 %v4841, %v6438
          %v6951 = vadd.f32 %v4843, %v6439
          %v6952 = vadd.f32 %v4845, %v6440
          %v6953 = vadd.f32 %v4847, %v6441
          %v6954 = vadd.f32 %v4849, %v6442
          %v6955 = vadd.f32 %v4851, %v6443
          %v6956 = vadd.f32 %v4853, %v6444
          %v6957 = vadd.f32 %v4855, %v6445
          %v6958 = vadd.f32 %v4857, %v6446
          %v6959 = vadd.f32 %v4859, %v6447
          %v6960 = vadd.f32 %v4861, %v6448
          %v6961 = vadd.f32 %v4863, %v6449
          %v6962 = vadd.f32 %v4865, %v6450
          %v6963 = vadd.f32 %v4867, %v6451
          %v6964 = vadd.f32 %v4869, %v6452
          %v6965 = vadd.f32 %v4871, %v6453
          %v6966 = vadd.f32 %v4873, %v6454
          %v6967 = vadd.f32 %v4875, %v6455
          %v6968 = vadd.f32 %v4877, %v6456
          %v6969 = vadd.f32 %v4879, %v6457
          %v6970 = vadd.f32 %v4881, %v6458
          %v6971 = vadd.f32 %v4883, %v6459
          %v6972 = vadd.f32 %v4885, %v6460
          %v6973 = vadd.f32 %v4887, %v6461
          %v6974 = vadd.f32 %v4889, %v6462
          %v6975 = vadd.f32 %v4891, %v6463
          %v6976 = vadd.f32 %v4893, %v6464
          %v6977 = vadd.f32 %v4895, %v6465
          %v6978 = vadd.f32 %v4897, %v6466
          %v6979 = vadd.f32 %v4899, %v6467
          %v6980 = vadd.f32 %v4901, %v6468
          %v6981 = vadd.f32 %v4903, %v6469
          %v6982 = vadd.f32 %v4905, %v6470
          %v6983 = vadd.f32 %v4907, %v6471
          %v6984 = vadd.f32 %v4909, %v6472
          %v6985 = vadd.f32 %v4911, %v6473
          %v6986 = vadd.f32 %v4913, %v6474
          %v6987 = vadd.f32 %v4915, %v6475
          %v6988 = vadd.f32 %v4917, %v6476
          %v6989 = vadd.f32 %v4919, %v6477
          %v6990 = vadd.f32 %v4921, %v6478
          %v6991 = vadd.f32 %v4923, %v6479
          %v6992 = vadd.f32 %v4925, %v6480
          %v6993 = vadd.f32 %v4927, %v6481
          %v6994 = vadd.f32 %v4929, %v6482
          %v6995 = vadd.f32 %v4931, %v6483
          %v6996 = vadd.f32 %v4933, %v6484
          %v6997 = vadd.f32 %v4935, %v6485
          %v6998 = vadd.f32 %v4937, %v6486
          %v6999 = vadd.f32 %v4939, %v6487
          %v7000 = vadd.f32 %v4941, %v6488
          %v7001 = vadd.f32 %v4943, %v6489
          %v7002 = vadd.f32 %v4945, %v6490
          %v7003 = vadd.f32 %v4947, %v6491
          %v7004 = vadd.f32 %v4949, %v6492
          %v7005 = vadd.f32 %v4951, %v6493
          %v7006 = vadd.f32 %v4953, %v6494
          %v7007 = vadd.f32 %v4955, %v6495
          %v7008 = vadd.f32 %v4957, %v6496
          %v7009 = vadd.f32 %v4959, %v6497
          %v7010 = vadd.f32 %v4961, %v6498
          %v7011 = vadd.f32 %v4963, %v6499
          %v7012 = vadd.f32 %v4965, %v6500
          %v7013 = vadd.f32 %v4967, %v6501
          %v7014 = vadd.f32 %v4969, %v6502
          %v7015 = vadd.f32 %v4971, %v6503
          %v7016 = vadd.f32 %v4973, %v6504
          %v7017 = vadd.f32 %v4975, %v6505
          %v7018 = vadd.f32 %v4977, %v6506
          %v7019 = vadd.f32 %v4979, %v6507
          %v7020 = vadd.f32 %v4981, %v6508
          %v7021 = vadd.f32 %v4983, %v6509
          %v7022 = vadd.f32 %v4985, %v6510
          %v7023 = vadd.f32 %v4987, %v6511
          %v7024 = vadd.f32 %v4989, %v6512
          %v7025 = vadd.f32 %v4991, %v6513
          %v7026 = vadd.f32 %v4993, %v6514
          %v7027 = vadd.f32 %v4995, %v6515
          %v7028 = vadd.f32 %v4997, %v6516
          %v7029 = vadd.f32 %v4999, %v6517
          %v7030 = vadd.f32 %v5001, %v6518
          %v7031 = vadd.f32 %v5003, %v6519
          %v7032 = vadd.f32 %v5005, %v6520
          %v7033 = vadd.f32 %v5007, %v6521
          %v7034 = vadd.f32 %v5009, %v6522
          %v7035 = vadd.f32 %v5011, %v6523
          %v7036 = vadd.f32 %v5013, %v6524
          %v7037 = vadd.f32 %v5015, %v6525
          %v7038 = vadd.f32 %v5017, %v6526
          %v7039 = vadd.f32 %v5019, %v6527
          %v7040 = vadd.f32 %v5021, %v6528
          %v7041 = vadd.f32 %v5023, %v6529
          %v7042 = vadd.f32 %v5025, %v6530
          %v7043 = vadd.f32 %v5027, %v6531
          %v7044 = vadd.f32 %v5029, %v6532
          %v7045 = vadd.f32 %v5031, %v6533
          %v7046 = vadd.f32 %v5033, %v6534
          %v7047 = vadd.f32 %v5035, %v6535
          %v7048 = vadd.f32 %v5037, %v6536
          %v7049 = vadd.f32 %v5039, %v6537
          %v7050 = vadd.f32 %v5041, %v6538
          %v7051 = vadd.f32 %v5043, %v6539
          %v7052 = vadd.f32 %v5045, %v6540
          %v7053 = vadd.f32 %v5047, %v6541
          %v7054 = vadd.f32 %v5049, %v6542
          %v7055 = vadd.f32 %v5051, %v6543
          %v7056 = vadd.f32 %v5053, %v6544
          %v7057 = vadd.f32 %v5055, %v6545
          %v7058 = vadd.f32 %v5057, %v6546
          %v7059 = vadd.f32 %v5059, %v6547
          %v7060 = vadd.f32 %v5061, %v6548
          %v7061 = vadd.f32 %v5063, %v6549
          %v7062 = vadd.f32 %v5065, %v6550
          %v7063 = vadd.f32 %v5067, %v6551
          %v7064 = vadd.f32 %v5069, %v6552
          %v7065 = vadd.f32 %v5071, %v6553
          %v7066 = vadd.f32 %v5073, %v6554
          %v7067 = vadd.f32 %v5075, %v6555
          %v7068 = vadd.f32 %v5077, %v6556
          %v7069 = vadd.f32 %v5079, %v6557
          %v7070 = vadd.f32 %v5081, %v6558
          %v7071 = vadd.f32 %v5083, %v6559
          %v7072 = vadd.f32 %v5085, %v6560
          %v7073 = vadd.f32 %v5087, %v6561
          %v7074 = vadd.f32 %v5089, %v6562
          %v7075 = vadd.f32 %v5091, %v6563
          %v7076 = vadd.f32 %v5093, %v6564
          %v7077 = vadd.f32 %v5095, %v6565
          %v7078 = vadd.f32 %v5097, %v6566
          %v7079 = vadd.f32 %v5099, %v6567
          %v7080 = vadd.f32 %v5101, %v6568
          %v7081 = vadd.f32 %v5103, %v6569
          %v7082 = vadd.f32 %v5105, %v6570
          %v7083 = vadd.f32 %v5107, %v6571
          %v7084 = vadd.f32 %v5109, %v6572
          %v7085 = vadd.f32 %v5111, %v6573
          %v7086 = vadd.f32 %v5113, %v6574
          %v7087 = vadd.f32 %v5115, %v6575
          %v7088 = vadd.f32 %v5117, %v6576
          %v7089 = vadd.f32 %v5119, %v6577
          %v7090 = vadd.f32 %v5121, %v6578
          %v7091 = vadd.f32 %v5123, %v6579
          %v7092 = vadd.f32 %v5125, %v6580
          %v7093 = vadd.f32 %v5127, %v6581
          %v7094 = vadd.f32 %v5129, %v6582
          %v7095 = vadd.f32 %v5131, %v6583
          %v7096 = vadd.f32 %v5133, %v6584
          %v7097 = vadd.f32 %v5135, %v6585
          %v7098 = vadd.f32 %v5137, %v6586
          %v7099 = vadd.f32 %v5139, %v6587
          %v7100 = vadd.f32 %v5141, %v6588
          %v7101 = vadd.f32 %v5143, %v6589
          %v7102 = vadd.f32 %v5145, %v6590
          %v7103 = vadd.f32 %v5147, %v6591
          %v7104 = vadd.f32 %v5149, %v6592
          %v7105 = vadd.f32 %v5151, %v6593
          %v7106 = vadd.f32 %v5153, %v6594
          %v7107 = vadd.f32 %v5155, %v6595
          %v7108 = vadd.f32 %v5157, %v6596
          %v7109 = vadd.f32 %v5159, %v6597
          %v7110 = vadd.f32 %v5161, %v6598
          %v7111 = vadd.f32 %v5163, %v6599
          %v7112 = vadd.f32 %v5165, %v6600
          %v7113 = vadd.f32 %v5167, %v6601
          %v7114 = vadd.f32 %v5169, %v6602
          %v7115 = vadd.f32 %v5171, %v6603
          %v7116 = vadd.f32 %v5173, %v6604
          %v7117 = vadd.f32 %v5175, %v6605
          %v7118 = vadd.f32 %v5177, %v6606
          %v7119 = vadd.f32 %v5179, %v6607
          %v7120 = vadd.f32 %v5181, %v6608
          %v7121 = vadd.f32 %v5183, %v6609
          %v7122 = vadd.f32 %v5185, %v6610
          %v7123 = vadd.f32 %v5187, %v6611
          %v7124 = vadd.f32 %v5189, %v6612
          %v7125 = vadd.f32 %v5191, %v6613
          %v7126 = vadd.f32 %v5193, %v6614
          %v7127 = vadd.f32 %v5195, %v6615
          %v7128 = vadd.f32 %v5197, %v6616
          %v7129 = vadd.f32 %v5199, %v6617
          %v7130 = vadd.f32 %v5201, %v6618
          %v7131 = vadd.f32 %v5203, %v6619
          %v7132 = vadd.f32 %v5205, %v6620
          %v7133 = vadd.f32 %v5207, %v6621
          %v7134 = vadd.f32 %v5209, %v6622
          %v7135 = vadd.f32 %v5211, %v6623
          %v7136 = vadd.f32 %v5213, %v6624
          %v7137 = vadd.f32 %v5215, %v6625
          %v7138 = vadd.f32 %v5217, %v6626
          %v7139 = vadd.f32 %v5219, %v6627
          %v7140 = vadd.f32 %v5221, %v6628
          %v7141 = vadd.f32 %v5223, %v6629
          %v7142 = vadd.f32 %v5225, %v6630
          %v7143 = vadd.f32 %v5227, %v6631
          %v7144 = vadd.f32 %v5229, %v6632
          %v7145 = vadd.f32 %v5231, %v6633
          %v7146 = vadd.f32 %v5233, %v6634
          %v7147 = vadd.f32 %v5235, %v6635
          %v7148 = vadd.f32 %v5237, %v6636
          %v7149 = vadd.f32 %v5239, %v6637
          %v7150 = vadd.f32 %v5241, %v6638
          %v7151 = vadd.f32 %v5243, %v6639
          %v7152 = vadd.f32 %v5245, %v6640
          %v7153 = vadd.f32 %v5247, %v6641
          %v7154 = vadd.f32 %v5249, %v6642
          %v7155 = vadd.f32 %v5251, %v6643
          %v7156 = vadd.f32 %v5253, %v6644
          %v7157 = vadd.f32 %v5255, %v6645
          %v7158 = vadd.f32 %v5257, %v6646
          %v7159 = vadd.f32 %v5259, %v6647
          %v7160 = vadd.f32 %v5261, %v6648
          %v7161 = vadd.f32 %v5263, %v6649
          %v7162 = vadd.f32 %v5265, %v6650
          %v7163 = vadd.f32 %v5267, %v6651
          %v7164 = vadd.f32 %v5269, %v6652
          %v7165 = vadd.f32 %v5271, %v6653
          %v7166 = vadd.f32 %v5273, %v6654
          %v7167 = vadd.f32 %v5275, %v6655
          %v7168 = vadd.f32 %v5277, %v6656
          %v7169 = vadd.f32 %v5279, %v6657
          %v7170 = vadd.f32 %v5281, %v6658
          %v7171 = vadd.f32 %v5283, %v6659
          %v7172 = vadd.f32 %v5285, %v6660
          %v7173 = vadd.f32 %v5287, %v6661
          %v7174 = vadd.f32 %v5289, %v6662
          %v7175 = vadd.f32 %v5291, %v6663
          %v7176 = vadd.f32 %v5293, %v6664
          %v7177 = vadd.f32 %v5295, %v6665
          %v7178 = vadd.f32 %v5297, %v6666
          %v7179 = vadd.f32 %v5299, %v6667
          %v7180 = vadd.f32 %v5301, %v6668
          %v7181 = vadd.f32 %v5303, %v6669
          %v7182 = vadd.f32 %v5305, %v6670
          %v7183 = vadd.f32 %v5307, %v6671
          %v7184 = vadd.f32 %v5309, %v6672
          %v7185 = vadd.f32 %v5311, %v6673
          %v7186 = vadd.f32 %v5313, %v6674
          %v7187 = vadd.f32 %v5315, %v6675
          %v7188 = vadd.f32 %v5317, %v6676
          %v7189 = vadd.f32 %v5319, %v6677
          %v7190 = vadd.f32 %v5321, %v6678
          %v7191 = vadd.f32 %v5323, %v6679
          %v7192 = vadd.f32 %v5325, %v6680
          %v7193 = vadd.f32 %v5327, %v6681
          %v7194 = vadd.f32 %v5329, %v6682
          %v7195 = vadd.f32 %v5331, %v6683
          %v7196 = vadd.f32 %v5333, %v6684
          %v7197 = vadd.f32 %v5335, %v6685
          %v7198 = vadd.f32 %v5337, %v6686
          %v7199 = vadd.f32 %v5339, %v6687
          %v7200 = vadd.f32 %v5341, %v6688
          %v7201 = vadd.f32 %v5343, %v6689
          %v7202 = vadd.f32 %v5345, %v6690
          %v7203 = vadd.f32 %v5347, %v6691
          %v7204 = vadd.f32 %v5349, %v6692
          %v7205 = vadd.f32 %v5351, %v6693
          %v7206 = vadd.f32 %v5353, %v6694
          %v7207 = vadd.f32 %v5355, %v6695
          %v7208 = vadd.f32 %v5357, %v6696
          %v7209 = vadd.f32 %v5359, %v6697
          %v7210 = vadd.f32 %v5361, %v6698
          %v7211 = vadd.f32 %v5363, %v6699
          %v7212 = vadd.f32 %v5365, %v6700
          %v7213 = vadd.f32 %v5367, %v6701
          %v7214 = vadd.f32 %v5369, %v6702
          %v7215 = vadd.f32 %v5371, %v6703
          %v7216 = vadd.f32 %v5373, %v6704
          %v7217 = vadd.f32 %v5375, %v6705
          %v7218 = vadd.f32 %v5377, %v6706
          %v7219 = vadd.f32 %v5379, %v6707
          %v7220 = vadd.f32 %v5381, %v6708
          %v7221 = vadd.f32 %v5383, %v6709
          %v7222 = vadd.f32 %v5385, %v6710
          %v7223 = vadd.f32 %v5387, %v6711
          %v7224 = vadd.f32 %v5389, %v6712
          %v7225 = vadd.f32 %v5391, %v6713
          %v7226 = vadd.f32 %v5393, %v6714
          %v7227 = vadd.f32 %v5395, %v6715
          %v7228 = vadd.f32 %v5397, %v6716
          %v7229 = vadd.f32 %v5399, %v6717
          %v7230 = vadd.f32 %v5401, %v6718
          %v7231 = vadd.f32 %v5403, %v6719
          %v7232 = vadd.f32 %v5405, %v6720
          %v7233 = vadd.f32 %v5407, %v6721
          %v7234 = vadd.f32 %v5409, %v6722
          %v7235 = vadd.f32 %v5411, %v6723
          %v7236 = vadd.f32 %v5413, %v6724
          %v7237 = vadd.f32 %v5415, %v6725
          %v7238 = vadd.f32 %v5417, %v6726
          %v7239 = vadd.f32 %v5419, %v6727
          %v7240 = vadd.f32 %v5421, %v6728
          %v7241 = vadd.f32 %v5423, %v6729
          %v7242 = vadd.f32 %v5425, %v6730
          %v7243 = vadd.f32 %v5427, %v6731
          %v7244 = vadd.f32 %v5429, %v6732
          %v7245 = vadd.f32 %v5431, %v6733
          %v7246 = vadd.f32 %v5433, %v6734
          %v7247 = vadd.f32 %v5435, %v6735
          %v7248 = vadd.f32 %v5437, %v6736
          %v7249 = vadd.f32 %v5439, %v6737
          %v7250 = vadd.f32 %v5441, %v6738
          %v7251 = vadd.f32 %v5443, %v6739
          %v7252 = vadd.f32 %v5445, %v6740
          %v7253 = vadd.f32 %v5447, %v6741
          %v7254 = vadd.f32 %v5449, %v6742
          %v7255 = vadd.f32 %v5451, %v6743
          %v7256 = vadd.f32 %v5453, %v6744
          %v7257 = vadd.f32 %v5455, %v6745
          %v7258 = vadd.f32 %v5457, %v6746
          %v7259 = vadd.f32 %v5459, %v6747
          %v7260 = vadd.f32 %v5461, %v6748
          %v7261 = vadd.f32 %v5463, %v6749
          %v7262 = vadd.f32 %v5465, %v6750
          %v7263 = vadd.f32 %v5467, %v6751
          %v7264 = vadd.f32 %v5469, %v6752
          %v7265 = vadd.f32 %v5471, %v6753
          %v7266 = vadd.f32 %v5473, %v6754
          %v7267 = vadd.f32 %v5475, %v6755
          %v7268 = vadd.f32 %v5477, %v6756
          %v7269 = vadd.f32 %v5479, %v6757
          %v7270 = vadd.f32 %v5481, %v6758
          %v7271 = vadd.f32 %v5483, %v6759
          %v7272 = vadd.f32 %v5485, %v6760
          %v7273 = vadd.f32 %v5487, %v6761
          %v7274 = vadd.f32 %v5489, %v6762
          %v7275 = vadd.f32 %v5491, %v6763
          %v7276 = vadd.f32 %v5493, %v6764
          %v7277 = vadd.f32 %v5495, %v6765
          %v7278 = vadd.f32 %v5497, %v6766
          %v7279 = vadd.f32 %v5499, %v6767
          %v7280 = vadd.f32 %v5501, %v6768
          %v7281 = vadd.f32 %v5503, %v6769
          %v7282 = vadd.f32 %v5505, %v6770
          %v7283 = vadd.f32 %v5507, %v6771
          %v7284 = vadd.f32 %v5509, %v6772
          %v7285 = vadd.f32 %v5511, %v6773
          %v7286 = vadd.f32 %v5513, %v6774
          %v7287 = vadd.f32 %v5515, %v6775
          %v7288 = vadd.f32 %v5517, %v6776
          %v7289 = vadd.f32 %v5519, %v6777
          %v7290 = vadd.f32 %v5521, %v6778
          %v7291 = vadd.f32 %v5523, %v6779
          %v7292 = vadd.f32 %v5525, %v6780
          %v7293 = vadd.f32 %v5527, %v6781
          %v7294 = vadd.f32 %v5529, %v6782
          %v7295 = vadd.f32 %v5531, %v6783
          %v7296 = vadd.f32 %v5533, %v6784
          %v7297 = vadd.f32 %v5535, %v6785
          %v7298 = vadd.f32 %v5537, %v6786
          %v7299 = vadd.f32 %v5539, %v6787
          %v7300 = vadd.f32 %v5541, %v6788
          %v7301 = vadd.f32 %v5543, %v6789
          %v7302 = vadd.f32 %v5545, %v6790
          %v7303 = vadd.f32 %v5547, %v6791
          %v7304 = vadd.f32 %v5549, %v6792
          %v7305 = vadd.f32 %v5551, %v6793
          %v7306 = vadd.f32 %v5553, %v6794
          %v7307 = vadd.f32 %v5555, %v6795
          %v7308 = vadd.f32 %v5557, %v6796
          %v7309 = vadd.f32 %v5559, %v6797
          %v7310 = vadd.f32 %v5561, %v6798
          %v7311 = vadd.f32 %v5563, %v6799
          %v7312 = vadd.f32 %v5565, %v6800
          %v7313 = vadd.f32 %v5567, %v6801
          %v7314 = vadd.f32 %v5569, %v6802
          %v7315 = vadd.f32 %v5571, %v6803
          %v7316 = vadd.f32 %v5573, %v6804
          %v7317 = vadd.f32 %v5575, %v6805
          %v7318 = vadd.f32 %v5577, %v6806
          %v7319 = vadd.f32 %v5579, %v6807
          %v7320 = vadd.f32 %v5581, %v6808
          %v7321 = vadd.f32 %v5583, %v6809
          %v7322 = vadd.f32 %v5585, %v6810
          %v7323 = vadd.f32 %v5587, %v6811
          %v7324 = vadd.f32 %v5589, %v6812
          %v7325 = vadd.f32 %v5591, %v6813
          %v7326 = vadd.f32 %v5593, %v6814
          %v7327 = vadd.f32 %v5595, %v6815
          %v7328 = vadd.f32 %v5597, %v6816
          %v7329 = vadd.f32 %v5599, %v6817
          %v7330 = vadd.f32 %v5601, %v6818
          %v7331 = vadd.f32 %v5603, %v6819
          %v7332 = vadd.f32 %v5605, %v6820
          %v7333 = vadd.f32 %v5607, %v6821
          %v7334 = vadd.f32 %v5609, %v6822
          %v7335 = vadd.f32 %v5611, %v6823
          %v7336 = vadd.f32 %v5613, %v6824
          %v7337 = vadd.f32 %v5615, %v6825
          %v7338 = vadd.f32 %v5617, %v6826
          %v7339 = vadd.f32 %v5619, %v6827
          %v7340 = vadd.f32 %v5621, %v6828
          %v7341 = vadd.f32 %v5623, %v6829
          %v7342 = vadd.f32 %v5625, %v6830
          %v7343 = vadd.f32 %v5627, %v6831
          %v7344 = vadd.f32 %v5629, %v6832
          %v7345 = vadd.f32 %v5631, %v6833
          %v7346 = vadd.f32 %v5633, %v6834
          %v7347 = vadd.f32 %v5635, %v6835
          %v7348 = vadd.f32 %v5637, %v6836
          %v7349 = vadd.f32 %v5639, %v6837
          %v7350 = vadd.f32 %v5641, %v6838
          %v7351 = vadd.f32 %v5643, %v6839
          %v7352 = vadd.f32 %v5645, %v6840
          %v7353 = vadd.f32 %v5647, %v6841
          %v7354 = vadd.f32 %v5649, %v6842
          %v7355 = vadd.f32 %v5651, %v6843
          %v7356 = vadd.f32 %v5653, %v6844
          %v7357 = vadd.f32 %v5655, %v6845
          %v7358 = vadd.f32 %v5657, %v6846
          %v7359 = vadd.f32 %v5659, %v6847
          %v7360 = vadd.f32 %v5661, %v6848
          %v7361 = vadd.f32 %v5663, %v6849
          %v7362 = vadd.f32 %v5665, %v6850
          %v7363 = vadd.f32 %v5667, %v6851
          %v7364 = vadd.f32 %v5669, %v6852
          %v7365 = vadd.f32 %v5671, %v6853
          %v7366 = vadd.f32 %v5673, %v6854
          %v7367 = vadd.f32 %v5675, %v6855
          %v7368 = vadd.f32 %v5677, %v6856
          %v7369 = vadd.f32 %v5679, %v6857
          %v7370 = vadd.f32 %v5681, %v6858
          %v7371 = vadd.f32 %v5683, %v6859
          %v7372 = vadd.f32 %v5685, %v6860
          %v7373 = vadd.f32 %v5687, %v6861
          %v7374 = vadd.f32 %v5689, %v6862
          %7375 = vst [vmem:[%s253] sm:$0xff] %v6863
          %7376 = vst [vmem:[%s253 + $0x8] sm:$0xff] %v6864
          %7377 = vst [vmem:[%s253 + $0x10] sm:$0xff] %v6865
          %7378 = vst [vmem:[%s253 + $0x18] sm:$0xff] %v6866
          %7379 = vst [vmem:[%s253 + $0x20] sm:$0xff] %v6867
          %7380 = vst [vmem:[%s253 + $0x28] sm:$0xff] %v6868
          %7381 = vst [vmem:[%s253 + $0x30] sm:$0xff] %v6869
          %7382 = vst [vmem:[%s253 + $0x38] sm:$0xff] %v6870
          %7383 = vst [vmem:[%s253 + $0x40] sm:$0xff] %v6871
          %7384 = vst [vmem:[%s253 + $0x48] sm:$0xff] %v6872
          %7385 = vst [vmem:[%s253 + $0x50] sm:$0xff] %v6873
          %7386 = vst [vmem:[%s253 + $0x58] sm:$0xff] %v6874
          %7387 = vst [vmem:[%s253 + $0x60] sm:$0xff] %v6875
          %7388 = vst [vmem:[%s253 + $0x68] sm:$0xff] %v6876
          %7389 = vst [vmem:[%s253 + $0x70] sm:$0xff] %v6877
          %7390 = vst [vmem:[%s253 + $0x78] sm:$0xff] %v6878
          %7391 = vst [vmem:[%s253 + $0x80] sm:$0xff] %v6879
          %7392 = vst [vmem:[%s253 + $0x88] sm:$0xff] %v6880
          %7393 = vst [vmem:[%s253 + $0x90] sm:$0xff] %v6881
          %7394 = vst [vmem:[%s253 + $0x98] sm:$0xff] %v6882
          %7395 = vst [vmem:[%s253 + $0xa0] sm:$0xff] %v6883
          %7396 = vst [vmem:[%s253 + $0xa8] sm:$0xff] %v6884
          %7397 = vst [vmem:[%s253 + $0xb0] sm:$0xff] %v6885
          %7398 = vst [vmem:[%s253 + $0xb8] sm:$0xff] %v6886
          %7399 = vst [vmem:[%s253 + $0xc0] sm:$0xff] %v6887
          %7400 = vst [vmem:[%s253 + $0xc8] sm:$0xff] %v6888
          %7401 = vst [vmem:[%s253 + $0xd0] sm:$0xff] %v6889
          %7402 = vst [vmem:[%s253 + $0xd8] sm:$0xff] %v6890
          %7403 = vst [vmem:[%s253 + $0xe0] sm:$0xff] %v6891
          %7404 = vst [vmem:[%s253 + $0xe8] sm:$0xff] %v6892
          %7405 = vst [vmem:[%s253 + $0xf0] sm:$0xff] %v6893
          %7406 = vst [vmem:[%s253 + $0xf8] sm:$0xff] %v6894
          %7407 = vst [vmem:[%s253 + $0x100] sm:$0xff] %v6895
          %7408 = vst [vmem:[%s253 + $0x108] sm:$0xff] %v6896
          %7409 = vst [vmem:[%s253 + $0x110] sm:$0xff] %v6897
          %7410 = vst [vmem:[%s253 + $0x118] sm:$0xff] %v6898
          %7411 = vst [vmem:[%s253 + $0x120] sm:$0xff] %v6899
          %7412 = vst [vmem:[%s253 + $0x128] sm:$0xff] %v6900
          %7413 = vst [vmem:[%s253 + $0x130] sm:$0xff] %v6901
          %7414 = vst [vmem:[%s253 + $0x138] sm:$0xff] %v6902
          %7415 = vst [vmem:[%s253 + $0x140] sm:$0xff] %v6903
          %7416 = vst [vmem:[%s253 + $0x148] sm:$0xff] %v6904
          %7417 = vst [vmem:[%s253 + $0x150] sm:$0xff] %v6905
          %7418 = vst [vmem:[%s253 + $0x158] sm:$0xff] %v6906
          %7419 = vst [vmem:[%s253 + $0x160] sm:$0xff] %v6907
          %7420 = vst [vmem:[%s253 + $0x168] sm:$0xff] %v6908
          %7421 = vst [vmem:[%s253 + $0x170] sm:$0xff] %v6909
          %7422 = vst [vmem:[%s253 + $0x178] sm:$0xff] %v6910
          %7423 = vst [vmem:[%s253 + $0x180] sm:$0xff] %v6911
          %7424 = vst [vmem:[%s253 + $0x188] sm:$0xff] %v6912
          %7425 = vst [vmem:[%s253 + $0x190] sm:$0xff] %v6913
          %7426 = vst [vmem:[%s253 + $0x198] sm:$0xff] %v6914
          %7427 = vst [vmem:[%s253 + $0x1a0] sm:$0xff] %v6915
          %7428 = vst [vmem:[%s253 + $0x1a8] sm:$0xff] %v6916
          %7429 = vst [vmem:[%s253 + $0x1b0] sm:$0xff] %v6917
          %7430 = vst [vmem:[%s253 + $0x1b8] sm:$0xff] %v6918
          %7431 = vst [vmem:[%s253 + $0x1c0] sm:$0xff] %v6919
          %7432 = vst [vmem:[%s253 + $0x1c8] sm:$0xff] %v6920
          %7433 = vst [vmem:[%s253 + $0x1d0] sm:$0xff] %v6921
          %7434 = vst [vmem:[%s253 + $0x1d8] sm:$0xff] %v6922
          %7435 = vst [vmem:[%s253 + $0x1e0] sm:$0xff] %v6923
          %7436 = vst [vmem:[%s253 + $0x1e8] sm:$0xff] %v6924
          %7437 = vst [vmem:[%s253 + $0x1f0] sm:$0xff] %v6925
          %7438 = vst [vmem:[%s253 + $0x1f8] sm:$0xff] %v6926
          %7439 = vst [vmem:[%s253 + $0x200] sm:$0xff] %v6927
          %7440 = vst [vmem:[%s253 + $0x208] sm:$0xff] %v6928
          %7441 = vst [vmem:[%s253 + $0x210] sm:$0xff] %v6929
          %7442 = vst [vmem:[%s253 + $0x218] sm:$0xff] %v6930
          %7443 = vst [vmem:[%s253 + $0x220] sm:$0xff] %v6931
          %7444 = vst [vmem:[%s253 + $0x228] sm:$0xff] %v6932
          %7445 = vst [vmem:[%s253 + $0x230] sm:$0xff] %v6933
          %7446 = vst [vmem:[%s253 + $0x238] sm:$0xff] %v6934
          %7447 = vst [vmem:[%s253 + $0x240] sm:$0xff] %v6935
          %7448 = vst [vmem:[%s253 + $0x248] sm:$0xff] %v6936
          %7449 = vst [vmem:[%s253 + $0x250] sm:$0xff] %v6937
          %7450 = vst [vmem:[%s253 + $0x258] sm:$0xff] %v6938
          %7451 = vst [vmem:[%s253 + $0x260] sm:$0xff] %v6939
          %7452 = vst [vmem:[%s253 + $0x268] sm:$0xff] %v6940
          %7453 = vst [vmem:[%s253 + $0x270] sm:$0xff] %v6941
          %7454 = vst [vmem:[%s253 + $0x278] sm:$0xff] %v6942
          %7455 = vst [vmem:[%s253 + $0x280] sm:$0xff] %v6943
          %7456 = vst [vmem:[%s253 + $0x288] sm:$0xff] %v6944
          %7457 = vst [vmem:[%s253 + $0x290] sm:$0xff] %v6945
          %7458 = vst [vmem:[%s253 + $0x298] sm:$0xff] %v6946
          %7459 = vst [vmem:[%s253 + $0x2a0] sm:$0xff] %v6947
          %7460 = vst [vmem:[%s253 + $0x2a8] sm:$0xff] %v6948
          %7461 = vst [vmem:[%s253 + $0x2b0] sm:$0xff] %v6949
          %7462 = vst [vmem:[%s253 + $0x2b8] sm:$0xff] %v6950
          %7463 = vst [vmem:[%s253 + $0x2c0] sm:$0xff] %v6951
          %7464 = vst [vmem:[%s253 + $0x2c8] sm:$0xff] %v6952
          %7465 = vst [vmem:[%s253 + $0x2d0] sm:$0xff] %v6953
          %7466 = vst [vmem:[%s253 + $0x2d8] sm:$0xff] %v6954
          %7467 = vst [vmem:[%s253 + $0x2e0] sm:$0xff] %v6955
          %7468 = vst [vmem:[%s253 + $0x2e8] sm:$0xff] %v6956
          %7469 = vst [vmem:[%s253 + $0x2f0] sm:$0xff] %v6957
          %7470 = vst [vmem:[%s253 + $0x2f8] sm:$0xff] %v6958
          %7471 = vst [vmem:[%s253 + $0x300] sm:$0xff] %v6959
          %7472 = vst [vmem:[%s253 + $0x308] sm:$0xff] %v6960
          %7473 = vst [vmem:[%s253 + $0x310] sm:$0xff] %v6961
          %7474 = vst [vmem:[%s253 + $0x318] sm:$0xff] %v6962
          %7475 = vst [vmem:[%s253 + $0x320] sm:$0xff] %v6963
          %7476 = vst [vmem:[%s253 + $0x328] sm:$0xff] %v6964
          %7477 = vst [vmem:[%s253 + $0x330] sm:$0xff] %v6965
          %7478 = vst [vmem:[%s253 + $0x338] sm:$0xff] %v6966
          %7479 = vst [vmem:[%s253 + $0x340] sm:$0xff] %v6967
          %7480 = vst [vmem:[%s253 + $0x348] sm:$0xff] %v6968
          %7481 = vst [vmem:[%s253 + $0x350] sm:$0xff] %v6969
          %7482 = vst [vmem:[%s253 + $0x358] sm:$0xff] %v6970
          %7483 = vst [vmem:[%s253 + $0x360] sm:$0xff] %v6971
          %7484 = vst [vmem:[%s253 + $0x368] sm:$0xff] %v6972
          %7485 = vst [vmem:[%s253 + $0x370] sm:$0xff] %v6973
          %7486 = vst [vmem:[%s253 + $0x378] sm:$0xff] %v6974
          %7487 = vst [vmem:[%s253 + $0x380] sm:$0xff] %v6975
          %7488 = vst [vmem:[%s253 + $0x388] sm:$0xff] %v6976
          %7489 = vst [vmem:[%s253 + $0x390] sm:$0xff] %v6977
          %7490 = vst [vmem:[%s253 + $0x398] sm:$0xff] %v6978
          %7491 = vst [vmem:[%s253 + $0x3a0] sm:$0xff] %v6979
          %7492 = vst [vmem:[%s253 + $0x3a8] sm:$0xff] %v6980
          %7493 = vst [vmem:[%s253 + $0x3b0] sm:$0xff] %v6981
          %7494 = vst [vmem:[%s253 + $0x3b8] sm:$0xff] %v6982
          %7495 = vst [vmem:[%s253 + $0x3c0] sm:$0xff] %v6983
          %7496 = vst [vmem:[%s253 + $0x3c8] sm:$0xff] %v6984
          %7497 = vst [vmem:[%s253 + $0x3d0] sm:$0xff] %v6985
          %7498 = vst [vmem:[%s253 + $0x3d8] sm:$0xff] %v6986
          %7499 = vst [vmem:[%s253 + $0x3e0] sm:$0xff] %v6987
          %7500 = vst [vmem:[%s253 + $0x3e8] sm:$0xff] %v6988
          %7501 = vst [vmem:[%s253 + $0x3f0] sm:$0xff] %v6989
          %7502 = vst [vmem:[%s253 + $0x3f8] sm:$0xff] %v6990
          %7503 = vst [vmem:[%s253 + $0x400] sm:$0xff] %v6991
          %7504 = vst [vmem:[%s253 + $0x408] sm:$0xff] %v6992
          %7505 = vst [vmem:[%s253 + $0x410] sm:$0xff] %v6993
          %7506 = vst [vmem:[%s253 + $0x418] sm:$0xff] %v6994
          %7507 = vst [vmem:[%s253 + $0x420] sm:$0xff] %v6995
          %7508 = vst [vmem:[%s253 + $0x428] sm:$0xff] %v6996
          %7509 = vst [vmem:[%s253 + $0x430] sm:$0xff] %v6997
          %7510 = vst [vmem:[%s253 + $0x438] sm:$0xff] %v6998
          %7511 = vst [vmem:[%s253 + $0x440] sm:$0xff] %v6999
          %7512 = vst [vmem:[%s253 + $0x448] sm:$0xff] %v7000
          %7513 = vst [vmem:[%s253 + $0x450] sm:$0xff] %v7001
          %7514 = vst [vmem:[%s253 + $0x458] sm:$0xff] %v7002
          %7515 = vst [vmem:[%s253 + $0x460] sm:$0xff] %v7003
          %7516 = vst [vmem:[%s253 + $0x468] sm:$0xff] %v7004
          %7517 = vst [vmem:[%s253 + $0x470] sm:$0xff] %v7005
          %7518 = vst [vmem:[%s253 + $0x478] sm:$0xff] %v7006
          %7519 = vst [vmem:[%s253 + $0x480] sm:$0xff] %v7007
          %7520 = vst [vmem:[%s253 + $0x488] sm:$0xff] %v7008
          %7521 = vst [vmem:[%s253 + $0x490] sm:$0xff] %v7009
          %7522 = vst [vmem:[%s253 + $0x498] sm:$0xff] %v7010
          %7523 = vst [vmem:[%s253 + $0x4a0] sm:$0xff] %v7011
          %7524 = vst [vmem:[%s253 + $0x4a8] sm:$0xff] %v7012
          %7525 = vst [vmem:[%s253 + $0x4b0] sm:$0xff] %v7013
          %7526 = vst [vmem:[%s253 + $0x4b8] sm:$0xff] %v7014
          %7527 = vst [vmem:[%s253 + $0x4c0] sm:$0xff] %v7015
          %7528 = vst [vmem:[%s253 + $0x4c8] sm:$0xff] %v7016
          %7529 = vst [vmem:[%s253 + $0x4d0] sm:$0xff] %v7017
          %7530 = vst [vmem:[%s253 + $0x4d8] sm:$0xff] %v7018
          %7531 = vst [vmem:[%s253 + $0x4e0] sm:$0xff] %v7019
          %7532 = vst [vmem:[%s253 + $0x4e8] sm:$0xff] %v7020
          %7533 = vst [vmem:[%s253 + $0x4f0] sm:$0xff] %v7021
          %7534 = vst [vmem:[%s253 + $0x4f8] sm:$0xff] %v7022
          %7535 = vst [vmem:[%s253 + $0x500] sm:$0xff] %v7023
          %7536 = vst [vmem:[%s253 + $0x508] sm:$0xff] %v7024
          %7537 = vst [vmem:[%s253 + $0x510] sm:$0xff] %v7025
          %7538 = vst [vmem:[%s253 + $0x518] sm:$0xff] %v7026
          %7539 = vst [vmem:[%s253 + $0x520] sm:$0xff] %v7027
          %7540 = vst [vmem:[%s253 + $0x528] sm:$0xff] %v7028
          %7541 = vst [vmem:[%s253 + $0x530] sm:$0xff] %v7029
          %7542 = vst [vmem:[%s253 + $0x538] sm:$0xff] %v7030
          %7543 = vst [vmem:[%s253 + $0x540] sm:$0xff] %v7031
          %7544 = vst [vmem:[%s253 + $0x548] sm:$0xff] %v7032
          %7545 = vst [vmem:[%s253 + $0x550] sm:$0xff] %v7033
          %7546 = vst [vmem:[%s253 + $0x558] sm:$0xff] %v7034
          %7547 = vst [vmem:[%s253 + $0x560] sm:$0xff] %v7035
          %7548 = vst [vmem:[%s253 + $0x568] sm:$0xff] %v7036
          %7549 = vst [vmem:[%s253 + $0x570] sm:$0xff] %v7037
          %7550 = vst [vmem:[%s253 + $0x578] sm:$0xff] %v7038
          %7551 = vst [vmem:[%s253 + $0x580] sm:$0xff] %v7039
          %7552 = vst [vmem:[%s253 + $0x588] sm:$0xff] %v7040
          %7553 = vst [vmem:[%s253 + $0x590] sm:$0xff] %v7041
          %7554 = vst [vmem:[%s253 + $0x598] sm:$0xff] %v7042
          %7555 = vst [vmem:[%s253 + $0x5a0] sm:$0xff] %v7043
          %7556 = vst [vmem:[%s253 + $0x5a8] sm:$0xff] %v7044
          %7557 = vst [vmem:[%s253 + $0x5b0] sm:$0xff] %v7045
          %7558 = vst [vmem:[%s253 + $0x5b8] sm:$0xff] %v7046
          %7559 = vst [vmem:[%s253 + $0x5c0] sm:$0xff] %v7047
          %7560 = vst [vmem:[%s253 + $0x5c8] sm:$0xff] %v7048
          %7561 = vst [vmem:[%s253 + $0x5d0] sm:$0xff] %v7049
          %7562 = vst [vmem:[%s253 + $0x5d8] sm:$0xff] %v7050
          %7563 = vst [vmem:[%s253 + $0x5e0] sm:$0xff] %v7051
          %7564 = vst [vmem:[%s253 + $0x5e8] sm:$0xff] %v7052
          %7565 = vst [vmem:[%s253 + $0x5f0] sm:$0xff] %v7053
          %7566 = vst [vmem:[%s253 + $0x5f8] sm:$0xff] %v7054
          %7567 = vst [vmem:[%s253 + $0x600] sm:$0xff] %v7055
          %7568 = vst [vmem:[%s253 + $0x608] sm:$0xff] %v7056
          %7569 = vst [vmem:[%s253 + $0x610] sm:$0xff] %v7057
          %7570 = vst [vmem:[%s253 + $0x618] sm:$0xff] %v7058
          %7571 = vst [vmem:[%s253 + $0x620] sm:$0xff] %v7059
          %7572 = vst [vmem:[%s253 + $0x628] sm:$0xff] %v7060
          %7573 = vst [vmem:[%s253 + $0x630] sm:$0xff] %v7061
          %7574 = vst [vmem:[%s253 + $0x638] sm:$0xff] %v7062
          %7575 = vst [vmem:[%s253 + $0x640] sm:$0xff] %v7063
          %7576 = vst [vmem:[%s253 + $0x648] sm:$0xff] %v7064
          %7577 = vst [vmem:[%s253 + $0x650] sm:$0xff] %v7065
          %7578 = vst [vmem:[%s253 + $0x658] sm:$0xff] %v7066
          %7579 = vst [vmem:[%s253 + $0x660] sm:$0xff] %v7067
          %7580 = vst [vmem:[%s253 + $0x668] sm:$0xff] %v7068
          %7581 = vst [vmem:[%s253 + $0x670] sm:$0xff] %v7069
          %7582 = vst [vmem:[%s253 + $0x678] sm:$0xff] %v7070
          %7583 = vst [vmem:[%s253 + $0x680] sm:$0xff] %v7071
          %7584 = vst [vmem:[%s253 + $0x688] sm:$0xff] %v7072
          %7585 = vst [vmem:[%s253 + $0x690] sm:$0xff] %v7073
          %7586 = vst [vmem:[%s253 + $0x698] sm:$0xff] %v7074
          %7587 = vst [vmem:[%s253 + $0x6a0] sm:$0xff] %v7075
          %7588 = vst [vmem:[%s253 + $0x6a8] sm:$0xff] %v7076
          %7589 = vst [vmem:[%s253 + $0x6b0] sm:$0xff] %v7077
          %7590 = vst [vmem:[%s253 + $0x6b8] sm:$0xff] %v7078
          %7591 = vst [vmem:[%s253 + $0x6c0] sm:$0xff] %v7079
          %7592 = vst [vmem:[%s253 + $0x6c8] sm:$0xff] %v7080
          %7593 = vst [vmem:[%s253 + $0x6d0] sm:$0xff] %v7081
          %7594 = vst [vmem:[%s253 + $0x6d8] sm:$0xff] %v7082
          %7595 = vst [vmem:[%s253 + $0x6e0] sm:$0xff] %v7083
          %7596 = vst [vmem:[%s253 + $0x6e8] sm:$0xff] %v7084
          %7597 = vst [vmem:[%s253 + $0x6f0] sm:$0xff] %v7085
          %7598 = vst [vmem:[%s253 + $0x6f8] sm:$0xff] %v7086
          %7599 = vst [vmem:[%s253 + $0x700] sm:$0xff] %v7087
          %7600 = vst [vmem:[%s253 + $0x708] sm:$0xff] %v7088
          %7601 = vst [vmem:[%s253 + $0x710] sm:$0xff] %v7089
          %7602 = vst [vmem:[%s253 + $0x718] sm:$0xff] %v7090
          %7603 = vst [vmem:[%s253 + $0x720] sm:$0xff] %v7091
          %7604 = vst [vmem:[%s253 + $0x728] sm:$0xff] %v7092
          %7605 = vst [vmem:[%s253 + $0x730] sm:$0xff] %v7093
          %7606 = vst [vmem:[%s253 + $0x738] sm:$0xff] %v7094
          %7607 = vst [vmem:[%s253 + $0x740] sm:$0xff] %v7095
          %7608 = vst [vmem:[%s253 + $0x748] sm:$0xff] %v7096
          %7609 = vst [vmem:[%s253 + $0x750] sm:$0xff] %v7097
          %7610 = vst [vmem:[%s253 + $0x758] sm:$0xff] %v7098
          %7611 = vst [vmem:[%s253 + $0x760] sm:$0xff] %v7099
          %7612 = vst [vmem:[%s253 + $0x768] sm:$0xff] %v7100
          %7613 = vst [vmem:[%s253 + $0x770] sm:$0xff] %v7101
          %7614 = vst [vmem:[%s253 + $0x778] sm:$0xff] %v7102
          %7615 = vst [vmem:[%s253 + $0x780] sm:$0xff] %v7103
          %7616 = vst [vmem:[%s253 + $0x788] sm:$0xff] %v7104
          %7617 = vst [vmem:[%s253 + $0x790] sm:$0xff] %v7105
          %7618 = vst [vmem:[%s253 + $0x798] sm:$0xff] %v7106
          %7619 = vst [vmem:[%s253 + $0x7a0] sm:$0xff] %v7107
          %7620 = vst [vmem:[%s253 + $0x7a8] sm:$0xff] %v7108
          %7621 = vst [vmem:[%s253 + $0x7b0] sm:$0xff] %v7109
          %7622 = vst [vmem:[%s253 + $0x7b8] sm:$0xff] %v7110
          %7623 = vst [vmem:[%s253 + $0x7c0] sm:$0xff] %v7111
          %7624 = vst [vmem:[%s253 + $0x7c8] sm:$0xff] %v7112
          %7625 = vst [vmem:[%s253 + $0x7d0] sm:$0xff] %v7113
          %7626 = vst [vmem:[%s253 + $0x7d8] sm:$0xff] %v7114
          %7627 = vst [vmem:[%s253 + $0x7e0] sm:$0xff] %v7115
          %7628 = vst [vmem:[%s253 + $0x7e8] sm:$0xff] %v7116
          %7629 = vst [vmem:[%s253 + $0x7f0] sm:$0xff] %v7117
          %7630 = vst [vmem:[%s253 + $0x7f8] sm:$0xff] %v7118
          %7631 = vst [vmem:[%s253 + $0x800] sm:$0xff] %v7119
          %7632 = vst [vmem:[%s253 + $0x808] sm:$0xff] %v7120
          %7633 = vst [vmem:[%s253 + $0x810] sm:$0xff] %v7121
          %7634 = vst [vmem:[%s253 + $0x818] sm:$0xff] %v7122
          %7635 = vst [vmem:[%s253 + $0x820] sm:$0xff] %v7123
          %7636 = vst [vmem:[%s253 + $0x828] sm:$0xff] %v7124
          %7637 = vst [vmem:[%s253 + $0x830] sm:$0xff] %v7125
          %7638 = vst [vmem:[%s253 + $0x838] sm:$0xff] %v7126
          %7639 = vst [vmem:[%s253 + $0x840] sm:$0xff] %v7127
          %7640 = vst [vmem:[%s253 + $0x848] sm:$0xff] %v7128
          %7641 = vst [vmem:[%s253 + $0x850] sm:$0xff] %v7129
          %7642 = vst [vmem:[%s253 + $0x858] sm:$0xff] %v7130
          %7643 = vst [vmem:[%s253 + $0x860] sm:$0xff] %v7131
          %7644 = vst [vmem:[%s253 + $0x868] sm:$0xff] %v7132
          %7645 = vst [vmem:[%s253 + $0x870] sm:$0xff] %v7133
          %7646 = vst [vmem:[%s253 + $0x878] sm:$0xff] %v7134
          %7647 = vst [vmem:[%s253 + $0x880] sm:$0xff] %v7135
          %7648 = vst [vmem:[%s253 + $0x888] sm:$0xff] %v7136
          %7649 = vst [vmem:[%s253 + $0x890] sm:$0xff] %v7137
          %7650 = vst [vmem:[%s253 + $0x898] sm:$0xff] %v7138
          %7651 = vst [vmem:[%s253 + $0x8a0] sm:$0xff] %v7139
          %7652 = vst [vmem:[%s253 + $0x8a8] sm:$0xff] %v7140
          %7653 = vst [vmem:[%s253 + $0x8b0] sm:$0xff] %v7141
          %7654 = vst [vmem:[%s253 + $0x8b8] sm:$0xff] %v7142
          %7655 = vst [vmem:[%s253 + $0x8c0] sm:$0xff] %v7143
          %7656 = vst [vmem:[%s253 + $0x8c8] sm:$0xff] %v7144
          %7657 = vst [vmem:[%s253 + $0x8d0] sm:$0xff] %v7145
          %7658 = vst [vmem:[%s253 + $0x8d8] sm:$0xff] %v7146
          %7659 = vst [vmem:[%s253 + $0x8e0] sm:$0xff] %v7147
          %7660 = vst [vmem:[%s253 + $0x8e8] sm:$0xff] %v7148
          %7661 = vst [vmem:[%s253 + $0x8f0] sm:$0xff] %v7149
          %7662 = vst [vmem:[%s253 + $0x8f8] sm:$0xff] %v7150
          %7663 = vst [vmem:[%s253 + $0x900] sm:$0xff] %v7151
          %7664 = vst [vmem:[%s253 + $0x908] sm:$0xff] %v7152
          %7665 = vst [vmem:[%s253 + $0x910] sm:$0xff] %v7153
          %7666 = vst [vmem:[%s253 + $0x918] sm:$0xff] %v7154
          %7667 = vst [vmem:[%s253 + $0x920] sm:$0xff] %v7155
          %7668 = vst [vmem:[%s253 + $0x928] sm:$0xff] %v7156
          %7669 = vst [vmem:[%s253 + $0x930] sm:$0xff] %v7157
          %7670 = vst [vmem:[%s253 + $0x938] sm:$0xff] %v7158
          %7671 = vst [vmem:[%s253 + $0x940] sm:$0xff] %v7159
          %7672 = vst [vmem:[%s253 + $0x948] sm:$0xff] %v7160
          %7673 = vst [vmem:[%s253 + $0x950] sm:$0xff] %v7161
          %7674 = vst [vmem:[%s253 + $0x958] sm:$0xff] %v7162
          %7675 = vst [vmem:[%s253 + $0x960] sm:$0xff] %v7163
          %7676 = vst [vmem:[%s253 + $0x968] sm:$0xff] %v7164
          %7677 = vst [vmem:[%s253 + $0x970] sm:$0xff] %v7165
          %7678 = vst [vmem:[%s253 + $0x978] sm:$0xff] %v7166
          %7679 = vst [vmem:[%s253 + $0x980] sm:$0xff] %v7167
          %7680 = vst [vmem:[%s253 + $0x988] sm:$0xff] %v7168
          %7681 = vst [vmem:[%s253 + $0x990] sm:$0xff] %v7169
          %7682 = vst [vmem:[%s253 + $0x998] sm:$0xff] %v7170
          %7683 = vst [vmem:[%s253 + $0x9a0] sm:$0xff] %v7171
          %7684 = vst [vmem:[%s253 + $0x9a8] sm:$0xff] %v7172
          %7685 = vst [vmem:[%s253 + $0x9b0] sm:$0xff] %v7173
          %7686 = vst [vmem:[%s253 + $0x9b8] sm:$0xff] %v7174
          %7687 = vst [vmem:[%s253 + $0x9c0] sm:$0xff] %v7175
          %7688 = vst [vmem:[%s253 + $0x9c8] sm:$0xff] %v7176
          %7689 = vst [vmem:[%s253 + $0x9d0] sm:$0xff] %v7177
          %7690 = vst [vmem:[%s253 + $0x9d8] sm:$0xff] %v7178
          %7691 = vst [vmem:[%s253 + $0x9e0] sm:$0xff] %v7179
          %7692 = vst [vmem:[%s253 + $0x9e8] sm:$0xff] %v7180
          %7693 = vst [vmem:[%s253 + $0x9f0] sm:$0xff] %v7181
          %7694 = vst [vmem:[%s253 + $0x9f8] sm:$0xff] %v7182
          %7695 = vst [vmem:[%s253 + $0xa00] sm:$0xff] %v7183
          %7696 = vst [vmem:[%s253 + $0xa08] sm:$0xff] %v7184
          %7697 = vst [vmem:[%s253 + $0xa10] sm:$0xff] %v7185
          %7698 = vst [vmem:[%s253 + $0xa18] sm:$0xff] %v7186
          %7699 = vst [vmem:[%s253 + $0xa20] sm:$0xff] %v7187
          %7700 = vst [vmem:[%s253 + $0xa28] sm:$0xff] %v7188
          %7701 = vst [vmem:[%s253 + $0xa30] sm:$0xff] %v7189
          %7702 = vst [vmem:[%s253 + $0xa38] sm:$0xff] %v7190
          %7703 = vst [vmem:[%s253 + $0xa40] sm:$0xff] %v7191
          %7704 = vst [vmem:[%s253 + $0xa48] sm:$0xff] %v7192
          %7705 = vst [vmem:[%s253 + $0xa50] sm:$0xff] %v7193
          %7706 = vst [vmem:[%s253 + $0xa58] sm:$0xff] %v7194
          %7707 = vst [vmem:[%s253 + $0xa60] sm:$0xff] %v7195
          %7708 = vst [vmem:[%s253 + $0xa68] sm:$0xff] %v7196
          %7709 = vst [vmem:[%s253 + $0xa70] sm:$0xff] %v7197
          %7710 = vst [vmem:[%s253 + $0xa78] sm:$0xff] %v7198
          %7711 = vst [vmem:[%s253 + $0xa80] sm:$0xff] %v7199
          %7712 = vst [vmem:[%s253 + $0xa88] sm:$0xff] %v7200
          %7713 = vst [vmem:[%s253 + $0xa90] sm:$0xff] %v7201
          %7714 = vst [vmem:[%s253 + $0xa98] sm:$0xff] %v7202
          %7715 = vst [vmem:[%s253 + $0xaa0] sm:$0xff] %v7203
          %7716 = vst [vmem:[%s253 + $0xaa8] sm:$0xff] %v7204
          %7717 = vst [vmem:[%s253 + $0xab0] sm:$0xff] %v7205
          %7718 = vst [vmem:[%s253 + $0xab8] sm:$0xff] %v7206
          %7719 = vst [vmem:[%s253 + $0xac0] sm:$0xff] %v7207
          %7720 = vst [vmem:[%s253 + $0xac8] sm:$0xff] %v7208
          %7721 = vst [vmem:[%s253 + $0xad0] sm:$0xff] %v7209
          %7722 = vst [vmem:[%s253 + $0xad8] sm:$0xff] %v7210
          %7723 = vst [vmem:[%s253 + $0xae0] sm:$0xff] %v7211
          %7724 = vst [vmem:[%s253 + $0xae8] sm:$0xff] %v7212
          %7725 = vst [vmem:[%s253 + $0xaf0] sm:$0xff] %v7213
          %7726 = vst [vmem:[%s253 + $0xaf8] sm:$0xff] %v7214
          %7727 = vst [vmem:[%s253 + $0xb00] sm:$0xff] %v7215
          %7728 = vst [vmem:[%s253 + $0xb08] sm:$0xff] %v7216
          %7729 = vst [vmem:[%s253 + $0xb10] sm:$0xff] %v7217
          %7730 = vst [vmem:[%s253 + $0xb18] sm:$0xff] %v7218
          %7731 = vst [vmem:[%s253 + $0xb20] sm:$0xff] %v7219
          %7732 = vst [vmem:[%s253 + $0xb28] sm:$0xff] %v7220
          %7733 = vst [vmem:[%s253 + $0xb30] sm:$0xff] %v7221
          %7734 = vst [vmem:[%s253 + $0xb38] sm:$0xff] %v7222
          %7735 = vst [vmem:[%s253 + $0xb40] sm:$0xff] %v7223
          %7736 = vst [vmem:[%s253 + $0xb48] sm:$0xff] %v7224
          %7737 = vst [vmem:[%s253 + $0xb50] sm:$0xff] %v7225
          %7738 = vst [vmem:[%s253 + $0xb58] sm:$0xff] %v7226
          %7739 = vst [vmem:[%s253 + $0xb60] sm:$0xff] %v7227
          %7740 = vst [vmem:[%s253 + $0xb68] sm:$0xff] %v7228
          %7741 = vst [vmem:[%s253 + $0xb70] sm:$0xff] %v7229
          %7742 = vst [vmem:[%s253 + $0xb78] sm:$0xff] %v7230
          %7743 = vst [vmem:[%s253 + $0xb80] sm:$0xff] %v7231
          %7744 = vst [vmem:[%s253 + $0xb88] sm:$0xff] %v7232
          %7745 = vst [vmem:[%s253 + $0xb90] sm:$0xff] %v7233
          %7746 = vst [vmem:[%s253 + $0xb98] sm:$0xff] %v7234
          %7747 = vst [vmem:[%s253 + $0xba0] sm:$0xff] %v7235
          %7748 = vst [vmem:[%s253 + $0xba8] sm:$0xff] %v7236
          %7749 = vst [vmem:[%s253 + $0xbb0] sm:$0xff] %v7237
          %7750 = vst [vmem:[%s253 + $0xbb8] sm:$0xff] %v7238
          %7751 = vst [vmem:[%s253 + $0xbc0] sm:$0xff] %v7239
          %7752 = vst [vmem:[%s253 + $0xbc8] sm:$0xff] %v7240
          %7753 = vst [vmem:[%s253 + $0xbd0] sm:$0xff] %v7241
          %7754 = vst [vmem:[%s253 + $0xbd8] sm:$0xff] %v7242
          %7755 = vst [vmem:[%s253 + $0xbe0] sm:$0xff] %v7243
          %7756 = vst [vmem:[%s253 + $0xbe8] sm:$0xff] %v7244
          %7757 = vst [vmem:[%s253 + $0xbf0] sm:$0xff] %v7245
          %7758 = vst [vmem:[%s253 + $0xbf8] sm:$0xff] %v7246
          %7759 = vst [vmem:[%s253 + $0xc00] sm:$0xff] %v7247
          %7760 = vst [vmem:[%s253 + $0xc08] sm:$0xff] %v7248
          %7761 = vst [vmem:[%s253 + $0xc10] sm:$0xff] %v7249
          %7762 = vst [vmem:[%s253 + $0xc18] sm:$0xff] %v7250
          %7763 = vst [vmem:[%s253 + $0xc20] sm:$0xff] %v7251
          %7764 = vst [vmem:[%s253 + $0xc28] sm:$0xff] %v7252
          %7765 = vst [vmem:[%s253 + $0xc30] sm:$0xff] %v7253
          %7766 = vst [vmem:[%s253 + $0xc38] sm:$0xff] %v7254
          %7767 = vst [vmem:[%s253 + $0xc40] sm:$0xff] %v7255
          %7768 = vst [vmem:[%s253 + $0xc48] sm:$0xff] %v7256
          %7769 = vst [vmem:[%s253 + $0xc50] sm:$0xff] %v7257
          %7770 = vst [vmem:[%s253 + $0xc58] sm:$0xff] %v7258
          %7771 = vst [vmem:[%s253 + $0xc60] sm:$0xff] %v7259
          %7772 = vst [vmem:[%s253 + $0xc68] sm:$0xff] %v7260
          %7773 = vst [vmem:[%s253 + $0xc70] sm:$0xff] %v7261
          %7774 = vst [vmem:[%s253 + $0xc78] sm:$0xff] %v7262
          %7775 = vst [vmem:[%s253 + $0xc80] sm:$0xff] %v7263
          %7776 = vst [vmem:[%s253 + $0xc88] sm:$0xff] %v7264
          %7777 = vst [vmem:[%s253 + $0xc90] sm:$0xff] %v7265
          %7778 = vst [vmem:[%s253 + $0xc98] sm:$0xff] %v7266
          %7779 = vst [vmem:[%s253 + $0xca0] sm:$0xff] %v7267
          %7780 = vst [vmem:[%s253 + $0xca8] sm:$0xff] %v7268
          %7781 = vst [vmem:[%s253 + $0xcb0] sm:$0xff] %v7269
          %7782 = vst [vmem:[%s253 + $0xcb8] sm:$0xff] %v7270
          %7783 = vst [vmem:[%s253 + $0xcc0] sm:$0xff] %v7271
          %7784 = vst [vmem:[%s253 + $0xcc8] sm:$0xff] %v7272
          %7785 = vst [vmem:[%s253 + $0xcd0] sm:$0xff] %v7273
          %7786 = vst [vmem:[%s253 + $0xcd8] sm:$0xff] %v7274
          %7787 = vst [vmem:[%s253 + $0xce0] sm:$0xff] %v7275
          %7788 = vst [vmem:[%s253 + $0xce8] sm:$0xff] %v7276
          %7789 = vst [vmem:[%s253 + $0xcf0] sm:$0xff] %v7277
          %7790 = vst [vmem:[%s253 + $0xcf8] sm:$0xff] %v7278
          %7791 = vst [vmem:[%s253 + $0xd00] sm:$0xff] %v7279
          %7792 = vst [vmem:[%s253 + $0xd08] sm:$0xff] %v7280
          %7793 = vst [vmem:[%s253 + $0xd10] sm:$0xff] %v7281
          %7794 = vst [vmem:[%s253 + $0xd18] sm:$0xff] %v7282
          %7795 = vst [vmem:[%s253 + $0xd20] sm:$0xff] %v7283
          %7796 = vst [vmem:[%s253 + $0xd28] sm:$0xff] %v7284
          %7797 = vst [vmem:[%s253 + $0xd30] sm:$0xff] %v7285
          %7798 = vst [vmem:[%s253 + $0xd38] sm:$0xff] %v7286
          %7799 = vst [vmem:[%s253 + $0xd40] sm:$0xff] %v7287
          %7800 = vst [vmem:[%s253 + $0xd48] sm:$0xff] %v7288
          %7801 = vst [vmem:[%s253 + $0xd50] sm:$0xff] %v7289
          %7802 = vst [vmem:[%s253 + $0xd58] sm:$0xff] %v7290
          %7803 = vst [vmem:[%s253 + $0xd60] sm:$0xff] %v7291
          %7804 = vst [vmem:[%s253 + $0xd68] sm:$0xff] %v7292
          %7805 = vst [vmem:[%s253 + $0xd70] sm:$0xff] %v7293
          %7806 = vst [vmem:[%s253 + $0xd78] sm:$0xff] %v7294
          %7807 = vst [vmem:[%s253 + $0xd80] sm:$0xff] %v7295
          %7808 = vst [vmem:[%s253 + $0xd88] sm:$0xff] %v7296
          %7809 = vst [vmem:[%s253 + $0xd90] sm:$0xff] %v7297
          %7810 = vst [vmem:[%s253 + $0xd98] sm:$0xff] %v7298
          %7811 = vst [vmem:[%s253 + $0xda0] sm:$0xff] %v7299
          %7812 = vst [vmem:[%s253 + $0xda8] sm:$0xff] %v7300
          %7813 = vst [vmem:[%s253 + $0xdb0] sm:$0xff] %v7301
          %7814 = vst [vmem:[%s253 + $0xdb8] sm:$0xff] %v7302
          %7815 = vst [vmem:[%s253 + $0xdc0] sm:$0xff] %v7303
          %7816 = vst [vmem:[%s253 + $0xdc8] sm:$0xff] %v7304
          %7817 = vst [vmem:[%s253 + $0xdd0] sm:$0xff] %v7305
          %7818 = vst [vmem:[%s253 + $0xdd8] sm:$0xff] %v7306
          %7819 = vst [vmem:[%s253 + $0xde0] sm:$0xff] %v7307
          %7820 = vst [vmem:[%s253 + $0xde8] sm:$0xff] %v7308
          %7821 = vst [vmem:[%s253 + $0xdf0] sm:$0xff] %v7309
          %7822 = vst [vmem:[%s253 + $0xdf8] sm:$0xff] %v7310
          %7823 = vst [vmem:[%s253 + $0xe00] sm:$0xff] %v7311
          %7824 = vst [vmem:[%s253 + $0xe08] sm:$0xff] %v7312
          %7825 = vst [vmem:[%s253 + $0xe10] sm:$0xff] %v7313
          %7826 = vst [vmem:[%s253 + $0xe18] sm:$0xff] %v7314
          %7827 = vst [vmem:[%s253 + $0xe20] sm:$0xff] %v7315
          %7828 = vst [vmem:[%s253 + $0xe28] sm:$0xff] %v7316
          %7829 = vst [vmem:[%s253 + $0xe30] sm:$0xff] %v7317
          %7830 = vst [vmem:[%s253 + $0xe38] sm:$0xff] %v7318
          %7831 = vst [vmem:[%s253 + $0xe40] sm:$0xff] %v7319
          %7832 = vst [vmem:[%s253 + $0xe48] sm:$0xff] %v7320
          %7833 = vst [vmem:[%s253 + $0xe50] sm:$0xff] %v7321
          %7834 = vst [vmem:[%s253 + $0xe58] sm:$0xff] %v7322
          %7835 = vst [vmem:[%s253 + $0xe60] sm:$0xff] %v7323
          %7836 = vst [vmem:[%s253 + $0xe68] sm:$0xff] %v7324
          %7837 = vst [vmem:[%s253 + $0xe70] sm:$0xff] %v7325
          %7838 = vst [vmem:[%s253 + $0xe78] sm:$0xff] %v7326
          %7839 = vst [vmem:[%s253 + $0xe80] sm:$0xff] %v7327
          %7840 = vst [vmem:[%s253 + $0xe88] sm:$0xff] %v7328
          %7841 = vst [vmem:[%s253 + $0xe90] sm:$0xff] %v7329
          %7842 = vst [vmem:[%s253 + $0xe98] sm:$0xff] %v7330
          %7843 = vst [vmem:[%s253 + $0xea0] sm:$0xff] %v7331
          %7844 = vst [vmem:[%s253 + $0xea8] sm:$0xff] %v7332
          %7845 = vst [vmem:[%s253 + $0xeb0] sm:$0xff] %v7333
          %7846 = vst [vmem:[%s253 + $0xeb8] sm:$0xff] %v7334
          %7847 = vst [vmem:[%s253 + $0xec0] sm:$0xff] %v7335
          %7848 = vst [vmem:[%s253 + $0xec8] sm:$0xff] %v7336
          %7849 = vst [vmem:[%s253 + $0xed0] sm:$0xff] %v7337
          %7850 = vst [vmem:[%s253 + $0xed8] sm:$0xff] %v7338
          %7851 = vst [vmem:[%s253 + $0xee0] sm:$0xff] %v7339
          %7852 = vst [vmem:[%s253 + $0xee8] sm:$0xff] %v7340
          %7853 = vst [vmem:[%s253 + $0xef0] sm:$0xff] %v7341
          %7854 = vst [vmem:[%s253 + $0xef8] sm:$0xff] %v7342
          %7855 = vst [vmem:[%s253 + $0xf00] sm:$0xff] %v7343
          %7856 = vst [vmem:[%s253 + $0xf08] sm:$0xff] %v7344
          %7857 = vst [vmem:[%s253 + $0xf10] sm:$0xff] %v7345
          %7858 = vst [vmem:[%s253 + $0xf18] sm:$0xff] %v7346
          %7859 = vst [vmem:[%s253 + $0xf20] sm:$0xff] %v7347
          %7860 = vst [vmem:[%s253 + $0xf28] sm:$0xff] %v7348
          %7861 = vst [vmem:[%s253 + $0xf30] sm:$0xff] %v7349
          %7862 = vst [vmem:[%s253 + $0xf38] sm:$0xff] %v7350
          %7863 = vst [vmem:[%s253 + $0xf40] sm:$0xff] %v7351
          %7864 = vst [vmem:[%s253 + $0xf48] sm:$0xff] %v7352
          %7865 = vst [vmem:[%s253 + $0xf50] sm:$0xff] %v7353
          %7866 = vst [vmem:[%s253 + $0xf58] sm:$0xff] %v7354
          %7867 = vst [vmem:[%s253 + $0xf60] sm:$0xff] %v7355
          %7868 = vst [vmem:[%s253 + $0xf68] sm:$0xff] %v7356
          %7869 = vst [vmem:[%s253 + $0xf70] sm:$0xff] %v7357
          %7870 = vst [vmem:[%s253 + $0xf78] sm:$0xff] %v7358
          %7871 = vst [vmem:[%s253 + $0xf80] sm:$0xff] %v7359
          %7872 = vst [vmem:[%s253 + $0xf88] sm:$0xff] %v7360
          %7873 = vst [vmem:[%s253 + $0xf90] sm:$0xff] %v7361
          %7874 = vst [vmem:[%s253 + $0xf98] sm:$0xff] %v7362
          %7875 = vst [vmem:[%s253 + $0xfa0] sm:$0xff] %v7363
          %7876 = vst [vmem:[%s253 + $0xfa8] sm:$0xff] %v7364
          %7877 = vst [vmem:[%s253 + $0xfb0] sm:$0xff] %v7365
          %7878 = vst [vmem:[%s253 + $0xfb8] sm:$0xff] %v7366
          %7879 = vst [vmem:[%s253 + $0xfc0] sm:$0xff] %v7367
          %7880 = vst [vmem:[%s253 + $0xfc8] sm:$0xff] %v7368
          %7881 = vst [vmem:[%s253 + $0xfd0] sm:$0xff] %v7369
          %7882 = vst [vmem:[%s253 + $0xfd8] sm:$0xff] %v7370
          %7883 = vst [vmem:[%s253 + $0xfe0] sm:$0xff] %v7371
          %7884 = vst [vmem:[%s253 + $0xfe8] sm:$0xff] %v7372
          %7885 = vst [vmem:[%s253 + $0xff0] sm:$0xff] %v7373
          %7886 = vst [vmem:[%s253 + $0xff8] sm:$0xff] %v7374
        $region40: #{gp_train_forward.1} parent=35 // pred_fallthru
          _
        %p7887 = pneg %p5695
        // Predicated region
        $region41: #{gp_train_forward.1} parent=35 // pred_check
          _
        $region42: #{gp_train_forward.1} parent=35 // pred_check_branch
          %7889 = sbr.rel (%p5695) target = $region44
        $region43: #{gp_train_forward.1} parent=35 // pred_region
          %7890 = vst [vmem:[%s253] sm:$0xff] %v4667
          %7891 = vst [vmem:[%s253 + $0x8] sm:$0xff] %v4669
          %7892 = vst [vmem:[%s253 + $0x10] sm:$0xff] %v4671
          %7893 = vst [vmem:[%s253 + $0x18] sm:$0xff] %v4673
          %7894 = vst [vmem:[%s253 + $0x20] sm:$0xff] %v4675
          %7895 = vst [vmem:[%s253 + $0x28] sm:$0xff] %v4677
          %7896 = vst [vmem:[%s253 + $0x30] sm:$0xff] %v4679
          %7897 = vst [vmem:[%s253 + $0x38] sm:$0xff] %v4681
          %7898 = vst [vmem:[%s253 + $0x40] sm:$0xff] %v4683
          %7899 = vst [vmem:[%s253 + $0x48] sm:$0xff] %v4685
          %7900 = vst [vmem:[%s253 + $0x50] sm:$0xff] %v4687
          %7901 = vst [vmem:[%s253 + $0x58] sm:$0xff] %v4689
          %7902 = vst [vmem:[%s253 + $0x60] sm:$0xff] %v4691
          %7903 = vst [vmem:[%s253 + $0x68] sm:$0xff] %v4693
          %7904 = vst [vmem:[%s253 + $0x70] sm:$0xff] %v4695
          %7905 = vst [vmem:[%s253 + $0x78] sm:$0xff] %v4697
          %7906 = vst [vmem:[%s253 + $0x80] sm:$0xff] %v4699
          %7907 = vst [vmem:[%s253 + $0x88] sm:$0xff] %v4701
          %7908 = vst [vmem:[%s253 + $0x90] sm:$0xff] %v4703
          %7909 = vst [vmem:[%s253 + $0x98] sm:$0xff] %v4705
          %7910 = vst [vmem:[%s253 + $0xa0] sm:$0xff] %v4707
          %7911 = vst [vmem:[%s253 + $0xa8] sm:$0xff] %v4709
          %7912 = vst [vmem:[%s253 + $0xb0] sm:$0xff] %v4711
          %7913 = vst [vmem:[%s253 + $0xb8] sm:$0xff] %v4713
          %7914 = vst [vmem:[%s253 + $0xc0] sm:$0xff] %v4715
          %7915 = vst [vmem:[%s253 + $0xc8] sm:$0xff] %v4717
          %7916 = vst [vmem:[%s253 + $0xd0] sm:$0xff] %v4719
          %7917 = vst [vmem:[%s253 + $0xd8] sm:$0xff] %v4721
          %7918 = vst [vmem:[%s253 + $0xe0] sm:$0xff] %v4723
          %7919 = vst [vmem:[%s253 + $0xe8] sm:$0xff] %v4725
          %7920 = vst [vmem:[%s253 + $0xf0] sm:$0xff] %v4727
          %7921 = vst [vmem:[%s253 + $0xf8] sm:$0xff] %v4729
          %7922 = vst [vmem:[%s253 + $0x100] sm:$0xff] %v4731
          %7923 = vst [vmem:[%s253 + $0x108] sm:$0xff] %v4733
          %7924 = vst [vmem:[%s253 + $0x110] sm:$0xff] %v4735
          %7925 = vst [vmem:[%s253 + $0x118] sm:$0xff] %v4737
          %7926 = vst [vmem:[%s253 + $0x120] sm:$0xff] %v4739
          %7927 = vst [vmem:[%s253 + $0x128] sm:$0xff] %v4741
          %7928 = vst [vmem:[%s253 + $0x130] sm:$0xff] %v4743
          %7929 = vst [vmem:[%s253 + $0x138] sm:$0xff] %v4745
          %7930 = vst [vmem:[%s253 + $0x140] sm:$0xff] %v4747
          %7931 = vst [vmem:[%s253 + $0x148] sm:$0xff] %v4749
          %7932 = vst [vmem:[%s253 + $0x150] sm:$0xff] %v4751
          %7933 = vst [vmem:[%s253 + $0x158] sm:$0xff] %v4753
          %7934 = vst [vmem:[%s253 + $0x160] sm:$0xff] %v4755
          %7935 = vst [vmem:[%s253 + $0x168] sm:$0xff] %v4757
          %7936 = vst [vmem:[%s253 + $0x170] sm:$0xff] %v4759
          %7937 = vst [vmem:[%s253 + $0x178] sm:$0xff] %v4761
          %7938 = vst [vmem:[%s253 + $0x180] sm:$0xff] %v4763
          %7939 = vst [vmem:[%s253 + $0x188] sm:$0xff] %v4765
          %7940 = vst [vmem:[%s253 + $0x190] sm:$0xff] %v4767
          %7941 = vst [vmem:[%s253 + $0x198] sm:$0xff] %v4769
          %7942 = vst [vmem:[%s253 + $0x1a0] sm:$0xff] %v4771
          %7943 = vst [vmem:[%s253 + $0x1a8] sm:$0xff] %v4773
          %7944 = vst [vmem:[%s253 + $0x1b0] sm:$0xff] %v4775
          %7945 = vst [vmem:[%s253 + $0x1b8] sm:$0xff] %v4777
          %7946 = vst [vmem:[%s253 + $0x1c0] sm:$0xff] %v4779
          %7947 = vst [vmem:[%s253 + $0x1c8] sm:$0xff] %v4781
          %7948 = vst [vmem:[%s253 + $0x1d0] sm:$0xff] %v4783
          %7949 = vst [vmem:[%s253 + $0x1d8] sm:$0xff] %v4785
          %7950 = vst [vmem:[%s253 + $0x1e0] sm:$0xff] %v4787
          %7951 = vst [vmem:[%s253 + $0x1e8] sm:$0xff] %v4789
          %7952 = vst [vmem:[%s253 + $0x1f0] sm:$0xff] %v4791
          %7953 = vst [vmem:[%s253 + $0x1f8] sm:$0xff] %v4793
          %7954 = vst [vmem:[%s253 + $0x200] sm:$0xff] %v4795
          %7955 = vst [vmem:[%s253 + $0x208] sm:$0xff] %v4797
          %7956 = vst [vmem:[%s253 + $0x210] sm:$0xff] %v4799
          %7957 = vst [vmem:[%s253 + $0x218] sm:$0xff] %v4801
          %7958 = vst [vmem:[%s253 + $0x220] sm:$0xff] %v4803
          %7959 = vst [vmem:[%s253 + $0x228] sm:$0xff] %v4805
          %7960 = vst [vmem:[%s253 + $0x230] sm:$0xff] %v4807
          %7961 = vst [vmem:[%s253 + $0x238] sm:$0xff] %v4809
          %7962 = vst [vmem:[%s253 + $0x240] sm:$0xff] %v4811
          %7963 = vst [vmem:[%s253 + $0x248] sm:$0xff] %v4813
          %7964 = vst [vmem:[%s253 + $0x250] sm:$0xff] %v4815
          %7965 = vst [vmem:[%s253 + $0x258] sm:$0xff] %v4817
          %7966 = vst [vmem:[%s253 + $0x260] sm:$0xff] %v4819
          %7967 = vst [vmem:[%s253 + $0x268] sm:$0xff] %v4821
          %7968 = vst [vmem:[%s253 + $0x270] sm:$0xff] %v4823
          %7969 = vst [vmem:[%s253 + $0x278] sm:$0xff] %v4825
          %7970 = vst [vmem:[%s253 + $0x280] sm:$0xff] %v4827
          %7971 = vst [vmem:[%s253 + $0x288] sm:$0xff] %v4829
          %7972 = vst [vmem:[%s253 + $0x290] sm:$0xff] %v4831
          %7973 = vst [vmem:[%s253 + $0x298] sm:$0xff] %v4833
          %7974 = vst [vmem:[%s253 + $0x2a0] sm:$0xff] %v4835
          %7975 = vst [vmem:[%s253 + $0x2a8] sm:$0xff] %v4837
          %7976 = vst [vmem:[%s253 + $0x2b0] sm:$0xff] %v4839
          %7977 = vst [vmem:[%s253 + $0x2b8] sm:$0xff] %v4841
          %7978 = vst [vmem:[%s253 + $0x2c0] sm:$0xff] %v4843
          %7979 = vst [vmem:[%s253 + $0x2c8] sm:$0xff] %v4845
          %7980 = vst [vmem:[%s253 + $0x2d0] sm:$0xff] %v4847
          %7981 = vst [vmem:[%s253 + $0x2d8] sm:$0xff] %v4849
          %7982 = vst [vmem:[%s253 + $0x2e0] sm:$0xff] %v4851
          %7983 = vst [vmem:[%s253 + $0x2e8] sm:$0xff] %v4853
          %7984 = vst [vmem:[%s253 + $0x2f0] sm:$0xff] %v4855
          %7985 = vst [vmem:[%s253 + $0x2f8] sm:$0xff] %v4857
          %7986 = vst [vmem:[%s253 + $0x300] sm:$0xff] %v4859
          %7987 = vst [vmem:[%s253 + $0x308] sm:$0xff] %v4861
          %7988 = vst [vmem:[%s253 + $0x310] sm:$0xff] %v4863
          %7989 = vst [vmem:[%s253 + $0x318] sm:$0xff] %v4865
          %7990 = vst [vmem:[%s253 + $0x320] sm:$0xff] %v4867
          %7991 = vst [vmem:[%s253 + $0x328] sm:$0xff] %v4869
          %7992 = vst [vmem:[%s253 + $0x330] sm:$0xff] %v4871
          %7993 = vst [vmem:[%s253 + $0x338] sm:$0xff] %v4873
          %7994 = vst [vmem:[%s253 + $0x340] sm:$0xff] %v4875
          %7995 = vst [vmem:[%s253 + $0x348] sm:$0xff] %v4877
          %7996 = vst [vmem:[%s253 + $0x350] sm:$0xff] %v4879
          %7997 = vst [vmem:[%s253 + $0x358] sm:$0xff] %v4881
          %7998 = vst [vmem:[%s253 + $0x360] sm:$0xff] %v4883
          %7999 = vst [vmem:[%s253 + $0x368] sm:$0xff] %v4885
          %8000 = vst [vmem:[%s253 + $0x370] sm:$0xff] %v4887
          %8001 = vst [vmem:[%s253 + $0x378] sm:$0xff] %v4889
          %8002 = vst [vmem:[%s253 + $0x380] sm:$0xff] %v4891
          %8003 = vst [vmem:[%s253 + $0x388] sm:$0xff] %v4893
          %8004 = vst [vmem:[%s253 + $0x390] sm:$0xff] %v4895
          %8005 = vst [vmem:[%s253 + $0x398] sm:$0xff] %v4897
          %8006 = vst [vmem:[%s253 + $0x3a0] sm:$0xff] %v4899
          %8007 = vst [vmem:[%s253 + $0x3a8] sm:$0xff] %v4901
          %8008 = vst [vmem:[%s253 + $0x3b0] sm:$0xff] %v4903
          %8009 = vst [vmem:[%s253 + $0x3b8] sm:$0xff] %v4905
          %8010 = vst [vmem:[%s253 + $0x3c0] sm:$0xff] %v4907
          %8011 = vst [vmem:[%s253 + $0x3c8] sm:$0xff] %v4909
          %8012 = vst [vmem:[%s253 + $0x3d0] sm:$0xff] %v4911
          %8013 = vst [vmem:[%s253 + $0x3d8] sm:$0xff] %v4913
          %8014 = vst [vmem:[%s253 + $0x3e0] sm:$0xff] %v4915
          %8015 = vst [vmem:[%s253 + $0x3e8] sm:$0xff] %v4917
          %8016 = vst [vmem:[%s253 + $0x3f0] sm:$0xff] %v4919
          %8017 = vst [vmem:[%s253 + $0x3f8] sm:$0xff] %v4921
          %8018 = vst [vmem:[%s253 + $0x400] sm:$0xff] %v4923
          %8019 = vst [vmem:[%s253 + $0x408] sm:$0xff] %v4925
          %8020 = vst [vmem:[%s253 + $0x410] sm:$0xff] %v4927
          %8021 = vst [vmem:[%s253 + $0x418] sm:$0xff] %v4929
          %8022 = vst [vmem:[%s253 + $0x420] sm:$0xff] %v4931
          %8023 = vst [vmem:[%s253 + $0x428] sm:$0xff] %v4933
          %8024 = vst [vmem:[%s253 + $0x430] sm:$0xff] %v4935
          %8025 = vst [vmem:[%s253 + $0x438] sm:$0xff] %v4937
          %8026 = vst [vmem:[%s253 + $0x440] sm:$0xff] %v4939
          %8027 = vst [vmem:[%s253 + $0x448] sm:$0xff] %v4941
          %8028 = vst [vmem:[%s253 + $0x450] sm:$0xff] %v4943
          %8029 = vst [vmem:[%s253 + $0x458] sm:$0xff] %v4945
          %8030 = vst [vmem:[%s253 + $0x460] sm:$0xff] %v4947
          %8031 = vst [vmem:[%s253 + $0x468] sm:$0xff] %v4949
          %8032 = vst [vmem:[%s253 + $0x470] sm:$0xff] %v4951
          %8033 = vst [vmem:[%s253 + $0x478] sm:$0xff] %v4953
          %8034 = vst [vmem:[%s253 + $0x480] sm:$0xff] %v4955
          %8035 = vst [vmem:[%s253 + $0x488] sm:$0xff] %v4957
          %8036 = vst [vmem:[%s253 + $0x490] sm:$0xff] %v4959
          %8037 = vst [vmem:[%s253 + $0x498] sm:$0xff] %v4961
          %8038 = vst [vmem:[%s253 + $0x4a0] sm:$0xff] %v4963
          %8039 = vst [vmem:[%s253 + $0x4a8] sm:$0xff] %v4965
          %8040 = vst [vmem:[%s253 + $0x4b0] sm:$0xff] %v4967
          %8041 = vst [vmem:[%s253 + $0x4b8] sm:$0xff] %v4969
          %8042 = vst [vmem:[%s253 + $0x4c0] sm:$0xff] %v4971
          %8043 = vst [vmem:[%s253 + $0x4c8] sm:$0xff] %v4973
          %8044 = vst [vmem:[%s253 + $0x4d0] sm:$0xff] %v4975
          %8045 = vst [vmem:[%s253 + $0x4d8] sm:$0xff] %v4977
          %8046 = vst [vmem:[%s253 + $0x4e0] sm:$0xff] %v4979
          %8047 = vst [vmem:[%s253 + $0x4e8] sm:$0xff] %v4981
          %8048 = vst [vmem:[%s253 + $0x4f0] sm:$0xff] %v4983
          %8049 = vst [vmem:[%s253 + $0x4f8] sm:$0xff] %v4985
          %8050 = vst [vmem:[%s253 + $0x500] sm:$0xff] %v4987
          %8051 = vst [vmem:[%s253 + $0x508] sm:$0xff] %v4989
          %8052 = vst [vmem:[%s253 + $0x510] sm:$0xff] %v4991
          %8053 = vst [vmem:[%s253 + $0x518] sm:$0xff] %v4993
          %8054 = vst [vmem:[%s253 + $0x520] sm:$0xff] %v4995
          %8055 = vst [vmem:[%s253 + $0x528] sm:$0xff] %v4997
          %8056 = vst [vmem:[%s253 + $0x530] sm:$0xff] %v4999
          %8057 = vst [vmem:[%s253 + $0x538] sm:$0xff] %v5001
          %8058 = vst [vmem:[%s253 + $0x540] sm:$0xff] %v5003
          %8059 = vst [vmem:[%s253 + $0x548] sm:$0xff] %v5005
          %8060 = vst [vmem:[%s253 + $0x550] sm:$0xff] %v5007
          %8061 = vst [vmem:[%s253 + $0x558] sm:$0xff] %v5009
          %8062 = vst [vmem:[%s253 + $0x560] sm:$0xff] %v5011
          %8063 = vst [vmem:[%s253 + $0x568] sm:$0xff] %v5013
          %8064 = vst [vmem:[%s253 + $0x570] sm:$0xff] %v5015
          %8065 = vst [vmem:[%s253 + $0x578] sm:$0xff] %v5017
          %8066 = vst [vmem:[%s253 + $0x580] sm:$0xff] %v5019
          %8067 = vst [vmem:[%s253 + $0x588] sm:$0xff] %v5021
          %8068 = vst [vmem:[%s253 + $0x590] sm:$0xff] %v5023
          %8069 = vst [vmem:[%s253 + $0x598] sm:$0xff] %v5025
          %8070 = vst [vmem:[%s253 + $0x5a0] sm:$0xff] %v5027
          %8071 = vst [vmem:[%s253 + $0x5a8] sm:$0xff] %v5029
          %8072 = vst [vmem:[%s253 + $0x5b0] sm:$0xff] %v5031
          %8073 = vst [vmem:[%s253 + $0x5b8] sm:$0xff] %v5033
          %8074 = vst [vmem:[%s253 + $0x5c0] sm:$0xff] %v5035
          %8075 = vst [vmem:[%s253 + $0x5c8] sm:$0xff] %v5037
          %8076 = vst [vmem:[%s253 + $0x5d0] sm:$0xff] %v5039
          %8077 = vst [vmem:[%s253 + $0x5d8] sm:$0xff] %v5041
          %8078 = vst [vmem:[%s253 + $0x5e0] sm:$0xff] %v5043
          %8079 = vst [vmem:[%s253 + $0x5e8] sm:$0xff] %v5045
          %8080 = vst [vmem:[%s253 + $0x5f0] sm:$0xff] %v5047
          %8081 = vst [vmem:[%s253 + $0x5f8] sm:$0xff] %v5049
          %8082 = vst [vmem:[%s253 + $0x600] sm:$0xff] %v5051
          %8083 = vst [vmem:[%s253 + $0x608] sm:$0xff] %v5053
          %8084 = vst [vmem:[%s253 + $0x610] sm:$0xff] %v5055
          %8085 = vst [vmem:[%s253 + $0x618] sm:$0xff] %v5057
          %8086 = vst [vmem:[%s253 + $0x620] sm:$0xff] %v5059
          %8087 = vst [vmem:[%s253 + $0x628] sm:$0xff] %v5061
          %8088 = vst [vmem:[%s253 + $0x630] sm:$0xff] %v5063
          %8089 = vst [vmem:[%s253 + $0x638] sm:$0xff] %v5065
          %8090 = vst [vmem:[%s253 + $0x640] sm:$0xff] %v5067
          %8091 = vst [vmem:[%s253 + $0x648] sm:$0xff] %v5069
          %8092 = vst [vmem:[%s253 + $0x650] sm:$0xff] %v5071
          %8093 = vst [vmem:[%s253 + $0x658] sm:$0xff] %v5073
          %8094 = vst [vmem:[%s253 + $0x660] sm:$0xff] %v5075
          %8095 = vst [vmem:[%s253 + $0x668] sm:$0xff] %v5077
          %8096 = vst [vmem:[%s253 + $0x670] sm:$0xff] %v5079
          %8097 = vst [vmem:[%s253 + $0x678] sm:$0xff] %v5081
          %8098 = vst [vmem:[%s253 + $0x680] sm:$0xff] %v5083
          %8099 = vst [vmem:[%s253 + $0x688] sm:$0xff] %v5085
          %8100 = vst [vmem:[%s253 + $0x690] sm:$0xff] %v5087
          %8101 = vst [vmem:[%s253 + $0x698] sm:$0xff] %v5089
          %8102 = vst [vmem:[%s253 + $0x6a0] sm:$0xff] %v5091
          %8103 = vst [vmem:[%s253 + $0x6a8] sm:$0xff] %v5093
          %8104 = vst [vmem:[%s253 + $0x6b0] sm:$0xff] %v5095
          %8105 = vst [vmem:[%s253 + $0x6b8] sm:$0xff] %v5097
          %8106 = vst [vmem:[%s253 + $0x6c0] sm:$0xff] %v5099
          %8107 = vst [vmem:[%s253 + $0x6c8] sm:$0xff] %v5101
          %8108 = vst [vmem:[%s253 + $0x6d0] sm:$0xff] %v5103
          %8109 = vst [vmem:[%s253 + $0x6d8] sm:$0xff] %v5105
          %8110 = vst [vmem:[%s253 + $0x6e0] sm:$0xff] %v5107
          %8111 = vst [vmem:[%s253 + $0x6e8] sm:$0xff] %v5109
          %8112 = vst [vmem:[%s253 + $0x6f0] sm:$0xff] %v5111
          %8113 = vst [vmem:[%s253 + $0x6f8] sm:$0xff] %v5113
          %8114 = vst [vmem:[%s253 + $0x700] sm:$0xff] %v5115
          %8115 = vst [vmem:[%s253 + $0x708] sm:$0xff] %v5117
          %8116 = vst [vmem:[%s253 + $0x710] sm:$0xff] %v5119
          %8117 = vst [vmem:[%s253 + $0x718] sm:$0xff] %v5121
          %8118 = vst [vmem:[%s253 + $0x720] sm:$0xff] %v5123
          %8119 = vst [vmem:[%s253 + $0x728] sm:$0xff] %v5125
          %8120 = vst [vmem:[%s253 + $0x730] sm:$0xff] %v5127
          %8121 = vst [vmem:[%s253 + $0x738] sm:$0xff] %v5129
          %8122 = vst [vmem:[%s253 + $0x740] sm:$0xff] %v5131
          %8123 = vst [vmem:[%s253 + $0x748] sm:$0xff] %v5133
          %8124 = vst [vmem:[%s253 + $0x750] sm:$0xff] %v5135
          %8125 = vst [vmem:[%s253 + $0x758] sm:$0xff] %v5137
          %8126 = vst [vmem:[%s253 + $0x760] sm:$0xff] %v5139
          %8127 = vst [vmem:[%s253 + $0x768] sm:$0xff] %v5141
          %8128 = vst [vmem:[%s253 + $0x770] sm:$0xff] %v5143
          %8129 = vst [vmem:[%s253 + $0x778] sm:$0xff] %v5145
          %8130 = vst [vmem:[%s253 + $0x780] sm:$0xff] %v5147
          %8131 = vst [vmem:[%s253 + $0x788] sm:$0xff] %v5149
          %8132 = vst [vmem:[%s253 + $0x790] sm:$0xff] %v5151
          %8133 = vst [vmem:[%s253 + $0x798] sm:$0xff] %v5153
          %8134 = vst [vmem:[%s253 + $0x7a0] sm:$0xff] %v5155
          %8135 = vst [vmem:[%s253 + $0x7a8] sm:$0xff] %v5157
          %8136 = vst [vmem:[%s253 + $0x7b0] sm:$0xff] %v5159
          %8137 = vst [vmem:[%s253 + $0x7b8] sm:$0xff] %v5161
          %8138 = vst [vmem:[%s253 + $0x7c0] sm:$0xff] %v5163
          %8139 = vst [vmem:[%s253 + $0x7c8] sm:$0xff] %v5165
          %8140 = vst [vmem:[%s253 + $0x7d0] sm:$0xff] %v5167
          %8141 = vst [vmem:[%s253 + $0x7d8] sm:$0xff] %v5169
          %8142 = vst [vmem:[%s253 + $0x7e0] sm:$0xff] %v5171
          %8143 = vst [vmem:[%s253 + $0x7e8] sm:$0xff] %v5173
          %8144 = vst [vmem:[%s253 + $0x7f0] sm:$0xff] %v5175
          %8145 = vst [vmem:[%s253 + $0x7f8] sm:$0xff] %v5177
          %8146 = vst [vmem:[%s253 + $0x800] sm:$0xff] %v5179
          %8147 = vst [vmem:[%s253 + $0x808] sm:$0xff] %v5181
          %8148 = vst [vmem:[%s253 + $0x810] sm:$0xff] %v5183
          %8149 = vst [vmem:[%s253 + $0x818] sm:$0xff] %v5185
          %8150 = vst [vmem:[%s253 + $0x820] sm:$0xff] %v5187
          %8151 = vst [vmem:[%s253 + $0x828] sm:$0xff] %v5189
          %8152 = vst [vmem:[%s253 + $0x830] sm:$0xff] %v5191
          %8153 = vst [vmem:[%s253 + $0x838] sm:$0xff] %v5193
          %8154 = vst [vmem:[%s253 + $0x840] sm:$0xff] %v5195
          %8155 = vst [vmem:[%s253 + $0x848] sm:$0xff] %v5197
          %8156 = vst [vmem:[%s253 + $0x850] sm:$0xff] %v5199
          %8157 = vst [vmem:[%s253 + $0x858] sm:$0xff] %v5201
          %8158 = vst [vmem:[%s253 + $0x860] sm:$0xff] %v5203
          %8159 = vst [vmem:[%s253 + $0x868] sm:$0xff] %v5205
          %8160 = vst [vmem:[%s253 + $0x870] sm:$0xff] %v5207
          %8161 = vst [vmem:[%s253 + $0x878] sm:$0xff] %v5209
          %8162 = vst [vmem:[%s253 + $0x880] sm:$0xff] %v5211
          %8163 = vst [vmem:[%s253 + $0x888] sm:$0xff] %v5213
          %8164 = vst [vmem:[%s253 + $0x890] sm:$0xff] %v5215
          %8165 = vst [vmem:[%s253 + $0x898] sm:$0xff] %v5217
          %8166 = vst [vmem:[%s253 + $0x8a0] sm:$0xff] %v5219
          %8167 = vst [vmem:[%s253 + $0x8a8] sm:$0xff] %v5221
          %8168 = vst [vmem:[%s253 + $0x8b0] sm:$0xff] %v5223
          %8169 = vst [vmem:[%s253 + $0x8b8] sm:$0xff] %v5225
          %8170 = vst [vmem:[%s253 + $0x8c0] sm:$0xff] %v5227
          %8171 = vst [vmem:[%s253 + $0x8c8] sm:$0xff] %v5229
          %8172 = vst [vmem:[%s253 + $0x8d0] sm:$0xff] %v5231
          %8173 = vst [vmem:[%s253 + $0x8d8] sm:$0xff] %v5233
          %8174 = vst [vmem:[%s253 + $0x8e0] sm:$0xff] %v5235
          %8175 = vst [vmem:[%s253 + $0x8e8] sm:$0xff] %v5237
          %8176 = vst [vmem:[%s253 + $0x8f0] sm:$0xff] %v5239
          %8177 = vst [vmem:[%s253 + $0x8f8] sm:$0xff] %v5241
          %8178 = vst [vmem:[%s253 + $0x900] sm:$0xff] %v5243
          %8179 = vst [vmem:[%s253 + $0x908] sm:$0xff] %v5245
          %8180 = vst [vmem:[%s253 + $0x910] sm:$0xff] %v5247
          %8181 = vst [vmem:[%s253 + $0x918] sm:$0xff] %v5249
          %8182 = vst [vmem:[%s253 + $0x920] sm:$0xff] %v5251
          %8183 = vst [vmem:[%s253 + $0x928] sm:$0xff] %v5253
          %8184 = vst [vmem:[%s253 + $0x930] sm:$0xff] %v5255
          %8185 = vst [vmem:[%s253 + $0x938] sm:$0xff] %v5257
          %8186 = vst [vmem:[%s253 + $0x940] sm:$0xff] %v5259
          %8187 = vst [vmem:[%s253 + $0x948] sm:$0xff] %v5261
          %8188 = vst [vmem:[%s253 + $0x950] sm:$0xff] %v5263
          %8189 = vst [vmem:[%s253 + $0x958] sm:$0xff] %v5265
          %8190 = vst [vmem:[%s253 + $0x960] sm:$0xff] %v5267
          %8191 = vst [vmem:[%s253 + $0x968] sm:$0xff] %v5269
          %8192 = vst [vmem:[%s253 + $0x970] sm:$0xff] %v5271
          %8193 = vst [vmem:[%s253 + $0x978] sm:$0xff] %v5273
          %8194 = vst [vmem:[%s253 + $0x980] sm:$0xff] %v5275
          %8195 = vst [vmem:[%s253 + $0x988] sm:$0xff] %v5277
          %8196 = vst [vmem:[%s253 + $0x990] sm:$0xff] %v5279
          %8197 = vst [vmem:[%s253 + $0x998] sm:$0xff] %v5281
          %8198 = vst [vmem:[%s253 + $0x9a0] sm:$0xff] %v5283
          %8199 = vst [vmem:[%s253 + $0x9a8] sm:$0xff] %v5285
          %8200 = vst [vmem:[%s253 + $0x9b0] sm:$0xff] %v5287
          %8201 = vst [vmem:[%s253 + $0x9b8] sm:$0xff] %v5289
          %8202 = vst [vmem:[%s253 + $0x9c0] sm:$0xff] %v5291
          %8203 = vst [vmem:[%s253 + $0x9c8] sm:$0xff] %v5293
          %8204 = vst [vmem:[%s253 + $0x9d0] sm:$0xff] %v5295
          %8205 = vst [vmem:[%s253 + $0x9d8] sm:$0xff] %v5297
          %8206 = vst [vmem:[%s253 + $0x9e0] sm:$0xff] %v5299
          %8207 = vst [vmem:[%s253 + $0x9e8] sm:$0xff] %v5301
          %8208 = vst [vmem:[%s253 + $0x9f0] sm:$0xff] %v5303
          %8209 = vst [vmem:[%s253 + $0x9f8] sm:$0xff] %v5305
          %8210 = vst [vmem:[%s253 + $0xa00] sm:$0xff] %v5307
          %8211 = vst [vmem:[%s253 + $0xa08] sm:$0xff] %v5309
          %8212 = vst [vmem:[%s253 + $0xa10] sm:$0xff] %v5311
          %8213 = vst [vmem:[%s253 + $0xa18] sm:$0xff] %v5313
          %8214 = vst [vmem:[%s253 + $0xa20] sm:$0xff] %v5315
          %8215 = vst [vmem:[%s253 + $0xa28] sm:$0xff] %v5317
          %8216 = vst [vmem:[%s253 + $0xa30] sm:$0xff] %v5319
          %8217 = vst [vmem:[%s253 + $0xa38] sm:$0xff] %v5321
          %8218 = vst [vmem:[%s253 + $0xa40] sm:$0xff] %v5323
          %8219 = vst [vmem:[%s253 + $0xa48] sm:$0xff] %v5325
          %8220 = vst [vmem:[%s253 + $0xa50] sm:$0xff] %v5327
          %8221 = vst [vmem:[%s253 + $0xa58] sm:$0xff] %v5329
          %8222 = vst [vmem:[%s253 + $0xa60] sm:$0xff] %v5331
          %8223 = vst [vmem:[%s253 + $0xa68] sm:$0xff] %v5333
          %8224 = vst [vmem:[%s253 + $0xa70] sm:$0xff] %v5335
          %8225 = vst [vmem:[%s253 + $0xa78] sm:$0xff] %v5337
          %8226 = vst [vmem:[%s253 + $0xa80] sm:$0xff] %v5339
          %8227 = vst [vmem:[%s253 + $0xa88] sm:$0xff] %v5341
          %8228 = vst [vmem:[%s253 + $0xa90] sm:$0xff] %v5343
          %8229 = vst [vmem:[%s253 + $0xa98] sm:$0xff] %v5345
          %8230 = vst [vmem:[%s253 + $0xaa0] sm:$0xff] %v5347
          %8231 = vst [vmem:[%s253 + $0xaa8] sm:$0xff] %v5349
          %8232 = vst [vmem:[%s253 + $0xab0] sm:$0xff] %v5351
          %8233 = vst [vmem:[%s253 + $0xab8] sm:$0xff] %v5353
          %8234 = vst [vmem:[%s253 + $0xac0] sm:$0xff] %v5355
          %8235 = vst [vmem:[%s253 + $0xac8] sm:$0xff] %v5357
          %8236 = vst [vmem:[%s253 + $0xad0] sm:$0xff] %v5359
          %8237 = vst [vmem:[%s253 + $0xad8] sm:$0xff] %v5361
          %8238 = vst [vmem:[%s253 + $0xae0] sm:$0xff] %v5363
          %8239 = vst [vmem:[%s253 + $0xae8] sm:$0xff] %v5365
          %8240 = vst [vmem:[%s253 + $0xaf0] sm:$0xff] %v5367
          %8241 = vst [vmem:[%s253 + $0xaf8] sm:$0xff] %v5369
          %8242 = vst [vmem:[%s253 + $0xb00] sm:$0xff] %v5371
          %8243 = vst [vmem:[%s253 + $0xb08] sm:$0xff] %v5373
          %8244 = vst [vmem:[%s253 + $0xb10] sm:$0xff] %v5375
          %8245 = vst [vmem:[%s253 + $0xb18] sm:$0xff] %v5377
          %8246 = vst [vmem:[%s253 + $0xb20] sm:$0xff] %v5379
          %8247 = vst [vmem:[%s253 + $0xb28] sm:$0xff] %v5381
          %8248 = vst [vmem:[%s253 + $0xb30] sm:$0xff] %v5383
          %8249 = vst [vmem:[%s253 + $0xb38] sm:$0xff] %v5385
          %8250 = vst [vmem:[%s253 + $0xb40] sm:$0xff] %v5387
          %8251 = vst [vmem:[%s253 + $0xb48] sm:$0xff] %v5389
          %8252 = vst [vmem:[%s253 + $0xb50] sm:$0xff] %v5391
          %8253 = vst [vmem:[%s253 + $0xb58] sm:$0xff] %v5393
          %8254 = vst [vmem:[%s253 + $0xb60] sm:$0xff] %v5395
          %8255 = vst [vmem:[%s253 + $0xb68] sm:$0xff] %v5397
          %8256 = vst [vmem:[%s253 + $0xb70] sm:$0xff] %v5399
          %8257 = vst [vmem:[%s253 + $0xb78] sm:$0xff] %v5401
          %8258 = vst [vmem:[%s253 + $0xb80] sm:$0xff] %v5403
          %8259 = vst [vmem:[%s253 + $0xb88] sm:$0xff] %v5405
          %8260 = vst [vmem:[%s253 + $0xb90] sm:$0xff] %v5407
          %8261 = vst [vmem:[%s253 + $0xb98] sm:$0xff] %v5409
          %8262 = vst [vmem:[%s253 + $0xba0] sm:$0xff] %v5411
          %8263 = vst [vmem:[%s253 + $0xba8] sm:$0xff] %v5413
          %8264 = vst [vmem:[%s253 + $0xbb0] sm:$0xff] %v5415
          %8265 = vst [vmem:[%s253 + $0xbb8] sm:$0xff] %v5417
          %8266 = vst [vmem:[%s253 + $0xbc0] sm:$0xff] %v5419
          %8267 = vst [vmem:[%s253 + $0xbc8] sm:$0xff] %v5421
          %8268 = vst [vmem:[%s253 + $0xbd0] sm:$0xff] %v5423
          %8269 = vst [vmem:[%s253 + $0xbd8] sm:$0xff] %v5425
          %8270 = vst [vmem:[%s253 + $0xbe0] sm:$0xff] %v5427
          %8271 = vst [vmem:[%s253 + $0xbe8] sm:$0xff] %v5429
          %8272 = vst [vmem:[%s253 + $0xbf0] sm:$0xff] %v5431
          %8273 = vst [vmem:[%s253 + $0xbf8] sm:$0xff] %v5433
          %8274 = vst [vmem:[%s253 + $0xc00] sm:$0xff] %v5435
          %8275 = vst [vmem:[%s253 + $0xc08] sm:$0xff] %v5437
          %8276 = vst [vmem:[%s253 + $0xc10] sm:$0xff] %v5439
          %8277 = vst [vmem:[%s253 + $0xc18] sm:$0xff] %v5441
          %8278 = vst [vmem:[%s253 + $0xc20] sm:$0xff] %v5443
          %8279 = vst [vmem:[%s253 + $0xc28] sm:$0xff] %v5445
          %8280 = vst [vmem:[%s253 + $0xc30] sm:$0xff] %v5447
          %8281 = vst [vmem:[%s253 + $0xc38] sm:$0xff] %v5449
          %8282 = vst [vmem:[%s253 + $0xc40] sm:$0xff] %v5451
          %8283 = vst [vmem:[%s253 + $0xc48] sm:$0xff] %v5453
          %8284 = vst [vmem:[%s253 + $0xc50] sm:$0xff] %v5455
          %8285 = vst [vmem:[%s253 + $0xc58] sm:$0xff] %v5457
          %8286 = vst [vmem:[%s253 + $0xc60] sm:$0xff] %v5459
          %8287 = vst [vmem:[%s253 + $0xc68] sm:$0xff] %v5461
          %8288 = vst [vmem:[%s253 + $0xc70] sm:$0xff] %v5463
          %8289 = vst [vmem:[%s253 + $0xc78] sm:$0xff] %v5465
          %8290 = vst [vmem:[%s253 + $0xc80] sm:$0xff] %v5467
          %8291 = vst [vmem:[%s253 + $0xc88] sm:$0xff] %v5469
          %8292 = vst [vmem:[%s253 + $0xc90] sm:$0xff] %v5471
          %8293 = vst [vmem:[%s253 + $0xc98] sm:$0xff] %v5473
          %8294 = vst [vmem:[%s253 + $0xca0] sm:$0xff] %v5475
          %8295 = vst [vmem:[%s253 + $0xca8] sm:$0xff] %v5477
          %8296 = vst [vmem:[%s253 + $0xcb0] sm:$0xff] %v5479
          %8297 = vst [vmem:[%s253 + $0xcb8] sm:$0xff] %v5481
          %8298 = vst [vmem:[%s253 + $0xcc0] sm:$0xff] %v5483
          %8299 = vst [vmem:[%s253 + $0xcc8] sm:$0xff] %v5485
          %8300 = vst [vmem:[%s253 + $0xcd0] sm:$0xff] %v5487
          %8301 = vst [vmem:[%s253 + $0xcd8] sm:$0xff] %v5489
          %8302 = vst [vmem:[%s253 + $0xce0] sm:$0xff] %v5491
          %8303 = vst [vmem:[%s253 + $0xce8] sm:$0xff] %v5493
          %8304 = vst [vmem:[%s253 + $0xcf0] sm:$0xff] %v5495
          %8305 = vst [vmem:[%s253 + $0xcf8] sm:$0xff] %v5497
          %8306 = vst [vmem:[%s253 + $0xd00] sm:$0xff] %v5499
          %8307 = vst [vmem:[%s253 + $0xd08] sm:$0xff] %v5501
          %8308 = vst [vmem:[%s253 + $0xd10] sm:$0xff] %v5503
          %8309 = vst [vmem:[%s253 + $0xd18] sm:$0xff] %v5505
          %8310 = vst [vmem:[%s253 + $0xd20] sm:$0xff] %v5507
          %8311 = vst [vmem:[%s253 + $0xd28] sm:$0xff] %v5509
          %8312 = vst [vmem:[%s253 + $0xd30] sm:$0xff] %v5511
          %8313 = vst [vmem:[%s253 + $0xd38] sm:$0xff] %v5513
          %8314 = vst [vmem:[%s253 + $0xd40] sm:$0xff] %v5515
          %8315 = vst [vmem:[%s253 + $0xd48] sm:$0xff] %v5517
          %8316 = vst [vmem:[%s253 + $0xd50] sm:$0xff] %v5519
          %8317 = vst [vmem:[%s253 + $0xd58] sm:$0xff] %v5521
          %8318 = vst [vmem:[%s253 + $0xd60] sm:$0xff] %v5523
          %8319 = vst [vmem:[%s253 + $0xd68] sm:$0xff] %v5525
          %8320 = vst [vmem:[%s253 + $0xd70] sm:$0xff] %v5527
          %8321 = vst [vmem:[%s253 + $0xd78] sm:$0xff] %v5529
          %8322 = vst [vmem:[%s253 + $0xd80] sm:$0xff] %v5531
          %8323 = vst [vmem:[%s253 + $0xd88] sm:$0xff] %v5533
          %8324 = vst [vmem:[%s253 + $0xd90] sm:$0xff] %v5535
          %8325 = vst [vmem:[%s253 + $0xd98] sm:$0xff] %v5537
          %8326 = vst [vmem:[%s253 + $0xda0] sm:$0xff] %v5539
          %8327 = vst [vmem:[%s253 + $0xda8] sm:$0xff] %v5541
          %8328 = vst [vmem:[%s253 + $0xdb0] sm:$0xff] %v5543
          %8329 = vst [vmem:[%s253 + $0xdb8] sm:$0xff] %v5545
          %8330 = vst [vmem:[%s253 + $0xdc0] sm:$0xff] %v5547
          %8331 = vst [vmem:[%s253 + $0xdc8] sm:$0xff] %v5549
          %8332 = vst [vmem:[%s253 + $0xdd0] sm:$0xff] %v5551
          %8333 = vst [vmem:[%s253 + $0xdd8] sm:$0xff] %v5553
          %8334 = vst [vmem:[%s253 + $0xde0] sm:$0xff] %v5555
          %8335 = vst [vmem:[%s253 + $0xde8] sm:$0xff] %v5557
          %8336 = vst [vmem:[%s253 + $0xdf0] sm:$0xff] %v5559
          %8337 = vst [vmem:[%s253 + $0xdf8] sm:$0xff] %v5561
          %8338 = vst [vmem:[%s253 + $0xe00] sm:$0xff] %v5563
          %8339 = vst [vmem:[%s253 + $0xe08] sm:$0xff] %v5565
          %8340 = vst [vmem:[%s253 + $0xe10] sm:$0xff] %v5567
          %8341 = vst [vmem:[%s253 + $0xe18] sm:$0xff] %v5569
          %8342 = vst [vmem:[%s253 + $0xe20] sm:$0xff] %v5571
          %8343 = vst [vmem:[%s253 + $0xe28] sm:$0xff] %v5573
          %8344 = vst [vmem:[%s253 + $0xe30] sm:$0xff] %v5575
          %8345 = vst [vmem:[%s253 + $0xe38] sm:$0xff] %v5577
          %8346 = vst [vmem:[%s253 + $0xe40] sm:$0xff] %v5579
          %8347 = vst [vmem:[%s253 + $0xe48] sm:$0xff] %v5581
          %8348 = vst [vmem:[%s253 + $0xe50] sm:$0xff] %v5583
          %8349 = vst [vmem:[%s253 + $0xe58] sm:$0xff] %v5585
          %8350 = vst [vmem:[%s253 + $0xe60] sm:$0xff] %v5587
          %8351 = vst [vmem:[%s253 + $0xe68] sm:$0xff] %v5589
          %8352 = vst [vmem:[%s253 + $0xe70] sm:$0xff] %v5591
          %8353 = vst [vmem:[%s253 + $0xe78] sm:$0xff] %v5593
          %8354 = vst [vmem:[%s253 + $0xe80] sm:$0xff] %v5595
          %8355 = vst [vmem:[%s253 + $0xe88] sm:$0xff] %v5597
          %8356 = vst [vmem:[%s253 + $0xe90] sm:$0xff] %v5599
          %8357 = vst [vmem:[%s253 + $0xe98] sm:$0xff] %v5601
          %8358 = vst [vmem:[%s253 + $0xea0] sm:$0xff] %v5603
          %8359 = vst [vmem:[%s253 + $0xea8] sm:$0xff] %v5605
          %8360 = vst [vmem:[%s253 + $0xeb0] sm:$0xff] %v5607
          %8361 = vst [vmem:[%s253 + $0xeb8] sm:$0xff] %v5609
          %8362 = vst [vmem:[%s253 + $0xec0] sm:$0xff] %v5611
          %8363 = vst [vmem:[%s253 + $0xec8] sm:$0xff] %v5613
          %8364 = vst [vmem:[%s253 + $0xed0] sm:$0xff] %v5615
          %8365 = vst [vmem:[%s253 + $0xed8] sm:$0xff] %v5617
          %8366 = vst [vmem:[%s253 + $0xee0] sm:$0xff] %v5619
          %8367 = vst [vmem:[%s253 + $0xee8] sm:$0xff] %v5621
          %8368 = vst [vmem:[%s253 + $0xef0] sm:$0xff] %v5623
          %8369 = vst [vmem:[%s253 + $0xef8] sm:$0xff] %v5625
          %8370 = vst [vmem:[%s253 + $0xf00] sm:$0xff] %v5627
          %8371 = vst [vmem:[%s253 + $0xf08] sm:$0xff] %v5629
          %8372 = vst [vmem:[%s253 + $0xf10] sm:$0xff] %v5631
          %8373 = vst [vmem:[%s253 + $0xf18] sm:$0xff] %v5633
          %8374 = vst [vmem:[%s253 + $0xf20] sm:$0xff] %v5635
          %8375 = vst [vmem:[%s253 + $0xf28] sm:$0xff] %v5637
          %8376 = vst [vmem:[%s253 + $0xf30] sm:$0xff] %v5639
          %8377 = vst [vmem:[%s253 + $0xf38] sm:$0xff] %v5641
          %8378 = vst [vmem:[%s253 + $0xf40] sm:$0xff] %v5643
          %8379 = vst [vmem:[%s253 + $0xf48] sm:$0xff] %v5645
          %8380 = vst [vmem:[%s253 + $0xf50] sm:$0xff] %v5647
          %8381 = vst [vmem:[%s253 + $0xf58] sm:$0xff] %v5649
          %8382 = vst [vmem:[%s253 + $0xf60] sm:$0xff] %v5651
          %8383 = vst [vmem:[%s253 + $0xf68] sm:$0xff] %v5653
          %8384 = vst [vmem:[%s253 + $0xf70] sm:$0xff] %v5655
          %8385 = vst [vmem:[%s253 + $0xf78] sm:$0xff] %v5657
          %8386 = vst [vmem:[%s253 + $0xf80] sm:$0xff] %v5659
          %8387 = vst [vmem:[%s253 + $0xf88] sm:$0xff] %v5661
          %8388 = vst [vmem:[%s253 + $0xf90] sm:$0xff] %v5663
          %8389 = vst [vmem:[%s253 + $0xf98] sm:$0xff] %v5665
          %8390 = vst [vmem:[%s253 + $0xfa0] sm:$0xff] %v5667
          %8391 = vst [vmem:[%s253 + $0xfa8] sm:$0xff] %v5669
          %8392 = vst [vmem:[%s253 + $0xfb0] sm:$0xff] %v5671
          %8393 = vst [vmem:[%s253 + $0xfb8] sm:$0xff] %v5673
          %8394 = vst [vmem:[%s253 + $0xfc0] sm:$0xff] %v5675
          %8395 = vst [vmem:[%s253 + $0xfc8] sm:$0xff] %v5677
          %8396 = vst [vmem:[%s253 + $0xfd0] sm:$0xff] %v5679
          %8397 = vst [vmem:[%s253 + $0xfd8] sm:$0xff] %v5681
          %8398 = vst [vmem:[%s253 + $0xfe0] sm:$0xff] %v5683
          %8399 = vst [vmem:[%s253 + $0xfe8] sm:$0xff] %v5685
          %8400 = vst [vmem:[%s253 + $0xff0] sm:$0xff] %v5687
          %8401 = vst [vmem:[%s253 + $0xff8] sm:$0xff] %v5689
        $region44: #{gp_train_forward.1} parent=35 // pred_fallthru
          _
        %s8402 = sand.u32 %s146, 1
        %s8403 = scalar_lea.sflag [#allocation5], %s8402
        %s8404 = sand.u32 %s146, 1
        %s8405 = smul.addr %s8404, 4096
        %s8406 = scalar_lea.vmem [#allocation4], %s8405
        // Predicated region
        $region45: #{gp_train_forward.1} parent=35 // pred_check
          %p8407 = pneg %p156
        $region46: #{gp_train_forward.1} parent=35 // pred_check_branch
          %8409 = sbr.rel (%p8407) target = $region48
        $region47: #{gp_train_forward.1} parent=35 // pred_region
          %s8410 = smul.u32 64, %s24
          %s8411 = smul.u32 8, %s25
          %s8412 = ssub.s32 125, %s8410
          %p8413 = scmp.lt.s32.totalorder %s8412, 64
          %s8414 = scalar_select %p8413, %s8412, 64
          %s8415 = smul.u32 8, %s8414
          %s8416 = smul.u32 %s8415, 8
          %s8417 = ssub.s32 4096, %s8416
          %s8418 = sshll.u32 %s8417, 4
          %8419 = vsyncadd %s8403, %s8418
          %p8420 = scmp.ne.s32.totalorder 0, %s8416
          %s8421 = smul.addr %s8410, 8
          %s8422 = sadd.s32 %s8411, %s8421
          %s8423 = smul.addr %s8422, 8
          %s8424 = scalar_lea.hbm %s5, %s8423
          %s8425 = smul.u32 64, %s8414
          %s8426 = sshll.u32 %s8406, 4
          %s8427 = int_to_ptr.vmem [resolvable:$true] %s8426
          %s8428 = sshll.u32 %s8424, 4
          %s8429 = int_to_ptr.hbm [resolvable:$true] %s8428
          %s8430 = sshll.u32 %s8425, 4
          %8434 = dma.vmem_to_hbm [thread:$0]  (%p8420), %s8427, %s8430, %s8429, %s8403, 1024, 1024, 64
        $region48: #{gp_train_forward.1} parent=35 // pred_fallthru
          _
      $region36: #{gp_train_forward.1} parent=5 // pred_fallthru
        _
      %p8435 = scmp.le.s32.totalorder 2, %s15
      // Predicated region
      $region49: #{gp_train_forward.1} parent=5 // pred_check
        %p8436 = pneg %p8435
      $region50: #{gp_train_forward.1} parent=5 // pred_check_branch
        %8438 = sbr.rel (%p8436) target = $region52
      $region51: #{gp_train_forward.1} parent=5 // pred_region
        %s8439 = ssub.s32 %s15, 2
        // Predicated region
        $region53: #{gp_train_forward.1} parent=51 // pred_check
          %p8440 = pneg %p162
        $region54: #{gp_train_forward.1} parent=51 // pred_check_branch
          %8442 = sbr.rel (%p8440) target = $region56
        $region55: #{gp_train_forward.1} parent=51 // pred_region
          %s8443 = sand.u32 %s147, 1
          %s8444 = scalar_lea.sflag [#allocation5], %s8443
          %s8445 = sand.u32 %s147, 1
          %s8446 = smul.addr %s8445, 4096
          %s8447 = scalar_lea.vmem [#allocation4], %s8446
          %8449 = dma.done %s8444, 65536
        $region56: #{gp_train_forward.1} parent=51 // pred_fallthru
          _
      $region52: #{gp_train_forward.1} parent=5 // pred_fallthru
        _
    $region6: #{gp_train_forward.1} parent=1 // loop_footer
      %s19 = sadd.s32 1, %s15
    $region7: #{gp_train_forward.1} parent=1 // loop_footer_branch
      %14 = sbr.rel target = $region3
    $region8: #{gp_train_forward.1} parent=1 // loop_exit
      _
    %8450 = vsyncpa [#allocation5], 1
    %s8451 = scalar_lea.sflag [#allocation5], 1
    %8452 = vsyncpa %s8451, 1

</llo_original>
